<compile_context>
chip_gen: v7x
topology: tpu7x:2x2x1
jax: 0.10.0
libtpu: 0.0.40
codegen_flags: <defaults>
</compile_context>

<pallas_src>
import jax
import jax.numpy as jnp
from jax import lax
from jax.experimental import pallas as pl
from jax.experimental.pallas import tpu as pltpu

HIDDEN = 10        # hidden_size in the PyTorch module
HP = 128           # hidden padded to one full 128-lane tile
GP = 4 * HP        # gate axis padded: gates i/f/g/o at lane offsets 0/128/256/384


def _sigmoid_tanh(x):
    # single-EUP tanh form of sigmoid (avoids exp + reciprocal chain on EUP)
    return 0.5 * (1.0 + jnp.tanh(0.5 * x))


def _lstm_net_kernel(x_ref, y_ref,
                     gxs_ref, gxb_ref,        # folded layer-0 x-path consts (1, GP) f32
                     w_hh0_ref,                # (HP, GP)  bf16  layer-0 hidden->gates
                     w_ih1_ref, w_hh1_ref,     # (HP, GP)  bf16  layer-1 input/hidden->gates
                     b1_ref,                   # (1, GP)   f32
                     w_out_ref, b_out_ref,     # (1, HP), (1, 1) f32
                     pred_ref, loss_ref,       # outputs: (T, B), (1, 1)
                     gx0_ref, h1h_ref):        # scratch: (T, B, GP), (T, B, HP)
    T, B, _ = x_ref.shape

    # ---- prologue: whole x-path for layer 0, vectorized over all T ---------
    gx0_ref[...] = x_ref[...] * gxs_ref[...] + gxb_ref[...]       # (T, B, GP)

    def gates_to_hc(gates, c):
        # gate-aligned layout -> every slice below is a whole-vreg lane slice
        i = _sigmoid_tanh(gates[:, 0 * HP:1 * HP])
        f = _sigmoid_tanh(gates[:, 1 * HP:2 * HP])
        g = jnp.tanh(gates[:, 2 * HP:3 * HP])
        o = _sigmoid_tanh(gates[:, 3 * HP:4 * HP])
        c_new = f * c + i * g
        h_new = o * jnp.tanh(c_new)
        return h_new, c_new

    def step(t, carry):
        h0, c0, h1, c1 = carry
        # layer-1 hidden partial: depends only on h1 from the previous step,
        # so it is issued first and overlaps the layer-0 critical dot.
        part1 = jnp.dot(h1.astype(jnp.bfloat16), w_hh1_ref[...],
                        preferred_element_type=jnp.float32) + b1_ref[...]
        # layer 0: single dot (x-path precomputed in prologue)
        gates0 = jnp.dot(h0.astype(jnp.bfloat16), w_hh0_ref[...],
                         preferred_element_type=jnp.float32) + gx0_ref[t]
        h0, c0 = gates_to_hc(gates0, c0)
        # TODO(synk): inter-layer dropout (config.dropout) omitted — inference semantics.
        # layer 1: only the h0-dependent dot remains on the critical path (K=128)
        gates1 = part1 + jnp.dot(h0.astype(jnp.bfloat16), w_ih1_ref[...],
                                 preferred_element_type=jnp.float32)
        h1, c1 = gates_to_hc(gates1, c1)
        h1h_ref[t] = h1
        return (h0, c0, h1, c1)

    zeros = jnp.zeros((B, HP), jnp.float32)
    lax.fori_loop(0, T, step, (zeros, zeros, zeros, zeros), unroll=True)

    # ---- epilogue: output Linear(H,1) + MSE, one vectorized shot -----------
    h1_all = h1h_ref[...]                                           # (T, B, HP)
    pred = jnp.sum(h1_all * w_out_ref[...], axis=-1) + b_out_ref[...]   # (T, B)
    pred_ref[...] = pred
    diff = y_ref[...] - pred
    loss_ref[...] = jnp.reshape(jnp.sum(diff * diff) * (1.0 / (T * B)), (1, 1))


def init_params(key):
    """Deterministic init mirroring PyTorch default U(-1/sqrt(fan_in), +...)."""
    H = HIDDEN
    ks = jax.random.split(key, 12)

    def u(k, shape, fan_in):
        bound = 1.0 / float(fan_in) ** 0.5
        return jax.random.uniform(k, shape, jnp.float32, -bound, bound)

    return dict(
        w_in=u(ks[0], (1, H), 1),        # nn.Linear(1, H).weight^T
        b_in=u(ks[1], (1, H), 1),
        w_ih0=u(ks[2], (H, 4 * H), H),   # lstm.weight_ih_l0^T
        w_hh0=u(ks[3], (H, 4 * H), H),   # lstm.weight_hh_l0^T
        b0=u(ks[4], (1, 4 * H), H) + u(ks[5], (1, 4 * H), H),   # b_ih_l0 + b_hh_l0
        w_ih1=u(ks[6], (H, 4 * H), H),
        w_hh1=u(ks[7], (H, 4 * H), H),
        b1=u(ks[8], (1, 4 * H), H) + u(ks[9], (1, 4 * H), H),
        w_out=u(ks[10], (1, H), H),      # nn.Linear(H, 1).weight (already (1, H))
        b_out=u(ks[11], (1, 1), H),
    )


def _gate_align(m):
    """(rows, 4H) -> (rows, GP): gate k moved to lane offset k*HP, zero padded."""
    H = HIDDEN
    rows = m.shape[0]
    out = jnp.zeros((rows, GP), jnp.float32)
    for k in range(4):
        out = out.at[:, k * HP:k * HP + H].set(m[:, k * H:(k + 1) * H])
    return out


def pack_params(p):
    """Algebraic folding + gate/lane-aligned padded layout (done ONCE per param set).

    Recurrent weights are cast to bf16 (MXU-native operand dtype); f32 accumulation
    is requested at the dot sites in the kernel.
    """
    H = HIDDEN
    # Linear(1,H) + layer-0 input projection fold:
    #   gates_x0 = x * (w_in @ w_ih0) + (b_in @ w_ih0 + b0)
    gx_scale = p["w_in"] @ p["w_ih0"]                    # (1, 4H)
    gx_bias = p["b_in"] @ p["w_ih0"] + p["b0"]           # (1, 4H)

    def pad_rows(m):
        return jnp.zeros((HP, GP), jnp.float32).at[:H, :].set(_gate_align(m))

    return dict(
        gxs=_gate_align(gx_scale),                       # (1, GP) f32
        gxb=_gate_align(gx_bias),                        # (1, GP) f32
        w_hh0=pad_rows(p["w_hh0"]).astype(jnp.bfloat16),
        w_ih1=pad_rows(p["w_ih1"]).astype(jnp.bfloat16),
        w_hh1=pad_rows(p["w_hh1"]).astype(jnp.bfloat16),
        b1=_gate_align(p["b1"]),                         # (1, GP) f32
        w_out=jnp.zeros((1, HP), jnp.float32).at[:, :H].set(p["w_out"]),
        b_out=p["b_out"],
    )


@jax.jit
def network_forward(packed, x_t, y_t):
    """packed: output of pack_params. x_t, y_t: (B, T) float32.
    Returns (loss, pred) with pred shaped (B, T)."""
    B, T = x_t.shape
    x_tm = jnp.transpose(x_t.astype(jnp.float32), (1, 0))[:, :, None]   # (T, B, 1)
    y_tm = jnp.transpose(y_t.astype(jnp.float32), (1, 0))               # (T, B)

    args = (x_tm, y_tm, packed["gxs"], packed["gxb"], packed["w_hh0"],
            packed["w_ih1"], packed["w_hh1"], packed["b1"],
            packed["w_out"], packed["b_out"])

    vmem = pl.BlockSpec(memory_space=pltpu.MemorySpace.VMEM)
    pred_tm, loss = pl.pallas_call(
        _lstm_net_kernel,
        out_shape=(jax.ShapeDtypeStruct((T, B), jnp.float32),
                   jax.ShapeDtypeStruct((1, 1), jnp.float32)),
        in_specs=[vmem] * len(args),
        out_specs=(vmem, vmem),
        scratch_shapes=[pltpu.VMEM((T, B, GP), jnp.float32),   # gates_x0 history
                        pltpu.VMEM((T, B, HP), jnp.float32)],  # h1 history
    )(*args)

    pred = jnp.transpose(pred_tm, (1, 0))   # (B, T)  (== PyTorch .squeeze())
    return loss[0, 0], pred


def _reference_forward(params, x_t, y_t):
    """Pure-JAX f32 reference with the original (unfolded, unpadded) algebra."""
    H = HIDDEN
    B, T = x_t.shape

    def cell(x_in, h, c, w_ih, w_hh, b):
        gates = x_in @ w_ih + h @ w_hh + b
        i = jax.nn.sigmoid(gates[:, 0 * H:1 * H])
        f = jax.nn.sigmoid(gates[:, 1 * H:2 * H])
        g = jnp.tanh(gates[:, 2 * H:3 * H])
        o = jax.nn.sigmoid(gates[:, 3 * H:4 * H])
        c = f * c + i * g
        h = o * jnp.tanh(c)
        return h, c

    h0 = c0 = h1 = c1 = jnp.zeros((B, H), jnp.float32)
    preds = []
    for t in range(T):
        x_in = x_t[:, t:t + 1] * params["w_in"] + params["b_in"]
        h0, c0 = cell(x_in, h0, c0, params["w_ih0"], params["w_hh0"], params["b0"])
        h1, c1 = cell(h0, h1, c1, params["w_ih1"], params["w_hh1"], params["b1"])
        preds.append(jnp.sum(h1 * params["w_out"], axis=-1) + params["b_out"][0, 0])
    pred = jnp.stack(preds, axis=1)          # (B, T)
    loss = jnp.mean((y_t - pred) ** 2)
    return loss, pred


if __name__ == "__main__":
    key = jax.random.PRNGKey(0)
    pkey, xkey, ykey = jax.random.split(key, 3)

    B, T = 2, 8
    params = init_params(pkey)
    packed = pack_params(params)             # packed ONCE, outside the jitted forward

    # sine-like synthetic sequences, consistent with x_t.unsqueeze(2) usage
    t_axis = jnp.linspace(0.0, 2.0 * jnp.pi, T)
    phase = jax.random.uniform(xkey, (B, 1), jnp.float32, 0.0, 1.0)
    x_t = jnp.sin(t_axis[None, :] + phase)                        # (B, T)
    y_t = jnp.sin(t_axis[None, :] + phase + 0.1) \
        + 0.01 * jax.random.normal(ykey, (B, T), jnp.float32)     # (B, T)

    loss, pred = network_forward(packed, x_t, y_t)
    jax.block_until_ready((loss, pred))

    ref_loss, ref_pred = _reference_forward(params, x_t, y_t)
    assert pred.shape == (B, T)
    assert loss.shape == ()
    # tolerance accounts for bf16 MXU operand rounding through the 8-step recurrence
    assert bool(jnp.allclose(pred, ref_pred, atol=2e-2, rtol=2e-2))
    assert bool(jnp.allclose(loss, ref_loss, atol=2e-2, rtol=2e-2))
    print("KERNEL_OK")
</pallas_src>

<mosaic_0001>
module attributes {stable_mosaic.version = 11 : i64} {
  func.func @_lstm_net_kernel(%arg0: memref<8x2x1xf32, #tpu.memory_space<vmem>>, %arg1: memref<8x2xf32, #tpu.memory_space<vmem>>, %arg2: memref<1x512xf32, #tpu.memory_space<vmem>>, %arg3: memref<1x512xf32, #tpu.memory_space<vmem>>, %arg4: memref<128x512xbf16, #tpu.memory_space<vmem>>, %arg5: memref<128x512xbf16, #tpu.memory_space<vmem>>, %arg6: memref<128x512xbf16, #tpu.memory_space<vmem>>, %arg7: memref<1x512xf32, #tpu.memory_space<vmem>>, %arg8: memref<1x128xf32, #tpu.memory_space<vmem>>, %arg9: memref<1x1xf32, #tpu.memory_space<vmem>>, %arg10: memref<8x2xf32, #tpu.memory_space<vmem>>, %arg11: memref<1x1xf32, #tpu.memory_space<vmem>>, %arg12: memref<8x2x512xf32, #tpu.memory_space<vmem>>, %arg13: memref<8x2x128xf32, #tpu.memory_space<vmem>>) attributes {dimension_semantics = [], scalar_prefetch = 0 : i64, scratch_operands = 2 : i64, tpu.core_type = #tpu.core_type<tc>} {
    %c0 = arith.constant 0 : index
    %c0_0 = arith.constant 0 : index
    %c0_1 = arith.constant 0 : index
    %0 = vector.load %arg0[%c0, %c0_0, %c0_1] : memref<8x2x1xf32, #tpu.memory_space<vmem>>, vector<8x2x1xf32>
    %c0_2 = arith.constant 0 : index
    %c0_3 = arith.constant 0 : index
    %1 = vector.load %arg2[%c0_2, %c0_3] : memref<1x512xf32, #tpu.memory_space<vmem>>, vector<1x512xf32>
    %2 = vector.shape_cast %1 : vector<1x512xf32> to vector<1x1x512xf32>
    %3 = vector.broadcast %0 : vector<8x2x1xf32> to vector<8x2x512xf32>
    %4 = vector.broadcast %2 : vector<1x1x512xf32> to vector<8x2x512xf32>
    %5 = arith.mulf %3, %4 : vector<8x2x512xf32>
    %c0_4 = arith.constant 0 : index
    %c0_5 = arith.constant 0 : index
    %6 = vector.load %arg3[%c0_4, %c0_5] : memref<1x512xf32, #tpu.memory_space<vmem>>, vector<1x512xf32>
    %7 = vector.shape_cast %6 : vector<1x512xf32> to vector<1x1x512xf32>
    %8 = vector.broadcast %7 : vector<1x1x512xf32> to vector<8x2x512xf32>
    %9 = arith.addf %5, %8 : vector<8x2x512xf32>
    %c0_6 = arith.constant 0 : index
    %c0_7 = arith.constant 0 : index
    %c0_8 = arith.constant 0 : index
    %10 = vector.load %arg12[%c0_6, %c0_7, %c0_8] : memref<8x2x512xf32, #tpu.memory_space<vmem>>, vector<8x2x512xf32>
    tpu.vector_store %arg12[%c0_6, %c0_7, %c0_8], %9 {strides = array<i32>} : memref<8x2x512xf32, #tpu.memory_space<vmem>>, vector<8x2x512xf32>,
    %cst = arith.constant 0.000000e+00 : f32
    %11 = vector.broadcast %cst : f32 to vector<2x128xf32>
    %c0_i32 = arith.constant 0 : i32
    %12 = arith.truncf %11 : vector<2x128xf32> to vector<2x128xbf16>
    %c0_9 = arith.constant 0 : index
    %c0_10 = arith.constant 0 : index
    %13 = vector.load %arg6[%c0_9, %c0_10] : memref<128x512xbf16, #tpu.memory_space<vmem>>, vector<128x512xbf16>
    %cst_11 = arith.constant dense<0.000000e+00> : vector<2x512xf32>
    %14 = tpu.matmul %12, %13, %cst_11 {dimension_numbers = #tpu.dot_dimension_numbers<[1], [0], [0], [1], [0, 0, 1, 1], [], []>} : vector<2x128xbf16>, vector<128x512xbf16>, vector<2x512xf32> -> vector<2x512xf32>
    %c0_12 = arith.constant 0 : index
    %c0_13 = arith.constant 0 : index
    %15 = vector.load %arg7[%c0_12, %c0_13] : memref<1x512xf32, #tpu.memory_space<vmem>>, vector<1x512xf32>
    %16 = vector.broadcast %15 : vector<1x512xf32> to vector<2x512xf32>
    %17 = arith.addf %14, %16 : vector<2x512xf32>
    %18 = arith.truncf %11 : vector<2x128xf32> to vector<2x128xbf16>
    %c0_14 = arith.constant 0 : index
    %c0_15 = arith.constant 0 : index
    %19 = vector.load %arg4[%c0_14, %c0_15] : memref<128x512xbf16, #tpu.memory_space<vmem>>, vector<128x512xbf16>
    %cst_16 = arith.constant dense<0.000000e+00> : vector<2x512xf32>
    %20 = tpu.matmul %18, %19, %cst_16 {dimension_numbers = #tpu.dot_dimension_numbers<[1], [0], [0], [1], [0, 0, 1, 1], [], []>} : vector<2x128xbf16>, vector<128x512xbf16>, vector<2x512xf32> -> vector<2x512xf32>
    %21 = arith.index_cast %c0_i32 : i32 to index
    %c0_17 = arith.constant 0 : index
    %c0_18 = arith.constant 0 : index
    %22 = vector.load %arg12[%21, %c0_17, %c0_18] : memref<8x2x512xf32, #tpu.memory_space<vmem>>, vector<1x2x512xf32>
    %23 = vector.shape_cast %22 : vector<1x2x512xf32> to vector<2x512xf32>
    %24 = arith.addf %20, %23 : vector<2x512xf32>
    %25 = vector.extract_strided_slice %24 {offsets = [0, 0], sizes = [2, 128], strides = [1, 1]} : vector<2x512xf32> to vector<2x128xf32>
    %cst_19 = arith.constant 5.000000e-01 : f32
    %26 = vector.broadcast %cst_19 : f32 to vector<2x128xf32>
    %27 = arith.mulf %26, %25 : vector<2x128xf32>
    %28 = math.tanh %27 : vector<2x128xf32>
    %cst_20 = arith.constant 1.000000e+00 : f32
    %29 = vector.broadcast %cst_20 : f32 to vector<2x128xf32>
    %30 = arith.addf %29, %28 : vector<2x128xf32>
    %cst_21 = arith.constant 5.000000e-01 : f32
    %31 = vector.broadcast %cst_21 : f32 to vector<2x128xf32>
    %32 = arith.mulf %31, %30 : vector<2x128xf32>
    %33 = vector.extract_strided_slice %24 {offsets = [0, 128], sizes = [2, 128], strides = [1, 1]} : vector<2x512xf32> to vector<2x128xf32>
    %cst_22 = arith.constant 5.000000e-01 : f32
    %34 = vector.broadcast %cst_22 : f32 to vector<2x128xf32>
    %35 = arith.mulf %34, %33 : vector<2x128xf32>
    %36 = math.tanh %35 : vector<2x128xf32>
    %cst_23 = arith.constant 1.000000e+00 : f32
    %37 = vector.broadcast %cst_23 : f32 to vector<2x128xf32>
    %38 = arith.addf %37, %36 : vector<2x128xf32>
    %cst_24 = arith.constant 5.000000e-01 : f32
    %39 = vector.broadcast %cst_24 : f32 to vector<2x128xf32>
    %40 = arith.mulf %39, %38 : vector<2x128xf32>
    %41 = vector.extract_strided_slice %24 {offsets = [0, 256], sizes = [2, 128], strides = [1, 1]} : vector<2x512xf32> to vector<2x128xf32>
    %42 = math.tanh %41 : vector<2x128xf32>
    %43 = vector.extract_strided_slice %24 {offsets = [0, 384], sizes = [2, 128], strides = [1, 1]} : vector<2x512xf32> to vector<2x128xf32>
    %cst_25 = arith.constant 5.000000e-01 : f32
    %44 = vector.broadcast %cst_25 : f32 to vector<2x128xf32>
    %45 = arith.mulf %44, %43 : vector<2x128xf32>
    %46 = math.tanh %45 : vector<2x128xf32>
    %cst_26 = arith.constant 1.000000e+00 : f32
    %47 = vector.broadcast %cst_26 : f32 to vector<2x128xf32>
    %48 = arith.addf %47, %46 : vector<2x128xf32>
    %cst_27 = arith.constant 5.000000e-01 : f32
    %49 = vector.broadcast %cst_27 : f32 to vector<2x128xf32>
    %50 = arith.mulf %49, %48 : vector<2x128xf32>
    %51 = arith.mulf %40, %11 : vector<2x128xf32>
    %52 = arith.mulf %32, %42 : vector<2x128xf32>
    %53 = arith.addf %51, %52 : vector<2x128xf32>
    %54 = math.tanh %53 : vector<2x128xf32>
    %55 = arith.mulf %50, %54 : vector<2x128xf32>
    %56 = arith.truncf %55 : vector<2x128xf32> to vector<2x128xbf16>
    %c0_28 = arith.constant 0 : index
    %c0_29 = arith.constant 0 : index
    %57 = vector.load %arg5[%c0_28, %c0_29] : memref<128x512xbf16, #tpu.memory_space<vmem>>, vector<128x512xbf16>
    %cst_30 = arith.constant dense<0.000000e+00> : vector<2x512xf32>
    %58 = tpu.matmul %56, %57, %cst_30 {dimension_numbers = #tpu.dot_dimension_numbers<[1], [0], [0], [1], [0, 0, 1, 1], [], []>} : vector<2x128xbf16>, vector<128x512xbf16>, vector<2x512xf32> -> vector<2x512xf32>
    %59 = arith.addf %17, %58 : vector<2x512xf32>
    %60 = vector.extract_strided_slice %59 {offsets = [0, 0], sizes = [2, 128], strides = [1, 1]} : vector<2x512xf32> to vector<2x128xf32>
    %cst_31 = arith.constant 5.000000e-01 : f32
    %61 = vector.broadcast %cst_31 : f32 to vector<2x128xf32>
    %62 = arith.mulf %61, %60 : vector<2x128xf32>
    %63 = math.tanh %62 : vector<2x128xf32>
    %cst_32 = arith.constant 1.000000e+00 : f32
    %64 = vector.broadcast %cst_32 : f32 to vector<2x128xf32>
    %65 = arith.addf %64, %63 : vector<2x128xf32>
    %cst_33 = arith.constant 5.000000e-01 : f32
    %66 = vector.broadcast %cst_33 : f32 to vector<2x128xf32>
    %67 = arith.mulf %66, %65 : vector<2x128xf32>
    %68 = vector.extract_strided_slice %59 {offsets = [0, 128], sizes = [2, 128], strides = [1, 1]} : vector<2x512xf32> to vector<2x128xf32>
    %cst_34 = arith.constant 5.000000e-01 : f32
    %69 = vector.broadcast %cst_34 : f32 to vector<2x128xf32>
    %70 = arith.mulf %69, %68 : vector<2x128xf32>
    %71 = math.tanh %70 : vector<2x128xf32>
    %cst_35 = arith.constant 1.000000e+00 : f32
    %72 = vector.broadcast %cst_35 : f32 to vector<2x128xf32>
    %73 = arith.addf %72, %71 : vector<2x128xf32>
    %cst_36 = arith.constant 5.000000e-01 : f32
    %74 = vector.broadcast %cst_36 : f32 to vector<2x128xf32>
    %75 = arith.mulf %74, %73 : vector<2x128xf32>
    %76 = vector.extract_strided_slice %59 {offsets = [0, 256], sizes = [2, 128], strides = [1, 1]} : vector<2x512xf32> to vector<2x128xf32>
    %77 = math.tanh %76 : vector<2x128xf32>
    %78 = vector.extract_strided_slice %59 {offsets = [0, 384], sizes = [2, 128], strides = [1, 1]} : vector<2x512xf32> to vector<2x128xf32>
    %cst_37 = arith.constant 5.000000e-01 : f32
    %79 = vector.broadcast %cst_37 : f32 to vector<2x128xf32>
    %80 = arith.mulf %79, %78 : vector<2x128xf32>
    %81 = math.tanh %80 : vector<2x128xf32>
    %cst_38 = arith.constant 1.000000e+00 : f32
    %82 = vector.broadcast %cst_38 : f32 to vector<2x128xf32>
    %83 = arith.addf %82, %81 : vector<2x128xf32>
    %cst_39 = arith.constant 5.000000e-01 : f32
    %84 = vector.broadcast %cst_39 : f32 to vector<2x128xf32>
    %85 = arith.mulf %84, %83 : vector<2x128xf32>
    %86 = arith.mulf %75, %11 : vector<2x128xf32>
    %87 = arith.mulf %67, %77 : vector<2x128xf32>
    %88 = arith.addf %86, %87 : vector<2x128xf32>
    %89 = math.tanh %88 : vector<2x128xf32>
    %90 = arith.mulf %85, %89 : vector<2x128xf32>
    %91 = arith.index_cast %c0_i32 : i32 to index
    %c0_40 = arith.constant 0 : index
    %c0_41 = arith.constant 0 : index
    %92 = vector.load %arg13[%91, %c0_40, %c0_41] : memref<8x2x128xf32, #tpu.memory_space<vmem>>, vector<1x2x128xf32>
    %93 = vector.shape_cast %92 : vector<1x2x128xf32> to vector<2x128xf32>
    %94 = vector.shape_cast %90 : vector<2x128xf32> to vector<1x2x128xf32>
    tpu.vector_store %arg13[%91, %c0_40, %c0_41], %94 {strides = array<i32>} : memref<8x2x128xf32, #tpu.memory_space<vmem>>, vector<1x2x128xf32>,
    %c1_i32 = arith.constant 1 : i32
    %95 = arith.truncf %90 : vector<2x128xf32> to vector<2x128xbf16>
    %c0_42 = arith.constant 0 : index
    %c0_43 = arith.constant 0 : index
    %96 = vector.load %arg6[%c0_42, %c0_43] : memref<128x512xbf16, #tpu.memory_space<vmem>>, vector<128x512xbf16>
    %cst_44 = arith.constant dense<0.000000e+00> : vector<2x512xf32>
    %97 = tpu.matmul %95, %96, %cst_44 {dimension_numbers = #tpu.dot_dimension_numbers<[1], [0], [0], [1], [0, 0, 1, 1], [], []>} : vector<2x128xbf16>, vector<128x512xbf16>, vector<2x512xf32> -> vector<2x512xf32>
    %c0_45 = arith.constant 0 : index
    %c0_46 = arith.constant 0 : index
    %98 = vector.load %arg7[%c0_45, %c0_46] : memref<1x512xf32, #tpu.memory_space<vmem>>, vector<1x512xf32>
    %99 = vector.broadcast %98 : vector<1x512xf32> to vector<2x512xf32>
    %100 = arith.addf %97, %99 : vector<2x512xf32>
    %101 = arith.truncf %55 : vector<2x128xf32> to vector<2x128xbf16>
    %c0_47 = arith.constant 0 : index
    %c0_48 = arith.constant 0 : index
    %102 = vector.load %arg4[%c0_47, %c0_48] : memref<128x512xbf16, #tpu.memory_space<vmem>>, vector<128x512xbf16>
    %cst_49 = arith.constant dense<0.000000e+00> : vector<2x512xf32>
    %103 = tpu.matmul %101, %102, %cst_49 {dimension_numbers = #tpu.dot_dimension_numbers<[1], [0], [0], [1], [0, 0, 1, 1], [], []>} : vector<2x128xbf16>, vector<128x512xbf16>, vector<2x512xf32> -> vector<2x512xf32>
    %104 = arith.index_cast %c1_i32 : i32 to index
    %c0_50 = arith.constant 0 : index
    %c0_51 = arith.constant 0 : index
    %105 = vector.load %arg12[%104, %c0_50, %c0_51] : memref<8x2x512xf32, #tpu.memory_space<vmem>>, vector<1x2x512xf32>
    %106 = vector.shape_cast %105 : vector<1x2x512xf32> to vector<2x512xf32>
    %107 = arith.addf %103, %106 : vector<2x512xf32>
    %108 = vector.extract_strided_slice %107 {offsets = [0, 0], sizes = [2, 128], strides = [1, 1]} : vector<2x512xf32> to vector<2x128xf32>
    %cst_52 = arith.constant 5.000000e-01 : f32
    %109 = vector.broadcast %cst_52 : f32 to vector<2x128xf32>
    %110 = arith.mulf %109, %108 : vector<2x128xf32>
    %111 = math.tanh %110 : vector<2x128xf32>
    %cst_53 = arith.constant 1.000000e+00 : f32
    %112 = vector.broadcast %cst_53 : f32 to vector<2x128xf32>
    %113 = arith.addf %112, %111 : vector<2x128xf32>
    %cst_54 = arith.constant 5.000000e-01 : f32
    %114 = vector.broadcast %cst_54 : f32 to vector<2x128xf32>
    %115 = arith.mulf %114, %113 : vector<2x128xf32>
    %116 = vector.extract_strided_slice %107 {offsets = [0, 128], sizes = [2, 128], strides = [1, 1]} : vector<2x512xf32> to vector<2x128xf32>
    %cst_55 = arith.constant 5.000000e-01 : f32
    %117 = vector.broadcast %cst_55 : f32 to vector<2x128xf32>
    %118 = arith.mulf %117, %116 : vector<2x128xf32>
    %119 = math.tanh %118 : vector<2x128xf32>
    %cst_56 = arith.constant 1.000000e+00 : f32
    %120 = vector.broadcast %cst_56 : f32 to vector<2x128xf32>
    %121 = arith.addf %120, %119 : vector<2x128xf32>
    %cst_57 = arith.constant 5.000000e-01 : f32
    %122 = vector.broadcast %cst_57 : f32 to vector<2x128xf32>
    %123 = arith.mulf %122, %121 : vector<2x128xf32>
    %124 = vector.extract_strided_slice %107 {offsets = [0, 256], sizes = [2, 128], strides = [1, 1]} : vector<2x512xf32> to vector<2x128xf32>
    %125 = math.tanh %124 : vector<2x128xf32>
    %126 = vector.extract_strided_slice %107 {offsets = [0, 384], sizes = [2, 128], strides = [1, 1]} : vector<2x512xf32> to vector<2x128xf32>
    %cst_58 = arith.constant 5.000000e-01 : f32
    %127 = vector.broadcast %cst_58 : f32 to vector<2x128xf32>
    %128 = arith.mulf %127, %126 : vector<2x128xf32>
    %129 = math.tanh %128 : vector<2x128xf32>
    %cst_59 = arith.constant 1.000000e+00 : f32
    %130 = vector.broadcast %cst_59 : f32 to vector<2x128xf32>
    %131 = arith.addf %130, %129 : vector<2x128xf32>
    %cst_60 = arith.constant 5.000000e-01 : f32
    %132 = vector.broadcast %cst_60 : f32 to vector<2x128xf32>
    %133 = arith.mulf %132, %131 : vector<2x128xf32>
    %134 = arith.mulf %123, %53 : vector<2x128xf32>
    %135 = arith.mulf %115, %125 : vector<2x128xf32>
    %136 = arith.addf %134, %135 : vector<2x128xf32>
    %137 = math.tanh %136 : vector<2x128xf32>
    %138 = arith.mulf %133, %137 : vector<2x128xf32>
    %139 = arith.truncf %138 : vector<2x128xf32> to vector<2x128xbf16>
    %c0_61 = arith.constant 0 : index
    %c0_62 = arith.constant 0 : index
    %140 = vector.load %arg5[%c0_61, %c0_62] : memref<128x512xbf16, #tpu.memory_space<vmem>>, vector<128x512xbf16>
    %cst_63 = arith.constant dense<0.000000e+00> : vector<2x512xf32>
    %141 = tpu.matmul %139, %140, %cst_63 {dimension_numbers = #tpu.dot_dimension_numbers<[1], [0], [0], [1], [0, 0, 1, 1], [], []>} : vector<2x128xbf16>, vector<128x512xbf16>, vector<2x512xf32> -> vector<2x512xf32>
    %142 = arith.addf %100, %141 : vector<2x512xf32>
    %143 = vector.extract_strided_slice %142 {offsets = [0, 0], sizes = [2, 128], strides = [1, 1]} : vector<2x512xf32> to vector<2x128xf32>
    %cst_64 = arith.constant 5.000000e-01 : f32
    %144 = vector.broadcast %cst_64 : f32 to vector<2x128xf32>
    %145 = arith.mulf %144, %143 : vector<2x128xf32>
    %146 = math.tanh %145 : vector<2x128xf32>
    %cst_65 = arith.constant 1.000000e+00 : f32
    %147 = vector.broadcast %cst_65 : f32 to vector<2x128xf32>
    %148 = arith.addf %147, %146 : vector<2x128xf32>
    %cst_66 = arith.constant 5.000000e-01 : f32
    %149 = vector.broadcast %cst_66 : f32 to vector<2x128xf32>
    %150 = arith.mulf %149, %148 : vector<2x128xf32>
    %151 = vector.extract_strided_slice %142 {offsets = [0, 128], sizes = [2, 128], strides = [1, 1]} : vector<2x512xf32> to vector<2x128xf32>
    %cst_67 = arith.constant 5.000000e-01 : f32
    %152 = vector.broadcast %cst_67 : f32 to vector<2x128xf32>
    %153 = arith.mulf %152, %151 : vector<2x128xf32>
    %154 = math.tanh %153 : vector<2x128xf32>
    %cst_68 = arith.constant 1.000000e+00 : f32
    %155 = vector.broadcast %cst_68 : f32 to vector<2x128xf32>
    %156 = arith.addf %155, %154 : vector<2x128xf32>
    %cst_69 = arith.constant 5.000000e-01 : f32
    %157 = vector.broadcast %cst_69 : f32 to vector<2x128xf32>
    %158 = arith.mulf %157, %156 : vector<2x128xf32>
    %159 = vector.extract_strided_slice %142 {offsets = [0, 256], sizes = [2, 128], strides = [1, 1]} : vector<2x512xf32> to vector<2x128xf32>
    %160 = math.tanh %159 : vector<2x128xf32>
    %161 = vector.extract_strided_slice %142 {offsets = [0, 384], sizes = [2, 128], strides = [1, 1]} : vector<2x512xf32> to vector<2x128xf32>
    %cst_70 = arith.constant 5.000000e-01 : f32
    %162 = vector.broadcast %cst_70 : f32 to vector<2x128xf32>
    %163 = arith.mulf %162, %161 : vector<2x128xf32>
    %164 = math.tanh %163 : vector<2x128xf32>
    %cst_71 = arith.constant 1.000000e+00 : f32
    %165 = vector.broadcast %cst_71 : f32 to vector<2x128xf32>
    %166 = arith.addf %165, %164 : vector<2x128xf32>
    %cst_72 = arith.constant 5.000000e-01 : f32
    %167 = vector.broadcast %cst_72 : f32 to vector<2x128xf32>
    %168 = arith.mulf %167, %166 : vector<2x128xf32>
    %169 = arith.mulf %158, %88 : vector<2x128xf32>
    %170 = arith.mulf %150, %160 : vector<2x128xf32>
    %171 = arith.addf %169, %170 : vector<2x128xf32>
    %172 = math.tanh %171 : vector<2x128xf32>
    %173 = arith.mulf %168, %172 : vector<2x128xf32>
    %174 = arith.index_cast %c1_i32 : i32 to index
    %c0_73 = arith.constant 0 : index
    %c0_74 = arith.constant 0 : index
    %175 = vector.load %arg13[%174, %c0_73, %c0_74] : memref<8x2x128xf32, #tpu.memory_space<vmem>>, vector<1x2x128xf32>
    %176 = vector.shape_cast %175 : vector<1x2x128xf32> to vector<2x128xf32>
    %177 = vector.shape_cast %173 : vector<2x128xf32> to vector<1x2x128xf32>
    tpu.vector_store %arg13[%174, %c0_73, %c0_74], %177 {strides = array<i32>} : memref<8x2x128xf32, #tpu.memory_space<vmem>>, vector<1x2x128xf32>,
    %c2_i32 = arith.constant 2 : i32
    %178 = arith.truncf %173 : vector<2x128xf32> to vector<2x128xbf16>
    %c0_75 = arith.constant 0 : index
    %c0_76 = arith.constant 0 : index
    %179 = vector.load %arg6[%c0_75, %c0_76] : memref<128x512xbf16, #tpu.memory_space<vmem>>, vector<128x512xbf16>
    %cst_77 = arith.constant dense<0.000000e+00> : vector<2x512xf32>
    %180 = tpu.matmul %178, %179, %cst_77 {dimension_numbers = #tpu.dot_dimension_numbers<[1], [0], [0], [1], [0, 0, 1, 1], [], []>} : vector<2x128xbf16>, vector<128x512xbf16>, vector<2x512xf32> -> vector<2x512xf32>
    %c0_78 = arith.constant 0 : index
    %c0_79 = arith.constant 0 : index
    %181 = vector.load %arg7[%c0_78, %c0_79] : memref<1x512xf32, #tpu.memory_space<vmem>>, vector<1x512xf32>
    %182 = vector.broadcast %181 : vector<1x512xf32> to vector<2x512xf32>
    %183 = arith.addf %180, %182 : vector<2x512xf32>
    %184 = arith.truncf %138 : vector<2x128xf32> to vector<2x128xbf16>
    %c0_80 = arith.constant 0 : index
    %c0_81 = arith.constant 0 : index
    %185 = vector.load %arg4[%c0_80, %c0_81] : memref<128x512xbf16, #tpu.memory_space<vmem>>, vector<128x512xbf16>
    %cst_82 = arith.constant dense<0.000000e+00> : vector<2x512xf32>
    %186 = tpu.matmul %184, %185, %cst_82 {dimension_numbers = #tpu.dot_dimension_numbers<[1], [0], [0], [1], [0, 0, 1, 1], [], []>} : vector<2x128xbf16>, vector<128x512xbf16>, vector<2x512xf32> -> vector<2x512xf32>
    %187 = arith.index_cast %c2_i32 : i32 to index
    %c0_83 = arith.constant 0 : index
    %c0_84 = arith.constant 0 : index
    %188 = vector.load %arg12[%187, %c0_83, %c0_84] : memref<8x2x512xf32, #tpu.memory_space<vmem>>, vector<1x2x512xf32>
    %189 = vector.shape_cast %188 : vector<1x2x512xf32> to vector<2x512xf32>
    %190 = arith.addf %186, %189 : vector<2x512xf32>
    %191 = vector.extract_strided_slice %190 {offsets = [0, 0], sizes = [2, 128], strides = [1, 1]} : vector<2x512xf32> to vector<2x128xf32>
    %cst_85 = arith.constant 5.000000e-01 : f32
    %192 = vector.broadcast %cst_85 : f32 to vector<2x128xf32>
    %193 = arith.mulf %192, %191 : vector<2x128xf32>
    %194 = math.tanh %193 : vector<2x128xf32>
    %cst_86 = arith.constant 1.000000e+00 : f32
    %195 = vector.broadcast %cst_86 : f32 to vector<2x128xf32>
    %196 = arith.addf %195, %194 : vector<2x128xf32>
    %cst_87 = arith.constant 5.000000e-01 : f32
    %197 = vector.broadcast %cst_87 : f32 to vector<2x128xf32>
    %198 = arith.mulf %197, %196 : vector<2x128xf32>
    %199 = vector.extract_strided_slice %190 {offsets = [0, 128], sizes = [2, 128], strides = [1, 1]} : vector<2x512xf32> to vector<2x128xf32>
    %cst_88 = arith.constant 5.000000e-01 : f32
    %200 = vector.broadcast %cst_88 : f32 to vector<2x128xf32>
    %201 = arith.mulf %200, %199 : vector<2x128xf32>
    %202 = math.tanh %201 : vector<2x128xf32>
    %cst_89 = arith.constant 1.000000e+00 : f32
    %203 = vector.broadcast %cst_89 : f32 to vector<2x128xf32>
    %204 = arith.addf %203, %202 : vector<2x128xf32>
    %cst_90 = arith.constant 5.000000e-01 : f32
    %205 = vector.broadcast %cst_90 : f32 to vector<2x128xf32>
    %206 = arith.mulf %205, %204 : vector<2x128xf32>
    %207 = vector.extract_strided_slice %190 {offsets = [0, 256], sizes = [2, 128], strides = [1, 1]} : vector<2x512xf32> to vector<2x128xf32>
    %208 = math.tanh %207 : vector<2x128xf32>
    %209 = vector.extract_strided_slice %190 {offsets = [0, 384], sizes = [2, 128], strides = [1, 1]} : vector<2x512xf32> to vector<2x128xf32>
    %cst_91 = arith.constant 5.000000e-01 : f32
    %210 = vector.broadcast %cst_91 : f32 to vector<2x128xf32>
    %211 = arith.mulf %210, %209 : vector<2x128xf32>
    %212 = math.tanh %211 : vector<2x128xf32>
    %cst_92 = arith.constant 1.000000e+00 : f32
    %213 = vector.broadcast %cst_92 : f32 to vector<2x128xf32>
    %214 = arith.addf %213, %212 : vector<2x128xf32>
    %cst_93 = arith.constant 5.000000e-01 : f32
    %215 = vector.broadcast %cst_93 : f32 to vector<2x128xf32>
    %216 = arith.mulf %215, %214 : vector<2x128xf32>
    %217 = arith.mulf %206, %136 : vector<2x128xf32>
    %218 = arith.mulf %198, %208 : vector<2x128xf32>
    %219 = arith.addf %217, %218 : vector<2x128xf32>
    %220 = math.tanh %219 : vector<2x128xf32>
    %221 = arith.mulf %216, %220 : vector<2x128xf32>
    %222 = arith.truncf %221 : vector<2x128xf32> to vector<2x128xbf16>
    %c0_94 = arith.constant 0 : index
    %c0_95 = arith.constant 0 : index
    %223 = vector.load %arg5[%c0_94, %c0_95] : memref<128x512xbf16, #tpu.memory_space<vmem>>, vector<128x512xbf16>
    %cst_96 = arith.constant dense<0.000000e+00> : vector<2x512xf32>
    %224 = tpu.matmul %222, %223, %cst_96 {dimension_numbers = #tpu.dot_dimension_numbers<[1], [0], [0], [1], [0, 0, 1, 1], [], []>} : vector<2x128xbf16>, vector<128x512xbf16>, vector<2x512xf32> -> vector<2x512xf32>
    %225 = arith.addf %183, %224 : vector<2x512xf32>
    %226 = vector.extract_strided_slice %225 {offsets = [0, 0], sizes = [2, 128], strides = [1, 1]} : vector<2x512xf32> to vector<2x128xf32>
    %cst_97 = arith.constant 5.000000e-01 : f32
    %227 = vector.broadcast %cst_97 : f32 to vector<2x128xf32>
    %228 = arith.mulf %227, %226 : vector<2x128xf32>
    %229 = math.tanh %228 : vector<2x128xf32>
    %cst_98 = arith.constant 1.000000e+00 : f32
    %230 = vector.broadcast %cst_98 : f32 to vector<2x128xf32>
    %231 = arith.addf %230, %229 : vector<2x128xf32>
    %cst_99 = arith.constant 5.000000e-01 : f32
    %232 = vector.broadcast %cst_99 : f32 to vector<2x128xf32>
    %233 = arith.mulf %232, %231 : vector<2x128xf32>
    %234 = vector.extract_strided_slice %225 {offsets = [0, 128], sizes = [2, 128], strides = [1, 1]} : vector<2x512xf32> to vector<2x128xf32>
    %cst_100 = arith.constant 5.000000e-01 : f32
    %235 = vector.broadcast %cst_100 : f32 to vector<2x128xf32>
    %236 = arith.mulf %235, %234 : vector<2x128xf32>
    %237 = math.tanh %236 : vector<2x128xf32>
    %cst_101 = arith.constant 1.000000e+00 : f32
    %238 = vector.broadcast %cst_101 : f32 to vector<2x128xf32>
    %239 = arith.addf %238, %237 : vector<2x128xf32>
    %cst_102 = arith.constant 5.000000e-01 : f32
    %240 = vector.broadcast %cst_102 : f32 to vector<2x128xf32>
    %241 = arith.mulf %240, %239 : vector<2x128xf32>
    %242 = vector.extract_strided_slice %225 {offsets = [0, 256], sizes = [2, 128], strides = [1, 1]} : vector<2x512xf32> to vector<2x128xf32>
    %243 = math.tanh %242 : vector<2x128xf32>
    %244 = vector.extract_strided_slice %225 {offsets = [0, 384], sizes = [2, 128], strides = [1, 1]} : vector<2x512xf32> to vector<2x128xf32>
    %cst_103 = arith.constant 5.000000e-01 : f32
    %245 = vector.broadcast %cst_103 : f32 to vector<2x128xf32>
    %246 = arith.mulf %245, %244 : vector<2x128xf32>
    %247 = math.tanh %246 : vector<2x128xf32>
    %cst_104 = arith.constant 1.000000e+00 : f32
    %248 = vector.broadcast %cst_104 : f32 to vector<2x128xf32>
    %249 = arith.addf %248, %247 : vector<2x128xf32>
    %cst_105 = arith.constant 5.000000e-01 : f32
    %250 = vector.broadcast %cst_105 : f32 to vector<2x128xf32>
    %251 = arith.mulf %250, %249 : vector<2x128xf32>
    %252 = arith.mulf %241, %171 : vector<2x128xf32>
    %253 = arith.mulf %233, %243 : vector<2x128xf32>
    %254 = arith.addf %252, %253 : vector<2x128xf32>
    %255 = math.tanh %254 : vector<2x128xf32>
    %256 = arith.mulf %251, %255 : vector<2x128xf32>
    %257 = arith.index_cast %c2_i32 : i32 to index
    %c0_106 = arith.constant 0 : index
    %c0_107 = arith.constant 0 : index
    %258 = vector.load %arg13[%257, %c0_106, %c0_107] : memref<8x2x128xf32, #tpu.memory_space<vmem>>, vector<1x2x128xf32>
    %259 = vector.shape_cast %258 : vector<1x2x128xf32> to vector<2x128xf32>
    %260 = vector.shape_cast %256 : vector<2x128xf32> to vector<1x2x128xf32>
    tpu.vector_store %arg13[%257, %c0_106, %c0_107], %260 {strides = array<i32>} : memref<8x2x128xf32, #tpu.memory_space<vmem>>, vector<1x2x128xf32>,
    %c3_i32 = arith.constant 3 : i32
    %261 = arith.truncf %256 : vector<2x128xf32> to vector<2x128xbf16>
    %c0_108 = arith.constant 0 : index
    %c0_109 = arith.constant 0 : index
    %262 = vector.load %arg6[%c0_108, %c0_109] : memref<128x512xbf16, #tpu.memory_space<vmem>>, vector<128x512xbf16>
    %cst_110 = arith.constant dense<0.000000e+00> : vector<2x512xf32>
    %263 = tpu.matmul %261, %262, %cst_110 {dimension_numbers = #tpu.dot_dimension_numbers<[1], [0], [0], [1], [0, 0, 1, 1], [], []>} : vector<2x128xbf16>, vector<128x512xbf16>, vector<2x512xf32> -> vector<2x512xf32>
    %c0_111 = arith.constant 0 : index
    %c0_112 = arith.constant 0 : index
    %264 = vector.load %arg7[%c0_111, %c0_112] : memref<1x512xf32, #tpu.memory_space<vmem>>, vector<1x512xf32>
    %265 = vector.broadcast %264 : vector<1x512xf32> to vector<2x512xf32>
    %266 = arith.addf %263, %265 : vector<2x512xf32>
    %267 = arith.truncf %221 : vector<2x128xf32> to vector<2x128xbf16>
    %c0_113 = arith.constant 0 : index
    %c0_114 = arith.constant 0 : index
    %268 = vector.load %arg4[%c0_113, %c0_114] : memref<128x512xbf16, #tpu.memory_space<vmem>>, vector<128x512xbf16>
    %cst_115 = arith.constant dense<0.000000e+00> : vector<2x512xf32>
    %269 = tpu.matmul %267, %268, %cst_115 {dimension_numbers = #tpu.dot_dimension_numbers<[1], [0], [0], [1], [0, 0, 1, 1], [], []>} : vector<2x128xbf16>, vector<128x512xbf16>, vector<2x512xf32> -> vector<2x512xf32>
    %270 = arith.index_cast %c3_i32 : i32 to index
    %c0_116 = arith.constant 0 : index
    %c0_117 = arith.constant 0 : index
    %271 = vector.load %arg12[%270, %c0_116, %c0_117] : memref<8x2x512xf32, #tpu.memory_space<vmem>>, vector<1x2x512xf32>
    %272 = vector.shape_cast %271 : vector<1x2x512xf32> to vector<2x512xf32>
    %273 = arith.addf %269, %272 : vector<2x512xf32>
    %274 = vector.extract_strided_slice %273 {offsets = [0, 0], sizes = [2, 128], strides = [1, 1]} : vector<2x512xf32> to vector<2x128xf32>
    %cst_118 = arith.constant 5.000000e-01 : f32
    %275 = vector.broadcast %cst_118 : f32 to vector<2x128xf32>
    %276 = arith.mulf %275, %274 : vector<2x128xf32>
    %277 = math.tanh %276 : vector<2x128xf32>
    %cst_119 = arith.constant 1.000000e+00 : f32
    %278 = vector.broadcast %cst_119 : f32 to vector<2x128xf32>
    %279 = arith.addf %278, %277 : vector<2x128xf32>
    %cst_120 = arith.constant 5.000000e-01 : f32
    %280 = vector.broadcast %cst_120 : f32 to vector<2x128xf32>
    %281 = arith.mulf %280, %279 : vector<2x128xf32>
    %282 = vector.extract_strided_slice %273 {offsets = [0, 128], sizes = [2, 128], strides = [1, 1]} : vector<2x512xf32> to vector<2x128xf32>
    %cst_121 = arith.constant 5.000000e-01 : f32
    %283 = vector.broadcast %cst_121 : f32 to vector<2x128xf32>
    %284 = arith.mulf %283, %282 : vector<2x128xf32>
    %285 = math.tanh %284 : vector<2x128xf32>
    %cst_122 = arith.constant 1.000000e+00 : f32
    %286 = vector.broadcast %cst_122 : f32 to vector<2x128xf32>
    %287 = arith.addf %286, %285 : vector<2x128xf32>
    %cst_123 = arith.constant 5.000000e-01 : f32
    %288 = vector.broadcast %cst_123 : f32 to vector<2x128xf32>
    %289 = arith.mulf %288, %287 : vector<2x128xf32>
    %290 = vector.extract_strided_slice %273 {offsets = [0, 256], sizes = [2, 128], strides = [1, 1]} : vector<2x512xf32> to vector<2x128xf32>
    %291 = math.tanh %290 : vector<2x128xf32>
    %292 = vector.extract_strided_slice %273 {offsets = [0, 384], sizes = [2, 128], strides = [1, 1]} : vector<2x512xf32> to vector<2x128xf32>
    %cst_124 = arith.constant 5.000000e-01 : f32
    %293 = vector.broadcast %cst_124 : f32 to vector<2x128xf32>
    %294 = arith.mulf %293, %292 : vector<2x128xf32>
    %295 = math.tanh %294 : vector<2x128xf32>
    %cst_125 = arith.constant 1.000000e+00 : f32
    %296 = vector.broadcast %cst_125 : f32 to vector<2x128xf32>
    %297 = arith.addf %296, %295 : vector<2x128xf32>
    %cst_126 = arith.constant 5.000000e-01 : f32
    %298 = vector.broadcast %cst_126 : f32 to vector<2x128xf32>
    %299 = arith.mulf %298, %297 : vector<2x128xf32>
    %300 = arith.mulf %289, %219 : vector<2x128xf32>
    %301 = arith.mulf %281, %291 : vector<2x128xf32>
    %302 = arith.addf %300, %301 : vector<2x128xf32>
    %303 = math.tanh %302 : vector<2x128xf32>
    %304 = arith.mulf %299, %303 : vector<2x128xf32>
    %305 = arith.truncf %304 : vector<2x128xf32> to vector<2x128xbf16>
    %c0_127 = arith.constant 0 : index
    %c0_128 = arith.constant 0 : index
    %306 = vector.load %arg5[%c0_127, %c0_128] : memref<128x512xbf16, #tpu.memory_space<vmem>>, vector<128x512xbf16>
    %cst_129 = arith.constant dense<0.000000e+00> : vector<2x512xf32>
    %307 = tpu.matmul %305, %306, %cst_129 {dimension_numbers = #tpu.dot_dimension_numbers<[1], [0], [0], [1], [0, 0, 1, 1], [], []>} : vector<2x128xbf16>, vector<128x512xbf16>, vector<2x512xf32> -> vector<2x512xf32>
    %308 = arith.addf %266, %307 : vector<2x512xf32>
    %309 = vector.extract_strided_slice %308 {offsets = [0, 0], sizes = [2, 128], strides = [1, 1]} : vector<2x512xf32> to vector<2x128xf32>
    %cst_130 = arith.constant 5.000000e-01 : f32
    %310 = vector.broadcast %cst_130 : f32 to vector<2x128xf32>
    %311 = arith.mulf %310, %309 : vector<2x128xf32>
    %312 = math.tanh %311 : vector<2x128xf32>
    %cst_131 = arith.constant 1.000000e+00 : f32
    %313 = vector.broadcast %cst_131 : f32 to vector<2x128xf32>
    %314 = arith.addf %313, %312 : vector<2x128xf32>
    %cst_132 = arith.constant 5.000000e-01 : f32
    %315 = vector.broadcast %cst_132 : f32 to vector<2x128xf32>
    %316 = arith.mulf %315, %314 : vector<2x128xf32>
    %317 = vector.extract_strided_slice %308 {offsets = [0, 128], sizes = [2, 128], strides = [1, 1]} : vector<2x512xf32> to vector<2x128xf32>
    %cst_133 = arith.constant 5.000000e-01 : f32
    %318 = vector.broadcast %cst_133 : f32 to vector<2x128xf32>
    %319 = arith.mulf %318, %317 : vector<2x128xf32>
    %320 = math.tanh %319 : vector<2x128xf32>
    %cst_134 = arith.constant 1.000000e+00 : f32
    %321 = vector.broadcast %cst_134 : f32 to vector<2x128xf32>
    %322 = arith.addf %321, %320 : vector<2x128xf32>
    %cst_135 = arith.constant 5.000000e-01 : f32
    %323 = vector.broadcast %cst_135 : f32 to vector<2x128xf32>
    %324 = arith.mulf %323, %322 : vector<2x128xf32>
    %325 = vector.extract_strided_slice %308 {offsets = [0, 256], sizes = [2, 128], strides = [1, 1]} : vector<2x512xf32> to vector<2x128xf32>
    %326 = math.tanh %325 : vector<2x128xf32>
    %327 = vector.extract_strided_slice %308 {offsets = [0, 384], sizes = [2, 128], strides = [1, 1]} : vector<2x512xf32> to vector<2x128xf32>
    %cst_136 = arith.constant 5.000000e-01 : f32
    %328 = vector.broadcast %cst_136 : f32 to vector<2x128xf32>
    %329 = arith.mulf %328, %327 : vector<2x128xf32>
    %330 = math.tanh %329 : vector<2x128xf32>
    %cst_137 = arith.constant 1.000000e+00 : f32
    %331 = vector.broadcast %cst_137 : f32 to vector<2x128xf32>
    %332 = arith.addf %331, %330 : vector<2x128xf32>
    %cst_138 = arith.constant 5.000000e-01 : f32
    %333 = vector.broadcast %cst_138 : f32 to vector<2x128xf32>
    %334 = arith.mulf %333, %332 : vector<2x128xf32>
    %335 = arith.mulf %324, %254 : vector<2x128xf32>
    %336 = arith.mulf %316, %326 : vector<2x128xf32>
    %337 = arith.addf %335, %336 : vector<2x128xf32>
    %338 = math.tanh %337 : vector<2x128xf32>
    %339 = arith.mulf %334, %338 : vector<2x128xf32>
    %340 = arith.index_cast %c3_i32 : i32 to index
    %c0_139 = arith.constant 0 : index
    %c0_140 = arith.constant 0 : index
    %341 = vector.load %arg13[%340, %c0_139, %c0_140] : memref<8x2x128xf32, #tpu.memory_space<vmem>>, vector<1x2x128xf32>
    %342 = vector.shape_cast %341 : vector<1x2x128xf32> to vector<2x128xf32>
    %343 = vector.shape_cast %339 : vector<2x128xf32> to vector<1x2x128xf32>
    tpu.vector_store %arg13[%340, %c0_139, %c0_140], %343 {strides = array<i32>} : memref<8x2x128xf32, #tpu.memory_space<vmem>>, vector<1x2x128xf32>,
    %c4_i32 = arith.constant 4 : i32
    %344 = arith.truncf %339 : vector<2x128xf32> to vector<2x128xbf16>
    %c0_141 = arith.constant 0 : index
    %c0_142 = arith.constant 0 : index
    %345 = vector.load %arg6[%c0_141, %c0_142] : memref<128x512xbf16, #tpu.memory_space<vmem>>, vector<128x512xbf16>
    %cst_143 = arith.constant dense<0.000000e+00> : vector<2x512xf32>
    %346 = tpu.matmul %344, %345, %cst_143 {dimension_numbers = #tpu.dot_dimension_numbers<[1], [0], [0], [1], [0, 0, 1, 1], [], []>} : vector<2x128xbf16>, vector<128x512xbf16>, vector<2x512xf32> -> vector<2x512xf32>
    %c0_144 = arith.constant 0 : index
    %c0_145 = arith.constant 0 : index
    %347 = vector.load %arg7[%c0_144, %c0_145] : memref<1x512xf32, #tpu.memory_space<vmem>>, vector<1x512xf32>
    %348 = vector.broadcast %347 : vector<1x512xf32> to vector<2x512xf32>
    %349 = arith.addf %346, %348 : vector<2x512xf32>
    %350 = arith.truncf %304 : vector<2x128xf32> to vector<2x128xbf16>
    %c0_146 = arith.constant 0 : index
    %c0_147 = arith.constant 0 : index
    %351 = vector.load %arg4[%c0_146, %c0_147] : memref<128x512xbf16, #tpu.memory_space<vmem>>, vector<128x512xbf16>
    %cst_148 = arith.constant dense<0.000000e+00> : vector<2x512xf32>
    %352 = tpu.matmul %350, %351, %cst_148 {dimension_numbers = #tpu.dot_dimension_numbers<[1], [0], [0], [1], [0, 0, 1, 1], [], []>} : vector<2x128xbf16>, vector<128x512xbf16>, vector<2x512xf32> -> vector<2x512xf32>
    %353 = arith.index_cast %c4_i32 : i32 to index
    %c0_149 = arith.constant 0 : index
    %c0_150 = arith.constant 0 : index
    %354 = vector.load %arg12[%353, %c0_149, %c0_150] : memref<8x2x512xf32, #tpu.memory_space<vmem>>, vector<1x2x512xf32>
    %355 = vector.shape_cast %354 : vector<1x2x512xf32> to vector<2x512xf32>
    %356 = arith.addf %352, %355 : vector<2x512xf32>
    %357 = vector.extract_strided_slice %356 {offsets = [0, 0], sizes = [2, 128], strides = [1, 1]} : vector<2x512xf32> to vector<2x128xf32>
    %cst_151 = arith.constant 5.000000e-01 : f32
    %358 = vector.broadcast %cst_151 : f32 to vector<2x128xf32>
    %359 = arith.mulf %358, %357 : vector<2x128xf32>
    %360 = math.tanh %359 : vector<2x128xf32>
    %cst_152 = arith.constant 1.000000e+00 : f32
    %361 = vector.broadcast %cst_152 : f32 to vector<2x128xf32>
    %362 = arith.addf %361, %360 : vector<2x128xf32>
    %cst_153 = arith.constant 5.000000e-01 : f32
    %363 = vector.broadcast %cst_153 : f32 to vector<2x128xf32>
    %364 = arith.mulf %363, %362 : vector<2x128xf32>
    %365 = vector.extract_strided_slice %356 {offsets = [0, 128], sizes = [2, 128], strides = [1, 1]} : vector<2x512xf32> to vector<2x128xf32>
    %cst_154 = arith.constant 5.000000e-01 : f32
    %366 = vector.broadcast %cst_154 : f32 to vector<2x128xf32>
    %367 = arith.mulf %366, %365 : vector<2x128xf32>
    %368 = math.tanh %367 : vector<2x128xf32>
    %cst_155 = arith.constant 1.000000e+00 : f32
    %369 = vector.broadcast %cst_155 : f32 to vector<2x128xf32>
    %370 = arith.addf %369, %368 : vector<2x128xf32>
    %cst_156 = arith.constant 5.000000e-01 : f32
    %371 = vector.broadcast %cst_156 : f32 to vector<2x128xf32>
    %372 = arith.mulf %371, %370 : vector<2x128xf32>
    %373 = vector.extract_strided_slice %356 {offsets = [0, 256], sizes = [2, 128], strides = [1, 1]} : vector<2x512xf32> to vector<2x128xf32>
    %374 = math.tanh %373 : vector<2x128xf32>
    %375 = vector.extract_strided_slice %356 {offsets = [0, 384], sizes = [2, 128], strides = [1, 1]} : vector<2x512xf32> to vector<2x128xf32>
    %cst_157 = arith.constant 5.000000e-01 : f32
    %376 = vector.broadcast %cst_157 : f32 to vector<2x128xf32>
    %377 = arith.mulf %376, %375 : vector<2x128xf32>
    %378 = math.tanh %377 : vector<2x128xf32>
    %cst_158 = arith.constant 1.000000e+00 : f32
    %379 = vector.broadcast %cst_158 : f32 to vector<2x128xf32>
    %380 = arith.addf %379, %378 : vector<2x128xf32>
    %cst_159 = arith.constant 5.000000e-01 : f32
    %381 = vector.broadcast %cst_159 : f32 to vector<2x128xf32>
    %382 = arith.mulf %381, %380 : vector<2x128xf32>
    %383 = arith.mulf %372, %302 : vector<2x128xf32>
    %384 = arith.mulf %364, %374 : vector<2x128xf32>
    %385 = arith.addf %383, %384 : vector<2x128xf32>
    %386 = math.tanh %385 : vector<2x128xf32>
    %387 = arith.mulf %382, %386 : vector<2x128xf32>
    %388 = arith.truncf %387 : vector<2x128xf32> to vector<2x128xbf16>
    %c0_160 = arith.constant 0 : index
    %c0_161 = arith.constant 0 : index
    %389 = vector.load %arg5[%c0_160, %c0_161] : memref<128x512xbf16, #tpu.memory_space<vmem>>, vector<128x512xbf16>
    %cst_162 = arith.constant dense<0.000000e+00> : vector<2x512xf32>
    %390 = tpu.matmul %388, %389, %cst_162 {dimension_numbers = #tpu.dot_dimension_numbers<[1], [0], [0], [1], [0, 0, 1, 1], [], []>} : vector<2x128xbf16>, vector<128x512xbf16>, vector<2x512xf32> -> vector<2x512xf32>
    %391 = arith.addf %349, %390 : vector<2x512xf32>
    %392 = vector.extract_strided_slice %391 {offsets = [0, 0], sizes = [2, 128], strides = [1, 1]} : vector<2x512xf32> to vector<2x128xf32>
    %cst_163 = arith.constant 5.000000e-01 : f32
    %393 = vector.broadcast %cst_163 : f32 to vector<2x128xf32>
    %394 = arith.mulf %393, %392 : vector<2x128xf32>
    %395 = math.tanh %394 : vector<2x128xf32>
    %cst_164 = arith.constant 1.000000e+00 : f32
    %396 = vector.broadcast %cst_164 : f32 to vector<2x128xf32>
    %397 = arith.addf %396, %395 : vector<2x128xf32>
    %cst_165 = arith.constant 5.000000e-01 : f32
    %398 = vector.broadcast %cst_165 : f32 to vector<2x128xf32>
    %399 = arith.mulf %398, %397 : vector<2x128xf32>
    %400 = vector.extract_strided_slice %391 {offsets = [0, 128], sizes = [2, 128], strides = [1, 1]} : vector<2x512xf32> to vector<2x128xf32>
    %cst_166 = arith.constant 5.000000e-01 : f32
    %401 = vector.broadcast %cst_166 : f32 to vector<2x128xf32>
    %402 = arith.mulf %401, %400 : vector<2x128xf32>
    %403 = math.tanh %402 : vector<2x128xf32>
    %cst_167 = arith.constant 1.000000e+00 : f32
    %404 = vector.broadcast %cst_167 : f32 to vector<2x128xf32>
    %405 = arith.addf %404, %403 : vector<2x128xf32>
    %cst_168 = arith.constant 5.000000e-01 : f32
    %406 = vector.broadcast %cst_168 : f32 to vector<2x128xf32>
    %407 = arith.mulf %406, %405 : vector<2x128xf32>
    %408 = vector.extract_strided_slice %391 {offsets = [0, 256], sizes = [2, 128], strides = [1, 1]} : vector<2x512xf32> to vector<2x128xf32>
    %409 = math.tanh %408 : vector<2x128xf32>
    %410 = vector.extract_strided_slice %391 {offsets = [0, 384], sizes = [2, 128], strides = [1, 1]} : vector<2x512xf32> to vector<2x128xf32>
    %cst_169 = arith.constant 5.000000e-01 : f32
    %411 = vector.broadcast %cst_169 : f32 to vector<2x128xf32>
    %412 = arith.mulf %411, %410 : vector<2x128xf32>
    %413 = math.tanh %412 : vector<2x128xf32>
    %cst_170 = arith.constant 1.000000e+00 : f32
    %414 = vector.broadcast %cst_170 : f32 to vector<2x128xf32>
    %415 = arith.addf %414, %413 : vector<2x128xf32>
    %cst_171 = arith.constant 5.000000e-01 : f32
    %416 = vector.broadcast %cst_171 : f32 to vector<2x128xf32>
    %417 = arith.mulf %416, %415 : vector<2x128xf32>
    %418 = arith.mulf %407, %337 : vector<2x128xf32>
    %419 = arith.mulf %399, %409 : vector<2x128xf32>
    %420 = arith.addf %418, %419 : vector<2x128xf32>
    %421 = math.tanh %420 : vector<2x128xf32>
    %422 = arith.mulf %417, %421 : vector<2x128xf32>
    %423 = arith.index_cast %c4_i32 : i32 to index
    %c0_172 = arith.constant 0 : index
    %c0_173 = arith.constant 0 : index
    %424 = vector.load %arg13[%423, %c0_172, %c0_173] : memref<8x2x128xf32, #tpu.memory_space<vmem>>, vector<1x2x128xf32>
    %425 = vector.shape_cast %424 : vector<1x2x128xf32> to vector<2x128xf32>
    %426 = vector.shape_cast %422 : vector<2x128xf32> to vector<1x2x128xf32>
    tpu.vector_store %arg13[%423, %c0_172, %c0_173], %426 {strides = array<i32>} : memref<8x2x128xf32, #tpu.memory_space<vmem>>, vector<1x2x128xf32>,
    %c5_i32 = arith.constant 5 : i32
    %427 = arith.truncf %422 : vector<2x128xf32> to vector<2x128xbf16>
    %c0_174 = arith.constant 0 : index
    %c0_175 = arith.constant 0 : index
    %428 = vector.load %arg6[%c0_174, %c0_175] : memref<128x512xbf16, #tpu.memory_space<vmem>>, vector<128x512xbf16>
    %cst_176 = arith.constant dense<0.000000e+00> : vector<2x512xf32>
    %429 = tpu.matmul %427, %428, %cst_176 {dimension_numbers = #tpu.dot_dimension_numbers<[1], [0], [0], [1], [0, 0, 1, 1], [], []>} : vector<2x128xbf16>, vector<128x512xbf16>, vector<2x512xf32> -> vector<2x512xf32>
    %c0_177 = arith.constant 0 : index
    %c0_178 = arith.constant 0 : index
    %430 = vector.load %arg7[%c0_177, %c0_178] : memref<1x512xf32, #tpu.memory_space<vmem>>, vector<1x512xf32>
    %431 = vector.broadcast %430 : vector<1x512xf32> to vector<2x512xf32>
    %432 = arith.addf %429, %431 : vector<2x512xf32>
    %433 = arith.truncf %387 : vector<2x128xf32> to vector<2x128xbf16>
    %c0_179 = arith.constant 0 : index
    %c0_180 = arith.constant 0 : index
    %434 = vector.load %arg4[%c0_179, %c0_180] : memref<128x512xbf16, #tpu.memory_space<vmem>>, vector<128x512xbf16>
    %cst_181 = arith.constant dense<0.000000e+00> : vector<2x512xf32>
    %435 = tpu.matmul %433, %434, %cst_181 {dimension_numbers = #tpu.dot_dimension_numbers<[1], [0], [0], [1], [0, 0, 1, 1], [], []>} : vector<2x128xbf16>, vector<128x512xbf16>, vector<2x512xf32> -> vector<2x512xf32>
    %436 = arith.index_cast %c5_i32 : i32 to index
    %c0_182 = arith.constant 0 : index
    %c0_183 = arith.constant 0 : index
    %437 = vector.load %arg12[%436, %c0_182, %c0_183] : memref<8x2x512xf32, #tpu.memory_space<vmem>>, vector<1x2x512xf32>
    %438 = vector.shape_cast %437 : vector<1x2x512xf32> to vector<2x512xf32>
    %439 = arith.addf %435, %438 : vector<2x512xf32>
    %440 = vector.extract_strided_slice %439 {offsets = [0, 0], sizes = [2, 128], strides = [1, 1]} : vector<2x512xf32> to vector<2x128xf32>
    %cst_184 = arith.constant 5.000000e-01 : f32
    %441 = vector.broadcast %cst_184 : f32 to vector<2x128xf32>
    %442 = arith.mulf %441, %440 : vector<2x128xf32>
    %443 = math.tanh %442 : vector<2x128xf32>
    %cst_185 = arith.constant 1.000000e+00 : f32
    %444 = vector.broadcast %cst_185 : f32 to vector<2x128xf32>
    %445 = arith.addf %444, %443 : vector<2x128xf32>
    %cst_186 = arith.constant 5.000000e-01 : f32
    %446 = vector.broadcast %cst_186 : f32 to vector<2x128xf32>
    %447 = arith.mulf %446, %445 : vector<2x128xf32>
    %448 = vector.extract_strided_slice %439 {offsets = [0, 128], sizes = [2, 128], strides = [1, 1]} : vector<2x512xf32> to vector<2x128xf32>
    %cst_187 = arith.constant 5.000000e-01 : f32
    %449 = vector.broadcast %cst_187 : f32 to vector<2x128xf32>
    %450 = arith.mulf %449, %448 : vector<2x128xf32>
    %451 = math.tanh %450 : vector<2x128xf32>
    %cst_188 = arith.constant 1.000000e+00 : f32
    %452 = vector.broadcast %cst_188 : f32 to vector<2x128xf32>
    %453 = arith.addf %452, %451 : vector<2x128xf32>
    %cst_189 = arith.constant 5.000000e-01 : f32
    %454 = vector.broadcast %cst_189 : f32 to vector<2x128xf32>
    %455 = arith.mulf %454, %453 : vector<2x128xf32>
    %456 = vector.extract_strided_slice %439 {offsets = [0, 256], sizes = [2, 128], strides = [1, 1]} : vector<2x512xf32> to vector<2x128xf32>
    %457 = math.tanh %456 : vector<2x128xf32>
    %458 = vector.extract_strided_slice %439 {offsets = [0, 384], sizes = [2, 128], strides = [1, 1]} : vector<2x512xf32> to vector<2x128xf32>
    %cst_190 = arith.constant 5.000000e-01 : f32
    %459 = vector.broadcast %cst_190 : f32 to vector<2x128xf32>
    %460 = arith.mulf %459, %458 : vector<2x128xf32>
    %461 = math.tanh %460 : vector<2x128xf32>
    %cst_191 = arith.constant 1.000000e+00 : f32
    %462 = vector.broadcast %cst_191 : f32 to vector<2x128xf32>
    %463 = arith.addf %462, %461 : vector<2x128xf32>
    %cst_192 = arith.constant 5.000000e-01 : f32
    %464 = vector.broadcast %cst_192 : f32 to vector<2x128xf32>
    %465 = arith.mulf %464, %463 : vector<2x128xf32>
    %466 = arith.mulf %455, %385 : vector<2x128xf32>
    %467 = arith.mulf %447, %457 : vector<2x128xf32>
    %468 = arith.addf %466, %467 : vector<2x128xf32>
    %469 = math.tanh %468 : vector<2x128xf32>
    %470 = arith.mulf %465, %469 : vector<2x128xf32>
    %471 = arith.truncf %470 : vector<2x128xf32> to vector<2x128xbf16>
    %c0_193 = arith.constant 0 : index
    %c0_194 = arith.constant 0 : index
    %472 = vector.load %arg5[%c0_193, %c0_194] : memref<128x512xbf16, #tpu.memory_space<vmem>>, vector<128x512xbf16>
    %cst_195 = arith.constant dense<0.000000e+00> : vector<2x512xf32>
    %473 = tpu.matmul %471, %472, %cst_195 {dimension_numbers = #tpu.dot_dimension_numbers<[1], [0], [0], [1], [0, 0, 1, 1], [], []>} : vector<2x128xbf16>, vector<128x512xbf16>, vector<2x512xf32> -> vector<2x512xf32>
    %474 = arith.addf %432, %473 : vector<2x512xf32>
    %475 = vector.extract_strided_slice %474 {offsets = [0, 0], sizes = [2, 128], strides = [1, 1]} : vector<2x512xf32> to vector<2x128xf32>
    %cst_196 = arith.constant 5.000000e-01 : f32
    %476 = vector.broadcast %cst_196 : f32 to vector<2x128xf32>
    %477 = arith.mulf %476, %475 : vector<2x128xf32>
    %478 = math.tanh %477 : vector<2x128xf32>
    %cst_197 = arith.constant 1.000000e+00 : f32
    %479 = vector.broadcast %cst_197 : f32 to vector<2x128xf32>
    %480 = arith.addf %479, %478 : vector<2x128xf32>
    %cst_198 = arith.constant 5.000000e-01 : f32
    %481 = vector.broadcast %cst_198 : f32 to vector<2x128xf32>
    %482 = arith.mulf %481, %480 : vector<2x128xf32>
    %483 = vector.extract_strided_slice %474 {offsets = [0, 128], sizes = [2, 128], strides = [1, 1]} : vector<2x512xf32> to vector<2x128xf32>
    %cst_199 = arith.constant 5.000000e-01 : f32
    %484 = vector.broadcast %cst_199 : f32 to vector<2x128xf32>
    %485 = arith.mulf %484, %483 : vector<2x128xf32>
    %486 = math.tanh %485 : vector<2x128xf32>
    %cst_200 = arith.constant 1.000000e+00 : f32
    %487 = vector.broadcast %cst_200 : f32 to vector<2x128xf32>
    %488 = arith.addf %487, %486 : vector<2x128xf32>
    %cst_201 = arith.constant 5.000000e-01 : f32
    %489 = vector.broadcast %cst_201 : f32 to vector<2x128xf32>
    %490 = arith.mulf %489, %488 : vector<2x128xf32>
    %491 = vector.extract_strided_slice %474 {offsets = [0, 256], sizes = [2, 128], strides = [1, 1]} : vector<2x512xf32> to vector<2x128xf32>
    %492 = math.tanh %491 : vector<2x128xf32>
    %493 = vector.extract_strided_slice %474 {offsets = [0, 384], sizes = [2, 128], strides = [1, 1]} : vector<2x512xf32> to vector<2x128xf32>
    %cst_202 = arith.constant 5.000000e-01 : f32
    %494 = vector.broadcast %cst_202 : f32 to vector<2x128xf32>
    %495 = arith.mulf %494, %493 : vector<2x128xf32>
    %496 = math.tanh %495 : vector<2x128xf32>
    %cst_203 = arith.constant 1.000000e+00 : f32
    %497 = vector.broadcast %cst_203 : f32 to vector<2x128xf32>
    %498 = arith.addf %497, %496 : vector<2x128xf32>
    %cst_204 = arith.constant 5.000000e-01 : f32
    %499 = vector.broadcast %cst_204 : f32 to vector<2x128xf32>
    %500 = arith.mulf %499, %498 : vector<2x128xf32>
    %501 = arith.mulf %490, %420 : vector<2x128xf32>
    %502 = arith.mulf %482, %492 : vector<2x128xf32>
    %503 = arith.addf %501, %502 : vector<2x128xf32>
    %504 = math.tanh %503 : vector<2x128xf32>
    %505 = arith.mulf %500, %504 : vector<2x128xf32>
    %506 = arith.index_cast %c5_i32 : i32 to index
    %c0_205 = arith.constant 0 : index
    %c0_206 = arith.constant 0 : index
    %507 = vector.load %arg13[%506, %c0_205, %c0_206] : memref<8x2x128xf32, #tpu.memory_space<vmem>>, vector<1x2x128xf32>
    %508 = vector.shape_cast %507 : vector<1x2x128xf32> to vector<2x128xf32>
    %509 = vector.shape_cast %505 : vector<2x128xf32> to vector<1x2x128xf32>
    tpu.vector_store %arg13[%506, %c0_205, %c0_206], %509 {strides = array<i32>} : memref<8x2x128xf32, #tpu.memory_space<vmem>>, vector<1x2x128xf32>,
    %c6_i32 = arith.constant 6 : i32
    %510 = arith.truncf %505 : vector<2x128xf32> to vector<2x128xbf16>
    %c0_207 = arith.constant 0 : index
    %c0_208 = arith.constant 0 : index
    %511 = vector.load %arg6[%c0_207, %c0_208] : memref<128x512xbf16, #tpu.memory_space<vmem>>, vector<128x512xbf16>
    %cst_209 = arith.constant dense<0.000000e+00> : vector<2x512xf32>
    %512 = tpu.matmul %510, %511, %cst_209 {dimension_numbers = #tpu.dot_dimension_numbers<[1], [0], [0], [1], [0, 0, 1, 1], [], []>} : vector<2x128xbf16>, vector<128x512xbf16>, vector<2x512xf32> -> vector<2x512xf32>
    %c0_210 = arith.constant 0 : index
    %c0_211 = arith.constant 0 : index
    %513 = vector.load %arg7[%c0_210, %c0_211] : memref<1x512xf32, #tpu.memory_space<vmem>>, vector<1x512xf32>
    %514 = vector.broadcast %513 : vector<1x512xf32> to vector<2x512xf32>
    %515 = arith.addf %512, %514 : vector<2x512xf32>
    %516 = arith.truncf %470 : vector<2x128xf32> to vector<2x128xbf16>
    %c0_212 = arith.constant 0 : index
    %c0_213 = arith.constant 0 : index
    %517 = vector.load %arg4[%c0_212, %c0_213] : memref<128x512xbf16, #tpu.memory_space<vmem>>, vector<128x512xbf16>
    %cst_214 = arith.constant dense<0.000000e+00> : vector<2x512xf32>
    %518 = tpu.matmul %516, %517, %cst_214 {dimension_numbers = #tpu.dot_dimension_numbers<[1], [0], [0], [1], [0, 0, 1, 1], [], []>} : vector<2x128xbf16>, vector<128x512xbf16>, vector<2x512xf32> -> vector<2x512xf32>
    %519 = arith.index_cast %c6_i32 : i32 to index
    %c0_215 = arith.constant 0 : index
    %c0_216 = arith.constant 0 : index
    %520 = vector.load %arg12[%519, %c0_215, %c0_216] : memref<8x2x512xf32, #tpu.memory_space<vmem>>, vector<1x2x512xf32>
    %521 = vector.shape_cast %520 : vector<1x2x512xf32> to vector<2x512xf32>
    %522 = arith.addf %518, %521 : vector<2x512xf32>
    %523 = vector.extract_strided_slice %522 {offsets = [0, 0], sizes = [2, 128], strides = [1, 1]} : vector<2x512xf32> to vector<2x128xf32>
    %cst_217 = arith.constant 5.000000e-01 : f32
    %524 = vector.broadcast %cst_217 : f32 to vector<2x128xf32>
    %525 = arith.mulf %524, %523 : vector<2x128xf32>
    %526 = math.tanh %525 : vector<2x128xf32>
    %cst_218 = arith.constant 1.000000e+00 : f32
    %527 = vector.broadcast %cst_218 : f32 to vector<2x128xf32>
    %528 = arith.addf %527, %526 : vector<2x128xf32>
    %cst_219 = arith.constant 5.000000e-01 : f32
    %529 = vector.broadcast %cst_219 : f32 to vector<2x128xf32>
    %530 = arith.mulf %529, %528 : vector<2x128xf32>
    %531 = vector.extract_strided_slice %522 {offsets = [0, 128], sizes = [2, 128], strides = [1, 1]} : vector<2x512xf32> to vector<2x128xf32>
    %cst_220 = arith.constant 5.000000e-01 : f32
    %532 = vector.broadcast %cst_220 : f32 to vector<2x128xf32>
    %533 = arith.mulf %532, %531 : vector<2x128xf32>
    %534 = math.tanh %533 : vector<2x128xf32>
    %cst_221 = arith.constant 1.000000e+00 : f32
    %535 = vector.broadcast %cst_221 : f32 to vector<2x128xf32>
    %536 = arith.addf %535, %534 : vector<2x128xf32>
    %cst_222 = arith.constant 5.000000e-01 : f32
    %537 = vector.broadcast %cst_222 : f32 to vector<2x128xf32>
    %538 = arith.mulf %537, %536 : vector<2x128xf32>
    %539 = vector.extract_strided_slice %522 {offsets = [0, 256], sizes = [2, 128], strides = [1, 1]} : vector<2x512xf32> to vector<2x128xf32>
    %540 = math.tanh %539 : vector<2x128xf32>
    %541 = vector.extract_strided_slice %522 {offsets = [0, 384], sizes = [2, 128], strides = [1, 1]} : vector<2x512xf32> to vector<2x128xf32>
    %cst_223 = arith.constant 5.000000e-01 : f32
    %542 = vector.broadcast %cst_223 : f32 to vector<2x128xf32>
    %543 = arith.mulf %542, %541 : vector<2x128xf32>
    %544 = math.tanh %543 : vector<2x128xf32>
    %cst_224 = arith.constant 1.000000e+00 : f32
    %545 = vector.broadcast %cst_224 : f32 to vector<2x128xf32>
    %546 = arith.addf %545, %544 : vector<2x128xf32>
    %cst_225 = arith.constant 5.000000e-01 : f32
    %547 = vector.broadcast %cst_225 : f32 to vector<2x128xf32>
    %548 = arith.mulf %547, %546 : vector<2x128xf32>
    %549 = arith.mulf %538, %468 : vector<2x128xf32>
    %550 = arith.mulf %530, %540 : vector<2x128xf32>
    %551 = arith.addf %549, %550 : vector<2x128xf32>
    %552 = math.tanh %551 : vector<2x128xf32>
    %553 = arith.mulf %548, %552 : vector<2x128xf32>
    %554 = arith.truncf %553 : vector<2x128xf32> to vector<2x128xbf16>
    %c0_226 = arith.constant 0 : index
    %c0_227 = arith.constant 0 : index
    %555 = vector.load %arg5[%c0_226, %c0_227] : memref<128x512xbf16, #tpu.memory_space<vmem>>, vector<128x512xbf16>
    %cst_228 = arith.constant dense<0.000000e+00> : vector<2x512xf32>
    %556 = tpu.matmul %554, %555, %cst_228 {dimension_numbers = #tpu.dot_dimension_numbers<[1], [0], [0], [1], [0, 0, 1, 1], [], []>} : vector<2x128xbf16>, vector<128x512xbf16>, vector<2x512xf32> -> vector<2x512xf32>
    %557 = arith.addf %515, %556 : vector<2x512xf32>
    %558 = vector.extract_strided_slice %557 {offsets = [0, 0], sizes = [2, 128], strides = [1, 1]} : vector<2x512xf32> to vector<2x128xf32>
    %cst_229 = arith.constant 5.000000e-01 : f32
    %559 = vector.broadcast %cst_229 : f32 to vector<2x128xf32>
    %560 = arith.mulf %559, %558 : vector<2x128xf32>
    %561 = math.tanh %560 : vector<2x128xf32>
    %cst_230 = arith.constant 1.000000e+00 : f32
    %562 = vector.broadcast %cst_230 : f32 to vector<2x128xf32>
    %563 = arith.addf %562, %561 : vector<2x128xf32>
    %cst_231 = arith.constant 5.000000e-01 : f32
    %564 = vector.broadcast %cst_231 : f32 to vector<2x128xf32>
    %565 = arith.mulf %564, %563 : vector<2x128xf32>
    %566 = vector.extract_strided_slice %557 {offsets = [0, 128], sizes = [2, 128], strides = [1, 1]} : vector<2x512xf32> to vector<2x128xf32>
    %cst_232 = arith.constant 5.000000e-01 : f32
    %567 = vector.broadcast %cst_232 : f32 to vector<2x128xf32>
    %568 = arith.mulf %567, %566 : vector<2x128xf32>
    %569 = math.tanh %568 : vector<2x128xf32>
    %cst_233 = arith.constant 1.000000e+00 : f32
    %570 = vector.broadcast %cst_233 : f32 to vector<2x128xf32>
    %571 = arith.addf %570, %569 : vector<2x128xf32>
    %cst_234 = arith.constant 5.000000e-01 : f32
    %572 = vector.broadcast %cst_234 : f32 to vector<2x128xf32>
    %573 = arith.mulf %572, %571 : vector<2x128xf32>
    %574 = vector.extract_strided_slice %557 {offsets = [0, 256], sizes = [2, 128], strides = [1, 1]} : vector<2x512xf32> to vector<2x128xf32>
    %575 = math.tanh %574 : vector<2x128xf32>
    %576 = vector.extract_strided_slice %557 {offsets = [0, 384], sizes = [2, 128], strides = [1, 1]} : vector<2x512xf32> to vector<2x128xf32>
    %cst_235 = arith.constant 5.000000e-01 : f32
    %577 = vector.broadcast %cst_235 : f32 to vector<2x128xf32>
    %578 = arith.mulf %577, %576 : vector<2x128xf32>
    %579 = math.tanh %578 : vector<2x128xf32>
    %cst_236 = arith.constant 1.000000e+00 : f32
    %580 = vector.broadcast %cst_236 : f32 to vector<2x128xf32>
    %581 = arith.addf %580, %579 : vector<2x128xf32>
    %cst_237 = arith.constant 5.000000e-01 : f32
    %582 = vector.broadcast %cst_237 : f32 to vector<2x128xf32>
    %583 = arith.mulf %582, %581 : vector<2x128xf32>
    %584 = arith.mulf %573, %503 : vector<2x128xf32>
    %585 = arith.mulf %565, %575 : vector<2x128xf32>
    %586 = arith.addf %584, %585 : vector<2x128xf32>
    %587 = math.tanh %586 : vector<2x128xf32>
    %588 = arith.mulf %583, %587 : vector<2x128xf32>
    %589 = arith.index_cast %c6_i32 : i32 to index
    %c0_238 = arith.constant 0 : index
    %c0_239 = arith.constant 0 : index
    %590 = vector.load %arg13[%589, %c0_238, %c0_239] : memref<8x2x128xf32, #tpu.memory_space<vmem>>, vector<1x2x128xf32>
    %591 = vector.shape_cast %590 : vector<1x2x128xf32> to vector<2x128xf32>
    %592 = vector.shape_cast %588 : vector<2x128xf32> to vector<1x2x128xf32>
    tpu.vector_store %arg13[%589, %c0_238, %c0_239], %592 {strides = array<i32>} : memref<8x2x128xf32, #tpu.memory_space<vmem>>, vector<1x2x128xf32>,
    %c7_i32 = arith.constant 7 : i32
    %593 = arith.truncf %588 : vector<2x128xf32> to vector<2x128xbf16>
    %c0_240 = arith.constant 0 : index
    %c0_241 = arith.constant 0 : index
    %594 = vector.load %arg6[%c0_240, %c0_241] : memref<128x512xbf16, #tpu.memory_space<vmem>>, vector<128x512xbf16>
    %cst_242 = arith.constant dense<0.000000e+00> : vector<2x512xf32>
    %595 = tpu.matmul %593, %594, %cst_242 {dimension_numbers = #tpu.dot_dimension_numbers<[1], [0], [0], [1], [0, 0, 1, 1], [], []>} : vector<2x128xbf16>, vector<128x512xbf16>, vector<2x512xf32> -> vector<2x512xf32>
    %c0_243 = arith.constant 0 : index
    %c0_244 = arith.constant 0 : index
    %596 = vector.load %arg7[%c0_243, %c0_244] : memref<1x512xf32, #tpu.memory_space<vmem>>, vector<1x512xf32>
    %597 = vector.broadcast %596 : vector<1x512xf32> to vector<2x512xf32>
    %598 = arith.addf %595, %597 : vector<2x512xf32>
    %599 = arith.truncf %553 : vector<2x128xf32> to vector<2x128xbf16>
    %c0_245 = arith.constant 0 : index
    %c0_246 = arith.constant 0 : index
    %600 = vector.load %arg4[%c0_245, %c0_246] : memref<128x512xbf16, #tpu.memory_space<vmem>>, vector<128x512xbf16>
    %cst_247 = arith.constant dense<0.000000e+00> : vector<2x512xf32>
    %601 = tpu.matmul %599, %600, %cst_247 {dimension_numbers = #tpu.dot_dimension_numbers<[1], [0], [0], [1], [0, 0, 1, 1], [], []>} : vector<2x128xbf16>, vector<128x512xbf16>, vector<2x512xf32> -> vector<2x512xf32>
    %602 = arith.index_cast %c7_i32 : i32 to index
    %c0_248 = arith.constant 0 : index
    %c0_249 = arith.constant 0 : index
    %603 = vector.load %arg12[%602, %c0_248, %c0_249] : memref<8x2x512xf32, #tpu.memory_space<vmem>>, vector<1x2x512xf32>
    %604 = vector.shape_cast %603 : vector<1x2x512xf32> to vector<2x512xf32>
    %605 = arith.addf %601, %604 : vector<2x512xf32>
    %606 = vector.extract_strided_slice %605 {offsets = [0, 0], sizes = [2, 128], strides = [1, 1]} : vector<2x512xf32> to vector<2x128xf32>
    %cst_250 = arith.constant 5.000000e-01 : f32
    %607 = vector.broadcast %cst_250 : f32 to vector<2x128xf32>
    %608 = arith.mulf %607, %606 : vector<2x128xf32>
    %609 = math.tanh %608 : vector<2x128xf32>
    %cst_251 = arith.constant 1.000000e+00 : f32
    %610 = vector.broadcast %cst_251 : f32 to vector<2x128xf32>
    %611 = arith.addf %610, %609 : vector<2x128xf32>
    %cst_252 = arith.constant 5.000000e-01 : f32
    %612 = vector.broadcast %cst_252 : f32 to vector<2x128xf32>
    %613 = arith.mulf %612, %611 : vector<2x128xf32>
    %614 = vector.extract_strided_slice %605 {offsets = [0, 128], sizes = [2, 128], strides = [1, 1]} : vector<2x512xf32> to vector<2x128xf32>
    %cst_253 = arith.constant 5.000000e-01 : f32
    %615 = vector.broadcast %cst_253 : f32 to vector<2x128xf32>
    %616 = arith.mulf %615, %614 : vector<2x128xf32>
    %617 = math.tanh %616 : vector<2x128xf32>
    %cst_254 = arith.constant 1.000000e+00 : f32
    %618 = vector.broadcast %cst_254 : f32 to vector<2x128xf32>
    %619 = arith.addf %618, %617 : vector<2x128xf32>
    %cst_255 = arith.constant 5.000000e-01 : f32
    %620 = vector.broadcast %cst_255 : f32 to vector<2x128xf32>
    %621 = arith.mulf %620, %619 : vector<2x128xf32>
    %622 = vector.extract_strided_slice %605 {offsets = [0, 256], sizes = [2, 128], strides = [1, 1]} : vector<2x512xf32> to vector<2x128xf32>
    %623 = math.tanh %622 : vector<2x128xf32>
    %624 = vector.extract_strided_slice %605 {offsets = [0, 384], sizes = [2, 128], strides = [1, 1]} : vector<2x512xf32> to vector<2x128xf32>
    %cst_256 = arith.constant 5.000000e-01 : f32
    %625 = vector.broadcast %cst_256 : f32 to vector<2x128xf32>
    %626 = arith.mulf %625, %624 : vector<2x128xf32>
    %627 = math.tanh %626 : vector<2x128xf32>
    %cst_257 = arith.constant 1.000000e+00 : f32
    %628 = vector.broadcast %cst_257 : f32 to vector<2x128xf32>
    %629 = arith.addf %628, %627 : vector<2x128xf32>
    %cst_258 = arith.constant 5.000000e-01 : f32
    %630 = vector.broadcast %cst_258 : f32 to vector<2x128xf32>
    %631 = arith.mulf %630, %629 : vector<2x128xf32>
    %632 = arith.mulf %621, %551 : vector<2x128xf32>
    %633 = arith.mulf %613, %623 : vector<2x128xf32>
    %634 = arith.addf %632, %633 : vector<2x128xf32>
    %635 = math.tanh %634 : vector<2x128xf32>
    %636 = arith.mulf %631, %635 : vector<2x128xf32>
    %637 = arith.truncf %636 : vector<2x128xf32> to vector<2x128xbf16>
    %c0_259 = arith.constant 0 : index
    %c0_260 = arith.constant 0 : index
    %638 = vector.load %arg5[%c0_259, %c0_260] : memref<128x512xbf16, #tpu.memory_space<vmem>>, vector<128x512xbf16>
    %cst_261 = arith.constant dense<0.000000e+00> : vector<2x512xf32>
    %639 = tpu.matmul %637, %638, %cst_261 {dimension_numbers = #tpu.dot_dimension_numbers<[1], [0], [0], [1], [0, 0, 1, 1], [], []>} : vector<2x128xbf16>, vector<128x512xbf16>, vector<2x512xf32> -> vector<2x512xf32>
    %640 = arith.addf %598, %639 : vector<2x512xf32>
    %641 = vector.extract_strided_slice %640 {offsets = [0, 0], sizes = [2, 128], strides = [1, 1]} : vector<2x512xf32> to vector<2x128xf32>
    %cst_262 = arith.constant 5.000000e-01 : f32
    %642 = vector.broadcast %cst_262 : f32 to vector<2x128xf32>
    %643 = arith.mulf %642, %641 : vector<2x128xf32>
    %644 = math.tanh %643 : vector<2x128xf32>
    %cst_263 = arith.constant 1.000000e+00 : f32
    %645 = vector.broadcast %cst_263 : f32 to vector<2x128xf32>
    %646 = arith.addf %645, %644 : vector<2x128xf32>
    %cst_264 = arith.constant 5.000000e-01 : f32
    %647 = vector.broadcast %cst_264 : f32 to vector<2x128xf32>
    %648 = arith.mulf %647, %646 : vector<2x128xf32>
    %649 = vector.extract_strided_slice %640 {offsets = [0, 128], sizes = [2, 128], strides = [1, 1]} : vector<2x512xf32> to vector<2x128xf32>
    %cst_265 = arith.constant 5.000000e-01 : f32
    %650 = vector.broadcast %cst_265 : f32 to vector<2x128xf32>
    %651 = arith.mulf %650, %649 : vector<2x128xf32>
    %652 = math.tanh %651 : vector<2x128xf32>
    %cst_266 = arith.constant 1.000000e+00 : f32
    %653 = vector.broadcast %cst_266 : f32 to vector<2x128xf32>
    %654 = arith.addf %653, %652 : vector<2x128xf32>
    %cst_267 = arith.constant 5.000000e-01 : f32
    %655 = vector.broadcast %cst_267 : f32 to vector<2x128xf32>
    %656 = arith.mulf %655, %654 : vector<2x128xf32>
    %657 = vector.extract_strided_slice %640 {offsets = [0, 256], sizes = [2, 128], strides = [1, 1]} : vector<2x512xf32> to vector<2x128xf32>
    %658 = math.tanh %657 : vector<2x128xf32>
    %659 = vector.extract_strided_slice %640 {offsets = [0, 384], sizes = [2, 128], strides = [1, 1]} : vector<2x512xf32> to vector<2x128xf32>
    %cst_268 = arith.constant 5.000000e-01 : f32
    %660 = vector.broadcast %cst_268 : f32 to vector<2x128xf32>
    %661 = arith.mulf %660, %659 : vector<2x128xf32>
    %662 = math.tanh %661 : vector<2x128xf32>
    %cst_269 = arith.constant 1.000000e+00 : f32
    %663 = vector.broadcast %cst_269 : f32 to vector<2x128xf32>
    %664 = arith.addf %663, %662 : vector<2x128xf32>
    %cst_270 = arith.constant 5.000000e-01 : f32
    %665 = vector.broadcast %cst_270 : f32 to vector<2x128xf32>
    %666 = arith.mulf %665, %664 : vector<2x128xf32>
    %667 = arith.mulf %656, %586 : vector<2x128xf32>
    %668 = arith.mulf %648, %658 : vector<2x128xf32>
    %669 = arith.addf %667, %668 : vector<2x128xf32>
    %670 = math.tanh %669 : vector<2x128xf32>
    %671 = arith.mulf %666, %670 : vector<2x128xf32>
    %672 = arith.index_cast %c7_i32 : i32 to index
    %c0_271 = arith.constant 0 : index
    %c0_272 = arith.constant 0 : index
    %673 = vector.load %arg13[%672, %c0_271, %c0_272] : memref<8x2x128xf32, #tpu.memory_space<vmem>>, vector<1x2x128xf32>
    %674 = vector.shape_cast %673 : vector<1x2x128xf32> to vector<2x128xf32>
    %675 = vector.shape_cast %671 : vector<2x128xf32> to vector<1x2x128xf32>
    tpu.vector_store %arg13[%672, %c0_271, %c0_272], %675 {strides = array<i32>} : memref<8x2x128xf32, #tpu.memory_space<vmem>>, vector<1x2x128xf32>,
    %c8_i32 = arith.constant 8 : i32
    %c0_273 = arith.constant 0 : index
    %c0_274 = arith.constant 0 : index
    %c0_275 = arith.constant 0 : index
    %676 = vector.load %arg13[%c0_273, %c0_274, %c0_275] : memref<8x2x128xf32, #tpu.memory_space<vmem>>, vector<8x2x128xf32>
    %c0_276 = arith.constant 0 : index
    %c0_277 = arith.constant 0 : index
    %677 = vector.load %arg8[%c0_276, %c0_277] : memref<1x128xf32, #tpu.memory_space<vmem>>, vector<1x128xf32>
    %678 = vector.shape_cast %677 : vector<1x128xf32> to vector<1x1x128xf32>
    %679 = vector.broadcast %678 : vector<1x1x128xf32> to vector<8x2x128xf32>
    %680 = arith.mulf %676, %679 : vector<8x2x128xf32>
    %cst_278 = arith.constant dense<0.000000e+00> : vector<8x2xf32>
    %681 = vector.multi_reduction <add>, %680, %cst_278 [2] : vector<8x2x128xf32> to vector<8x2xf32>
    %c0_279 = arith.constant 0 : index
    %c0_280 = arith.constant 0 : index
    %682 = vector.load %arg9[%c0_279, %c0_280] : memref<1x1xf32, #tpu.memory_space<vmem>>, vector<1x1xf32>
    %683 = vector.broadcast %682 : vector<1x1xf32> to vector<8x2xf32>
    %684 = arith.addf %681, %683 : vector<8x2xf32>
    %c0_281 = arith.constant 0 : index
    %c0_282 = arith.constant 0 : index
    %685 = vector.load %arg10[%c0_281, %c0_282] : memref<8x2xf32, #tpu.memory_space<vmem>>, vector<8x2xf32>
    tpu.vector_store %arg10[%c0_281, %c0_282], %684 {strides = array<i32>} : memref<8x2xf32, #tpu.memory_space<vmem>>, vector<8x2xf32>,
    %c0_283 = arith.constant 0 : index
    %c0_284 = arith.constant 0 : index
    %686 = vector.load %arg1[%c0_283, %c0_284] : memref<8x2xf32, #tpu.memory_space<vmem>>, vector<8x2xf32>
    %687 = arith.subf %686, %684 : vector<8x2xf32>
    %688 = arith.mulf %687, %687 : vector<8x2xf32>
    %689 = vector.shape_cast %688 : vector<8x2xf32> to vector<1x8x2xf32>
    %cst_285 = arith.constant dense<0.000000e+00> : vector<1xf32>
    %690 = vector.multi_reduction <add>, %689, %cst_285 [1, 2] : vector<1x8x2xf32> to vector<1xf32>
    %691 = vector.shape_cast %690 : vector<1xf32> to vector<1x1x1xf32>
    %692 = vector.extract %691[0, 0, 0] : f32 from vector<1x1x1xf32>
    %cst_286 = arith.constant 6.250000e-02 : f32
    %693 = arith.mulf %692, %cst_286 : f32
    %694 = vector.broadcast %693 : f32 to vector<1x1xf32>
    %c0_287 = arith.constant 0 : index
    %c0_288 = arith.constant 0 : index
    %695 = vector.load %arg11[%c0_287, %c0_288] : memref<1x1xf32, #tpu.memory_space<vmem>>, vector<1x1xf32>
    tpu.vector_store %arg11[%c0_287, %c0_288], %694 {strides = array<i32>} : memref<1x1xf32, #tpu.memory_space<vmem>>, vector<1x1xf32>,
    return
  }
}

</mosaic_0001>

<llo_original>
// kernel: network_forward.1
$region0: #{network_forward.1}
  #allocation0 [shape = 'u32[]', space=smem, size = 0x4, offset = 0x4, fixed_abs, tag = 'smem constant byte address 0x4 - core index']
  #allocation1 [shape = 'u32[144,128]{1,0:T(1,128)}', space=vmem, size = 0x12000, scoped, tag = 'internal scratch']
  #allocation2 [shape = 'f32[8,2,512]{2,1,0:T(2,128)}', space=vmem, size = 0x8000, scoped, tag = 'scratch operand']
  #allocation3 [shape = 'f32[8,2,128]{2,1,0:T(2,128)}', space=vmem, size = 0x2000, scoped, tag = 'scratch operand']
  #allocation4 [shape = 'f32[1,1]{1,0:T(1,128)S(1)}', space=vmem, size = 0x200, scoped, tag = 'scoped memory for network_forward.1']
  %s0 = inlined_call_operand.vmem [shape: f32[8,2,1], index: 0, kind: input, shape index: {}]
  %s1 = inlined_call_operand.vmem [shape: f32[8,2], index: 1, kind: input, shape index: {}]
  %s2 = inlined_call_operand.vmem [shape: f32[1,512], index: 2, kind: input, shape index: {}]
  %s3 = inlined_call_operand.vmem [shape: f32[1,512], index: 3, kind: input, shape index: {}]
  %s4 = inlined_call_operand.hbm [shape: bf16[128,512], index: 4, kind: input, shape index: {}]
  %s5 = inlined_call_operand.hbm [shape: bf16[128,512], index: 5, kind: input, shape index: {}]
  %s6 = inlined_call_operand.hbm [shape: bf16[128,512], index: 6, kind: input, shape index: {}]
  %s7 = inlined_call_operand.vmem [shape: f32[1,512], index: 7, kind: input, shape index: {}]
  %s8 = inlined_call_operand.vmem [shape: f32[1,128], index: 8, kind: input, shape index: {}]
  %s9 = inlined_call_operand.<no memory space> [shape: f32[1,1], index: 9, kind: input, shape index: {}]
  %s10 = inlined_call_operand.vmem [shape: f32[8,2], index: 10, kind: output, shape index: {0}]
  %s11 = inlined_call_operand.hbm [shape: f32[1,1], index: 11, kind: output, shape index: {1}]
  %12 = xla_tuple %s10, %s11
  %s13 = sld [smem:[#allocation0]]
  $region70: #{network_forward.1} parent=0
    _
  %s15 = ssub.s32 1, %s13
  %s16 = scalar_select 0, %s15, %s13
  %v17 = vstv %s9
  %18 = vst [vmem:[#allocation4] sm:$0x1] %v17
  $region1: #{network_forward.1} parent=0
    #allocation5 [shape = 'u8[131072]{0}', space=vmem, size = 0x20000, scoped, tag = 'input window, operand 4, single buffered']
    #allocation6 [shape = 's32[1]{0}', space=sflag, size = 0x4, scoped, tag = 'scoped memory for network_forward.1']
    #allocation7 [shape = 's32[1]{0}', space=sflag, size = 0x4, scoped, tag = 'scoped memory for network_forward.1']
    #allocation8 [shape = 'u8[131072]{0}', space=vmem, size = 0x20000, scoped, tag = 'input window, operand 5, single buffered']
    #allocation9 [shape = 's32[1]{0}', space=sflag, size = 0x4, scoped, tag = 'scoped memory for network_forward.1']
    #allocation10 [shape = 'u8[131072]{0}', space=vmem, size = 0x20000, scoped, tag = 'input window, operand 6, single buffered']
    #allocation11 [shape = 'u8[512]{0}', space=vmem, size = 0x400, scoped, tag = 'output window, operand 1, single buffered']
    %19 = vsyncpa [#allocation6], 0
    %20 = vsyncpa [#allocation9], 0
    %21 = vsyncpa [#allocation7], 0
    // Predicated region
    $region2: #{network_forward.1} parent=1 // pred_check
      _
    $region3: #{network_forward.1} parent=1 // pred_check_branch
      %23 = sbr.rel (0) target = $region5
    $region4: #{network_forward.1} parent=1 // pred_region
      _
    $region5: #{network_forward.1} parent=1 // pred_fallthru
      _
    // Predicated region
    $region6: #{network_forward.1} parent=1 // pred_check
      _
    $region7: #{network_forward.1} parent=1 // pred_check_branch
      %25 = sbr.rel (0) target = $region9
    $region8: #{network_forward.1} parent=1 // pred_region
      _
    $region9: #{network_forward.1} parent=1 // pred_fallthru
      _
    // Predicated region
    $region10: #{network_forward.1} parent=1 // pred_check
      _
    $region11: #{network_forward.1} parent=1 // pred_check_branch
      %27 = sbr.rel (0) target = $region13
    $region12: #{network_forward.1} parent=1 // pred_region
      _
    $region13: #{network_forward.1} parent=1 // pred_fallthru
      _
    // Predicated region
    $region14: #{network_forward.1} parent=1 // pred_check
      _
    $region15: #{network_forward.1} parent=1 // pred_check_branch
      %29 = sbr.rel (0) target = $region17
    $region16: #{network_forward.1} parent=1 // pred_region
      _
    $region17: #{network_forward.1} parent=1 // pred_fallthru
      _
    // Predicated region
    $region18: #{network_forward.1} parent=1 // pred_check
      _
    $region19: #{network_forward.1} parent=1 // pred_check_branch
      %31 = sbr.rel (0) target = $region21
    $region20: #{network_forward.1} parent=1 // pred_region
      %s33 = ssub.s32 4096, 4096
      %34 = vsyncadd [#allocation6], %s33
      %s35 = sshll.u32 [#allocation5], 4
      %s36 = int_to_ptr.vmem [resolvable:$true] %s35
      %41 = dma.hbm_to_vmem [thread:$0]  %s4, 4096, %s36, [#allocation6], 256, 256, 16
    $region21: #{network_forward.1} parent=1 // pred_fallthru
      _
    // Predicated region
    $region22: #{network_forward.1} parent=1 // pred_check
      _
    $region23: #{network_forward.1} parent=1 // pred_check_branch
      %43 = sbr.rel (0) target = $region25
    $region24: #{network_forward.1} parent=1 // pred_region
      %s45 = ssub.s32 4096, 4096
      %46 = vsyncadd [#allocation9], %s45
      %s47 = sshll.u32 [#allocation8], 4
      %s48 = int_to_ptr.vmem [resolvable:$true] %s47
      %53 = dma.hbm_to_vmem [thread:$0]  %s5, 4096, %s48, [#allocation9], 256, 256, 16
    $region25: #{network_forward.1} parent=1 // pred_fallthru
      _
    // Predicated region
    $region26: #{network_forward.1} parent=1 // pred_check
      _
    $region27: #{network_forward.1} parent=1 // pred_check_branch
      %55 = sbr.rel (0) target = $region29
    $region28: #{network_forward.1} parent=1 // pred_region
      %s57 = ssub.s32 4096, 4096
      %58 = vsyncadd [#allocation9], %s57
      %s59 = sshll.u32 [#allocation10], 4
      %s60 = int_to_ptr.vmem [resolvable:$true] %s59
      %65 = dma.hbm_to_vmem [thread:$0]  %s6, 4096, %s60, [#allocation9], 256, 256, 16
    $region29: #{network_forward.1} parent=1 // pred_fallthru
      _
    // Predicated region
    $region30: #{network_forward.1} parent=1 // pred_check
      _
    $region31: #{network_forward.1} parent=1 // pred_check_branch
      %67 = sbr.rel (0) target = $region33
    $region32: #{network_forward.1} parent=1 // pred_region
      _
    $region33: #{network_forward.1} parent=1 // pred_fallthru
      _
    // Predicated region
    $region34: #{network_forward.1} parent=1 // pred_check
      _
    $region35: #{network_forward.1} parent=1 // pred_check_branch
      %69 = sbr.rel (0) target = $region37
    $region36: #{network_forward.1} parent=1 // pred_region
      _
    $region37: #{network_forward.1} parent=1 // pred_fallthru
      _
    // Predicated region
    $region38: #{network_forward.1} parent=1 // pred_check
      _
    $region39: #{network_forward.1} parent=1 // pred_check_branch
      %71 = sbr.rel (0) target = $region41
    $region40: #{network_forward.1} parent=1 // pred_region
      _
    $region41: #{network_forward.1} parent=1 // pred_fallthru
      _
    // Predicated region
    $region42: #{network_forward.1} parent=1 // pred_check
      _
    $region43: #{network_forward.1} parent=1 // pred_check_branch
      %73 = sbr.rel (0) target = $region45
    $region44: #{network_forward.1} parent=1 // pred_region
      %74 = dma.done [#allocation6], 4096
    $region45: #{network_forward.1} parent=1 // pred_fallthru
      _
    // Predicated region
    $region46: #{network_forward.1} parent=1 // pred_check
      _
    $region47: #{network_forward.1} parent=1 // pred_check_branch
      %76 = sbr.rel (0) target = $region49
    $region48: #{network_forward.1} parent=1 // pred_region
      %77 = dma.done [#allocation9], 4096
    $region49: #{network_forward.1} parent=1 // pred_fallthru
      _
    // Predicated region
    $region50: #{network_forward.1} parent=1 // pred_check
      _
    $region51: #{network_forward.1} parent=1 // pred_check_branch
      %79 = sbr.rel (0) target = $region53
    $region52: #{network_forward.1} parent=1 // pred_region
      %80 = dma.done [#allocation9], 4096
    $region53: #{network_forward.1} parent=1 // pred_fallthru
      _
    %v82 = vld [vmem:[%s0] sm:$0x3]
    %v83 = vld [vmem:[%s0 + $0x2] sm:$0x3]
    %v84 = vld [vmem:[%s0 + $0x4] sm:$0x3]
    %v85 = vld [vmem:[%s0 + $0x6] sm:$0x3]
    %v86 = vld [vmem:[%s0 + $0x8] sm:$0x3]
    %v87 = vld [vmem:[%s0 + $0xa] sm:$0x3]
    %v88 = vld [vmem:[%s0 + $0xc] sm:$0x3]
    %v89 = vld [vmem:[%s0 + $0xe] sm:$0x3]
    %v90 = vld [vmem:[%s2] sm:$0xf]
    %92 = vset.pattern.permute.xlu0 0
    %93 = vperm.xlu0 %92, %v82
    %v94 = vpop.permute.xlu0 %93
    %97 = vset.pattern.permute.xlu0 0
    %98 = vperm.xlu0 %97, %v83
    %v99 = vpop.permute.xlu0 %98
    %102 = vset.pattern.permute.xlu0 0
    %103 = vperm.xlu0 %102, %v84
    %v104 = vpop.permute.xlu0 %103
    %107 = vset.pattern.permute.xlu0 0
    %108 = vperm.xlu0 %107, %v85
    %v109 = vpop.permute.xlu0 %108
    %112 = vset.pattern.permute.xlu0 0
    %113 = vperm.xlu0 %112, %v86
    %v114 = vpop.permute.xlu0 %113
    %117 = vset.pattern.permute.xlu0 0
    %118 = vperm.xlu0 %117, %v87
    %v119 = vpop.permute.xlu0 %118
    %122 = vset.pattern.permute.xlu0 0
    %123 = vperm.xlu0 %122, %v88
    %v124 = vpop.permute.xlu0 %123
    %127 = vset.pattern.permute.xlu0 0
    %128 = vperm.xlu0 %127, %v89
    %v129 = vpop.permute.xlu0 %128
    %v132 = vlaneseq
    %v133 = vshrl.u32 %v132, 7
    %v134 = vsub.s32 0, %v133
    %v135 = vrot.slane %v90, %v134
    %v136 = vlaneseq
    %v137 = vshrl.u32 %v136, 7
    %v138 = vsub.s32 1, %v137
    %v139 = vrot.slane %v90, %v138
    %v140 = vlaneseq
    %v141 = vshrl.u32 %v140, 7
    %v142 = vsub.s32 2, %v141
    %v143 = vrot.slane %v90, %v142
    %v144 = vlaneseq
    %v145 = vshrl.u32 %v144, 7
    %v146 = vsub.s32 3, %v145
    %v147 = vrot.slane %v90, %v146
    %v152 = vmul.f32 %v94, %v135
    %v153 = vmul.f32 %v94, %v139
    %v154 = vmul.f32 %v94, %v143
    %v155 = vmul.f32 %v94, %v147
    %v156 = vmul.f32 %v99, %v135
    %v157 = vmul.f32 %v99, %v139
    %v158 = vmul.f32 %v99, %v143
    %v159 = vmul.f32 %v99, %v147
    %v160 = vmul.f32 %v104, %v135
    %v161 = vmul.f32 %v104, %v139
    %v162 = vmul.f32 %v104, %v143
    %v163 = vmul.f32 %v104, %v147
    %v164 = vmul.f32 %v109, %v135
    %v165 = vmul.f32 %v109, %v139
    %v166 = vmul.f32 %v109, %v143
    %v167 = vmul.f32 %v109, %v147
    %v168 = vmul.f32 %v114, %v135
    %v169 = vmul.f32 %v114, %v139
    %v170 = vmul.f32 %v114, %v143
    %v171 = vmul.f32 %v114, %v147
    %v172 = vmul.f32 %v119, %v135
    %v173 = vmul.f32 %v119, %v139
    %v174 = vmul.f32 %v119, %v143
    %v175 = vmul.f32 %v119, %v147
    %v176 = vmul.f32 %v124, %v135
    %v177 = vmul.f32 %v124, %v139
    %v178 = vmul.f32 %v124, %v143
    %v179 = vmul.f32 %v124, %v147
    %v180 = vmul.f32 %v129, %v135
    %v181 = vmul.f32 %v129, %v139
    %v182 = vmul.f32 %v129, %v143
    %v183 = vmul.f32 %v129, %v147
    %v184 = vld [vmem:[%s3] sm:$0xf]
    %v186 = vlaneseq
    %v187 = vshrl.u32 %v186, 7
    %v188 = vsub.s32 0, %v187
    %v189 = vrot.slane %v184, %v188
    %v190 = vlaneseq
    %v191 = vshrl.u32 %v190, 7
    %v192 = vsub.s32 1, %v191
    %v193 = vrot.slane %v184, %v192
    %v194 = vlaneseq
    %v195 = vshrl.u32 %v194, 7
    %v196 = vsub.s32 2, %v195
    %v197 = vrot.slane %v184, %v196
    %v198 = vlaneseq
    %v199 = vshrl.u32 %v198, 7
    %v200 = vsub.s32 3, %v199
    %v201 = vrot.slane %v184, %v200
    %v206 = vadd.f32 %v152, %v189
    %v207 = vadd.f32 %v153, %v193
    %v208 = vadd.f32 %v154, %v197
    %v209 = vadd.f32 %v155, %v201
    %v210 = vadd.f32 %v156, %v189
    %v211 = vadd.f32 %v157, %v193
    %v212 = vadd.f32 %v158, %v197
    %v213 = vadd.f32 %v159, %v201
    %v214 = vadd.f32 %v160, %v189
    %v215 = vadd.f32 %v161, %v193
    %v216 = vadd.f32 %v162, %v197
    %v217 = vadd.f32 %v163, %v201
    %v218 = vadd.f32 %v164, %v189
    %v219 = vadd.f32 %v165, %v193
    %v220 = vadd.f32 %v166, %v197
    %v221 = vadd.f32 %v167, %v201
    %v222 = vadd.f32 %v168, %v189
    %v223 = vadd.f32 %v169, %v193
    %v224 = vadd.f32 %v170, %v197
    %v225 = vadd.f32 %v171, %v201
    %v226 = vadd.f32 %v172, %v189
    %v227 = vadd.f32 %v173, %v193
    %v228 = vadd.f32 %v174, %v197
    %v229 = vadd.f32 %v175, %v201
    %v230 = vadd.f32 %v176, %v189
    %v231 = vadd.f32 %v177, %v193
    %v232 = vadd.f32 %v178, %v197
    %v233 = vadd.f32 %v179, %v201
    %v234 = vadd.f32 %v180, %v189
    %v235 = vadd.f32 %v181, %v193
    %v236 = vadd.f32 %v182, %v197
    %v237 = vadd.f32 %v183, %v201
    %v270 = vcombine.low %v206, %v207
    %v271 = vcombine.low %v208, %v209
    %v273 = vunpack.c.l.s4 1983009808
    %v274 = vunpack.c.0.s8 %v273
    %v275 = vlaneseq
    %v276 = vshrl.u32 %v275, 7
    %v277 = vsub.s32 %v274, %v276
    %v278 = vrot.slane %v270, %v277
    %v280 = vunpack.c.l.s4 1983009808
    %v281 = vunpack.c.0.s8 %v280
    %v282 = vlaneseq
    %v283 = vshrl.u32 %v282, 7
    %v284 = vsub.s32 %v281, %v283
    %v285 = vrot.slane %v271, %v284
    %v286 = vcombine.low %v278, %v285
    %v287 = vcombine.low %v210, %v211
    %v288 = vcombine.low %v212, %v213
    %v290 = vunpack.c.l.s4 1983009808
    %v291 = vunpack.c.0.s8 %v290
    %v292 = vlaneseq
    %v293 = vshrl.u32 %v292, 7
    %v294 = vsub.s32 %v291, %v293
    %v295 = vrot.slane %v287, %v294
    %v297 = vunpack.c.l.s4 1983009808
    %v298 = vunpack.c.0.s8 %v297
    %v299 = vlaneseq
    %v300 = vshrl.u32 %v299, 7
    %v301 = vsub.s32 %v298, %v300
    %v302 = vrot.slane %v288, %v301
    %v303 = vcombine.low %v295, %v302
    %v304 = vcombine.low %v214, %v215
    %v305 = vcombine.low %v216, %v217
    %v307 = vunpack.c.l.s4 1983009808
    %v308 = vunpack.c.0.s8 %v307
    %v309 = vlaneseq
    %v310 = vshrl.u32 %v309, 7
    %v311 = vsub.s32 %v308, %v310
    %v312 = vrot.slane %v304, %v311
    %v314 = vunpack.c.l.s4 1983009808
    %v315 = vunpack.c.0.s8 %v314
    %v316 = vlaneseq
    %v317 = vshrl.u32 %v316, 7
    %v318 = vsub.s32 %v315, %v317
    %v319 = vrot.slane %v305, %v318
    %v320 = vcombine.low %v312, %v319
    %v321 = vcombine.low %v218, %v219
    %v322 = vcombine.low %v220, %v221
    %v324 = vunpack.c.l.s4 1983009808
    %v325 = vunpack.c.0.s8 %v324
    %v326 = vlaneseq
    %v327 = vshrl.u32 %v326, 7
    %v328 = vsub.s32 %v325, %v327
    %v329 = vrot.slane %v321, %v328
    %v331 = vunpack.c.l.s4 1983009808
    %v332 = vunpack.c.0.s8 %v331
    %v333 = vlaneseq
    %v334 = vshrl.u32 %v333, 7
    %v335 = vsub.s32 %v332, %v334
    %v336 = vrot.slane %v322, %v335
    %v337 = vcombine.low %v329, %v336
    %v338 = vcombine.low %v222, %v223
    %v339 = vcombine.low %v224, %v225
    %v341 = vunpack.c.l.s4 1983009808
    %v342 = vunpack.c.0.s8 %v341
    %v343 = vlaneseq
    %v344 = vshrl.u32 %v343, 7
    %v345 = vsub.s32 %v342, %v344
    %v346 = vrot.slane %v338, %v345
    %v348 = vunpack.c.l.s4 1983009808
    %v349 = vunpack.c.0.s8 %v348
    %v350 = vlaneseq
    %v351 = vshrl.u32 %v350, 7
    %v352 = vsub.s32 %v349, %v351
    %v353 = vrot.slane %v339, %v352
    %v354 = vcombine.low %v346, %v353
    %v355 = vcombine.low %v226, %v227
    %v356 = vcombine.low %v228, %v229
    %v358 = vunpack.c.l.s4 1983009808
    %v359 = vunpack.c.0.s8 %v358
    %v360 = vlaneseq
    %v361 = vshrl.u32 %v360, 7
    %v362 = vsub.s32 %v359, %v361
    %v363 = vrot.slane %v355, %v362
    %v365 = vunpack.c.l.s4 1983009808
    %v366 = vunpack.c.0.s8 %v365
    %v367 = vlaneseq
    %v368 = vshrl.u32 %v367, 7
    %v369 = vsub.s32 %v366, %v368
    %v370 = vrot.slane %v356, %v369
    %v371 = vcombine.low %v363, %v370
    %v372 = vcombine.low %v230, %v231
    %v373 = vcombine.low %v232, %v233
    %v375 = vunpack.c.l.s4 1983009808
    %v376 = vunpack.c.0.s8 %v375
    %v377 = vlaneseq
    %v378 = vshrl.u32 %v377, 7
    %v379 = vsub.s32 %v376, %v378
    %v380 = vrot.slane %v372, %v379
    %v382 = vunpack.c.l.s4 1983009808
    %v383 = vunpack.c.0.s8 %v382
    %v384 = vlaneseq
    %v385 = vshrl.u32 %v384, 7
    %v386 = vsub.s32 %v383, %v385
    %v387 = vrot.slane %v373, %v386
    %v388 = vcombine.low %v380, %v387
    %v389 = vcombine.low %v234, %v235
    %v390 = vcombine.low %v236, %v237
    %v392 = vunpack.c.l.s4 1983009808
    %v393 = vunpack.c.0.s8 %v392
    %v394 = vlaneseq
    %v395 = vshrl.u32 %v394, 7
    %v396 = vsub.s32 %v393, %v395
    %v397 = vrot.slane %v389, %v396
    %v399 = vunpack.c.l.s4 1983009808
    %v400 = vunpack.c.0.s8 %v399
    %v401 = vlaneseq
    %v402 = vshrl.u32 %v401, 7
    %v403 = vsub.s32 %v400, %v402
    %v404 = vrot.slane %v390, %v403
    %v405 = vcombine.low %v397, %v404
    %414 = vst [vmem:[#allocation2] sm:$0xff] %v286
    %415 = vst [vmem:[#allocation2 + $0x8] sm:$0xff] %v303
    %416 = vst [vmem:[#allocation2 + $0x10] sm:$0xff] %v320
    %417 = vst [vmem:[#allocation2 + $0x18] sm:$0xff] %v337
    %418 = vst [vmem:[#allocation2 + $0x20] sm:$0xff] %v354
    %419 = vst [vmem:[#allocation2 + $0x28] sm:$0xff] %v371
    %420 = vst [vmem:[#allocation2 + $0x30] sm:$0xff] %v388
    %421 = vst [vmem:[#allocation2 + $0x38] sm:$0xff] %v405
    %v422 = vld [vmem:[#allocation10] sm:$0xff]
    %v423 = vld [vmem:[#allocation10 + $0x8] sm:$0xff]
    %v424 = vld [vmem:[#allocation10 + $0x10] sm:$0xff]
    %v425 = vld [vmem:[#allocation10 + $0x18] sm:$0xff]
    %v426 = vld [vmem:[#allocation10 + $0x20] sm:$0xff]
    %v427 = vld [vmem:[#allocation10 + $0x28] sm:$0xff]
    %v428 = vld [vmem:[#allocation10 + $0x30] sm:$0xff]
    %v429 = vld [vmem:[#allocation10 + $0x38] sm:$0xff]
    %v430 = vld [vmem:[#allocation10 + $0x40] sm:$0xff]
    %v431 = vld [vmem:[#allocation10 + $0x48] sm:$0xff]
    %v432 = vld [vmem:[#allocation10 + $0x50] sm:$0xff]
    %v433 = vld [vmem:[#allocation10 + $0x58] sm:$0xff]
    %v434 = vld [vmem:[#allocation10 + $0x60] sm:$0xff]
    %v435 = vld [vmem:[#allocation10 + $0x68] sm:$0xff]
    %v436 = vld [vmem:[#allocation10 + $0x70] sm:$0xff]
    %v437 = vld [vmem:[#allocation10 + $0x78] sm:$0xff]
    %v438 = vld [vmem:[#allocation10 + $0x80] sm:$0xff]
    %v439 = vld [vmem:[#allocation10 + $0x88] sm:$0xff]
    %v440 = vld [vmem:[#allocation10 + $0x90] sm:$0xff]
    %v441 = vld [vmem:[#allocation10 + $0x98] sm:$0xff]
    %v442 = vld [vmem:[#allocation10 + $0xa0] sm:$0xff]
    %v443 = vld [vmem:[#allocation10 + $0xa8] sm:$0xff]
    %v444 = vld [vmem:[#allocation10 + $0xb0] sm:$0xff]
    %v445 = vld [vmem:[#allocation10 + $0xb8] sm:$0xff]
    %v446 = vld [vmem:[#allocation10 + $0xc0] sm:$0xff]
    %v447 = vld [vmem:[#allocation10 + $0xc8] sm:$0xff]
    %v448 = vld [vmem:[#allocation10 + $0xd0] sm:$0xff]
    %v449 = vld [vmem:[#allocation10 + $0xd8] sm:$0xff]
    %v450 = vld [vmem:[#allocation10 + $0xe0] sm:$0xff]
    %v451 = vld [vmem:[#allocation10 + $0xe8] sm:$0xff]
    %v452 = vld [vmem:[#allocation10 + $0xf0] sm:$0xff]
    %v453 = vld [vmem:[#allocation10 + $0xf8] sm:$0xff]
    %v454 = vld [vmem:[%s7] sm:$0xf]
    %v456 = vlaneseq
    %v457 = vshrl.u32 %v456, 7
    %v458 = vsub.s32 0, %v457
    %v459 = vrot.slane %v454, %v458
    %v460 = vlaneseq
    %v461 = vshrl.u32 %v460, 7
    %v462 = vsub.s32 1, %v461
    %v463 = vrot.slane %v454, %v462
    %v464 = vlaneseq
    %v465 = vshrl.u32 %v464, 7
    %v466 = vsub.s32 2, %v465
    %v467 = vrot.slane %v454, %v466
    %v468 = vlaneseq
    %v469 = vshrl.u32 %v468, 7
    %v470 = vsub.s32 3, %v469
    %v471 = vrot.slane %v454, %v470
    %v508 = vunpack.c.l.b16 %v422
    %v509 = vunpack.c.h.b16 %v422
    %v510 = vunpack.c.l.b16 %v423
    %v511 = vunpack.c.h.b16 %v423
    %v512 = vunpack.c.l.b16 %v424
    %v513 = vunpack.c.h.b16 %v424
    %v514 = vunpack.c.l.b16 %v425
    %v515 = vunpack.c.h.b16 %v425
    %v516 = vunpack.c.l.b16 %v426
    %v517 = vunpack.c.h.b16 %v426
    %v518 = vunpack.c.l.b16 %v427
    %v519 = vunpack.c.h.b16 %v427
    %v520 = vunpack.c.l.b16 %v428
    %v521 = vunpack.c.h.b16 %v428
    %v522 = vunpack.c.l.b16 %v429
    %v523 = vunpack.c.h.b16 %v429
    %v524 = vunpack.c.l.b16 %v430
    %v525 = vunpack.c.h.b16 %v430
    %v526 = vunpack.c.l.b16 %v431
    %v527 = vunpack.c.h.b16 %v431
    %v528 = vunpack.c.l.b16 %v432
    %v529 = vunpack.c.h.b16 %v432
    %v530 = vunpack.c.l.b16 %v433
    %v531 = vunpack.c.h.b16 %v433
    %v532 = vunpack.c.l.b16 %v434
    %v533 = vunpack.c.h.b16 %v434
    %v534 = vunpack.c.l.b16 %v435
    %v535 = vunpack.c.h.b16 %v435
    %v536 = vunpack.c.l.b16 %v436
    %v537 = vunpack.c.h.b16 %v436
    %v538 = vunpack.c.l.b16 %v437
    %v539 = vunpack.c.h.b16 %v437
    %v540 = vunpack.c.l.b16 %v438
    %v541 = vunpack.c.h.b16 %v438
    %v542 = vunpack.c.l.b16 %v439
    %v543 = vunpack.c.h.b16 %v439
    %v544 = vunpack.c.l.b16 %v440
    %v545 = vunpack.c.h.b16 %v440
    %v546 = vunpack.c.l.b16 %v441
    %v547 = vunpack.c.h.b16 %v441
    %v548 = vunpack.c.l.b16 %v442
    %v549 = vunpack.c.h.b16 %v442
    %v550 = vunpack.c.l.b16 %v443
    %v551 = vunpack.c.h.b16 %v443
    %v552 = vunpack.c.l.b16 %v444
    %v553 = vunpack.c.h.b16 %v444
    %v554 = vunpack.c.l.b16 %v445
    %v555 = vunpack.c.h.b16 %v445
    %v556 = vunpack.c.l.b16 %v446
    %v557 = vunpack.c.h.b16 %v446
    %v558 = vunpack.c.l.b16 %v447
    %v559 = vunpack.c.h.b16 %v447
    %v560 = vunpack.c.l.b16 %v448
    %v561 = vunpack.c.h.b16 %v448
    %v562 = vunpack.c.l.b16 %v449
    %v563 = vunpack.c.h.b16 %v449
    %v564 = vunpack.c.l.b16 %v450
    %v565 = vunpack.c.h.b16 %v450
    %v566 = vunpack.c.l.b16 %v451
    %v567 = vunpack.c.h.b16 %v451
    %v568 = vunpack.c.l.b16 %v452
    %v569 = vunpack.c.h.b16 %v452
    %v570 = vunpack.c.l.b16 %v453
    %v571 = vunpack.c.h.b16 %v453
    %v572 = vpack.c.b16 %v512, %v508
    %v573 = vpack.c.b16 %v513, %v509
    %v574 = vpack.c.b16 %v514, %v510
    %v575 = vpack.c.b16 %v515, %v511
    %v576 = vpack.c.b16 %v520, %v516
    %v577 = vpack.c.b16 %v521, %v517
    %v578 = vpack.c.b16 %v522, %v518
    %v579 = vpack.c.b16 %v523, %v519
    %v580 = vpack.c.b16 %v528, %v524
    %v581 = vpack.c.b16 %v529, %v525
    %v582 = vpack.c.b16 %v530, %v526
    %v583 = vpack.c.b16 %v531, %v527
    %v584 = vpack.c.b16 %v536, %v532
    %v585 = vpack.c.b16 %v537, %v533
    %v586 = vpack.c.b16 %v538, %v534
    %v587 = vpack.c.b16 %v539, %v535
    %v588 = vpack.c.b16 %v544, %v540
    %v589 = vpack.c.b16 %v545, %v541
    %v590 = vpack.c.b16 %v546, %v542
    %v591 = vpack.c.b16 %v547, %v543
    %v592 = vpack.c.b16 %v552, %v548
    %v593 = vpack.c.b16 %v553, %v549
    %v594 = vpack.c.b16 %v554, %v550
    %v595 = vpack.c.b16 %v555, %v551
    %v596 = vpack.c.b16 %v560, %v556
    %v597 = vpack.c.b16 %v561, %v557
    %v598 = vpack.c.b16 %v562, %v558
    %v599 = vpack.c.b16 %v563, %v559
    %v600 = vpack.c.b16 %v568, %v564
    %v601 = vpack.c.b16 %v569, %v565
    %v602 = vpack.c.b16 %v570, %v566
    %v603 = vpack.c.b16 %v571, %v567
    %636 = vmatprep.subr.bf16.mxu0 %v573
    %637 = vmatpush1.bf16.msra.mxu0 %v572
    %638 = vmatprep.subr.bf16.mxu0 %v577
    %639 = vmatpush1.bf16.msra.mxu0 %v576
    %640 = vmatprep.subr.bf16.mxu0 %v581
    %641 = vmatpush1.bf16.msra.mxu0 %v580
    %642 = vmatprep.subr.bf16.mxu0 %v585
    %643 = vmatpush1.bf16.msra.mxu0 %v584
    %644 = vmatprep.subr.bf16.mxu0 %v589
    %645 = vmatpush1.bf16.msra.mxu0 %v588
    %646 = vmatprep.subr.bf16.mxu0 %v593
    %647 = vmatpush1.bf16.msra.mxu0 %v592
    %648 = vmatprep.subr.bf16.mxu0 %v597
    %649 = vmatpush1.bf16.msra.mxu0 %v596
    %650 = vmatprep.subr.bf16.mxu0 %v601
    %651 = vmatpush1.bf16.msra.mxu0 %v600
    %652 = vmatprep.subr.bf16.mxu0 0
    %653 = vmatpush1.bf16.msra.mxu0 0
    %654 = vmatprep.subr.bf16.mxu0 0
    %655 = vmatpush1.bf16.msra.mxu0 0
    %656 = vmatprep.subr.bf16.mxu0 0
    %657 = vmatpush1.bf16.msra.mxu0 0
    %658 = vmatprep.subr.bf16.mxu0 0
    %659 = vmatpush1.bf16.msra.mxu0 0
    %660 = vmatprep.subr.bf16.mxu0 0
    %661 = vmatpush1.bf16.msra.mxu0 0
    %662 = vmatprep.subr.bf16.mxu0 0
    %663 = vmatpush1.bf16.msra.mxu0 0
    %664 = vmatprep.subr.bf16.mxu0 0
    %665 = vmatpush1.bf16.msra.mxu0 0
    %666 = vmatprep.subr.bf16.mxu0 0
    %667 = vmatpush1.bf16.msra.mxu0 0
    %668 = vmatprep.mubr.bf16.mxu0 0
    %669 = vmatmul.mubr.bf16.gmra.mrb[0].mxu0 0
    %v670 = vpop.f32.mrb[0].mxu0
    %v671 = vadd.f32 %v459, %v670
    %v672 = vpop.f32.mrb[0].mxu0
    %v673 = vadd.f32 %v463, %v672
    %v674 = vpop.f32.mrb[0].mxu0
    %v675 = vpop.f32.mrb[0].mxu0
    %676 = vdwg.mxu0
    %677 = vmatprep.subr.bf16.mxu0 %v575
    %678 = vmatpush1.bf16.msra.mxu0 %v574
    %679 = vmatprep.subr.bf16.mxu0 %v579
    %680 = vmatpush1.bf16.msra.mxu0 %v578
    %681 = vmatprep.subr.bf16.mxu0 %v583
    %682 = vmatpush1.bf16.msra.mxu0 %v582
    %683 = vmatprep.subr.bf16.mxu0 %v587
    %684 = vmatpush1.bf16.msra.mxu0 %v586
    %685 = vmatprep.subr.bf16.mxu0 %v591
    %686 = vmatpush1.bf16.msra.mxu0 %v590
    %687 = vmatprep.subr.bf16.mxu0 %v595
    %688 = vmatpush1.bf16.msra.mxu0 %v594
    %689 = vmatprep.subr.bf16.mxu0 %v599
    %690 = vmatpush1.bf16.msra.mxu0 %v598
    %691 = vmatprep.subr.bf16.mxu0 %v603
    %692 = vmatpush1.bf16.msra.mxu0 %v602
    %693 = vmatprep.subr.bf16.mxu0 0
    %694 = vmatpush1.bf16.msra.mxu0 0
    %695 = vmatprep.subr.bf16.mxu0 0
    %696 = vmatpush1.bf16.msra.mxu0 0
    %697 = vmatprep.subr.bf16.mxu0 0
    %698 = vmatpush1.bf16.msra.mxu0 0
    %699 = vmatprep.subr.bf16.mxu0 0
    %700 = vmatpush1.bf16.msra.mxu0 0
    %701 = vmatprep.subr.bf16.mxu0 0
    %702 = vmatpush1.bf16.msra.mxu0 0
    %703 = vmatprep.subr.bf16.mxu0 0
    %704 = vmatpush1.bf16.msra.mxu0 0
    %705 = vmatprep.subr.bf16.mxu0 0
    %706 = vmatpush1.bf16.msra.mxu0 0
    %707 = vmatprep.subr.bf16.mxu0 0
    %708 = vmatpush1.bf16.msra.mxu0 0
    %709 = vmatprep.mubr.bf16.mxu0 0
    %710 = vmatmul.mubr.bf16.gmra.mrb[0].mxu0 0
    %v711 = vpop.f32.mrb[0].mxu0
    %v712 = vadd.f32 %v467, %v711
    %v713 = vpop.f32.mrb[0].mxu0
    %v714 = vadd.f32 %v471, %v713
    %v715 = vpop.f32.mrb[0].mxu0
    %v716 = vpop.f32.mrb[0].mxu0
    %717 = vdwg.mxu0
    %v718 = vld [vmem:[#allocation5] sm:$0xff]
    %v719 = vld [vmem:[#allocation5 + $0x8] sm:$0xff]
    %v720 = vld [vmem:[#allocation5 + $0x10] sm:$0xff]
    %v721 = vld [vmem:[#allocation5 + $0x18] sm:$0xff]
    %v722 = vld [vmem:[#allocation5 + $0x20] sm:$0xff]
    %v723 = vld [vmem:[#allocation5 + $0x28] sm:$0xff]
    %v724 = vld [vmem:[#allocation5 + $0x30] sm:$0xff]
    %v725 = vld [vmem:[#allocation5 + $0x38] sm:$0xff]
    %v726 = vld [vmem:[#allocation5 + $0x40] sm:$0xff]
    %v727 = vld [vmem:[#allocation5 + $0x48] sm:$0xff]
    %v728 = vld [vmem:[#allocation5 + $0x50] sm:$0xff]
    %v729 = vld [vmem:[#allocation5 + $0x58] sm:$0xff]
    %v730 = vld [vmem:[#allocation5 + $0x60] sm:$0xff]
    %v731 = vld [vmem:[#allocation5 + $0x68] sm:$0xff]
    %v732 = vld [vmem:[#allocation5 + $0x70] sm:$0xff]
    %v733 = vld [vmem:[#allocation5 + $0x78] sm:$0xff]
    %v734 = vld [vmem:[#allocation5 + $0x80] sm:$0xff]
    %v735 = vld [vmem:[#allocation5 + $0x88] sm:$0xff]
    %v736 = vld [vmem:[#allocation5 + $0x90] sm:$0xff]
    %v737 = vld [vmem:[#allocation5 + $0x98] sm:$0xff]
    %v738 = vld [vmem:[#allocation5 + $0xa0] sm:$0xff]
    %v739 = vld [vmem:[#allocation5 + $0xa8] sm:$0xff]
    %v740 = vld [vmem:[#allocation5 + $0xb0] sm:$0xff]
    %v741 = vld [vmem:[#allocation5 + $0xb8] sm:$0xff]
    %v742 = vld [vmem:[#allocation5 + $0xc0] sm:$0xff]
    %v743 = vld [vmem:[#allocation5 + $0xc8] sm:$0xff]
    %v744 = vld [vmem:[#allocation5 + $0xd0] sm:$0xff]
    %v745 = vld [vmem:[#allocation5 + $0xd8] sm:$0xff]
    %v746 = vld [vmem:[#allocation5 + $0xe0] sm:$0xff]
    %v747 = vld [vmem:[#allocation5 + $0xe8] sm:$0xff]
    %v748 = vld [vmem:[#allocation5 + $0xf0] sm:$0xff]
    %v749 = vld [vmem:[#allocation5 + $0xf8] sm:$0xff]
    %v750 = vld [vmem:[#allocation2] sm:$0xff]
    %v783 = vunpack.c.l.b16 %v718
    %v784 = vunpack.c.h.b16 %v718
    %v785 = vunpack.c.l.b16 %v719
    %v786 = vunpack.c.h.b16 %v719
    %v787 = vunpack.c.l.b16 %v720
    %v788 = vunpack.c.h.b16 %v720
    %v789 = vunpack.c.l.b16 %v721
    %v790 = vunpack.c.h.b16 %v721
    %v791 = vunpack.c.l.b16 %v722
    %v792 = vunpack.c.h.b16 %v722
    %v793 = vunpack.c.l.b16 %v723
    %v794 = vunpack.c.h.b16 %v723
    %v795 = vunpack.c.l.b16 %v724
    %v796 = vunpack.c.h.b16 %v724
    %v797 = vunpack.c.l.b16 %v725
    %v798 = vunpack.c.h.b16 %v725
    %v799 = vunpack.c.l.b16 %v726
    %v800 = vunpack.c.h.b16 %v726
    %v801 = vunpack.c.l.b16 %v727
    %v802 = vunpack.c.h.b16 %v727
    %v803 = vunpack.c.l.b16 %v728
    %v804 = vunpack.c.h.b16 %v728
    %v805 = vunpack.c.l.b16 %v729
    %v806 = vunpack.c.h.b16 %v729
    %v807 = vunpack.c.l.b16 %v730
    %v808 = vunpack.c.h.b16 %v730
    %v809 = vunpack.c.l.b16 %v731
    %v810 = vunpack.c.h.b16 %v731
    %v811 = vunpack.c.l.b16 %v732
    %v812 = vunpack.c.h.b16 %v732
    %v813 = vunpack.c.l.b16 %v733
    %v814 = vunpack.c.h.b16 %v733
    %v815 = vunpack.c.l.b16 %v734
    %v816 = vunpack.c.h.b16 %v734
    %v817 = vunpack.c.l.b16 %v735
    %v818 = vunpack.c.h.b16 %v735
    %v819 = vunpack.c.l.b16 %v736
    %v820 = vunpack.c.h.b16 %v736
    %v821 = vunpack.c.l.b16 %v737
    %v822 = vunpack.c.h.b16 %v737
    %v823 = vunpack.c.l.b16 %v738
    %v824 = vunpack.c.h.b16 %v738
    %v825 = vunpack.c.l.b16 %v739
    %v826 = vunpack.c.h.b16 %v739
    %v827 = vunpack.c.l.b16 %v740
    %v828 = vunpack.c.h.b16 %v740
    %v829 = vunpack.c.l.b16 %v741
    %v830 = vunpack.c.h.b16 %v741
    %v831 = vunpack.c.l.b16 %v742
    %v832 = vunpack.c.h.b16 %v742
    %v833 = vunpack.c.l.b16 %v743
    %v834 = vunpack.c.h.b16 %v743
    %v835 = vunpack.c.l.b16 %v744
    %v836 = vunpack.c.h.b16 %v744
    %v837 = vunpack.c.l.b16 %v745
    %v838 = vunpack.c.h.b16 %v745
    %v839 = vunpack.c.l.b16 %v746
    %v840 = vunpack.c.h.b16 %v746
    %v841 = vunpack.c.l.b16 %v747
    %v842 = vunpack.c.h.b16 %v747
    %v843 = vunpack.c.l.b16 %v748
    %v844 = vunpack.c.h.b16 %v748
    %v845 = vunpack.c.l.b16 %v749
    %v846 = vunpack.c.h.b16 %v749
    %v847 = vpack.c.b16 %v787, %v783
    %v848 = vpack.c.b16 %v788, %v784
    %v849 = vpack.c.b16 %v789, %v785
    %v850 = vpack.c.b16 %v790, %v786
    %v851 = vpack.c.b16 %v795, %v791
    %v852 = vpack.c.b16 %v796, %v792
    %v853 = vpack.c.b16 %v797, %v793
    %v854 = vpack.c.b16 %v798, %v794
    %v855 = vpack.c.b16 %v803, %v799
    %v856 = vpack.c.b16 %v804, %v800
    %v857 = vpack.c.b16 %v805, %v801
    %v858 = vpack.c.b16 %v806, %v802
    %v859 = vpack.c.b16 %v811, %v807
    %v860 = vpack.c.b16 %v812, %v808
    %v861 = vpack.c.b16 %v813, %v809
    %v862 = vpack.c.b16 %v814, %v810
    %v863 = vpack.c.b16 %v819, %v815
    %v864 = vpack.c.b16 %v820, %v816
    %v865 = vpack.c.b16 %v821, %v817
    %v866 = vpack.c.b16 %v822, %v818
    %v867 = vpack.c.b16 %v827, %v823
    %v868 = vpack.c.b16 %v828, %v824
    %v869 = vpack.c.b16 %v829, %v825
    %v870 = vpack.c.b16 %v830, %v826
    %v871 = vpack.c.b16 %v835, %v831
    %v872 = vpack.c.b16 %v836, %v832
    %v873 = vpack.c.b16 %v837, %v833
    %v874 = vpack.c.b16 %v838, %v834
    %v875 = vpack.c.b16 %v843, %v839
    %v876 = vpack.c.b16 %v844, %v840
    %v877 = vpack.c.b16 %v845, %v841
    %v878 = vpack.c.b16 %v846, %v842
    %v912 = vcombine.high %v750, %v750
    %v914 = vunpack.c.l.s4 1983009808
    %v915 = vunpack.c.0.s8 %v914
    %v916 = vlaneseq
    %v917 = vshrl.u32 %v916, 7
    %v918 = vsub.s32 %v915, %v917
    %v919 = vrot.slane %v750, %v918
    %v921 = vunpack.c.l.s4 1983009808
    %v922 = vunpack.c.0.s8 %v921
    %v923 = vlaneseq
    %v924 = vshrl.u32 %v923, 7
    %v925 = vsub.s32 %v922, %v924
    %v926 = vrot.slane %v912, %v925
    %v927 = vcombine.high %v919, %v919
    %v928 = vcombine.high %v926, %v926
    %933 = vmatprep.subr.bf16.mxu0 %v848
    %934 = vmatpush1.bf16.msra.mxu0 %v847
    %935 = vmatprep.subr.bf16.mxu0 %v852
    %936 = vmatpush1.bf16.msra.mxu0 %v851
    %937 = vmatprep.subr.bf16.mxu0 %v856
    %938 = vmatpush1.bf16.msra.mxu0 %v855
    %939 = vmatprep.subr.bf16.mxu0 %v860
    %940 = vmatpush1.bf16.msra.mxu0 %v859
    %941 = vmatprep.subr.bf16.mxu0 %v864
    %942 = vmatpush1.bf16.msra.mxu0 %v863
    %943 = vmatprep.subr.bf16.mxu0 %v868
    %944 = vmatpush1.bf16.msra.mxu0 %v867
    %945 = vmatprep.subr.bf16.mxu0 %v872
    %946 = vmatpush1.bf16.msra.mxu0 %v871
    %947 = vmatprep.subr.bf16.mxu0 %v876
    %948 = vmatpush1.bf16.msra.mxu0 %v875
    %949 = vmatprep.subr.bf16.mxu0 0
    %950 = vmatpush1.bf16.msra.mxu0 0
    %951 = vmatprep.subr.bf16.mxu0 0
    %952 = vmatpush1.bf16.msra.mxu0 0
    %953 = vmatprep.subr.bf16.mxu0 0
    %954 = vmatpush1.bf16.msra.mxu0 0
    %955 = vmatprep.subr.bf16.mxu0 0
    %956 = vmatpush1.bf16.msra.mxu0 0
    %957 = vmatprep.subr.bf16.mxu0 0
    %958 = vmatpush1.bf16.msra.mxu0 0
    %959 = vmatprep.subr.bf16.mxu0 0
    %960 = vmatpush1.bf16.msra.mxu0 0
    %961 = vmatprep.subr.bf16.mxu0 0
    %962 = vmatpush1.bf16.msra.mxu0 0
    %963 = vmatprep.subr.bf16.mxu0 0
    %964 = vmatpush1.bf16.msra.mxu0 0
    %965 = vmatprep.mubr.bf16.mxu0 0
    %966 = vmatmul.mubr.bf16.gmra.mrb[0].mxu0 0
    %v967 = vpop.f32.mrb[0].mxu0
    %v968 = vadd.f32 %v919, %v967
    %v969 = vpop.f32.mrb[0].mxu0
    %v970 = vadd.f32 %v927, %v969
    %v971 = vpop.f32.mrb[0].mxu0
    %v972 = vpop.f32.mrb[0].mxu0
    %973 = vdwg.mxu0
    %974 = vmatprep.subr.bf16.mxu0 %v850
    %975 = vmatpush1.bf16.msra.mxu0 %v849
    %976 = vmatprep.subr.bf16.mxu0 %v854
    %977 = vmatpush1.bf16.msra.mxu0 %v853
    %978 = vmatprep.subr.bf16.mxu0 %v858
    %979 = vmatpush1.bf16.msra.mxu0 %v857
    %980 = vmatprep.subr.bf16.mxu0 %v862
    %981 = vmatpush1.bf16.msra.mxu0 %v861
    %982 = vmatprep.subr.bf16.mxu0 %v866
    %983 = vmatpush1.bf16.msra.mxu0 %v865
    %984 = vmatprep.subr.bf16.mxu0 %v870
    %985 = vmatpush1.bf16.msra.mxu0 %v869
    %986 = vmatprep.subr.bf16.mxu0 %v874
    %987 = vmatpush1.bf16.msra.mxu0 %v873
    %988 = vmatprep.subr.bf16.mxu0 %v878
    %989 = vmatpush1.bf16.msra.mxu0 %v877
    %990 = vmatprep.subr.bf16.mxu0 0
    %991 = vmatpush1.bf16.msra.mxu0 0
    %992 = vmatprep.subr.bf16.mxu0 0
    %993 = vmatpush1.bf16.msra.mxu0 0
    %994 = vmatprep.subr.bf16.mxu0 0
    %995 = vmatpush1.bf16.msra.mxu0 0
    %996 = vmatprep.subr.bf16.mxu0 0
    %997 = vmatpush1.bf16.msra.mxu0 0
    %998 = vmatprep.subr.bf16.mxu0 0
    %999 = vmatpush1.bf16.msra.mxu0 0
    %1000 = vmatprep.subr.bf16.mxu0 0
    %1001 = vmatpush1.bf16.msra.mxu0 0
    %1002 = vmatprep.subr.bf16.mxu0 0
    %1003 = vmatpush1.bf16.msra.mxu0 0
    %1004 = vmatprep.subr.bf16.mxu0 0
    %1005 = vmatpush1.bf16.msra.mxu0 0
    %1006 = vmatprep.mubr.bf16.mxu0 0
    %1007 = vmatmul.mubr.bf16.gmra.mrb[0].mxu0 0
    %v1008 = vpop.f32.mrb[0].mxu0
    %v1009 = vadd.f32 %v926, %v1008
    %v1010 = vpop.f32.mrb[0].mxu0
    %v1011 = vadd.f32 %v928, %v1010
    %v1012 = vpop.f32.mrb[0].mxu0
    %v1013 = vpop.f32.mrb[0].mxu0
    %1014 = vdwg.mxu0
    %v1015 = vmul.f32 %v968, 0.5
    %v1016 = vtanh.pop %v1015
    %v1017 = vadd.f32 %v1016, 1.0
    %v1018 = vmul.f32 %v1017, 0.5
    %v1019 = vmul.f32 %v970, 0.5
    %v1020 = vtanh.pop %v1019
    %v1021 = vadd.f32 %v1020, 1.0
    %v1022 = vmul.f32 %v1021, 0.5
    %v1023 = vtanh.pop %v1009
    %v1024 = vmul.f32 %v1011, 0.5
    %v1025 = vtanh.pop %v1024
    %v1026 = vadd.f32 %v1025, 1.0
    %v1027 = vmul.f32 %v1026, 0.5
    %v1028 = vmul.f32 %v1022, 0.0
    %v1029 = vmul.f32 %v1018, %v1023
    %v1030 = vadd.f32 %v1028, %v1029
    %v1031 = vtanh.pop %v1030
    %v1032 = vmul.f32 %v1027, %v1031
    %v1033 = vpack.c.bf16 %v1032, %v1032
    %v1034 = vld [vmem:[#allocation8] sm:$0xff]
    %v1035 = vld [vmem:[#allocation8 + $0x8] sm:$0xff]
    %v1036 = vld [vmem:[#allocation8 + $0x10] sm:$0xff]
    %v1037 = vld [vmem:[#allocation8 + $0x18] sm:$0xff]
    %v1038 = vld [vmem:[#allocation8 + $0x20] sm:$0xff]
    %v1039 = vld [vmem:[#allocation8 + $0x28] sm:$0xff]
    %v1040 = vld [vmem:[#allocation8 + $0x30] sm:$0xff]
    %v1041 = vld [vmem:[#allocation8 + $0x38] sm:$0xff]
    %v1042 = vld [vmem:[#allocation8 + $0x40] sm:$0xff]
    %v1043 = vld [vmem:[#allocation8 + $0x48] sm:$0xff]
    %v1044 = vld [vmem:[#allocation8 + $0x50] sm:$0xff]
    %v1045 = vld [vmem:[#allocation8 + $0x58] sm:$0xff]
    %v1046 = vld [vmem:[#allocation8 + $0x60] sm:$0xff]
    %v1047 = vld [vmem:[#allocation8 + $0x68] sm:$0xff]
    %v1048 = vld [vmem:[#allocation8 + $0x70] sm:$0xff]
    %v1049 = vld [vmem:[#allocation8 + $0x78] sm:$0xff]
    %v1050 = vld [vmem:[#allocation8 + $0x80] sm:$0xff]
    %v1051 = vld [vmem:[#allocation8 + $0x88] sm:$0xff]
    %v1052 = vld [vmem:[#allocation8 + $0x90] sm:$0xff]
    %v1053 = vld [vmem:[#allocation8 + $0x98] sm:$0xff]
    %v1054 = vld [vmem:[#allocation8 + $0xa0] sm:$0xff]
    %v1055 = vld [vmem:[#allocation8 + $0xa8] sm:$0xff]
    %v1056 = vld [vmem:[#allocation8 + $0xb0] sm:$0xff]
    %v1057 = vld [vmem:[#allocation8 + $0xb8] sm:$0xff]
    %v1058 = vld [vmem:[#allocation8 + $0xc0] sm:$0xff]
    %v1059 = vld [vmem:[#allocation8 + $0xc8] sm:$0xff]
    %v1060 = vld [vmem:[#allocation8 + $0xd0] sm:$0xff]
    %v1061 = vld [vmem:[#allocation8 + $0xd8] sm:$0xff]
    %v1062 = vld [vmem:[#allocation8 + $0xe0] sm:$0xff]
    %v1063 = vld [vmem:[#allocation8 + $0xe8] sm:$0xff]
    %v1064 = vld [vmem:[#allocation8 + $0xf0] sm:$0xff]
    %v1065 = vld [vmem:[#allocation8 + $0xf8] sm:$0xff]
    %v1098 = vunpack.c.l.b16 %v1034
    %v1099 = vunpack.c.h.b16 %v1034
    %v1100 = vunpack.c.l.b16 %v1035
    %v1101 = vunpack.c.h.b16 %v1035
    %v1102 = vunpack.c.l.b16 %v1036
    %v1103 = vunpack.c.h.b16 %v1036
    %v1104 = vunpack.c.l.b16 %v1037
    %v1105 = vunpack.c.h.b16 %v1037
    %v1106 = vunpack.c.l.b16 %v1038
    %v1107 = vunpack.c.h.b16 %v1038
    %v1108 = vunpack.c.l.b16 %v1039
    %v1109 = vunpack.c.h.b16 %v1039
    %v1110 = vunpack.c.l.b16 %v1040
    %v1111 = vunpack.c.h.b16 %v1040
    %v1112 = vunpack.c.l.b16 %v1041
    %v1113 = vunpack.c.h.b16 %v1041
    %v1114 = vunpack.c.l.b16 %v1042
    %v1115 = vunpack.c.h.b16 %v1042
    %v1116 = vunpack.c.l.b16 %v1043
    %v1117 = vunpack.c.h.b16 %v1043
    %v1118 = vunpack.c.l.b16 %v1044
    %v1119 = vunpack.c.h.b16 %v1044
    %v1120 = vunpack.c.l.b16 %v1045
    %v1121 = vunpack.c.h.b16 %v1045
    %v1122 = vunpack.c.l.b16 %v1046
    %v1123 = vunpack.c.h.b16 %v1046
    %v1124 = vunpack.c.l.b16 %v1047
    %v1125 = vunpack.c.h.b16 %v1047
    %v1126 = vunpack.c.l.b16 %v1048
    %v1127 = vunpack.c.h.b16 %v1048
    %v1128 = vunpack.c.l.b16 %v1049
    %v1129 = vunpack.c.h.b16 %v1049
    %v1130 = vunpack.c.l.b16 %v1050
    %v1131 = vunpack.c.h.b16 %v1050
    %v1132 = vunpack.c.l.b16 %v1051
    %v1133 = vunpack.c.h.b16 %v1051
    %v1134 = vunpack.c.l.b16 %v1052
    %v1135 = vunpack.c.h.b16 %v1052
    %v1136 = vunpack.c.l.b16 %v1053
    %v1137 = vunpack.c.h.b16 %v1053
    %v1138 = vunpack.c.l.b16 %v1054
    %v1139 = vunpack.c.h.b16 %v1054
    %v1140 = vunpack.c.l.b16 %v1055
    %v1141 = vunpack.c.h.b16 %v1055
    %v1142 = vunpack.c.l.b16 %v1056
    %v1143 = vunpack.c.h.b16 %v1056
    %v1144 = vunpack.c.l.b16 %v1057
    %v1145 = vunpack.c.h.b16 %v1057
    %v1146 = vunpack.c.l.b16 %v1058
    %v1147 = vunpack.c.h.b16 %v1058
    %v1148 = vunpack.c.l.b16 %v1059
    %v1149 = vunpack.c.h.b16 %v1059
    %v1150 = vunpack.c.l.b16 %v1060
    %v1151 = vunpack.c.h.b16 %v1060
    %v1152 = vunpack.c.l.b16 %v1061
    %v1153 = vunpack.c.h.b16 %v1061
    %v1154 = vunpack.c.l.b16 %v1062
    %v1155 = vunpack.c.h.b16 %v1062
    %v1156 = vunpack.c.l.b16 %v1063
    %v1157 = vunpack.c.h.b16 %v1063
    %v1158 = vunpack.c.l.b16 %v1064
    %v1159 = vunpack.c.h.b16 %v1064
    %v1160 = vunpack.c.l.b16 %v1065
    %v1161 = vunpack.c.h.b16 %v1065
    %v1162 = vpack.c.b16 %v1102, %v1098
    %v1163 = vpack.c.b16 %v1103, %v1099
    %v1164 = vpack.c.b16 %v1104, %v1100
    %v1165 = vpack.c.b16 %v1105, %v1101
    %v1166 = vpack.c.b16 %v1110, %v1106
    %v1167 = vpack.c.b16 %v1111, %v1107
    %v1168 = vpack.c.b16 %v1112, %v1108
    %v1169 = vpack.c.b16 %v1113, %v1109
    %v1170 = vpack.c.b16 %v1118, %v1114
    %v1171 = vpack.c.b16 %v1119, %v1115
    %v1172 = vpack.c.b16 %v1120, %v1116
    %v1173 = vpack.c.b16 %v1121, %v1117
    %v1174 = vpack.c.b16 %v1126, %v1122
    %v1175 = vpack.c.b16 %v1127, %v1123
    %v1176 = vpack.c.b16 %v1128, %v1124
    %v1177 = vpack.c.b16 %v1129, %v1125
    %v1178 = vpack.c.b16 %v1134, %v1130
    %v1179 = vpack.c.b16 %v1135, %v1131
    %v1180 = vpack.c.b16 %v1136, %v1132
    %v1181 = vpack.c.b16 %v1137, %v1133
    %v1182 = vpack.c.b16 %v1142, %v1138
    %v1183 = vpack.c.b16 %v1143, %v1139
    %v1184 = vpack.c.b16 %v1144, %v1140
    %v1185 = vpack.c.b16 %v1145, %v1141
    %v1186 = vpack.c.b16 %v1150, %v1146
    %v1187 = vpack.c.b16 %v1151, %v1147
    %v1188 = vpack.c.b16 %v1152, %v1148
    %v1189 = vpack.c.b16 %v1153, %v1149
    %v1190 = vpack.c.b16 %v1158, %v1154
    %v1191 = vpack.c.b16 %v1159, %v1155
    %v1192 = vpack.c.b16 %v1160, %v1156
    %v1193 = vpack.c.b16 %v1161, %v1157
    %1226 = vmatprep.subr.bf16.mxu0 %v1163
    %1227 = vmatpush1.bf16.msra.mxu0 %v1162
    %1228 = vmatprep.subr.bf16.mxu0 %v1167
    %1229 = vmatpush1.bf16.msra.mxu0 %v1166
    %1230 = vmatprep.subr.bf16.mxu0 %v1171
    %1231 = vmatpush1.bf16.msra.mxu0 %v1170
    %1232 = vmatprep.subr.bf16.mxu0 %v1175
    %1233 = vmatpush1.bf16.msra.mxu0 %v1174
    %1234 = vmatprep.subr.bf16.mxu0 %v1179
    %1235 = vmatpush1.bf16.msra.mxu0 %v1178
    %1236 = vmatprep.subr.bf16.mxu0 %v1183
    %1237 = vmatpush1.bf16.msra.mxu0 %v1182
    %1238 = vmatprep.subr.bf16.mxu0 %v1187
    %1239 = vmatpush1.bf16.msra.mxu0 %v1186
    %1240 = vmatprep.subr.bf16.mxu0 %v1191
    %1241 = vmatpush1.bf16.msra.mxu0 %v1190
    %1242 = vmatprep.subr.bf16.mxu0 0
    %1243 = vmatpush1.bf16.msra.mxu0 0
    %1244 = vmatprep.subr.bf16.mxu0 0
    %1245 = vmatpush1.bf16.msra.mxu0 0
    %1246 = vmatprep.subr.bf16.mxu0 0
    %1247 = vmatpush1.bf16.msra.mxu0 0
    %1248 = vmatprep.subr.bf16.mxu0 0
    %1249 = vmatpush1.bf16.msra.mxu0 0
    %1250 = vmatprep.subr.bf16.mxu0 0
    %1251 = vmatpush1.bf16.msra.mxu0 0
    %1252 = vmatprep.subr.bf16.mxu0 0
    %1253 = vmatpush1.bf16.msra.mxu0 0
    %1254 = vmatprep.subr.bf16.mxu0 0
    %1255 = vmatpush1.bf16.msra.mxu0 0
    %1256 = vmatprep.subr.bf16.mxu0 0
    %1257 = vmatpush1.bf16.msra.mxu0 0
    %1258 = vmatprep.mubr.bf16.mxu0 0
    %1259 = vmatmul.mubr.bf16.gmra.mrb[0].mxu0 %v1033
    %v1260 = vpop.f32.mrb[0].mxu0
    %v1261 = vadd.f32 0.0, %v1260
    %v1262 = vpop.f32.mrb[0].mxu0
    %v1263 = vadd.f32 0.0, %v1262
    %v1264 = vpop.f32.mrb[0].mxu0
    %v1265 = vpop.f32.mrb[0].mxu0
    %1266 = vdwg.mxu0
    %1267 = vmatprep.subr.bf16.mxu0 %v1165
    %1268 = vmatpush1.bf16.msra.mxu0 %v1164
    %1269 = vmatprep.subr.bf16.mxu0 %v1169
    %1270 = vmatpush1.bf16.msra.mxu0 %v1168
    %1271 = vmatprep.subr.bf16.mxu0 %v1173
    %1272 = vmatpush1.bf16.msra.mxu0 %v1172
    %1273 = vmatprep.subr.bf16.mxu0 %v1177
    %1274 = vmatpush1.bf16.msra.mxu0 %v1176
    %1275 = vmatprep.subr.bf16.mxu0 %v1181
    %1276 = vmatpush1.bf16.msra.mxu0 %v1180
    %1277 = vmatprep.subr.bf16.mxu0 %v1185
    %1278 = vmatpush1.bf16.msra.mxu0 %v1184
    %1279 = vmatprep.subr.bf16.mxu0 %v1189
    %1280 = vmatpush1.bf16.msra.mxu0 %v1188
    %1281 = vmatprep.subr.bf16.mxu0 %v1193
    %1282 = vmatpush1.bf16.msra.mxu0 %v1192
    %1283 = vmatprep.subr.bf16.mxu0 0
    %1284 = vmatpush1.bf16.msra.mxu0 0
    %1285 = vmatprep.subr.bf16.mxu0 0
    %1286 = vmatpush1.bf16.msra.mxu0 0
    %1287 = vmatprep.subr.bf16.mxu0 0
    %1288 = vmatpush1.bf16.msra.mxu0 0
    %1289 = vmatprep.subr.bf16.mxu0 0
    %1290 = vmatpush1.bf16.msra.mxu0 0
    %1291 = vmatprep.subr.bf16.mxu0 0
    %1292 = vmatpush1.bf16.msra.mxu0 0
    %1293 = vmatprep.subr.bf16.mxu0 0
    %1294 = vmatpush1.bf16.msra.mxu0 0
    %1295 = vmatprep.subr.bf16.mxu0 0
    %1296 = vmatpush1.bf16.msra.mxu0 0
    %1297 = vmatprep.subr.bf16.mxu0 0
    %1298 = vmatpush1.bf16.msra.mxu0 0
    %1299 = vmatprep.mubr.bf16.mxu0 0
    %1300 = vmatmul.mubr.bf16.gmra.mrb[0].mxu0 %v1033
    %v1301 = vpop.f32.mrb[0].mxu0
    %v1302 = vadd.f32 0.0, %v1301
    %v1303 = vpop.f32.mrb[0].mxu0
    %v1304 = vadd.f32 0.0, %v1303
    %v1305 = vpop.f32.mrb[0].mxu0
    %v1306 = vpop.f32.mrb[0].mxu0
    %1307 = vdwg.mxu0
    %v1308 = vadd.f32 %v671, %v1261
    %v1309 = vadd.f32 %v673, %v1263
    %v1310 = vadd.f32 %v712, %v1302
    %v1311 = vadd.f32 %v714, %v1304
    %v1312 = vmul.f32 %v1308, 0.5
    %v1313 = vtanh.pop %v1312
    %v1314 = vadd.f32 %v1313, 1.0
    %v1315 = vmul.f32 %v1314, 0.5
    %v1316 = vmul.f32 %v1309, 0.5
    %v1317 = vtanh.pop %v1316
    %v1318 = vadd.f32 %v1317, 1.0
    %v1319 = vmul.f32 %v1318, 0.5
    %v1320 = vtanh.pop %v1310
    %v1321 = vmul.f32 %v1311, 0.5
    %v1322 = vtanh.pop %v1321
    %v1323 = vadd.f32 %v1322, 1.0
    %v1324 = vmul.f32 %v1323, 0.5
    %v1325 = vmul.f32 %v1319, 0.0
    %v1326 = vmul.f32 %v1315, %v1320
    %v1327 = vadd.f32 %v1325, %v1326
    %v1328 = vtanh.pop %v1327
    %v1329 = vmul.f32 %v1324, %v1328
    %1330 = vst [vmem:[#allocation3] sm:$0x3] %v1329
    %v1331 = vpack.c.bf16 %v1329, %v1329
    %v1332 = vld [vmem:[#allocation10] sm:$0xff]
    %v1333 = vld [vmem:[#allocation10 + $0x8] sm:$0xff]
    %v1334 = vld [vmem:[#allocation10 + $0x10] sm:$0xff]
    %v1335 = vld [vmem:[#allocation10 + $0x18] sm:$0xff]
    %v1336 = vld [vmem:[#allocation10 + $0x20] sm:$0xff]
    %v1337 = vld [vmem:[#allocation10 + $0x28] sm:$0xff]
    %v1338 = vld [vmem:[#allocation10 + $0x30] sm:$0xff]
    %v1339 = vld [vmem:[#allocation10 + $0x38] sm:$0xff]
    %v1340 = vld [vmem:[#allocation10 + $0x40] sm:$0xff]
    %v1341 = vld [vmem:[#allocation10 + $0x48] sm:$0xff]
    %v1342 = vld [vmem:[#allocation10 + $0x50] sm:$0xff]
    %v1343 = vld [vmem:[#allocation10 + $0x58] sm:$0xff]
    %v1344 = vld [vmem:[#allocation10 + $0x60] sm:$0xff]
    %v1345 = vld [vmem:[#allocation10 + $0x68] sm:$0xff]
    %v1346 = vld [vmem:[#allocation10 + $0x70] sm:$0xff]
    %v1347 = vld [vmem:[#allocation10 + $0x78] sm:$0xff]
    %v1348 = vld [vmem:[#allocation10 + $0x80] sm:$0xff]
    %v1349 = vld [vmem:[#allocation10 + $0x88] sm:$0xff]
    %v1350 = vld [vmem:[#allocation10 + $0x90] sm:$0xff]
    %v1351 = vld [vmem:[#allocation10 + $0x98] sm:$0xff]
    %v1352 = vld [vmem:[#allocation10 + $0xa0] sm:$0xff]
    %v1353 = vld [vmem:[#allocation10 + $0xa8] sm:$0xff]
    %v1354 = vld [vmem:[#allocation10 + $0xb0] sm:$0xff]
    %v1355 = vld [vmem:[#allocation10 + $0xb8] sm:$0xff]
    %v1356 = vld [vmem:[#allocation10 + $0xc0] sm:$0xff]
    %v1357 = vld [vmem:[#allocation10 + $0xc8] sm:$0xff]
    %v1358 = vld [vmem:[#allocation10 + $0xd0] sm:$0xff]
    %v1359 = vld [vmem:[#allocation10 + $0xd8] sm:$0xff]
    %v1360 = vld [vmem:[#allocation10 + $0xe0] sm:$0xff]
    %v1361 = vld [vmem:[#allocation10 + $0xe8] sm:$0xff]
    %v1362 = vld [vmem:[#allocation10 + $0xf0] sm:$0xff]
    %v1363 = vld [vmem:[#allocation10 + $0xf8] sm:$0xff]
    %v1364 = vld [vmem:[%s7] sm:$0xf]
    %v1366 = vlaneseq
    %v1367 = vshrl.u32 %v1366, 7
    %v1368 = vsub.s32 0, %v1367
    %v1369 = vrot.slane %v1364, %v1368
    %v1370 = vlaneseq
    %v1371 = vshrl.u32 %v1370, 7
    %v1372 = vsub.s32 1, %v1371
    %v1373 = vrot.slane %v1364, %v1372
    %v1374 = vlaneseq
    %v1375 = vshrl.u32 %v1374, 7
    %v1376 = vsub.s32 2, %v1375
    %v1377 = vrot.slane %v1364, %v1376
    %v1378 = vlaneseq
    %v1379 = vshrl.u32 %v1378, 7
    %v1380 = vsub.s32 3, %v1379
    %v1381 = vrot.slane %v1364, %v1380
    %v1418 = vunpack.c.l.b16 %v1332
    %v1419 = vunpack.c.h.b16 %v1332
    %v1420 = vunpack.c.l.b16 %v1333
    %v1421 = vunpack.c.h.b16 %v1333
    %v1422 = vunpack.c.l.b16 %v1334
    %v1423 = vunpack.c.h.b16 %v1334
    %v1424 = vunpack.c.l.b16 %v1335
    %v1425 = vunpack.c.h.b16 %v1335
    %v1426 = vunpack.c.l.b16 %v1336
    %v1427 = vunpack.c.h.b16 %v1336
    %v1428 = vunpack.c.l.b16 %v1337
    %v1429 = vunpack.c.h.b16 %v1337
    %v1430 = vunpack.c.l.b16 %v1338
    %v1431 = vunpack.c.h.b16 %v1338
    %v1432 = vunpack.c.l.b16 %v1339
    %v1433 = vunpack.c.h.b16 %v1339
    %v1434 = vunpack.c.l.b16 %v1340
    %v1435 = vunpack.c.h.b16 %v1340
    %v1436 = vunpack.c.l.b16 %v1341
    %v1437 = vunpack.c.h.b16 %v1341
    %v1438 = vunpack.c.l.b16 %v1342
    %v1439 = vunpack.c.h.b16 %v1342
    %v1440 = vunpack.c.l.b16 %v1343
    %v1441 = vunpack.c.h.b16 %v1343
    %v1442 = vunpack.c.l.b16 %v1344
    %v1443 = vunpack.c.h.b16 %v1344
    %v1444 = vunpack.c.l.b16 %v1345
    %v1445 = vunpack.c.h.b16 %v1345
    %v1446 = vunpack.c.l.b16 %v1346
    %v1447 = vunpack.c.h.b16 %v1346
    %v1448 = vunpack.c.l.b16 %v1347
    %v1449 = vunpack.c.h.b16 %v1347
    %v1450 = vunpack.c.l.b16 %v1348
    %v1451 = vunpack.c.h.b16 %v1348
    %v1452 = vunpack.c.l.b16 %v1349
    %v1453 = vunpack.c.h.b16 %v1349
    %v1454 = vunpack.c.l.b16 %v1350
    %v1455 = vunpack.c.h.b16 %v1350
    %v1456 = vunpack.c.l.b16 %v1351
    %v1457 = vunpack.c.h.b16 %v1351
    %v1458 = vunpack.c.l.b16 %v1352
    %v1459 = vunpack.c.h.b16 %v1352
    %v1460 = vunpack.c.l.b16 %v1353
    %v1461 = vunpack.c.h.b16 %v1353
    %v1462 = vunpack.c.l.b16 %v1354
    %v1463 = vunpack.c.h.b16 %v1354
    %v1464 = vunpack.c.l.b16 %v1355
    %v1465 = vunpack.c.h.b16 %v1355
    %v1466 = vunpack.c.l.b16 %v1356
    %v1467 = vunpack.c.h.b16 %v1356
    %v1468 = vunpack.c.l.b16 %v1357
    %v1469 = vunpack.c.h.b16 %v1357
    %v1470 = vunpack.c.l.b16 %v1358
    %v1471 = vunpack.c.h.b16 %v1358
    %v1472 = vunpack.c.l.b16 %v1359
    %v1473 = vunpack.c.h.b16 %v1359
    %v1474 = vunpack.c.l.b16 %v1360
    %v1475 = vunpack.c.h.b16 %v1360
    %v1476 = vunpack.c.l.b16 %v1361
    %v1477 = vunpack.c.h.b16 %v1361
    %v1478 = vunpack.c.l.b16 %v1362
    %v1479 = vunpack.c.h.b16 %v1362
    %v1480 = vunpack.c.l.b16 %v1363
    %v1481 = vunpack.c.h.b16 %v1363
    %v1482 = vpack.c.b16 %v1422, %v1418
    %v1483 = vpack.c.b16 %v1423, %v1419
    %v1484 = vpack.c.b16 %v1424, %v1420
    %v1485 = vpack.c.b16 %v1425, %v1421
    %v1486 = vpack.c.b16 %v1430, %v1426
    %v1487 = vpack.c.b16 %v1431, %v1427
    %v1488 = vpack.c.b16 %v1432, %v1428
    %v1489 = vpack.c.b16 %v1433, %v1429
    %v1490 = vpack.c.b16 %v1438, %v1434
    %v1491 = vpack.c.b16 %v1439, %v1435
    %v1492 = vpack.c.b16 %v1440, %v1436
    %v1493 = vpack.c.b16 %v1441, %v1437
    %v1494 = vpack.c.b16 %v1446, %v1442
    %v1495 = vpack.c.b16 %v1447, %v1443
    %v1496 = vpack.c.b16 %v1448, %v1444
    %v1497 = vpack.c.b16 %v1449, %v1445
    %v1498 = vpack.c.b16 %v1454, %v1450
    %v1499 = vpack.c.b16 %v1455, %v1451
    %v1500 = vpack.c.b16 %v1456, %v1452
    %v1501 = vpack.c.b16 %v1457, %v1453
    %v1502 = vpack.c.b16 %v1462, %v1458
    %v1503 = vpack.c.b16 %v1463, %v1459
    %v1504 = vpack.c.b16 %v1464, %v1460
    %v1505 = vpack.c.b16 %v1465, %v1461
    %v1506 = vpack.c.b16 %v1470, %v1466
    %v1507 = vpack.c.b16 %v1471, %v1467
    %v1508 = vpack.c.b16 %v1472, %v1468
    %v1509 = vpack.c.b16 %v1473, %v1469
    %v1510 = vpack.c.b16 %v1478, %v1474
    %v1511 = vpack.c.b16 %v1479, %v1475
    %v1512 = vpack.c.b16 %v1480, %v1476
    %v1513 = vpack.c.b16 %v1481, %v1477
    %1546 = vmatprep.subr.bf16.mxu0 %v1483
    %1547 = vmatpush1.bf16.msra.mxu0 %v1482
    %1548 = vmatprep.subr.bf16.mxu0 %v1487
    %1549 = vmatpush1.bf16.msra.mxu0 %v1486
    %1550 = vmatprep.subr.bf16.mxu0 %v1491
    %1551 = vmatpush1.bf16.msra.mxu0 %v1490
    %1552 = vmatprep.subr.bf16.mxu0 %v1495
    %1553 = vmatpush1.bf16.msra.mxu0 %v1494
    %1554 = vmatprep.subr.bf16.mxu0 %v1499
    %1555 = vmatpush1.bf16.msra.mxu0 %v1498
    %1556 = vmatprep.subr.bf16.mxu0 %v1503
    %1557 = vmatpush1.bf16.msra.mxu0 %v1502
    %1558 = vmatprep.subr.bf16.mxu0 %v1507
    %1559 = vmatpush1.bf16.msra.mxu0 %v1506
    %1560 = vmatprep.subr.bf16.mxu0 %v1511
    %1561 = vmatpush1.bf16.msra.mxu0 %v1510
    %1562 = vmatprep.subr.bf16.mxu0 0
    %1563 = vmatpush1.bf16.msra.mxu0 0
    %1564 = vmatprep.subr.bf16.mxu0 0
    %1565 = vmatpush1.bf16.msra.mxu0 0
    %1566 = vmatprep.subr.bf16.mxu0 0
    %1567 = vmatpush1.bf16.msra.mxu0 0
    %1568 = vmatprep.subr.bf16.mxu0 0
    %1569 = vmatpush1.bf16.msra.mxu0 0
    %1570 = vmatprep.subr.bf16.mxu0 0
    %1571 = vmatpush1.bf16.msra.mxu0 0
    %1572 = vmatprep.subr.bf16.mxu0 0
    %1573 = vmatpush1.bf16.msra.mxu0 0
    %1574 = vmatprep.subr.bf16.mxu0 0
    %1575 = vmatpush1.bf16.msra.mxu0 0
    %1576 = vmatprep.subr.bf16.mxu0 0
    %1577 = vmatpush1.bf16.msra.mxu0 0
    %1578 = vmatprep.mubr.bf16.mxu0 0
    %1579 = vmatmul.mubr.bf16.gmra.mrb[0].mxu0 %v1331
    %v1580 = vpop.f32.mrb[0].mxu0
    %v1581 = vadd.f32 %v1369, %v1580
    %v1582 = vpop.f32.mrb[0].mxu0
    %v1583 = vadd.f32 %v1373, %v1582
    %v1584 = vpop.f32.mrb[0].mxu0
    %v1585 = vpop.f32.mrb[0].mxu0
    %1586 = vdwg.mxu0
    %1587 = vmatprep.subr.bf16.mxu0 %v1485
    %1588 = vmatpush1.bf16.msra.mxu0 %v1484
    %1589 = vmatprep.subr.bf16.mxu0 %v1489
    %1590 = vmatpush1.bf16.msra.mxu0 %v1488
    %1591 = vmatprep.subr.bf16.mxu0 %v1493
    %1592 = vmatpush1.bf16.msra.mxu0 %v1492
    %1593 = vmatprep.subr.bf16.mxu0 %v1497
    %1594 = vmatpush1.bf16.msra.mxu0 %v1496
    %1595 = vmatprep.subr.bf16.mxu0 %v1501
    %1596 = vmatpush1.bf16.msra.mxu0 %v1500
    %1597 = vmatprep.subr.bf16.mxu0 %v1505
    %1598 = vmatpush1.bf16.msra.mxu0 %v1504
    %1599 = vmatprep.subr.bf16.mxu0 %v1509
    %1600 = vmatpush1.bf16.msra.mxu0 %v1508
    %1601 = vmatprep.subr.bf16.mxu0 %v1513
    %1602 = vmatpush1.bf16.msra.mxu0 %v1512
    %1603 = vmatprep.subr.bf16.mxu0 0
    %1604 = vmatpush1.bf16.msra.mxu0 0
    %1605 = vmatprep.subr.bf16.mxu0 0
    %1606 = vmatpush1.bf16.msra.mxu0 0
    %1607 = vmatprep.subr.bf16.mxu0 0
    %1608 = vmatpush1.bf16.msra.mxu0 0
    %1609 = vmatprep.subr.bf16.mxu0 0
    %1610 = vmatpush1.bf16.msra.mxu0 0
    %1611 = vmatprep.subr.bf16.mxu0 0
    %1612 = vmatpush1.bf16.msra.mxu0 0
    %1613 = vmatprep.subr.bf16.mxu0 0
    %1614 = vmatpush1.bf16.msra.mxu0 0
    %1615 = vmatprep.subr.bf16.mxu0 0
    %1616 = vmatpush1.bf16.msra.mxu0 0
    %1617 = vmatprep.subr.bf16.mxu0 0
    %1618 = vmatpush1.bf16.msra.mxu0 0
    %1619 = vmatprep.mubr.bf16.mxu0 0
    %1620 = vmatmul.mubr.bf16.gmra.mrb[0].mxu0 %v1331
    %v1621 = vpop.f32.mrb[0].mxu0
    %v1622 = vadd.f32 %v1377, %v1621
    %v1623 = vpop.f32.mrb[0].mxu0
    %v1624 = vadd.f32 %v1381, %v1623
    %v1625 = vpop.f32.mrb[0].mxu0
    %v1626 = vpop.f32.mrb[0].mxu0
    %1627 = vdwg.mxu0
    %v1628 = vld [vmem:[#allocation5] sm:$0xff]
    %v1629 = vld [vmem:[#allocation5 + $0x8] sm:$0xff]
    %v1630 = vld [vmem:[#allocation5 + $0x10] sm:$0xff]
    %v1631 = vld [vmem:[#allocation5 + $0x18] sm:$0xff]
    %v1632 = vld [vmem:[#allocation5 + $0x20] sm:$0xff]
    %v1633 = vld [vmem:[#allocation5 + $0x28] sm:$0xff]
    %v1634 = vld [vmem:[#allocation5 + $0x30] sm:$0xff]
    %v1635 = vld [vmem:[#allocation5 + $0x38] sm:$0xff]
    %v1636 = vld [vmem:[#allocation5 + $0x40] sm:$0xff]
    %v1637 = vld [vmem:[#allocation5 + $0x48] sm:$0xff]
    %v1638 = vld [vmem:[#allocation5 + $0x50] sm:$0xff]
    %v1639 = vld [vmem:[#allocation5 + $0x58] sm:$0xff]
    %v1640 = vld [vmem:[#allocation5 + $0x60] sm:$0xff]
    %v1641 = vld [vmem:[#allocation5 + $0x68] sm:$0xff]
    %v1642 = vld [vmem:[#allocation5 + $0x70] sm:$0xff]
    %v1643 = vld [vmem:[#allocation5 + $0x78] sm:$0xff]
    %v1644 = vld [vmem:[#allocation5 + $0x80] sm:$0xff]
    %v1645 = vld [vmem:[#allocation5 + $0x88] sm:$0xff]
    %v1646 = vld [vmem:[#allocation5 + $0x90] sm:$0xff]
    %v1647 = vld [vmem:[#allocation5 + $0x98] sm:$0xff]
    %v1648 = vld [vmem:[#allocation5 + $0xa0] sm:$0xff]
    %v1649 = vld [vmem:[#allocation5 + $0xa8] sm:$0xff]
    %v1650 = vld [vmem:[#allocation5 + $0xb0] sm:$0xff]
    %v1651 = vld [vmem:[#allocation5 + $0xb8] sm:$0xff]
    %v1652 = vld [vmem:[#allocation5 + $0xc0] sm:$0xff]
    %v1653 = vld [vmem:[#allocation5 + $0xc8] sm:$0xff]
    %v1654 = vld [vmem:[#allocation5 + $0xd0] sm:$0xff]
    %v1655 = vld [vmem:[#allocation5 + $0xd8] sm:$0xff]
    %v1656 = vld [vmem:[#allocation5 + $0xe0] sm:$0xff]
    %v1657 = vld [vmem:[#allocation5 + $0xe8] sm:$0xff]
    %v1658 = vld [vmem:[#allocation5 + $0xf0] sm:$0xff]
    %v1659 = vld [vmem:[#allocation5 + $0xf8] sm:$0xff]
    %s1660 = scalar_lea.vmem [#allocation2], 8
    %v1661 = vld [vmem:[%s1660] sm:$0xff]
    %v1694 = vunpack.c.l.b16 %v1628
    %v1695 = vunpack.c.h.b16 %v1628
    %v1696 = vunpack.c.l.b16 %v1629
    %v1697 = vunpack.c.h.b16 %v1629
    %v1698 = vunpack.c.l.b16 %v1630
    %v1699 = vunpack.c.h.b16 %v1630
    %v1700 = vunpack.c.l.b16 %v1631
    %v1701 = vunpack.c.h.b16 %v1631
    %v1702 = vunpack.c.l.b16 %v1632
    %v1703 = vunpack.c.h.b16 %v1632
    %v1704 = vunpack.c.l.b16 %v1633
    %v1705 = vunpack.c.h.b16 %v1633
    %v1706 = vunpack.c.l.b16 %v1634
    %v1707 = vunpack.c.h.b16 %v1634
    %v1708 = vunpack.c.l.b16 %v1635
    %v1709 = vunpack.c.h.b16 %v1635
    %v1710 = vunpack.c.l.b16 %v1636
    %v1711 = vunpack.c.h.b16 %v1636
    %v1712 = vunpack.c.l.b16 %v1637
    %v1713 = vunpack.c.h.b16 %v1637
    %v1714 = vunpack.c.l.b16 %v1638
    %v1715 = vunpack.c.h.b16 %v1638
    %v1716 = vunpack.c.l.b16 %v1639
    %v1717 = vunpack.c.h.b16 %v1639
    %v1718 = vunpack.c.l.b16 %v1640
    %v1719 = vunpack.c.h.b16 %v1640
    %v1720 = vunpack.c.l.b16 %v1641
    %v1721 = vunpack.c.h.b16 %v1641
    %v1722 = vunpack.c.l.b16 %v1642
    %v1723 = vunpack.c.h.b16 %v1642
    %v1724 = vunpack.c.l.b16 %v1643
    %v1725 = vunpack.c.h.b16 %v1643
    %v1726 = vunpack.c.l.b16 %v1644
    %v1727 = vunpack.c.h.b16 %v1644
    %v1728 = vunpack.c.l.b16 %v1645
    %v1729 = vunpack.c.h.b16 %v1645
    %v1730 = vunpack.c.l.b16 %v1646
    %v1731 = vunpack.c.h.b16 %v1646
    %v1732 = vunpack.c.l.b16 %v1647
    %v1733 = vunpack.c.h.b16 %v1647
    %v1734 = vunpack.c.l.b16 %v1648
    %v1735 = vunpack.c.h.b16 %v1648
    %v1736 = vunpack.c.l.b16 %v1649
    %v1737 = vunpack.c.h.b16 %v1649
    %v1738 = vunpack.c.l.b16 %v1650
    %v1739 = vunpack.c.h.b16 %v1650
    %v1740 = vunpack.c.l.b16 %v1651
    %v1741 = vunpack.c.h.b16 %v1651
    %v1742 = vunpack.c.l.b16 %v1652
    %v1743 = vunpack.c.h.b16 %v1652
    %v1744 = vunpack.c.l.b16 %v1653
    %v1745 = vunpack.c.h.b16 %v1653
    %v1746 = vunpack.c.l.b16 %v1654
    %v1747 = vunpack.c.h.b16 %v1654
    %v1748 = vunpack.c.l.b16 %v1655
    %v1749 = vunpack.c.h.b16 %v1655
    %v1750 = vunpack.c.l.b16 %v1656
    %v1751 = vunpack.c.h.b16 %v1656
    %v1752 = vunpack.c.l.b16 %v1657
    %v1753 = vunpack.c.h.b16 %v1657
    %v1754 = vunpack.c.l.b16 %v1658
    %v1755 = vunpack.c.h.b16 %v1658
    %v1756 = vunpack.c.l.b16 %v1659
    %v1757 = vunpack.c.h.b16 %v1659
    %v1758 = vpack.c.b16 %v1698, %v1694
    %v1759 = vpack.c.b16 %v1699, %v1695
    %v1760 = vpack.c.b16 %v1700, %v1696
    %v1761 = vpack.c.b16 %v1701, %v1697
    %v1762 = vpack.c.b16 %v1706, %v1702
    %v1763 = vpack.c.b16 %v1707, %v1703
    %v1764 = vpack.c.b16 %v1708, %v1704
    %v1765 = vpack.c.b16 %v1709, %v1705
    %v1766 = vpack.c.b16 %v1714, %v1710
    %v1767 = vpack.c.b16 %v1715, %v1711
    %v1768 = vpack.c.b16 %v1716, %v1712
    %v1769 = vpack.c.b16 %v1717, %v1713
    %v1770 = vpack.c.b16 %v1722, %v1718
    %v1771 = vpack.c.b16 %v1723, %v1719
    %v1772 = vpack.c.b16 %v1724, %v1720
    %v1773 = vpack.c.b16 %v1725, %v1721
    %v1774 = vpack.c.b16 %v1730, %v1726
    %v1775 = vpack.c.b16 %v1731, %v1727
    %v1776 = vpack.c.b16 %v1732, %v1728
    %v1777 = vpack.c.b16 %v1733, %v1729
    %v1778 = vpack.c.b16 %v1738, %v1734
    %v1779 = vpack.c.b16 %v1739, %v1735
    %v1780 = vpack.c.b16 %v1740, %v1736
    %v1781 = vpack.c.b16 %v1741, %v1737
    %v1782 = vpack.c.b16 %v1746, %v1742
    %v1783 = vpack.c.b16 %v1747, %v1743
    %v1784 = vpack.c.b16 %v1748, %v1744
    %v1785 = vpack.c.b16 %v1749, %v1745
    %v1786 = vpack.c.b16 %v1754, %v1750
    %v1787 = vpack.c.b16 %v1755, %v1751
    %v1788 = vpack.c.b16 %v1756, %v1752
    %v1789 = vpack.c.b16 %v1757, %v1753
    %v1823 = vcombine.high %v1661, %v1661
    %v1825 = vunpack.c.l.s4 1983009808
    %v1826 = vunpack.c.0.s8 %v1825
    %v1827 = vlaneseq
    %v1828 = vshrl.u32 %v1827, 7
    %v1829 = vsub.s32 %v1826, %v1828
    %v1830 = vrot.slane %v1661, %v1829
    %v1832 = vunpack.c.l.s4 1983009808
    %v1833 = vunpack.c.0.s8 %v1832
    %v1834 = vlaneseq
    %v1835 = vshrl.u32 %v1834, 7
    %v1836 = vsub.s32 %v1833, %v1835
    %v1837 = vrot.slane %v1823, %v1836
    %v1838 = vcombine.high %v1830, %v1830
    %v1839 = vcombine.high %v1837, %v1837
    %1844 = vmatprep.subr.bf16.mxu0 %v1759
    %1845 = vmatpush1.bf16.msra.mxu0 %v1758
    %1846 = vmatprep.subr.bf16.mxu0 %v1763
    %1847 = vmatpush1.bf16.msra.mxu0 %v1762
    %1848 = vmatprep.subr.bf16.mxu0 %v1767
    %1849 = vmatpush1.bf16.msra.mxu0 %v1766
    %1850 = vmatprep.subr.bf16.mxu0 %v1771
    %1851 = vmatpush1.bf16.msra.mxu0 %v1770
    %1852 = vmatprep.subr.bf16.mxu0 %v1775
    %1853 = vmatpush1.bf16.msra.mxu0 %v1774
    %1854 = vmatprep.subr.bf16.mxu0 %v1779
    %1855 = vmatpush1.bf16.msra.mxu0 %v1778
    %1856 = vmatprep.subr.bf16.mxu0 %v1783
    %1857 = vmatpush1.bf16.msra.mxu0 %v1782
    %1858 = vmatprep.subr.bf16.mxu0 %v1787
    %1859 = vmatpush1.bf16.msra.mxu0 %v1786
    %1860 = vmatprep.subr.bf16.mxu0 0
    %1861 = vmatpush1.bf16.msra.mxu0 0
    %1862 = vmatprep.subr.bf16.mxu0 0
    %1863 = vmatpush1.bf16.msra.mxu0 0
    %1864 = vmatprep.subr.bf16.mxu0 0
    %1865 = vmatpush1.bf16.msra.mxu0 0
    %1866 = vmatprep.subr.bf16.mxu0 0
    %1867 = vmatpush1.bf16.msra.mxu0 0
    %1868 = vmatprep.subr.bf16.mxu0 0
    %1869 = vmatpush1.bf16.msra.mxu0 0
    %1870 = vmatprep.subr.bf16.mxu0 0
    %1871 = vmatpush1.bf16.msra.mxu0 0
    %1872 = vmatprep.subr.bf16.mxu0 0
    %1873 = vmatpush1.bf16.msra.mxu0 0
    %1874 = vmatprep.subr.bf16.mxu0 0
    %1875 = vmatpush1.bf16.msra.mxu0 0
    %1876 = vmatprep.mubr.bf16.mxu0 0
    %1877 = vmatmul.mubr.bf16.gmra.mrb[0].mxu0 %v1033
    %v1878 = vpop.f32.mrb[0].mxu0
    %v1879 = vadd.f32 %v1830, %v1878
    %v1880 = vpop.f32.mrb[0].mxu0
    %v1881 = vadd.f32 %v1838, %v1880
    %v1882 = vpop.f32.mrb[0].mxu0
    %v1883 = vpop.f32.mrb[0].mxu0
    %1884 = vdwg.mxu0
    %1885 = vmatprep.subr.bf16.mxu0 %v1761
    %1886 = vmatpush1.bf16.msra.mxu0 %v1760
    %1887 = vmatprep.subr.bf16.mxu0 %v1765
    %1888 = vmatpush1.bf16.msra.mxu0 %v1764
    %1889 = vmatprep.subr.bf16.mxu0 %v1769
    %1890 = vmatpush1.bf16.msra.mxu0 %v1768
    %1891 = vmatprep.subr.bf16.mxu0 %v1773
    %1892 = vmatpush1.bf16.msra.mxu0 %v1772
    %1893 = vmatprep.subr.bf16.mxu0 %v1777
    %1894 = vmatpush1.bf16.msra.mxu0 %v1776
    %1895 = vmatprep.subr.bf16.mxu0 %v1781
    %1896 = vmatpush1.bf16.msra.mxu0 %v1780
    %1897 = vmatprep.subr.bf16.mxu0 %v1785
    %1898 = vmatpush1.bf16.msra.mxu0 %v1784
    %1899 = vmatprep.subr.bf16.mxu0 %v1789
    %1900 = vmatpush1.bf16.msra.mxu0 %v1788
    %1901 = vmatprep.subr.bf16.mxu0 0
    %1902 = vmatpush1.bf16.msra.mxu0 0
    %1903 = vmatprep.subr.bf16.mxu0 0
    %1904 = vmatpush1.bf16.msra.mxu0 0
    %1905 = vmatprep.subr.bf16.mxu0 0
    %1906 = vmatpush1.bf16.msra.mxu0 0
    %1907 = vmatprep.subr.bf16.mxu0 0
    %1908 = vmatpush1.bf16.msra.mxu0 0
    %1909 = vmatprep.subr.bf16.mxu0 0
    %1910 = vmatpush1.bf16.msra.mxu0 0
    %1911 = vmatprep.subr.bf16.mxu0 0
    %1912 = vmatpush1.bf16.msra.mxu0 0
    %1913 = vmatprep.subr.bf16.mxu0 0
    %1914 = vmatpush1.bf16.msra.mxu0 0
    %1915 = vmatprep.subr.bf16.mxu0 0
    %1916 = vmatpush1.bf16.msra.mxu0 0
    %1917 = vmatprep.mubr.bf16.mxu0 0
    %1918 = vmatmul.mubr.bf16.gmra.mrb[0].mxu0 %v1033
    %v1919 = vpop.f32.mrb[0].mxu0
    %v1920 = vadd.f32 %v1837, %v1919
    %v1921 = vpop.f32.mrb[0].mxu0
    %v1922 = vadd.f32 %v1839, %v1921
    %v1923 = vpop.f32.mrb[0].mxu0
    %v1924 = vpop.f32.mrb[0].mxu0
    %1925 = vdwg.mxu0
    %v1926 = vmul.f32 %v1879, 0.5
    %v1927 = vtanh.pop %v1926
    %v1928 = vadd.f32 %v1927, 1.0
    %v1929 = vmul.f32 %v1928, 0.5
    %v1930 = vmul.f32 %v1881, 0.5
    %v1931 = vtanh.pop %v1930
    %v1932 = vadd.f32 %v1931, 1.0
    %v1933 = vmul.f32 %v1932, 0.5
    %v1934 = vtanh.pop %v1920
    %v1935 = vmul.f32 %v1922, 0.5
    %v1936 = vtanh.pop %v1935
    %v1937 = vadd.f32 %v1936, 1.0
    %v1938 = vmul.f32 %v1937, 0.5
    %v1939 = vmul.f32 %v1933, %v1030
    %v1940 = vmul.f32 %v1929, %v1934
    %v1941 = vadd.f32 %v1939, %v1940
    %v1942 = vtanh.pop %v1941
    %v1943 = vmul.f32 %v1938, %v1942
    %v1944 = vpack.c.bf16 %v1943, %v1943
    %v1945 = vld [vmem:[#allocation8] sm:$0xff]
    %v1946 = vld [vmem:[#allocation8 + $0x8] sm:$0xff]
    %v1947 = vld [vmem:[#allocation8 + $0x10] sm:$0xff]
    %v1948 = vld [vmem:[#allocation8 + $0x18] sm:$0xff]
    %v1949 = vld [vmem:[#allocation8 + $0x20] sm:$0xff]
    %v1950 = vld [vmem:[#allocation8 + $0x28] sm:$0xff]
    %v1951 = vld [vmem:[#allocation8 + $0x30] sm:$0xff]
    %v1952 = vld [vmem:[#allocation8 + $0x38] sm:$0xff]
    %v1953 = vld [vmem:[#allocation8 + $0x40] sm:$0xff]
    %v1954 = vld [vmem:[#allocation8 + $0x48] sm:$0xff]
    %v1955 = vld [vmem:[#allocation8 + $0x50] sm:$0xff]
    %v1956 = vld [vmem:[#allocation8 + $0x58] sm:$0xff]
    %v1957 = vld [vmem:[#allocation8 + $0x60] sm:$0xff]
    %v1958 = vld [vmem:[#allocation8 + $0x68] sm:$0xff]
    %v1959 = vld [vmem:[#allocation8 + $0x70] sm:$0xff]
    %v1960 = vld [vmem:[#allocation8 + $0x78] sm:$0xff]
    %v1961 = vld [vmem:[#allocation8 + $0x80] sm:$0xff]
    %v1962 = vld [vmem:[#allocation8 + $0x88] sm:$0xff]
    %v1963 = vld [vmem:[#allocation8 + $0x90] sm:$0xff]
    %v1964 = vld [vmem:[#allocation8 + $0x98] sm:$0xff]
    %v1965 = vld [vmem:[#allocation8 + $0xa0] sm:$0xff]
    %v1966 = vld [vmem:[#allocation8 + $0xa8] sm:$0xff]
    %v1967 = vld [vmem:[#allocation8 + $0xb0] sm:$0xff]
    %v1968 = vld [vmem:[#allocation8 + $0xb8] sm:$0xff]
    %v1969 = vld [vmem:[#allocation8 + $0xc0] sm:$0xff]
    %v1970 = vld [vmem:[#allocation8 + $0xc8] sm:$0xff]
    %v1971 = vld [vmem:[#allocation8 + $0xd0] sm:$0xff]
    %v1972 = vld [vmem:[#allocation8 + $0xd8] sm:$0xff]
    %v1973 = vld [vmem:[#allocation8 + $0xe0] sm:$0xff]
    %v1974 = vld [vmem:[#allocation8 + $0xe8] sm:$0xff]
    %v1975 = vld [vmem:[#allocation8 + $0xf0] sm:$0xff]
    %v1976 = vld [vmem:[#allocation8 + $0xf8] sm:$0xff]
    %v2009 = vunpack.c.l.b16 %v1945
    %v2010 = vunpack.c.h.b16 %v1945
    %v2011 = vunpack.c.l.b16 %v1946
    %v2012 = vunpack.c.h.b16 %v1946
    %v2013 = vunpack.c.l.b16 %v1947
    %v2014 = vunpack.c.h.b16 %v1947
    %v2015 = vunpack.c.l.b16 %v1948
    %v2016 = vunpack.c.h.b16 %v1948
    %v2017 = vunpack.c.l.b16 %v1949
    %v2018 = vunpack.c.h.b16 %v1949
    %v2019 = vunpack.c.l.b16 %v1950
    %v2020 = vunpack.c.h.b16 %v1950
    %v2021 = vunpack.c.l.b16 %v1951
    %v2022 = vunpack.c.h.b16 %v1951
    %v2023 = vunpack.c.l.b16 %v1952
    %v2024 = vunpack.c.h.b16 %v1952
    %v2025 = vunpack.c.l.b16 %v1953
    %v2026 = vunpack.c.h.b16 %v1953
    %v2027 = vunpack.c.l.b16 %v1954
    %v2028 = vunpack.c.h.b16 %v1954
    %v2029 = vunpack.c.l.b16 %v1955
    %v2030 = vunpack.c.h.b16 %v1955
    %v2031 = vunpack.c.l.b16 %v1956
    %v2032 = vunpack.c.h.b16 %v1956
    %v2033 = vunpack.c.l.b16 %v1957
    %v2034 = vunpack.c.h.b16 %v1957
    %v2035 = vunpack.c.l.b16 %v1958
    %v2036 = vunpack.c.h.b16 %v1958
    %v2037 = vunpack.c.l.b16 %v1959
    %v2038 = vunpack.c.h.b16 %v1959
    %v2039 = vunpack.c.l.b16 %v1960
    %v2040 = vunpack.c.h.b16 %v1960
    %v2041 = vunpack.c.l.b16 %v1961
    %v2042 = vunpack.c.h.b16 %v1961
    %v2043 = vunpack.c.l.b16 %v1962
    %v2044 = vunpack.c.h.b16 %v1962
    %v2045 = vunpack.c.l.b16 %v1963
    %v2046 = vunpack.c.h.b16 %v1963
    %v2047 = vunpack.c.l.b16 %v1964
    %v2048 = vunpack.c.h.b16 %v1964
    %v2049 = vunpack.c.l.b16 %v1965
    %v2050 = vunpack.c.h.b16 %v1965
    %v2051 = vunpack.c.l.b16 %v1966
    %v2052 = vunpack.c.h.b16 %v1966
    %v2053 = vunpack.c.l.b16 %v1967
    %v2054 = vunpack.c.h.b16 %v1967
    %v2055 = vunpack.c.l.b16 %v1968
    %v2056 = vunpack.c.h.b16 %v1968
    %v2057 = vunpack.c.l.b16 %v1969
    %v2058 = vunpack.c.h.b16 %v1969
    %v2059 = vunpack.c.l.b16 %v1970
    %v2060 = vunpack.c.h.b16 %v1970
    %v2061 = vunpack.c.l.b16 %v1971
    %v2062 = vunpack.c.h.b16 %v1971
    %v2063 = vunpack.c.l.b16 %v1972
    %v2064 = vunpack.c.h.b16 %v1972
    %v2065 = vunpack.c.l.b16 %v1973
    %v2066 = vunpack.c.h.b16 %v1973
    %v2067 = vunpack.c.l.b16 %v1974
    %v2068 = vunpack.c.h.b16 %v1974
    %v2069 = vunpack.c.l.b16 %v1975
    %v2070 = vunpack.c.h.b16 %v1975
    %v2071 = vunpack.c.l.b16 %v1976
    %v2072 = vunpack.c.h.b16 %v1976
    %v2073 = vpack.c.b16 %v2013, %v2009
    %v2074 = vpack.c.b16 %v2014, %v2010
    %v2075 = vpack.c.b16 %v2015, %v2011
    %v2076 = vpack.c.b16 %v2016, %v2012
    %v2077 = vpack.c.b16 %v2021, %v2017
    %v2078 = vpack.c.b16 %v2022, %v2018
    %v2079 = vpack.c.b16 %v2023, %v2019
    %v2080 = vpack.c.b16 %v2024, %v2020
    %v2081 = vpack.c.b16 %v2029, %v2025
    %v2082 = vpack.c.b16 %v2030, %v2026
    %v2083 = vpack.c.b16 %v2031, %v2027
    %v2084 = vpack.c.b16 %v2032, %v2028
    %v2085 = vpack.c.b16 %v2037, %v2033
    %v2086 = vpack.c.b16 %v2038, %v2034
    %v2087 = vpack.c.b16 %v2039, %v2035
    %v2088 = vpack.c.b16 %v2040, %v2036
    %v2089 = vpack.c.b16 %v2045, %v2041
    %v2090 = vpack.c.b16 %v2046, %v2042
    %v2091 = vpack.c.b16 %v2047, %v2043
    %v2092 = vpack.c.b16 %v2048, %v2044
    %v2093 = vpack.c.b16 %v2053, %v2049
    %v2094 = vpack.c.b16 %v2054, %v2050
    %v2095 = vpack.c.b16 %v2055, %v2051
    %v2096 = vpack.c.b16 %v2056, %v2052
    %v2097 = vpack.c.b16 %v2061, %v2057
    %v2098 = vpack.c.b16 %v2062, %v2058
    %v2099 = vpack.c.b16 %v2063, %v2059
    %v2100 = vpack.c.b16 %v2064, %v2060
    %v2101 = vpack.c.b16 %v2069, %v2065
    %v2102 = vpack.c.b16 %v2070, %v2066
    %v2103 = vpack.c.b16 %v2071, %v2067
    %v2104 = vpack.c.b16 %v2072, %v2068
    %2137 = vmatprep.subr.bf16.mxu0 %v2074
    %2138 = vmatpush1.bf16.msra.mxu0 %v2073
    %2139 = vmatprep.subr.bf16.mxu0 %v2078
    %2140 = vmatpush1.bf16.msra.mxu0 %v2077
    %2141 = vmatprep.subr.bf16.mxu0 %v2082
    %2142 = vmatpush1.bf16.msra.mxu0 %v2081
    %2143 = vmatprep.subr.bf16.mxu0 %v2086
    %2144 = vmatpush1.bf16.msra.mxu0 %v2085
    %2145 = vmatprep.subr.bf16.mxu0 %v2090
    %2146 = vmatpush1.bf16.msra.mxu0 %v2089
    %2147 = vmatprep.subr.bf16.mxu0 %v2094
    %2148 = vmatpush1.bf16.msra.mxu0 %v2093
    %2149 = vmatprep.subr.bf16.mxu0 %v2098
    %2150 = vmatpush1.bf16.msra.mxu0 %v2097
    %2151 = vmatprep.subr.bf16.mxu0 %v2102
    %2152 = vmatpush1.bf16.msra.mxu0 %v2101
    %2153 = vmatprep.subr.bf16.mxu0 0
    %2154 = vmatpush1.bf16.msra.mxu0 0
    %2155 = vmatprep.subr.bf16.mxu0 0
    %2156 = vmatpush1.bf16.msra.mxu0 0
    %2157 = vmatprep.subr.bf16.mxu0 0
    %2158 = vmatpush1.bf16.msra.mxu0 0
    %2159 = vmatprep.subr.bf16.mxu0 0
    %2160 = vmatpush1.bf16.msra.mxu0 0
    %2161 = vmatprep.subr.bf16.mxu0 0
    %2162 = vmatpush1.bf16.msra.mxu0 0
    %2163 = vmatprep.subr.bf16.mxu0 0
    %2164 = vmatpush1.bf16.msra.mxu0 0
    %2165 = vmatprep.subr.bf16.mxu0 0
    %2166 = vmatpush1.bf16.msra.mxu0 0
    %2167 = vmatprep.subr.bf16.mxu0 0
    %2168 = vmatpush1.bf16.msra.mxu0 0
    %2169 = vmatprep.mubr.bf16.mxu0 0
    %2170 = vmatmul.mubr.bf16.gmra.mrb[0].mxu0 %v1944
    %v2171 = vpop.f32.mrb[0].mxu0
    %v2172 = vadd.f32 0.0, %v2171
    %v2173 = vpop.f32.mrb[0].mxu0
    %v2174 = vadd.f32 0.0, %v2173
    %v2175 = vpop.f32.mrb[0].mxu0
    %v2176 = vpop.f32.mrb[0].mxu0
    %2177 = vdwg.mxu0
    %2178 = vmatprep.subr.bf16.mxu0 %v2076
    %2179 = vmatpush1.bf16.msra.mxu0 %v2075
    %2180 = vmatprep.subr.bf16.mxu0 %v2080
    %2181 = vmatpush1.bf16.msra.mxu0 %v2079
    %2182 = vmatprep.subr.bf16.mxu0 %v2084
    %2183 = vmatpush1.bf16.msra.mxu0 %v2083
    %2184 = vmatprep.subr.bf16.mxu0 %v2088
    %2185 = vmatpush1.bf16.msra.mxu0 %v2087
    %2186 = vmatprep.subr.bf16.mxu0 %v2092
    %2187 = vmatpush1.bf16.msra.mxu0 %v2091
    %2188 = vmatprep.subr.bf16.mxu0 %v2096
    %2189 = vmatpush1.bf16.msra.mxu0 %v2095
    %2190 = vmatprep.subr.bf16.mxu0 %v2100
    %2191 = vmatpush1.bf16.msra.mxu0 %v2099
    %2192 = vmatprep.subr.bf16.mxu0 %v2104
    %2193 = vmatpush1.bf16.msra.mxu0 %v2103
    %2194 = vmatprep.subr.bf16.mxu0 0
    %2195 = vmatpush1.bf16.msra.mxu0 0
    %2196 = vmatprep.subr.bf16.mxu0 0
    %2197 = vmatpush1.bf16.msra.mxu0 0
    %2198 = vmatprep.subr.bf16.mxu0 0
    %2199 = vmatpush1.bf16.msra.mxu0 0
    %2200 = vmatprep.subr.bf16.mxu0 0
    %2201 = vmatpush1.bf16.msra.mxu0 0
    %2202 = vmatprep.subr.bf16.mxu0 0
    %2203 = vmatpush1.bf16.msra.mxu0 0
    %2204 = vmatprep.subr.bf16.mxu0 0
    %2205 = vmatpush1.bf16.msra.mxu0 0
    %2206 = vmatprep.subr.bf16.mxu0 0
    %2207 = vmatpush1.bf16.msra.mxu0 0
    %2208 = vmatprep.subr.bf16.mxu0 0
    %2209 = vmatpush1.bf16.msra.mxu0 0
    %2210 = vmatprep.mubr.bf16.mxu0 0
    %2211 = vmatmul.mubr.bf16.gmra.mrb[0].mxu0 %v1944
    %v2212 = vpop.f32.mrb[0].mxu0
    %v2213 = vadd.f32 0.0, %v2212
    %v2214 = vpop.f32.mrb[0].mxu0
    %v2215 = vadd.f32 0.0, %v2214
    %v2216 = vpop.f32.mrb[0].mxu0
    %v2217 = vpop.f32.mrb[0].mxu0
    %2218 = vdwg.mxu0
    %v2219 = vadd.f32 %v1581, %v2172
    %v2220 = vadd.f32 %v1583, %v2174
    %v2221 = vadd.f32 %v1622, %v2213
    %v2222 = vadd.f32 %v1624, %v2215
    %v2223 = vmul.f32 %v2219, 0.5
    %v2224 = vtanh.pop %v2223
    %v2225 = vadd.f32 %v2224, 1.0
    %v2226 = vmul.f32 %v2225, 0.5
    %v2227 = vmul.f32 %v2220, 0.5
    %v2228 = vtanh.pop %v2227
    %v2229 = vadd.f32 %v2228, 1.0
    %v2230 = vmul.f32 %v2229, 0.5
    %v2231 = vtanh.pop %v2221
    %v2232 = vmul.f32 %v2222, 0.5
    %v2233 = vtanh.pop %v2232
    %v2234 = vadd.f32 %v2233, 1.0
    %v2235 = vmul.f32 %v2234, 0.5
    %v2236 = vmul.f32 %v2230, %v1327
    %v2237 = vmul.f32 %v2226, %v2231
    %v2238 = vadd.f32 %v2236, %v2237
    %v2239 = vtanh.pop %v2238
    %v2240 = vmul.f32 %v2235, %v2239
    %s2241 = scalar_lea.vmem [#allocation3], 2
    %2242 = vst [vmem:[%s2241] sm:$0x3] %v2240
    %v2243 = vpack.c.bf16 %v2240, %v2240
    %v2244 = vld [vmem:[#allocation10] sm:$0xff]
    %v2245 = vld [vmem:[#allocation10 + $0x8] sm:$0xff]
    %v2246 = vld [vmem:[#allocation10 + $0x10] sm:$0xff]
    %v2247 = vld [vmem:[#allocation10 + $0x18] sm:$0xff]
    %v2248 = vld [vmem:[#allocation10 + $0x20] sm:$0xff]
    %v2249 = vld [vmem:[#allocation10 + $0x28] sm:$0xff]
    %v2250 = vld [vmem:[#allocation10 + $0x30] sm:$0xff]
    %v2251 = vld [vmem:[#allocation10 + $0x38] sm:$0xff]
    %v2252 = vld [vmem:[#allocation10 + $0x40] sm:$0xff]
    %v2253 = vld [vmem:[#allocation10 + $0x48] sm:$0xff]
    %v2254 = vld [vmem:[#allocation10 + $0x50] sm:$0xff]
    %v2255 = vld [vmem:[#allocation10 + $0x58] sm:$0xff]
    %v2256 = vld [vmem:[#allocation10 + $0x60] sm:$0xff]
    %v2257 = vld [vmem:[#allocation10 + $0x68] sm:$0xff]
    %v2258 = vld [vmem:[#allocation10 + $0x70] sm:$0xff]
    %v2259 = vld [vmem:[#allocation10 + $0x78] sm:$0xff]
    %v2260 = vld [vmem:[#allocation10 + $0x80] sm:$0xff]
    %v2261 = vld [vmem:[#allocation10 + $0x88] sm:$0xff]
    %v2262 = vld [vmem:[#allocation10 + $0x90] sm:$0xff]
    %v2263 = vld [vmem:[#allocation10 + $0x98] sm:$0xff]
    %v2264 = vld [vmem:[#allocation10 + $0xa0] sm:$0xff]
    %v2265 = vld [vmem:[#allocation10 + $0xa8] sm:$0xff]
    %v2266 = vld [vmem:[#allocation10 + $0xb0] sm:$0xff]
    %v2267 = vld [vmem:[#allocation10 + $0xb8] sm:$0xff]
    %v2268 = vld [vmem:[#allocation10 + $0xc0] sm:$0xff]
    %v2269 = vld [vmem:[#allocation10 + $0xc8] sm:$0xff]
    %v2270 = vld [vmem:[#allocation10 + $0xd0] sm:$0xff]
    %v2271 = vld [vmem:[#allocation10 + $0xd8] sm:$0xff]
    %v2272 = vld [vmem:[#allocation10 + $0xe0] sm:$0xff]
    %v2273 = vld [vmem:[#allocation10 + $0xe8] sm:$0xff]
    %v2274 = vld [vmem:[#allocation10 + $0xf0] sm:$0xff]
    %v2275 = vld [vmem:[#allocation10 + $0xf8] sm:$0xff]
    %v2276 = vld [vmem:[%s7] sm:$0xf]
    %v2278 = vlaneseq
    %v2279 = vshrl.u32 %v2278, 7
    %v2280 = vsub.s32 0, %v2279
    %v2281 = vrot.slane %v2276, %v2280
    %v2282 = vlaneseq
    %v2283 = vshrl.u32 %v2282, 7
    %v2284 = vsub.s32 1, %v2283
    %v2285 = vrot.slane %v2276, %v2284
    %v2286 = vlaneseq
    %v2287 = vshrl.u32 %v2286, 7
    %v2288 = vsub.s32 2, %v2287
    %v2289 = vrot.slane %v2276, %v2288
    %v2290 = vlaneseq
    %v2291 = vshrl.u32 %v2290, 7
    %v2292 = vsub.s32 3, %v2291
    %v2293 = vrot.slane %v2276, %v2292
    %v2330 = vunpack.c.l.b16 %v2244
    %v2331 = vunpack.c.h.b16 %v2244
    %v2332 = vunpack.c.l.b16 %v2245
    %v2333 = vunpack.c.h.b16 %v2245
    %v2334 = vunpack.c.l.b16 %v2246
    %v2335 = vunpack.c.h.b16 %v2246
    %v2336 = vunpack.c.l.b16 %v2247
    %v2337 = vunpack.c.h.b16 %v2247
    %v2338 = vunpack.c.l.b16 %v2248
    %v2339 = vunpack.c.h.b16 %v2248
    %v2340 = vunpack.c.l.b16 %v2249
    %v2341 = vunpack.c.h.b16 %v2249
    %v2342 = vunpack.c.l.b16 %v2250
    %v2343 = vunpack.c.h.b16 %v2250
    %v2344 = vunpack.c.l.b16 %v2251
    %v2345 = vunpack.c.h.b16 %v2251
    %v2346 = vunpack.c.l.b16 %v2252
    %v2347 = vunpack.c.h.b16 %v2252
    %v2348 = vunpack.c.l.b16 %v2253
    %v2349 = vunpack.c.h.b16 %v2253
    %v2350 = vunpack.c.l.b16 %v2254
    %v2351 = vunpack.c.h.b16 %v2254
    %v2352 = vunpack.c.l.b16 %v2255
    %v2353 = vunpack.c.h.b16 %v2255
    %v2354 = vunpack.c.l.b16 %v2256
    %v2355 = vunpack.c.h.b16 %v2256
    %v2356 = vunpack.c.l.b16 %v2257
    %v2357 = vunpack.c.h.b16 %v2257
    %v2358 = vunpack.c.l.b16 %v2258
    %v2359 = vunpack.c.h.b16 %v2258
    %v2360 = vunpack.c.l.b16 %v2259
    %v2361 = vunpack.c.h.b16 %v2259
    %v2362 = vunpack.c.l.b16 %v2260
    %v2363 = vunpack.c.h.b16 %v2260
    %v2364 = vunpack.c.l.b16 %v2261
    %v2365 = vunpack.c.h.b16 %v2261
    %v2366 = vunpack.c.l.b16 %v2262
    %v2367 = vunpack.c.h.b16 %v2262
    %v2368 = vunpack.c.l.b16 %v2263
    %v2369 = vunpack.c.h.b16 %v2263
    %v2370 = vunpack.c.l.b16 %v2264
    %v2371 = vunpack.c.h.b16 %v2264
    %v2372 = vunpack.c.l.b16 %v2265
    %v2373 = vunpack.c.h.b16 %v2265
    %v2374 = vunpack.c.l.b16 %v2266
    %v2375 = vunpack.c.h.b16 %v2266
    %v2376 = vunpack.c.l.b16 %v2267
    %v2377 = vunpack.c.h.b16 %v2267
    %v2378 = vunpack.c.l.b16 %v2268
    %v2379 = vunpack.c.h.b16 %v2268
    %v2380 = vunpack.c.l.b16 %v2269
    %v2381 = vunpack.c.h.b16 %v2269
    %v2382 = vunpack.c.l.b16 %v2270
    %v2383 = vunpack.c.h.b16 %v2270
    %v2384 = vunpack.c.l.b16 %v2271
    %v2385 = vunpack.c.h.b16 %v2271
    %v2386 = vunpack.c.l.b16 %v2272
    %v2387 = vunpack.c.h.b16 %v2272
    %v2388 = vunpack.c.l.b16 %v2273
    %v2389 = vunpack.c.h.b16 %v2273
    %v2390 = vunpack.c.l.b16 %v2274
    %v2391 = vunpack.c.h.b16 %v2274
    %v2392 = vunpack.c.l.b16 %v2275
    %v2393 = vunpack.c.h.b16 %v2275
    %v2394 = vpack.c.b16 %v2334, %v2330
    %v2395 = vpack.c.b16 %v2335, %v2331
    %v2396 = vpack.c.b16 %v2336, %v2332
    %v2397 = vpack.c.b16 %v2337, %v2333
    %v2398 = vpack.c.b16 %v2342, %v2338
    %v2399 = vpack.c.b16 %v2343, %v2339
    %v2400 = vpack.c.b16 %v2344, %v2340
    %v2401 = vpack.c.b16 %v2345, %v2341
    %v2402 = vpack.c.b16 %v2350, %v2346
    %v2403 = vpack.c.b16 %v2351, %v2347
    %v2404 = vpack.c.b16 %v2352, %v2348
    %v2405 = vpack.c.b16 %v2353, %v2349
    %v2406 = vpack.c.b16 %v2358, %v2354
    %v2407 = vpack.c.b16 %v2359, %v2355
    %v2408 = vpack.c.b16 %v2360, %v2356
    %v2409 = vpack.c.b16 %v2361, %v2357
    %v2410 = vpack.c.b16 %v2366, %v2362
    %v2411 = vpack.c.b16 %v2367, %v2363
    %v2412 = vpack.c.b16 %v2368, %v2364
    %v2413 = vpack.c.b16 %v2369, %v2365
    %v2414 = vpack.c.b16 %v2374, %v2370
    %v2415 = vpack.c.b16 %v2375, %v2371
    %v2416 = vpack.c.b16 %v2376, %v2372
    %v2417 = vpack.c.b16 %v2377, %v2373
    %v2418 = vpack.c.b16 %v2382, %v2378
    %v2419 = vpack.c.b16 %v2383, %v2379
    %v2420 = vpack.c.b16 %v2384, %v2380
    %v2421 = vpack.c.b16 %v2385, %v2381
    %v2422 = vpack.c.b16 %v2390, %v2386
    %v2423 = vpack.c.b16 %v2391, %v2387
    %v2424 = vpack.c.b16 %v2392, %v2388
    %v2425 = vpack.c.b16 %v2393, %v2389
    %2458 = vmatprep.subr.bf16.mxu0 %v2395
    %2459 = vmatpush1.bf16.msra.mxu0 %v2394
    %2460 = vmatprep.subr.bf16.mxu0 %v2399
    %2461 = vmatpush1.bf16.msra.mxu0 %v2398
    %2462 = vmatprep.subr.bf16.mxu0 %v2403
    %2463 = vmatpush1.bf16.msra.mxu0 %v2402
    %2464 = vmatprep.subr.bf16.mxu0 %v2407
    %2465 = vmatpush1.bf16.msra.mxu0 %v2406
    %2466 = vmatprep.subr.bf16.mxu0 %v2411
    %2467 = vmatpush1.bf16.msra.mxu0 %v2410
    %2468 = vmatprep.subr.bf16.mxu0 %v2415
    %2469 = vmatpush1.bf16.msra.mxu0 %v2414
    %2470 = vmatprep.subr.bf16.mxu0 %v2419
    %2471 = vmatpush1.bf16.msra.mxu0 %v2418
    %2472 = vmatprep.subr.bf16.mxu0 %v2423
    %2473 = vmatpush1.bf16.msra.mxu0 %v2422
    %2474 = vmatprep.subr.bf16.mxu0 0
    %2475 = vmatpush1.bf16.msra.mxu0 0
    %2476 = vmatprep.subr.bf16.mxu0 0
    %2477 = vmatpush1.bf16.msra.mxu0 0
    %2478 = vmatprep.subr.bf16.mxu0 0
    %2479 = vmatpush1.bf16.msra.mxu0 0
    %2480 = vmatprep.subr.bf16.mxu0 0
    %2481 = vmatpush1.bf16.msra.mxu0 0
    %2482 = vmatprep.subr.bf16.mxu0 0
    %2483 = vmatpush1.bf16.msra.mxu0 0
    %2484 = vmatprep.subr.bf16.mxu0 0
    %2485 = vmatpush1.bf16.msra.mxu0 0
    %2486 = vmatprep.subr.bf16.mxu0 0
    %2487 = vmatpush1.bf16.msra.mxu0 0
    %2488 = vmatprep.subr.bf16.mxu0 0
    %2489 = vmatpush1.bf16.msra.mxu0 0
    %2490 = vmatprep.mubr.bf16.mxu0 0
    %2491 = vmatmul.mubr.bf16.gmra.mrb[0].mxu0 %v2243
    %v2492 = vpop.f32.mrb[0].mxu0
    %v2493 = vadd.f32 %v2281, %v2492
    %v2494 = vpop.f32.mrb[0].mxu0
    %v2495 = vadd.f32 %v2285, %v2494
    %v2496 = vpop.f32.mrb[0].mxu0
    %v2497 = vpop.f32.mrb[0].mxu0
    %2498 = vdwg.mxu0
    %2499 = vmatprep.subr.bf16.mxu0 %v2397
    %2500 = vmatpush1.bf16.msra.mxu0 %v2396
    %2501 = vmatprep.subr.bf16.mxu0 %v2401
    %2502 = vmatpush1.bf16.msra.mxu0 %v2400
    %2503 = vmatprep.subr.bf16.mxu0 %v2405
    %2504 = vmatpush1.bf16.msra.mxu0 %v2404
    %2505 = vmatprep.subr.bf16.mxu0 %v2409
    %2506 = vmatpush1.bf16.msra.mxu0 %v2408
    %2507 = vmatprep.subr.bf16.mxu0 %v2413
    %2508 = vmatpush1.bf16.msra.mxu0 %v2412
    %2509 = vmatprep.subr.bf16.mxu0 %v2417
    %2510 = vmatpush1.bf16.msra.mxu0 %v2416
    %2511 = vmatprep.subr.bf16.mxu0 %v2421
    %2512 = vmatpush1.bf16.msra.mxu0 %v2420
    %2513 = vmatprep.subr.bf16.mxu0 %v2425
    %2514 = vmatpush1.bf16.msra.mxu0 %v2424
    %2515 = vmatprep.subr.bf16.mxu0 0
    %2516 = vmatpush1.bf16.msra.mxu0 0
    %2517 = vmatprep.subr.bf16.mxu0 0
    %2518 = vmatpush1.bf16.msra.mxu0 0
    %2519 = vmatprep.subr.bf16.mxu0 0
    %2520 = vmatpush1.bf16.msra.mxu0 0
    %2521 = vmatprep.subr.bf16.mxu0 0
    %2522 = vmatpush1.bf16.msra.mxu0 0
    %2523 = vmatprep.subr.bf16.mxu0 0
    %2524 = vmatpush1.bf16.msra.mxu0 0
    %2525 = vmatprep.subr.bf16.mxu0 0
    %2526 = vmatpush1.bf16.msra.mxu0 0
    %2527 = vmatprep.subr.bf16.mxu0 0
    %2528 = vmatpush1.bf16.msra.mxu0 0
    %2529 = vmatprep.subr.bf16.mxu0 0
    %2530 = vmatpush1.bf16.msra.mxu0 0
    %2531 = vmatprep.mubr.bf16.mxu0 0
    %2532 = vmatmul.mubr.bf16.gmra.mrb[0].mxu0 %v2243
    %v2533 = vpop.f32.mrb[0].mxu0
    %v2534 = vadd.f32 %v2289, %v2533
    %v2535 = vpop.f32.mrb[0].mxu0
    %v2536 = vadd.f32 %v2293, %v2535
    %v2537 = vpop.f32.mrb[0].mxu0
    %v2538 = vpop.f32.mrb[0].mxu0
    %2539 = vdwg.mxu0
    %v2540 = vld [vmem:[#allocation5] sm:$0xff]
    %v2541 = vld [vmem:[#allocation5 + $0x8] sm:$0xff]
    %v2542 = vld [vmem:[#allocation5 + $0x10] sm:$0xff]
    %v2543 = vld [vmem:[#allocation5 + $0x18] sm:$0xff]
    %v2544 = vld [vmem:[#allocation5 + $0x20] sm:$0xff]
    %v2545 = vld [vmem:[#allocation5 + $0x28] sm:$0xff]
    %v2546 = vld [vmem:[#allocation5 + $0x30] sm:$0xff]
    %v2547 = vld [vmem:[#allocation5 + $0x38] sm:$0xff]
    %v2548 = vld [vmem:[#allocation5 + $0x40] sm:$0xff]
    %v2549 = vld [vmem:[#allocation5 + $0x48] sm:$0xff]
    %v2550 = vld [vmem:[#allocation5 + $0x50] sm:$0xff]
    %v2551 = vld [vmem:[#allocation5 + $0x58] sm:$0xff]
    %v2552 = vld [vmem:[#allocation5 + $0x60] sm:$0xff]
    %v2553 = vld [vmem:[#allocation5 + $0x68] sm:$0xff]
    %v2554 = vld [vmem:[#allocation5 + $0x70] sm:$0xff]
    %v2555 = vld [vmem:[#allocation5 + $0x78] sm:$0xff]
    %v2556 = vld [vmem:[#allocation5 + $0x80] sm:$0xff]
    %v2557 = vld [vmem:[#allocation5 + $0x88] sm:$0xff]
    %v2558 = vld [vmem:[#allocation5 + $0x90] sm:$0xff]
    %v2559 = vld [vmem:[#allocation5 + $0x98] sm:$0xff]
    %v2560 = vld [vmem:[#allocation5 + $0xa0] sm:$0xff]
    %v2561 = vld [vmem:[#allocation5 + $0xa8] sm:$0xff]
    %v2562 = vld [vmem:[#allocation5 + $0xb0] sm:$0xff]
    %v2563 = vld [vmem:[#allocation5 + $0xb8] sm:$0xff]
    %v2564 = vld [vmem:[#allocation5 + $0xc0] sm:$0xff]
    %v2565 = vld [vmem:[#allocation5 + $0xc8] sm:$0xff]
    %v2566 = vld [vmem:[#allocation5 + $0xd0] sm:$0xff]
    %v2567 = vld [vmem:[#allocation5 + $0xd8] sm:$0xff]
    %v2568 = vld [vmem:[#allocation5 + $0xe0] sm:$0xff]
    %v2569 = vld [vmem:[#allocation5 + $0xe8] sm:$0xff]
    %v2570 = vld [vmem:[#allocation5 + $0xf0] sm:$0xff]
    %v2571 = vld [vmem:[#allocation5 + $0xf8] sm:$0xff]
    %s2572 = scalar_lea.vmem [#allocation2], 16
    %v2573 = vld [vmem:[%s2572] sm:$0xff]
    %v2606 = vunpack.c.l.b16 %v2540
    %v2607 = vunpack.c.h.b16 %v2540
    %v2608 = vunpack.c.l.b16 %v2541
    %v2609 = vunpack.c.h.b16 %v2541
    %v2610 = vunpack.c.l.b16 %v2542
    %v2611 = vunpack.c.h.b16 %v2542
    %v2612 = vunpack.c.l.b16 %v2543
    %v2613 = vunpack.c.h.b16 %v2543
    %v2614 = vunpack.c.l.b16 %v2544
    %v2615 = vunpack.c.h.b16 %v2544
    %v2616 = vunpack.c.l.b16 %v2545
    %v2617 = vunpack.c.h.b16 %v2545
    %v2618 = vunpack.c.l.b16 %v2546
    %v2619 = vunpack.c.h.b16 %v2546
    %v2620 = vunpack.c.l.b16 %v2547
    %v2621 = vunpack.c.h.b16 %v2547
    %v2622 = vunpack.c.l.b16 %v2548
    %v2623 = vunpack.c.h.b16 %v2548
    %v2624 = vunpack.c.l.b16 %v2549
    %v2625 = vunpack.c.h.b16 %v2549
    %v2626 = vunpack.c.l.b16 %v2550
    %v2627 = vunpack.c.h.b16 %v2550
    %v2628 = vunpack.c.l.b16 %v2551
    %v2629 = vunpack.c.h.b16 %v2551
    %v2630 = vunpack.c.l.b16 %v2552
    %v2631 = vunpack.c.h.b16 %v2552
    %v2632 = vunpack.c.l.b16 %v2553
    %v2633 = vunpack.c.h.b16 %v2553
    %v2634 = vunpack.c.l.b16 %v2554
    %v2635 = vunpack.c.h.b16 %v2554
    %v2636 = vunpack.c.l.b16 %v2555
    %v2637 = vunpack.c.h.b16 %v2555
    %v2638 = vunpack.c.l.b16 %v2556
    %v2639 = vunpack.c.h.b16 %v2556
    %v2640 = vunpack.c.l.b16 %v2557
    %v2641 = vunpack.c.h.b16 %v2557
    %v2642 = vunpack.c.l.b16 %v2558
    %v2643 = vunpack.c.h.b16 %v2558
    %v2644 = vunpack.c.l.b16 %v2559
    %v2645 = vunpack.c.h.b16 %v2559
    %v2646 = vunpack.c.l.b16 %v2560
    %v2647 = vunpack.c.h.b16 %v2560
    %v2648 = vunpack.c.l.b16 %v2561
    %v2649 = vunpack.c.h.b16 %v2561
    %v2650 = vunpack.c.l.b16 %v2562
    %v2651 = vunpack.c.h.b16 %v2562
    %v2652 = vunpack.c.l.b16 %v2563
    %v2653 = vunpack.c.h.b16 %v2563
    %v2654 = vunpack.c.l.b16 %v2564
    %v2655 = vunpack.c.h.b16 %v2564
    %v2656 = vunpack.c.l.b16 %v2565
    %v2657 = vunpack.c.h.b16 %v2565
    %v2658 = vunpack.c.l.b16 %v2566
    %v2659 = vunpack.c.h.b16 %v2566
    %v2660 = vunpack.c.l.b16 %v2567
    %v2661 = vunpack.c.h.b16 %v2567
    %v2662 = vunpack.c.l.b16 %v2568
    %v2663 = vunpack.c.h.b16 %v2568
    %v2664 = vunpack.c.l.b16 %v2569
    %v2665 = vunpack.c.h.b16 %v2569
    %v2666 = vunpack.c.l.b16 %v2570
    %v2667 = vunpack.c.h.b16 %v2570
    %v2668 = vunpack.c.l.b16 %v2571
    %v2669 = vunpack.c.h.b16 %v2571
    %v2670 = vpack.c.b16 %v2610, %v2606
    %v2671 = vpack.c.b16 %v2611, %v2607
    %v2672 = vpack.c.b16 %v2612, %v2608
    %v2673 = vpack.c.b16 %v2613, %v2609
    %v2674 = vpack.c.b16 %v2618, %v2614
    %v2675 = vpack.c.b16 %v2619, %v2615
    %v2676 = vpack.c.b16 %v2620, %v2616
    %v2677 = vpack.c.b16 %v2621, %v2617
    %v2678 = vpack.c.b16 %v2626, %v2622
    %v2679 = vpack.c.b16 %v2627, %v2623
    %v2680 = vpack.c.b16 %v2628, %v2624
    %v2681 = vpack.c.b16 %v2629, %v2625
    %v2682 = vpack.c.b16 %v2634, %v2630
    %v2683 = vpack.c.b16 %v2635, %v2631
    %v2684 = vpack.c.b16 %v2636, %v2632
    %v2685 = vpack.c.b16 %v2637, %v2633
    %v2686 = vpack.c.b16 %v2642, %v2638
    %v2687 = vpack.c.b16 %v2643, %v2639
    %v2688 = vpack.c.b16 %v2644, %v2640
    %v2689 = vpack.c.b16 %v2645, %v2641
    %v2690 = vpack.c.b16 %v2650, %v2646
    %v2691 = vpack.c.b16 %v2651, %v2647
    %v2692 = vpack.c.b16 %v2652, %v2648
    %v2693 = vpack.c.b16 %v2653, %v2649
    %v2694 = vpack.c.b16 %v2658, %v2654
    %v2695 = vpack.c.b16 %v2659, %v2655
    %v2696 = vpack.c.b16 %v2660, %v2656
    %v2697 = vpack.c.b16 %v2661, %v2657
    %v2698 = vpack.c.b16 %v2666, %v2662
    %v2699 = vpack.c.b16 %v2667, %v2663
    %v2700 = vpack.c.b16 %v2668, %v2664
    %v2701 = vpack.c.b16 %v2669, %v2665
    %v2735 = vcombine.high %v2573, %v2573
    %v2737 = vunpack.c.l.s4 1983009808
    %v2738 = vunpack.c.0.s8 %v2737
    %v2739 = vlaneseq
    %v2740 = vshrl.u32 %v2739, 7
    %v2741 = vsub.s32 %v2738, %v2740
    %v2742 = vrot.slane %v2573, %v2741
    %v2744 = vunpack.c.l.s4 1983009808
    %v2745 = vunpack.c.0.s8 %v2744
    %v2746 = vlaneseq
    %v2747 = vshrl.u32 %v2746, 7
    %v2748 = vsub.s32 %v2745, %v2747
    %v2749 = vrot.slane %v2735, %v2748
    %v2750 = vcombine.high %v2742, %v2742
    %v2751 = vcombine.high %v2749, %v2749
    %2756 = vmatprep.subr.bf16.mxu0 %v2671
    %2757 = vmatpush1.bf16.msra.mxu0 %v2670
    %2758 = vmatprep.subr.bf16.mxu0 %v2675
    %2759 = vmatpush1.bf16.msra.mxu0 %v2674
    %2760 = vmatprep.subr.bf16.mxu0 %v2679
    %2761 = vmatpush1.bf16.msra.mxu0 %v2678
    %2762 = vmatprep.subr.bf16.mxu0 %v2683
    %2763 = vmatpush1.bf16.msra.mxu0 %v2682
    %2764 = vmatprep.subr.bf16.mxu0 %v2687
    %2765 = vmatpush1.bf16.msra.mxu0 %v2686
    %2766 = vmatprep.subr.bf16.mxu0 %v2691
    %2767 = vmatpush1.bf16.msra.mxu0 %v2690
    %2768 = vmatprep.subr.bf16.mxu0 %v2695
    %2769 = vmatpush1.bf16.msra.mxu0 %v2694
    %2770 = vmatprep.subr.bf16.mxu0 %v2699
    %2771 = vmatpush1.bf16.msra.mxu0 %v2698
    %2772 = vmatprep.subr.bf16.mxu0 0
    %2773 = vmatpush1.bf16.msra.mxu0 0
    %2774 = vmatprep.subr.bf16.mxu0 0
    %2775 = vmatpush1.bf16.msra.mxu0 0
    %2776 = vmatprep.subr.bf16.mxu0 0
    %2777 = vmatpush1.bf16.msra.mxu0 0
    %2778 = vmatprep.subr.bf16.mxu0 0
    %2779 = vmatpush1.bf16.msra.mxu0 0
    %2780 = vmatprep.subr.bf16.mxu0 0
    %2781 = vmatpush1.bf16.msra.mxu0 0
    %2782 = vmatprep.subr.bf16.mxu0 0
    %2783 = vmatpush1.bf16.msra.mxu0 0
    %2784 = vmatprep.subr.bf16.mxu0 0
    %2785 = vmatpush1.bf16.msra.mxu0 0
    %2786 = vmatprep.subr.bf16.mxu0 0
    %2787 = vmatpush1.bf16.msra.mxu0 0
    %2788 = vmatprep.mubr.bf16.mxu0 0
    %2789 = vmatmul.mubr.bf16.gmra.mrb[0].mxu0 %v1944
    %v2790 = vpop.f32.mrb[0].mxu0
    %v2791 = vadd.f32 %v2742, %v2790
    %v2792 = vpop.f32.mrb[0].mxu0
    %v2793 = vadd.f32 %v2750, %v2792
    %v2794 = vpop.f32.mrb[0].mxu0
    %v2795 = vpop.f32.mrb[0].mxu0
    %2796 = vdwg.mxu0
    %2797 = vmatprep.subr.bf16.mxu0 %v2673
    %2798 = vmatpush1.bf16.msra.mxu0 %v2672
    %2799 = vmatprep.subr.bf16.mxu0 %v2677
    %2800 = vmatpush1.bf16.msra.mxu0 %v2676
    %2801 = vmatprep.subr.bf16.mxu0 %v2681
    %2802 = vmatpush1.bf16.msra.mxu0 %v2680
    %2803 = vmatprep.subr.bf16.mxu0 %v2685
    %2804 = vmatpush1.bf16.msra.mxu0 %v2684
    %2805 = vmatprep.subr.bf16.mxu0 %v2689
    %2806 = vmatpush1.bf16.msra.mxu0 %v2688
    %2807 = vmatprep.subr.bf16.mxu0 %v2693
    %2808 = vmatpush1.bf16.msra.mxu0 %v2692
    %2809 = vmatprep.subr.bf16.mxu0 %v2697
    %2810 = vmatpush1.bf16.msra.mxu0 %v2696
    %2811 = vmatprep.subr.bf16.mxu0 %v2701
    %2812 = vmatpush1.bf16.msra.mxu0 %v2700
    %2813 = vmatprep.subr.bf16.mxu0 0
    %2814 = vmatpush1.bf16.msra.mxu0 0
    %2815 = vmatprep.subr.bf16.mxu0 0
    %2816 = vmatpush1.bf16.msra.mxu0 0
    %2817 = vmatprep.subr.bf16.mxu0 0
    %2818 = vmatpush1.bf16.msra.mxu0 0
    %2819 = vmatprep.subr.bf16.mxu0 0
    %2820 = vmatpush1.bf16.msra.mxu0 0
    %2821 = vmatprep.subr.bf16.mxu0 0
    %2822 = vmatpush1.bf16.msra.mxu0 0
    %2823 = vmatprep.subr.bf16.mxu0 0
    %2824 = vmatpush1.bf16.msra.mxu0 0
    %2825 = vmatprep.subr.bf16.mxu0 0
    %2826 = vmatpush1.bf16.msra.mxu0 0
    %2827 = vmatprep.subr.bf16.mxu0 0
    %2828 = vmatpush1.bf16.msra.mxu0 0
    %2829 = vmatprep.mubr.bf16.mxu0 0
    %2830 = vmatmul.mubr.bf16.gmra.mrb[0].mxu0 %v1944
    %v2831 = vpop.f32.mrb[0].mxu0
    %v2832 = vadd.f32 %v2749, %v2831
    %v2833 = vpop.f32.mrb[0].mxu0
    %v2834 = vadd.f32 %v2751, %v2833
    %v2835 = vpop.f32.mrb[0].mxu0
    %v2836 = vpop.f32.mrb[0].mxu0
    %2837 = vdwg.mxu0
    %v2838 = vmul.f32 %v2791, 0.5
    %v2839 = vtanh.pop %v2838
    %v2840 = vadd.f32 %v2839, 1.0
    %v2841 = vmul.f32 %v2840, 0.5
    %v2842 = vmul.f32 %v2793, 0.5
    %v2843 = vtanh.pop %v2842
    %v2844 = vadd.f32 %v2843, 1.0
    %v2845 = vmul.f32 %v2844, 0.5
    %v2846 = vtanh.pop %v2832
    %v2847 = vmul.f32 %v2834, 0.5
    %v2848 = vtanh.pop %v2847
    %v2849 = vadd.f32 %v2848, 1.0
    %v2850 = vmul.f32 %v2849, 0.5
    %v2851 = vmul.f32 %v2845, %v1941
    %v2852 = vmul.f32 %v2841, %v2846
    %v2853 = vadd.f32 %v2851, %v2852
    %v2854 = vtanh.pop %v2853
    %v2855 = vmul.f32 %v2850, %v2854
    %v2856 = vpack.c.bf16 %v2855, %v2855
    %v2857 = vld [vmem:[#allocation8] sm:$0xff]
    %v2858 = vld [vmem:[#allocation8 + $0x8] sm:$0xff]
    %v2859 = vld [vmem:[#allocation8 + $0x10] sm:$0xff]
    %v2860 = vld [vmem:[#allocation8 + $0x18] sm:$0xff]
    %v2861 = vld [vmem:[#allocation8 + $0x20] sm:$0xff]
    %v2862 = vld [vmem:[#allocation8 + $0x28] sm:$0xff]
    %v2863 = vld [vmem:[#allocation8 + $0x30] sm:$0xff]
    %v2864 = vld [vmem:[#allocation8 + $0x38] sm:$0xff]
    %v2865 = vld [vmem:[#allocation8 + $0x40] sm:$0xff]
    %v2866 = vld [vmem:[#allocation8 + $0x48] sm:$0xff]
    %v2867 = vld [vmem:[#allocation8 + $0x50] sm:$0xff]
    %v2868 = vld [vmem:[#allocation8 + $0x58] sm:$0xff]
    %v2869 = vld [vmem:[#allocation8 + $0x60] sm:$0xff]
    %v2870 = vld [vmem:[#allocation8 + $0x68] sm:$0xff]
    %v2871 = vld [vmem:[#allocation8 + $0x70] sm:$0xff]
    %v2872 = vld [vmem:[#allocation8 + $0x78] sm:$0xff]
    %v2873 = vld [vmem:[#allocation8 + $0x80] sm:$0xff]
    %v2874 = vld [vmem:[#allocation8 + $0x88] sm:$0xff]
    %v2875 = vld [vmem:[#allocation8 + $0x90] sm:$0xff]
    %v2876 = vld [vmem:[#allocation8 + $0x98] sm:$0xff]
    %v2877 = vld [vmem:[#allocation8 + $0xa0] sm:$0xff]
    %v2878 = vld [vmem:[#allocation8 + $0xa8] sm:$0xff]
    %v2879 = vld [vmem:[#allocation8 + $0xb0] sm:$0xff]
    %v2880 = vld [vmem:[#allocation8 + $0xb8] sm:$0xff]
    %v2881 = vld [vmem:[#allocation8 + $0xc0] sm:$0xff]
    %v2882 = vld [vmem:[#allocation8 + $0xc8] sm:$0xff]
    %v2883 = vld [vmem:[#allocation8 + $0xd0] sm:$0xff]
    %v2884 = vld [vmem:[#allocation8 + $0xd8] sm:$0xff]
    %v2885 = vld [vmem:[#allocation8 + $0xe0] sm:$0xff]
    %v2886 = vld [vmem:[#allocation8 + $0xe8] sm:$0xff]
    %v2887 = vld [vmem:[#allocation8 + $0xf0] sm:$0xff]
    %v2888 = vld [vmem:[#allocation8 + $0xf8] sm:$0xff]
    %v2921 = vunpack.c.l.b16 %v2857
    %v2922 = vunpack.c.h.b16 %v2857
    %v2923 = vunpack.c.l.b16 %v2858
    %v2924 = vunpack.c.h.b16 %v2858
    %v2925 = vunpack.c.l.b16 %v2859
    %v2926 = vunpack.c.h.b16 %v2859
    %v2927 = vunpack.c.l.b16 %v2860
    %v2928 = vunpack.c.h.b16 %v2860
    %v2929 = vunpack.c.l.b16 %v2861
    %v2930 = vunpack.c.h.b16 %v2861
    %v2931 = vunpack.c.l.b16 %v2862
    %v2932 = vunpack.c.h.b16 %v2862
    %v2933 = vunpack.c.l.b16 %v2863
    %v2934 = vunpack.c.h.b16 %v2863
    %v2935 = vunpack.c.l.b16 %v2864
    %v2936 = vunpack.c.h.b16 %v2864
    %v2937 = vunpack.c.l.b16 %v2865
    %v2938 = vunpack.c.h.b16 %v2865
    %v2939 = vunpack.c.l.b16 %v2866
    %v2940 = vunpack.c.h.b16 %v2866
    %v2941 = vunpack.c.l.b16 %v2867
    %v2942 = vunpack.c.h.b16 %v2867
    %v2943 = vunpack.c.l.b16 %v2868
    %v2944 = vunpack.c.h.b16 %v2868
    %v2945 = vunpack.c.l.b16 %v2869
    %v2946 = vunpack.c.h.b16 %v2869
    %v2947 = vunpack.c.l.b16 %v2870
    %v2948 = vunpack.c.h.b16 %v2870
    %v2949 = vunpack.c.l.b16 %v2871
    %v2950 = vunpack.c.h.b16 %v2871
    %v2951 = vunpack.c.l.b16 %v2872
    %v2952 = vunpack.c.h.b16 %v2872
    %v2953 = vunpack.c.l.b16 %v2873
    %v2954 = vunpack.c.h.b16 %v2873
    %v2955 = vunpack.c.l.b16 %v2874
    %v2956 = vunpack.c.h.b16 %v2874
    %v2957 = vunpack.c.l.b16 %v2875
    %v2958 = vunpack.c.h.b16 %v2875
    %v2959 = vunpack.c.l.b16 %v2876
    %v2960 = vunpack.c.h.b16 %v2876
    %v2961 = vunpack.c.l.b16 %v2877
    %v2962 = vunpack.c.h.b16 %v2877
    %v2963 = vunpack.c.l.b16 %v2878
    %v2964 = vunpack.c.h.b16 %v2878
    %v2965 = vunpack.c.l.b16 %v2879
    %v2966 = vunpack.c.h.b16 %v2879
    %v2967 = vunpack.c.l.b16 %v2880
    %v2968 = vunpack.c.h.b16 %v2880
    %v2969 = vunpack.c.l.b16 %v2881
    %v2970 = vunpack.c.h.b16 %v2881
    %v2971 = vunpack.c.l.b16 %v2882
    %v2972 = vunpack.c.h.b16 %v2882
    %v2973 = vunpack.c.l.b16 %v2883
    %v2974 = vunpack.c.h.b16 %v2883
    %v2975 = vunpack.c.l.b16 %v2884
    %v2976 = vunpack.c.h.b16 %v2884
    %v2977 = vunpack.c.l.b16 %v2885
    %v2978 = vunpack.c.h.b16 %v2885
    %v2979 = vunpack.c.l.b16 %v2886
    %v2980 = vunpack.c.h.b16 %v2886
    %v2981 = vunpack.c.l.b16 %v2887
    %v2982 = vunpack.c.h.b16 %v2887
    %v2983 = vunpack.c.l.b16 %v2888
    %v2984 = vunpack.c.h.b16 %v2888
    %v2985 = vpack.c.b16 %v2925, %v2921
    %v2986 = vpack.c.b16 %v2926, %v2922
    %v2987 = vpack.c.b16 %v2927, %v2923
    %v2988 = vpack.c.b16 %v2928, %v2924
    %v2989 = vpack.c.b16 %v2933, %v2929
    %v2990 = vpack.c.b16 %v2934, %v2930
    %v2991 = vpack.c.b16 %v2935, %v2931
    %v2992 = vpack.c.b16 %v2936, %v2932
    %v2993 = vpack.c.b16 %v2941, %v2937
    %v2994 = vpack.c.b16 %v2942, %v2938
    %v2995 = vpack.c.b16 %v2943, %v2939
    %v2996 = vpack.c.b16 %v2944, %v2940
    %v2997 = vpack.c.b16 %v2949, %v2945
    %v2998 = vpack.c.b16 %v2950, %v2946
    %v2999 = vpack.c.b16 %v2951, %v2947
    %v3000 = vpack.c.b16 %v2952, %v2948
    %v3001 = vpack.c.b16 %v2957, %v2953
    %v3002 = vpack.c.b16 %v2958, %v2954
    %v3003 = vpack.c.b16 %v2959, %v2955
    %v3004 = vpack.c.b16 %v2960, %v2956
    %v3005 = vpack.c.b16 %v2965, %v2961
    %v3006 = vpack.c.b16 %v2966, %v2962
    %v3007 = vpack.c.b16 %v2967, %v2963
    %v3008 = vpack.c.b16 %v2968, %v2964
    %v3009 = vpack.c.b16 %v2973, %v2969
    %v3010 = vpack.c.b16 %v2974, %v2970
    %v3011 = vpack.c.b16 %v2975, %v2971
    %v3012 = vpack.c.b16 %v2976, %v2972
    %v3013 = vpack.c.b16 %v2981, %v2977
    %v3014 = vpack.c.b16 %v2982, %v2978
    %v3015 = vpack.c.b16 %v2983, %v2979
    %v3016 = vpack.c.b16 %v2984, %v2980
    %3049 = vmatprep.subr.bf16.mxu0 %v2986
    %3050 = vmatpush1.bf16.msra.mxu0 %v2985
    %3051 = vmatprep.subr.bf16.mxu0 %v2990
    %3052 = vmatpush1.bf16.msra.mxu0 %v2989
    %3053 = vmatprep.subr.bf16.mxu0 %v2994
    %3054 = vmatpush1.bf16.msra.mxu0 %v2993
    %3055 = vmatprep.subr.bf16.mxu0 %v2998
    %3056 = vmatpush1.bf16.msra.mxu0 %v2997
    %3057 = vmatprep.subr.bf16.mxu0 %v3002
    %3058 = vmatpush1.bf16.msra.mxu0 %v3001
    %3059 = vmatprep.subr.bf16.mxu0 %v3006
    %3060 = vmatpush1.bf16.msra.mxu0 %v3005
    %3061 = vmatprep.subr.bf16.mxu0 %v3010
    %3062 = vmatpush1.bf16.msra.mxu0 %v3009
    %3063 = vmatprep.subr.bf16.mxu0 %v3014
    %3064 = vmatpush1.bf16.msra.mxu0 %v3013
    %3065 = vmatprep.subr.bf16.mxu0 0
    %3066 = vmatpush1.bf16.msra.mxu0 0
    %3067 = vmatprep.subr.bf16.mxu0 0
    %3068 = vmatpush1.bf16.msra.mxu0 0
    %3069 = vmatprep.subr.bf16.mxu0 0
    %3070 = vmatpush1.bf16.msra.mxu0 0
    %3071 = vmatprep.subr.bf16.mxu0 0
    %3072 = vmatpush1.bf16.msra.mxu0 0
    %3073 = vmatprep.subr.bf16.mxu0 0
    %3074 = vmatpush1.bf16.msra.mxu0 0
    %3075 = vmatprep.subr.bf16.mxu0 0
    %3076 = vmatpush1.bf16.msra.mxu0 0
    %3077 = vmatprep.subr.bf16.mxu0 0
    %3078 = vmatpush1.bf16.msra.mxu0 0
    %3079 = vmatprep.subr.bf16.mxu0 0
    %3080 = vmatpush1.bf16.msra.mxu0 0
    %3081 = vmatprep.mubr.bf16.mxu0 0
    %3082 = vmatmul.mubr.bf16.gmra.mrb[0].mxu0 %v2856
    %v3083 = vpop.f32.mrb[0].mxu0
    %v3084 = vadd.f32 0.0, %v3083
    %v3085 = vpop.f32.mrb[0].mxu0
    %v3086 = vadd.f32 0.0, %v3085
    %v3087 = vpop.f32.mrb[0].mxu0
    %v3088 = vpop.f32.mrb[0].mxu0
    %3089 = vdwg.mxu0
    %3090 = vmatprep.subr.bf16.mxu0 %v2988
    %3091 = vmatpush1.bf16.msra.mxu0 %v2987
    %3092 = vmatprep.subr.bf16.mxu0 %v2992
    %3093 = vmatpush1.bf16.msra.mxu0 %v2991
    %3094 = vmatprep.subr.bf16.mxu0 %v2996
    %3095 = vmatpush1.bf16.msra.mxu0 %v2995
    %3096 = vmatprep.subr.bf16.mxu0 %v3000
    %3097 = vmatpush1.bf16.msra.mxu0 %v2999
    %3098 = vmatprep.subr.bf16.mxu0 %v3004
    %3099 = vmatpush1.bf16.msra.mxu0 %v3003
    %3100 = vmatprep.subr.bf16.mxu0 %v3008
    %3101 = vmatpush1.bf16.msra.mxu0 %v3007
    %3102 = vmatprep.subr.bf16.mxu0 %v3012
    %3103 = vmatpush1.bf16.msra.mxu0 %v3011
    %3104 = vmatprep.subr.bf16.mxu0 %v3016
    %3105 = vmatpush1.bf16.msra.mxu0 %v3015
    %3106 = vmatprep.subr.bf16.mxu0 0
    %3107 = vmatpush1.bf16.msra.mxu0 0
    %3108 = vmatprep.subr.bf16.mxu0 0
    %3109 = vmatpush1.bf16.msra.mxu0 0
    %3110 = vmatprep.subr.bf16.mxu0 0
    %3111 = vmatpush1.bf16.msra.mxu0 0
    %3112 = vmatprep.subr.bf16.mxu0 0
    %3113 = vmatpush1.bf16.msra.mxu0 0
    %3114 = vmatprep.subr.bf16.mxu0 0
    %3115 = vmatpush1.bf16.msra.mxu0 0
    %3116 = vmatprep.subr.bf16.mxu0 0
    %3117 = vmatpush1.bf16.msra.mxu0 0
    %3118 = vmatprep.subr.bf16.mxu0 0
    %3119 = vmatpush1.bf16.msra.mxu0 0
    %3120 = vmatprep.subr.bf16.mxu0 0
    %3121 = vmatpush1.bf16.msra.mxu0 0
    %3122 = vmatprep.mubr.bf16.mxu0 0
    %3123 = vmatmul.mubr.bf16.gmra.mrb[0].mxu0 %v2856
    %v3124 = vpop.f32.mrb[0].mxu0
    %v3125 = vadd.f32 0.0, %v3124
    %v3126 = vpop.f32.mrb[0].mxu0
    %v3127 = vadd.f32 0.0, %v3126
    %v3128 = vpop.f32.mrb[0].mxu0
    %v3129 = vpop.f32.mrb[0].mxu0
    %3130 = vdwg.mxu0
    %v3131 = vadd.f32 %v2493, %v3084
    %v3132 = vadd.f32 %v2495, %v3086
    %v3133 = vadd.f32 %v2534, %v3125
    %v3134 = vadd.f32 %v2536, %v3127
    %v3135 = vmul.f32 %v3131, 0.5
    %v3136 = vtanh.pop %v3135
    %v3137 = vadd.f32 %v3136, 1.0
    %v3138 = vmul.f32 %v3137, 0.5
    %v3139 = vmul.f32 %v3132, 0.5
    %v3140 = vtanh.pop %v3139
    %v3141 = vadd.f32 %v3140, 1.0
    %v3142 = vmul.f32 %v3141, 0.5
    %v3143 = vtanh.pop %v3133
    %v3144 = vmul.f32 %v3134, 0.5
    %v3145 = vtanh.pop %v3144
    %v3146 = vadd.f32 %v3145, 1.0
    %v3147 = vmul.f32 %v3146, 0.5
    %v3148 = vmul.f32 %v3142, %v2238
    %v3149 = vmul.f32 %v3138, %v3143
    %v3150 = vadd.f32 %v3148, %v3149
    %v3151 = vtanh.pop %v3150
    %v3152 = vmul.f32 %v3147, %v3151
    %s3153 = scalar_lea.vmem [#allocation3], 4
    %3154 = vst [vmem:[%s3153] sm:$0x3] %v3152
    %v3155 = vpack.c.bf16 %v3152, %v3152
    %v3156 = vld [vmem:[#allocation10] sm:$0xff]
    %v3157 = vld [vmem:[#allocation10 + $0x8] sm:$0xff]
    %v3158 = vld [vmem:[#allocation10 + $0x10] sm:$0xff]
    %v3159 = vld [vmem:[#allocation10 + $0x18] sm:$0xff]
    %v3160 = vld [vmem:[#allocation10 + $0x20] sm:$0xff]
    %v3161 = vld [vmem:[#allocation10 + $0x28] sm:$0xff]
    %v3162 = vld [vmem:[#allocation10 + $0x30] sm:$0xff]
    %v3163 = vld [vmem:[#allocation10 + $0x38] sm:$0xff]
    %v3164 = vld [vmem:[#allocation10 + $0x40] sm:$0xff]
    %v3165 = vld [vmem:[#allocation10 + $0x48] sm:$0xff]
    %v3166 = vld [vmem:[#allocation10 + $0x50] sm:$0xff]
    %v3167 = vld [vmem:[#allocation10 + $0x58] sm:$0xff]
    %v3168 = vld [vmem:[#allocation10 + $0x60] sm:$0xff]
    %v3169 = vld [vmem:[#allocation10 + $0x68] sm:$0xff]
    %v3170 = vld [vmem:[#allocation10 + $0x70] sm:$0xff]
    %v3171 = vld [vmem:[#allocation10 + $0x78] sm:$0xff]
    %v3172 = vld [vmem:[#allocation10 + $0x80] sm:$0xff]
    %v3173 = vld [vmem:[#allocation10 + $0x88] sm:$0xff]
    %v3174 = vld [vmem:[#allocation10 + $0x90] sm:$0xff]
    %v3175 = vld [vmem:[#allocation10 + $0x98] sm:$0xff]
    %v3176 = vld [vmem:[#allocation10 + $0xa0] sm:$0xff]
    %v3177 = vld [vmem:[#allocation10 + $0xa8] sm:$0xff]
    %v3178 = vld [vmem:[#allocation10 + $0xb0] sm:$0xff]
    %v3179 = vld [vmem:[#allocation10 + $0xb8] sm:$0xff]
    %v3180 = vld [vmem:[#allocation10 + $0xc0] sm:$0xff]
    %v3181 = vld [vmem:[#allocation10 + $0xc8] sm:$0xff]
    %v3182 = vld [vmem:[#allocation10 + $0xd0] sm:$0xff]
    %v3183 = vld [vmem:[#allocation10 + $0xd8] sm:$0xff]
    %v3184 = vld [vmem:[#allocation10 + $0xe0] sm:$0xff]
    %v3185 = vld [vmem:[#allocation10 + $0xe8] sm:$0xff]
    %v3186 = vld [vmem:[#allocation10 + $0xf0] sm:$0xff]
    %v3187 = vld [vmem:[#allocation10 + $0xf8] sm:$0xff]
    %v3188 = vld [vmem:[%s7] sm:$0xf]
    %v3190 = vlaneseq
    %v3191 = vshrl.u32 %v3190, 7
    %v3192 = vsub.s32 0, %v3191
    %v3193 = vrot.slane %v3188, %v3192
    %v3194 = vlaneseq
    %v3195 = vshrl.u32 %v3194, 7
    %v3196 = vsub.s32 1, %v3195
    %v3197 = vrot.slane %v3188, %v3196
    %v3198 = vlaneseq
    %v3199 = vshrl.u32 %v3198, 7
    %v3200 = vsub.s32 2, %v3199
    %v3201 = vrot.slane %v3188, %v3200
    %v3202 = vlaneseq
    %v3203 = vshrl.u32 %v3202, 7
    %v3204 = vsub.s32 3, %v3203
    %v3205 = vrot.slane %v3188, %v3204
    %v3242 = vunpack.c.l.b16 %v3156
    %v3243 = vunpack.c.h.b16 %v3156
    %v3244 = vunpack.c.l.b16 %v3157
    %v3245 = vunpack.c.h.b16 %v3157
    %v3246 = vunpack.c.l.b16 %v3158
    %v3247 = vunpack.c.h.b16 %v3158
    %v3248 = vunpack.c.l.b16 %v3159
    %v3249 = vunpack.c.h.b16 %v3159
    %v3250 = vunpack.c.l.b16 %v3160
    %v3251 = vunpack.c.h.b16 %v3160
    %v3252 = vunpack.c.l.b16 %v3161
    %v3253 = vunpack.c.h.b16 %v3161
    %v3254 = vunpack.c.l.b16 %v3162
    %v3255 = vunpack.c.h.b16 %v3162
    %v3256 = vunpack.c.l.b16 %v3163
    %v3257 = vunpack.c.h.b16 %v3163
    %v3258 = vunpack.c.l.b16 %v3164
    %v3259 = vunpack.c.h.b16 %v3164
    %v3260 = vunpack.c.l.b16 %v3165
    %v3261 = vunpack.c.h.b16 %v3165
    %v3262 = vunpack.c.l.b16 %v3166
    %v3263 = vunpack.c.h.b16 %v3166
    %v3264 = vunpack.c.l.b16 %v3167
    %v3265 = vunpack.c.h.b16 %v3167
    %v3266 = vunpack.c.l.b16 %v3168
    %v3267 = vunpack.c.h.b16 %v3168
    %v3268 = vunpack.c.l.b16 %v3169
    %v3269 = vunpack.c.h.b16 %v3169
    %v3270 = vunpack.c.l.b16 %v3170
    %v3271 = vunpack.c.h.b16 %v3170
    %v3272 = vunpack.c.l.b16 %v3171
    %v3273 = vunpack.c.h.b16 %v3171
    %v3274 = vunpack.c.l.b16 %v3172
    %v3275 = vunpack.c.h.b16 %v3172
    %v3276 = vunpack.c.l.b16 %v3173
    %v3277 = vunpack.c.h.b16 %v3173
    %v3278 = vunpack.c.l.b16 %v3174
    %v3279 = vunpack.c.h.b16 %v3174
    %v3280 = vunpack.c.l.b16 %v3175
    %v3281 = vunpack.c.h.b16 %v3175
    %v3282 = vunpack.c.l.b16 %v3176
    %v3283 = vunpack.c.h.b16 %v3176
    %v3284 = vunpack.c.l.b16 %v3177
    %v3285 = vunpack.c.h.b16 %v3177
    %v3286 = vunpack.c.l.b16 %v3178
    %v3287 = vunpack.c.h.b16 %v3178
    %v3288 = vunpack.c.l.b16 %v3179
    %v3289 = vunpack.c.h.b16 %v3179
    %v3290 = vunpack.c.l.b16 %v3180
    %v3291 = vunpack.c.h.b16 %v3180
    %v3292 = vunpack.c.l.b16 %v3181
    %v3293 = vunpack.c.h.b16 %v3181
    %v3294 = vunpack.c.l.b16 %v3182
    %v3295 = vunpack.c.h.b16 %v3182
    %v3296 = vunpack.c.l.b16 %v3183
    %v3297 = vunpack.c.h.b16 %v3183
    %v3298 = vunpack.c.l.b16 %v3184
    %v3299 = vunpack.c.h.b16 %v3184
    %v3300 = vunpack.c.l.b16 %v3185
    %v3301 = vunpack.c.h.b16 %v3185
    %v3302 = vunpack.c.l.b16 %v3186
    %v3303 = vunpack.c.h.b16 %v3186
    %v3304 = vunpack.c.l.b16 %v3187
    %v3305 = vunpack.c.h.b16 %v3187
    %v3306 = vpack.c.b16 %v3246, %v3242
    %v3307 = vpack.c.b16 %v3247, %v3243
    %v3308 = vpack.c.b16 %v3248, %v3244
    %v3309 = vpack.c.b16 %v3249, %v3245
    %v3310 = vpack.c.b16 %v3254, %v3250
    %v3311 = vpack.c.b16 %v3255, %v3251
    %v3312 = vpack.c.b16 %v3256, %v3252
    %v3313 = vpack.c.b16 %v3257, %v3253
    %v3314 = vpack.c.b16 %v3262, %v3258
    %v3315 = vpack.c.b16 %v3263, %v3259
    %v3316 = vpack.c.b16 %v3264, %v3260
    %v3317 = vpack.c.b16 %v3265, %v3261
    %v3318 = vpack.c.b16 %v3270, %v3266
    %v3319 = vpack.c.b16 %v3271, %v3267
    %v3320 = vpack.c.b16 %v3272, %v3268
    %v3321 = vpack.c.b16 %v3273, %v3269
    %v3322 = vpack.c.b16 %v3278, %v3274
    %v3323 = vpack.c.b16 %v3279, %v3275
    %v3324 = vpack.c.b16 %v3280, %v3276
    %v3325 = vpack.c.b16 %v3281, %v3277
    %v3326 = vpack.c.b16 %v3286, %v3282
    %v3327 = vpack.c.b16 %v3287, %v3283
    %v3328 = vpack.c.b16 %v3288, %v3284
    %v3329 = vpack.c.b16 %v3289, %v3285
    %v3330 = vpack.c.b16 %v3294, %v3290
    %v3331 = vpack.c.b16 %v3295, %v3291
    %v3332 = vpack.c.b16 %v3296, %v3292
    %v3333 = vpack.c.b16 %v3297, %v3293
    %v3334 = vpack.c.b16 %v3302, %v3298
    %v3335 = vpack.c.b16 %v3303, %v3299
    %v3336 = vpack.c.b16 %v3304, %v3300
    %v3337 = vpack.c.b16 %v3305, %v3301
    %3370 = vmatprep.subr.bf16.mxu0 %v3307
    %3371 = vmatpush1.bf16.msra.mxu0 %v3306
    %3372 = vmatprep.subr.bf16.mxu0 %v3311
    %3373 = vmatpush1.bf16.msra.mxu0 %v3310
    %3374 = vmatprep.subr.bf16.mxu0 %v3315
    %3375 = vmatpush1.bf16.msra.mxu0 %v3314
    %3376 = vmatprep.subr.bf16.mxu0 %v3319
    %3377 = vmatpush1.bf16.msra.mxu0 %v3318
    %3378 = vmatprep.subr.bf16.mxu0 %v3323
    %3379 = vmatpush1.bf16.msra.mxu0 %v3322
    %3380 = vmatprep.subr.bf16.mxu0 %v3327
    %3381 = vmatpush1.bf16.msra.mxu0 %v3326
    %3382 = vmatprep.subr.bf16.mxu0 %v3331
    %3383 = vmatpush1.bf16.msra.mxu0 %v3330
    %3384 = vmatprep.subr.bf16.mxu0 %v3335
    %3385 = vmatpush1.bf16.msra.mxu0 %v3334
    %3386 = vmatprep.subr.bf16.mxu0 0
    %3387 = vmatpush1.bf16.msra.mxu0 0
    %3388 = vmatprep.subr.bf16.mxu0 0
    %3389 = vmatpush1.bf16.msra.mxu0 0
    %3390 = vmatprep.subr.bf16.mxu0 0
    %3391 = vmatpush1.bf16.msra.mxu0 0
    %3392 = vmatprep.subr.bf16.mxu0 0
    %3393 = vmatpush1.bf16.msra.mxu0 0
    %3394 = vmatprep.subr.bf16.mxu0 0
    %3395 = vmatpush1.bf16.msra.mxu0 0
    %3396 = vmatprep.subr.bf16.mxu0 0
    %3397 = vmatpush1.bf16.msra.mxu0 0
    %3398 = vmatprep.subr.bf16.mxu0 0
    %3399 = vmatpush1.bf16.msra.mxu0 0
    %3400 = vmatprep.subr.bf16.mxu0 0
    %3401 = vmatpush1.bf16.msra.mxu0 0
    %3402 = vmatprep.mubr.bf16.mxu0 0
    %3403 = vmatmul.mubr.bf16.gmra.mrb[0].mxu0 %v3155
    %v3404 = vpop.f32.mrb[0].mxu0
    %v3405 = vadd.f32 %v3193, %v3404
    %v3406 = vpop.f32.mrb[0].mxu0
    %v3407 = vadd.f32 %v3197, %v3406
    %v3408 = vpop.f32.mrb[0].mxu0
    %v3409 = vpop.f32.mrb[0].mxu0
    %3410 = vdwg.mxu0
    %3411 = vmatprep.subr.bf16.mxu0 %v3309
    %3412 = vmatpush1.bf16.msra.mxu0 %v3308
    %3413 = vmatprep.subr.bf16.mxu0 %v3313
    %3414 = vmatpush1.bf16.msra.mxu0 %v3312
    %3415 = vmatprep.subr.bf16.mxu0 %v3317
    %3416 = vmatpush1.bf16.msra.mxu0 %v3316
    %3417 = vmatprep.subr.bf16.mxu0 %v3321
    %3418 = vmatpush1.bf16.msra.mxu0 %v3320
    %3419 = vmatprep.subr.bf16.mxu0 %v3325
    %3420 = vmatpush1.bf16.msra.mxu0 %v3324
    %3421 = vmatprep.subr.bf16.mxu0 %v3329
    %3422 = vmatpush1.bf16.msra.mxu0 %v3328
    %3423 = vmatprep.subr.bf16.mxu0 %v3333
    %3424 = vmatpush1.bf16.msra.mxu0 %v3332
    %3425 = vmatprep.subr.bf16.mxu0 %v3337
    %3426 = vmatpush1.bf16.msra.mxu0 %v3336
    %3427 = vmatprep.subr.bf16.mxu0 0
    %3428 = vmatpush1.bf16.msra.mxu0 0
    %3429 = vmatprep.subr.bf16.mxu0 0
    %3430 = vmatpush1.bf16.msra.mxu0 0
    %3431 = vmatprep.subr.bf16.mxu0 0
    %3432 = vmatpush1.bf16.msra.mxu0 0
    %3433 = vmatprep.subr.bf16.mxu0 0
    %3434 = vmatpush1.bf16.msra.mxu0 0
    %3435 = vmatprep.subr.bf16.mxu0 0
    %3436 = vmatpush1.bf16.msra.mxu0 0
    %3437 = vmatprep.subr.bf16.mxu0 0
    %3438 = vmatpush1.bf16.msra.mxu0 0
    %3439 = vmatprep.subr.bf16.mxu0 0
    %3440 = vmatpush1.bf16.msra.mxu0 0
    %3441 = vmatprep.subr.bf16.mxu0 0
    %3442 = vmatpush1.bf16.msra.mxu0 0
    %3443 = vmatprep.mubr.bf16.mxu0 0
    %3444 = vmatmul.mubr.bf16.gmra.mrb[0].mxu0 %v3155
    %v3445 = vpop.f32.mrb[0].mxu0
    %v3446 = vadd.f32 %v3201, %v3445
    %v3447 = vpop.f32.mrb[0].mxu0
    %v3448 = vadd.f32 %v3205, %v3447
    %v3449 = vpop.f32.mrb[0].mxu0
    %v3450 = vpop.f32.mrb[0].mxu0
    %3451 = vdwg.mxu0
    %v3452 = vld [vmem:[#allocation5] sm:$0xff]
    %v3453 = vld [vmem:[#allocation5 + $0x8] sm:$0xff]
    %v3454 = vld [vmem:[#allocation5 + $0x10] sm:$0xff]
    %v3455 = vld [vmem:[#allocation5 + $0x18] sm:$0xff]
    %v3456 = vld [vmem:[#allocation5 + $0x20] sm:$0xff]
    %v3457 = vld [vmem:[#allocation5 + $0x28] sm:$0xff]
    %v3458 = vld [vmem:[#allocation5 + $0x30] sm:$0xff]
    %v3459 = vld [vmem:[#allocation5 + $0x38] sm:$0xff]
    %v3460 = vld [vmem:[#allocation5 + $0x40] sm:$0xff]
    %v3461 = vld [vmem:[#allocation5 + $0x48] sm:$0xff]
    %v3462 = vld [vmem:[#allocation5 + $0x50] sm:$0xff]
    %v3463 = vld [vmem:[#allocation5 + $0x58] sm:$0xff]
    %v3464 = vld [vmem:[#allocation5 + $0x60] sm:$0xff]
    %v3465 = vld [vmem:[#allocation5 + $0x68] sm:$0xff]
    %v3466 = vld [vmem:[#allocation5 + $0x70] sm:$0xff]
    %v3467 = vld [vmem:[#allocation5 + $0x78] sm:$0xff]
    %v3468 = vld [vmem:[#allocation5 + $0x80] sm:$0xff]
    %v3469 = vld [vmem:[#allocation5 + $0x88] sm:$0xff]
    %v3470 = vld [vmem:[#allocation5 + $0x90] sm:$0xff]
    %v3471 = vld [vmem:[#allocation5 + $0x98] sm:$0xff]
    %v3472 = vld [vmem:[#allocation5 + $0xa0] sm:$0xff]
    %v3473 = vld [vmem:[#allocation5 + $0xa8] sm:$0xff]
    %v3474 = vld [vmem:[#allocation5 + $0xb0] sm:$0xff]
    %v3475 = vld [vmem:[#allocation5 + $0xb8] sm:$0xff]
    %v3476 = vld [vmem:[#allocation5 + $0xc0] sm:$0xff]
    %v3477 = vld [vmem:[#allocation5 + $0xc8] sm:$0xff]
    %v3478 = vld [vmem:[#allocation5 + $0xd0] sm:$0xff]
    %v3479 = vld [vmem:[#allocation5 + $0xd8] sm:$0xff]
    %v3480 = vld [vmem:[#allocation5 + $0xe0] sm:$0xff]
    %v3481 = vld [vmem:[#allocation5 + $0xe8] sm:$0xff]
    %v3482 = vld [vmem:[#allocation5 + $0xf0] sm:$0xff]
    %v3483 = vld [vmem:[#allocation5 + $0xf8] sm:$0xff]
    %s3484 = scalar_lea.vmem [#allocation2], 24
    %v3485 = vld [vmem:[%s3484] sm:$0xff]
    %v3518 = vunpack.c.l.b16 %v3452
    %v3519 = vunpack.c.h.b16 %v3452
    %v3520 = vunpack.c.l.b16 %v3453
    %v3521 = vunpack.c.h.b16 %v3453
    %v3522 = vunpack.c.l.b16 %v3454
    %v3523 = vunpack.c.h.b16 %v3454
    %v3524 = vunpack.c.l.b16 %v3455
    %v3525 = vunpack.c.h.b16 %v3455
    %v3526 = vunpack.c.l.b16 %v3456
    %v3527 = vunpack.c.h.b16 %v3456
    %v3528 = vunpack.c.l.b16 %v3457
    %v3529 = vunpack.c.h.b16 %v3457
    %v3530 = vunpack.c.l.b16 %v3458
    %v3531 = vunpack.c.h.b16 %v3458
    %v3532 = vunpack.c.l.b16 %v3459
    %v3533 = vunpack.c.h.b16 %v3459
    %v3534 = vunpack.c.l.b16 %v3460
    %v3535 = vunpack.c.h.b16 %v3460
    %v3536 = vunpack.c.l.b16 %v3461
    %v3537 = vunpack.c.h.b16 %v3461
    %v3538 = vunpack.c.l.b16 %v3462
    %v3539 = vunpack.c.h.b16 %v3462
    %v3540 = vunpack.c.l.b16 %v3463
    %v3541 = vunpack.c.h.b16 %v3463
    %v3542 = vunpack.c.l.b16 %v3464
    %v3543 = vunpack.c.h.b16 %v3464
    %v3544 = vunpack.c.l.b16 %v3465
    %v3545 = vunpack.c.h.b16 %v3465
    %v3546 = vunpack.c.l.b16 %v3466
    %v3547 = vunpack.c.h.b16 %v3466
    %v3548 = vunpack.c.l.b16 %v3467
    %v3549 = vunpack.c.h.b16 %v3467
    %v3550 = vunpack.c.l.b16 %v3468
    %v3551 = vunpack.c.h.b16 %v3468
    %v3552 = vunpack.c.l.b16 %v3469
    %v3553 = vunpack.c.h.b16 %v3469
    %v3554 = vunpack.c.l.b16 %v3470
    %v3555 = vunpack.c.h.b16 %v3470
    %v3556 = vunpack.c.l.b16 %v3471
    %v3557 = vunpack.c.h.b16 %v3471
    %v3558 = vunpack.c.l.b16 %v3472
    %v3559 = vunpack.c.h.b16 %v3472
    %v3560 = vunpack.c.l.b16 %v3473
    %v3561 = vunpack.c.h.b16 %v3473
    %v3562 = vunpack.c.l.b16 %v3474
    %v3563 = vunpack.c.h.b16 %v3474
    %v3564 = vunpack.c.l.b16 %v3475
    %v3565 = vunpack.c.h.b16 %v3475
    %v3566 = vunpack.c.l.b16 %v3476
    %v3567 = vunpack.c.h.b16 %v3476
    %v3568 = vunpack.c.l.b16 %v3477
    %v3569 = vunpack.c.h.b16 %v3477
    %v3570 = vunpack.c.l.b16 %v3478
    %v3571 = vunpack.c.h.b16 %v3478
    %v3572 = vunpack.c.l.b16 %v3479
    %v3573 = vunpack.c.h.b16 %v3479
    %v3574 = vunpack.c.l.b16 %v3480
    %v3575 = vunpack.c.h.b16 %v3480
    %v3576 = vunpack.c.l.b16 %v3481
    %v3577 = vunpack.c.h.b16 %v3481
    %v3578 = vunpack.c.l.b16 %v3482
    %v3579 = vunpack.c.h.b16 %v3482
    %v3580 = vunpack.c.l.b16 %v3483
    %v3581 = vunpack.c.h.b16 %v3483
    %v3582 = vpack.c.b16 %v3522, %v3518
    %v3583 = vpack.c.b16 %v3523, %v3519
    %v3584 = vpack.c.b16 %v3524, %v3520
    %v3585 = vpack.c.b16 %v3525, %v3521
    %v3586 = vpack.c.b16 %v3530, %v3526
    %v3587 = vpack.c.b16 %v3531, %v3527
    %v3588 = vpack.c.b16 %v3532, %v3528
    %v3589 = vpack.c.b16 %v3533, %v3529
    %v3590 = vpack.c.b16 %v3538, %v3534
    %v3591 = vpack.c.b16 %v3539, %v3535
    %v3592 = vpack.c.b16 %v3540, %v3536
    %v3593 = vpack.c.b16 %v3541, %v3537
    %v3594 = vpack.c.b16 %v3546, %v3542
    %v3595 = vpack.c.b16 %v3547, %v3543
    %v3596 = vpack.c.b16 %v3548, %v3544
    %v3597 = vpack.c.b16 %v3549, %v3545
    %v3598 = vpack.c.b16 %v3554, %v3550
    %v3599 = vpack.c.b16 %v3555, %v3551
    %v3600 = vpack.c.b16 %v3556, %v3552
    %v3601 = vpack.c.b16 %v3557, %v3553
    %v3602 = vpack.c.b16 %v3562, %v3558
    %v3603 = vpack.c.b16 %v3563, %v3559
    %v3604 = vpack.c.b16 %v3564, %v3560
    %v3605 = vpack.c.b16 %v3565, %v3561
    %v3606 = vpack.c.b16 %v3570, %v3566
    %v3607 = vpack.c.b16 %v3571, %v3567
    %v3608 = vpack.c.b16 %v3572, %v3568
    %v3609 = vpack.c.b16 %v3573, %v3569
    %v3610 = vpack.c.b16 %v3578, %v3574
    %v3611 = vpack.c.b16 %v3579, %v3575
    %v3612 = vpack.c.b16 %v3580, %v3576
    %v3613 = vpack.c.b16 %v3581, %v3577
    %v3647 = vcombine.high %v3485, %v3485
    %v3649 = vunpack.c.l.s4 1983009808
    %v3650 = vunpack.c.0.s8 %v3649
    %v3651 = vlaneseq
    %v3652 = vshrl.u32 %v3651, 7
    %v3653 = vsub.s32 %v3650, %v3652
    %v3654 = vrot.slane %v3485, %v3653
    %v3656 = vunpack.c.l.s4 1983009808
    %v3657 = vunpack.c.0.s8 %v3656
    %v3658 = vlaneseq
    %v3659 = vshrl.u32 %v3658, 7
    %v3660 = vsub.s32 %v3657, %v3659
    %v3661 = vrot.slane %v3647, %v3660
    %v3662 = vcombine.high %v3654, %v3654
    %v3663 = vcombine.high %v3661, %v3661
    %3668 = vmatprep.subr.bf16.mxu0 %v3583
    %3669 = vmatpush1.bf16.msra.mxu0 %v3582
    %3670 = vmatprep.subr.bf16.mxu0 %v3587
    %3671 = vmatpush1.bf16.msra.mxu0 %v3586
    %3672 = vmatprep.subr.bf16.mxu0 %v3591
    %3673 = vmatpush1.bf16.msra.mxu0 %v3590
    %3674 = vmatprep.subr.bf16.mxu0 %v3595
    %3675 = vmatpush1.bf16.msra.mxu0 %v3594
    %3676 = vmatprep.subr.bf16.mxu0 %v3599
    %3677 = vmatpush1.bf16.msra.mxu0 %v3598
    %3678 = vmatprep.subr.bf16.mxu0 %v3603
    %3679 = vmatpush1.bf16.msra.mxu0 %v3602
    %3680 = vmatprep.subr.bf16.mxu0 %v3607
    %3681 = vmatpush1.bf16.msra.mxu0 %v3606
    %3682 = vmatprep.subr.bf16.mxu0 %v3611
    %3683 = vmatpush1.bf16.msra.mxu0 %v3610
    %3684 = vmatprep.subr.bf16.mxu0 0
    %3685 = vmatpush1.bf16.msra.mxu0 0
    %3686 = vmatprep.subr.bf16.mxu0 0
    %3687 = vmatpush1.bf16.msra.mxu0 0
    %3688 = vmatprep.subr.bf16.mxu0 0
    %3689 = vmatpush1.bf16.msra.mxu0 0
    %3690 = vmatprep.subr.bf16.mxu0 0
    %3691 = vmatpush1.bf16.msra.mxu0 0
    %3692 = vmatprep.subr.bf16.mxu0 0
    %3693 = vmatpush1.bf16.msra.mxu0 0
    %3694 = vmatprep.subr.bf16.mxu0 0
    %3695 = vmatpush1.bf16.msra.mxu0 0
    %3696 = vmatprep.subr.bf16.mxu0 0
    %3697 = vmatpush1.bf16.msra.mxu0 0
    %3698 = vmatprep.subr.bf16.mxu0 0
    %3699 = vmatpush1.bf16.msra.mxu0 0
    %3700 = vmatprep.mubr.bf16.mxu0 0
    %3701 = vmatmul.mubr.bf16.gmra.mrb[0].mxu0 %v2856
    %v3702 = vpop.f32.mrb[0].mxu0
    %v3703 = vadd.f32 %v3654, %v3702
    %v3704 = vpop.f32.mrb[0].mxu0
    %v3705 = vadd.f32 %v3662, %v3704
    %v3706 = vpop.f32.mrb[0].mxu0
    %v3707 = vpop.f32.mrb[0].mxu0
    %3708 = vdwg.mxu0
    %3709 = vmatprep.subr.bf16.mxu0 %v3585
    %3710 = vmatpush1.bf16.msra.mxu0 %v3584
    %3711 = vmatprep.subr.bf16.mxu0 %v3589
    %3712 = vmatpush1.bf16.msra.mxu0 %v3588
    %3713 = vmatprep.subr.bf16.mxu0 %v3593
    %3714 = vmatpush1.bf16.msra.mxu0 %v3592
    %3715 = vmatprep.subr.bf16.mxu0 %v3597
    %3716 = vmatpush1.bf16.msra.mxu0 %v3596
    %3717 = vmatprep.subr.bf16.mxu0 %v3601
    %3718 = vmatpush1.bf16.msra.mxu0 %v3600
    %3719 = vmatprep.subr.bf16.mxu0 %v3605
    %3720 = vmatpush1.bf16.msra.mxu0 %v3604
    %3721 = vmatprep.subr.bf16.mxu0 %v3609
    %3722 = vmatpush1.bf16.msra.mxu0 %v3608
    %3723 = vmatprep.subr.bf16.mxu0 %v3613
    %3724 = vmatpush1.bf16.msra.mxu0 %v3612
    %3725 = vmatprep.subr.bf16.mxu0 0
    %3726 = vmatpush1.bf16.msra.mxu0 0
    %3727 = vmatprep.subr.bf16.mxu0 0
    %3728 = vmatpush1.bf16.msra.mxu0 0
    %3729 = vmatprep.subr.bf16.mxu0 0
    %3730 = vmatpush1.bf16.msra.mxu0 0
    %3731 = vmatprep.subr.bf16.mxu0 0
    %3732 = vmatpush1.bf16.msra.mxu0 0
    %3733 = vmatprep.subr.bf16.mxu0 0
    %3734 = vmatpush1.bf16.msra.mxu0 0
    %3735 = vmatprep.subr.bf16.mxu0 0
    %3736 = vmatpush1.bf16.msra.mxu0 0
    %3737 = vmatprep.subr.bf16.mxu0 0
    %3738 = vmatpush1.bf16.msra.mxu0 0
    %3739 = vmatprep.subr.bf16.mxu0 0
    %3740 = vmatpush1.bf16.msra.mxu0 0
    %3741 = vmatprep.mubr.bf16.mxu0 0
    %3742 = vmatmul.mubr.bf16.gmra.mrb[0].mxu0 %v2856
    %v3743 = vpop.f32.mrb[0].mxu0
    %v3744 = vadd.f32 %v3661, %v3743
    %v3745 = vpop.f32.mrb[0].mxu0
    %v3746 = vadd.f32 %v3663, %v3745
    %v3747 = vpop.f32.mrb[0].mxu0
    %v3748 = vpop.f32.mrb[0].mxu0
    %3749 = vdwg.mxu0
    %v3750 = vmul.f32 %v3703, 0.5
    %v3751 = vtanh.pop %v3750
    %v3752 = vadd.f32 %v3751, 1.0
    %v3753 = vmul.f32 %v3752, 0.5
    %v3754 = vmul.f32 %v3705, 0.5
    %v3755 = vtanh.pop %v3754
    %v3756 = vadd.f32 %v3755, 1.0
    %v3757 = vmul.f32 %v3756, 0.5
    %v3758 = vtanh.pop %v3744
    %v3759 = vmul.f32 %v3746, 0.5
    %v3760 = vtanh.pop %v3759
    %v3761 = vadd.f32 %v3760, 1.0
    %v3762 = vmul.f32 %v3761, 0.5
    %v3763 = vmul.f32 %v3757, %v2853
    %v3764 = vmul.f32 %v3753, %v3758
    %v3765 = vadd.f32 %v3763, %v3764
    %v3766 = vtanh.pop %v3765
    %v3767 = vmul.f32 %v3762, %v3766
    %v3768 = vpack.c.bf16 %v3767, %v3767
    %v3769 = vld [vmem:[#allocation8] sm:$0xff]
    %v3770 = vld [vmem:[#allocation8 + $0x8] sm:$0xff]
    %v3771 = vld [vmem:[#allocation8 + $0x10] sm:$0xff]
    %v3772 = vld [vmem:[#allocation8 + $0x18] sm:$0xff]
    %v3773 = vld [vmem:[#allocation8 + $0x20] sm:$0xff]
    %v3774 = vld [vmem:[#allocation8 + $0x28] sm:$0xff]
    %v3775 = vld [vmem:[#allocation8 + $0x30] sm:$0xff]
    %v3776 = vld [vmem:[#allocation8 + $0x38] sm:$0xff]
    %v3777 = vld [vmem:[#allocation8 + $0x40] sm:$0xff]
    %v3778 = vld [vmem:[#allocation8 + $0x48] sm:$0xff]
    %v3779 = vld [vmem:[#allocation8 + $0x50] sm:$0xff]
    %v3780 = vld [vmem:[#allocation8 + $0x58] sm:$0xff]
    %v3781 = vld [vmem:[#allocation8 + $0x60] sm:$0xff]
    %v3782 = vld [vmem:[#allocation8 + $0x68] sm:$0xff]
    %v3783 = vld [vmem:[#allocation8 + $0x70] sm:$0xff]
    %v3784 = vld [vmem:[#allocation8 + $0x78] sm:$0xff]
    %v3785 = vld [vmem:[#allocation8 + $0x80] sm:$0xff]
    %v3786 = vld [vmem:[#allocation8 + $0x88] sm:$0xff]
    %v3787 = vld [vmem:[#allocation8 + $0x90] sm:$0xff]
    %v3788 = vld [vmem:[#allocation8 + $0x98] sm:$0xff]
    %v3789 = vld [vmem:[#allocation8 + $0xa0] sm:$0xff]
    %v3790 = vld [vmem:[#allocation8 + $0xa8] sm:$0xff]
    %v3791 = vld [vmem:[#allocation8 + $0xb0] sm:$0xff]
    %v3792 = vld [vmem:[#allocation8 + $0xb8] sm:$0xff]
    %v3793 = vld [vmem:[#allocation8 + $0xc0] sm:$0xff]
    %v3794 = vld [vmem:[#allocation8 + $0xc8] sm:$0xff]
    %v3795 = vld [vmem:[#allocation8 + $0xd0] sm:$0xff]
    %v3796 = vld [vmem:[#allocation8 + $0xd8] sm:$0xff]
    %v3797 = vld [vmem:[#allocation8 + $0xe0] sm:$0xff]
    %v3798 = vld [vmem:[#allocation8 + $0xe8] sm:$0xff]
    %v3799 = vld [vmem:[#allocation8 + $0xf0] sm:$0xff]
    %v3800 = vld [vmem:[#allocation8 + $0xf8] sm:$0xff]
    %v3833 = vunpack.c.l.b16 %v3769
    %v3834 = vunpack.c.h.b16 %v3769
    %v3835 = vunpack.c.l.b16 %v3770
    %v3836 = vunpack.c.h.b16 %v3770
    %v3837 = vunpack.c.l.b16 %v3771
    %v3838 = vunpack.c.h.b16 %v3771
    %v3839 = vunpack.c.l.b16 %v3772
    %v3840 = vunpack.c.h.b16 %v3772
    %v3841 = vunpack.c.l.b16 %v3773
    %v3842 = vunpack.c.h.b16 %v3773
    %v3843 = vunpack.c.l.b16 %v3774
    %v3844 = vunpack.c.h.b16 %v3774
    %v3845 = vunpack.c.l.b16 %v3775
    %v3846 = vunpack.c.h.b16 %v3775
    %v3847 = vunpack.c.l.b16 %v3776
    %v3848 = vunpack.c.h.b16 %v3776
    %v3849 = vunpack.c.l.b16 %v3777
    %v3850 = vunpack.c.h.b16 %v3777
    %v3851 = vunpack.c.l.b16 %v3778
    %v3852 = vunpack.c.h.b16 %v3778
    %v3853 = vunpack.c.l.b16 %v3779
    %v3854 = vunpack.c.h.b16 %v3779
    %v3855 = vunpack.c.l.b16 %v3780
    %v3856 = vunpack.c.h.b16 %v3780
    %v3857 = vunpack.c.l.b16 %v3781
    %v3858 = vunpack.c.h.b16 %v3781
    %v3859 = vunpack.c.l.b16 %v3782
    %v3860 = vunpack.c.h.b16 %v3782
    %v3861 = vunpack.c.l.b16 %v3783
    %v3862 = vunpack.c.h.b16 %v3783
    %v3863 = vunpack.c.l.b16 %v3784
    %v3864 = vunpack.c.h.b16 %v3784
    %v3865 = vunpack.c.l.b16 %v3785
    %v3866 = vunpack.c.h.b16 %v3785
    %v3867 = vunpack.c.l.b16 %v3786
    %v3868 = vunpack.c.h.b16 %v3786
    %v3869 = vunpack.c.l.b16 %v3787
    %v3870 = vunpack.c.h.b16 %v3787
    %v3871 = vunpack.c.l.b16 %v3788
    %v3872 = vunpack.c.h.b16 %v3788
    %v3873 = vunpack.c.l.b16 %v3789
    %v3874 = vunpack.c.h.b16 %v3789
    %v3875 = vunpack.c.l.b16 %v3790
    %v3876 = vunpack.c.h.b16 %v3790
    %v3877 = vunpack.c.l.b16 %v3791
    %v3878 = vunpack.c.h.b16 %v3791
    %v3879 = vunpack.c.l.b16 %v3792
    %v3880 = vunpack.c.h.b16 %v3792
    %v3881 = vunpack.c.l.b16 %v3793
    %v3882 = vunpack.c.h.b16 %v3793
    %v3883 = vunpack.c.l.b16 %v3794
    %v3884 = vunpack.c.h.b16 %v3794
    %v3885 = vunpack.c.l.b16 %v3795
    %v3886 = vunpack.c.h.b16 %v3795
    %v3887 = vunpack.c.l.b16 %v3796
    %v3888 = vunpack.c.h.b16 %v3796
    %v3889 = vunpack.c.l.b16 %v3797
    %v3890 = vunpack.c.h.b16 %v3797
    %v3891 = vunpack.c.l.b16 %v3798
    %v3892 = vunpack.c.h.b16 %v3798
    %v3893 = vunpack.c.l.b16 %v3799
    %v3894 = vunpack.c.h.b16 %v3799
    %v3895 = vunpack.c.l.b16 %v3800
    %v3896 = vunpack.c.h.b16 %v3800
    %v3897 = vpack.c.b16 %v3837, %v3833
    %v3898 = vpack.c.b16 %v3838, %v3834
    %v3899 = vpack.c.b16 %v3839, %v3835
    %v3900 = vpack.c.b16 %v3840, %v3836
    %v3901 = vpack.c.b16 %v3845, %v3841
    %v3902 = vpack.c.b16 %v3846, %v3842
    %v3903 = vpack.c.b16 %v3847, %v3843
    %v3904 = vpack.c.b16 %v3848, %v3844
    %v3905 = vpack.c.b16 %v3853, %v3849
    %v3906 = vpack.c.b16 %v3854, %v3850
    %v3907 = vpack.c.b16 %v3855, %v3851
    %v3908 = vpack.c.b16 %v3856, %v3852
    %v3909 = vpack.c.b16 %v3861, %v3857
    %v3910 = vpack.c.b16 %v3862, %v3858
    %v3911 = vpack.c.b16 %v3863, %v3859
    %v3912 = vpack.c.b16 %v3864, %v3860
    %v3913 = vpack.c.b16 %v3869, %v3865
    %v3914 = vpack.c.b16 %v3870, %v3866
    %v3915 = vpack.c.b16 %v3871, %v3867
    %v3916 = vpack.c.b16 %v3872, %v3868
    %v3917 = vpack.c.b16 %v3877, %v3873
    %v3918 = vpack.c.b16 %v3878, %v3874
    %v3919 = vpack.c.b16 %v3879, %v3875
    %v3920 = vpack.c.b16 %v3880, %v3876
    %v3921 = vpack.c.b16 %v3885, %v3881
    %v3922 = vpack.c.b16 %v3886, %v3882
    %v3923 = vpack.c.b16 %v3887, %v3883
    %v3924 = vpack.c.b16 %v3888, %v3884
    %v3925 = vpack.c.b16 %v3893, %v3889
    %v3926 = vpack.c.b16 %v3894, %v3890
    %v3927 = vpack.c.b16 %v3895, %v3891
    %v3928 = vpack.c.b16 %v3896, %v3892
    %3961 = vmatprep.subr.bf16.mxu0 %v3898
    %3962 = vmatpush1.bf16.msra.mxu0 %v3897
    %3963 = vmatprep.subr.bf16.mxu0 %v3902
    %3964 = vmatpush1.bf16.msra.mxu0 %v3901
    %3965 = vmatprep.subr.bf16.mxu0 %v3906
    %3966 = vmatpush1.bf16.msra.mxu0 %v3905
    %3967 = vmatprep.subr.bf16.mxu0 %v3910
    %3968 = vmatpush1.bf16.msra.mxu0 %v3909
    %3969 = vmatprep.subr.bf16.mxu0 %v3914
    %3970 = vmatpush1.bf16.msra.mxu0 %v3913
    %3971 = vmatprep.subr.bf16.mxu0 %v3918
    %3972 = vmatpush1.bf16.msra.mxu0 %v3917
    %3973 = vmatprep.subr.bf16.mxu0 %v3922
    %3974 = vmatpush1.bf16.msra.mxu0 %v3921
    %3975 = vmatprep.subr.bf16.mxu0 %v3926
    %3976 = vmatpush1.bf16.msra.mxu0 %v3925
    %3977 = vmatprep.subr.bf16.mxu0 0
    %3978 = vmatpush1.bf16.msra.mxu0 0
    %3979 = vmatprep.subr.bf16.mxu0 0
    %3980 = vmatpush1.bf16.msra.mxu0 0
    %3981 = vmatprep.subr.bf16.mxu0 0
    %3982 = vmatpush1.bf16.msra.mxu0 0
    %3983 = vmatprep.subr.bf16.mxu0 0
    %3984 = vmatpush1.bf16.msra.mxu0 0
    %3985 = vmatprep.subr.bf16.mxu0 0
    %3986 = vmatpush1.bf16.msra.mxu0 0
    %3987 = vmatprep.subr.bf16.mxu0 0
    %3988 = vmatpush1.bf16.msra.mxu0 0
    %3989 = vmatprep.subr.bf16.mxu0 0
    %3990 = vmatpush1.bf16.msra.mxu0 0
    %3991 = vmatprep.subr.bf16.mxu0 0
    %3992 = vmatpush1.bf16.msra.mxu0 0
    %3993 = vmatprep.mubr.bf16.mxu0 0
    %3994 = vmatmul.mubr.bf16.gmra.mrb[0].mxu0 %v3768
    %v3995 = vpop.f32.mrb[0].mxu0
    %v3996 = vadd.f32 0.0, %v3995
    %v3997 = vpop.f32.mrb[0].mxu0
    %v3998 = vadd.f32 0.0, %v3997
    %v3999 = vpop.f32.mrb[0].mxu0
    %v4000 = vpop.f32.mrb[0].mxu0
    %4001 = vdwg.mxu0
    %4002 = vmatprep.subr.bf16.mxu0 %v3900
    %4003 = vmatpush1.bf16.msra.mxu0 %v3899
    %4004 = vmatprep.subr.bf16.mxu0 %v3904
    %4005 = vmatpush1.bf16.msra.mxu0 %v3903
    %4006 = vmatprep.subr.bf16.mxu0 %v3908
    %4007 = vmatpush1.bf16.msra.mxu0 %v3907
    %4008 = vmatprep.subr.bf16.mxu0 %v3912
    %4009 = vmatpush1.bf16.msra.mxu0 %v3911
    %4010 = vmatprep.subr.bf16.mxu0 %v3916
    %4011 = vmatpush1.bf16.msra.mxu0 %v3915
    %4012 = vmatprep.subr.bf16.mxu0 %v3920
    %4013 = vmatpush1.bf16.msra.mxu0 %v3919
    %4014 = vmatprep.subr.bf16.mxu0 %v3924
    %4015 = vmatpush1.bf16.msra.mxu0 %v3923
    %4016 = vmatprep.subr.bf16.mxu0 %v3928
    %4017 = vmatpush1.bf16.msra.mxu0 %v3927
    %4018 = vmatprep.subr.bf16.mxu0 0
    %4019 = vmatpush1.bf16.msra.mxu0 0
    %4020 = vmatprep.subr.bf16.mxu0 0
    %4021 = vmatpush1.bf16.msra.mxu0 0
    %4022 = vmatprep.subr.bf16.mxu0 0
    %4023 = vmatpush1.bf16.msra.mxu0 0
    %4024 = vmatprep.subr.bf16.mxu0 0
    %4025 = vmatpush1.bf16.msra.mxu0 0
    %4026 = vmatprep.subr.bf16.mxu0 0
    %4027 = vmatpush1.bf16.msra.mxu0 0
    %4028 = vmatprep.subr.bf16.mxu0 0
    %4029 = vmatpush1.bf16.msra.mxu0 0
    %4030 = vmatprep.subr.bf16.mxu0 0
    %4031 = vmatpush1.bf16.msra.mxu0 0
    %4032 = vmatprep.subr.bf16.mxu0 0
    %4033 = vmatpush1.bf16.msra.mxu0 0
    %4034 = vmatprep.mubr.bf16.mxu0 0
    %4035 = vmatmul.mubr.bf16.gmra.mrb[0].mxu0 %v3768
    %v4036 = vpop.f32.mrb[0].mxu0
    %v4037 = vadd.f32 0.0, %v4036
    %v4038 = vpop.f32.mrb[0].mxu0
    %v4039 = vadd.f32 0.0, %v4038
    %v4040 = vpop.f32.mrb[0].mxu0
    %v4041 = vpop.f32.mrb[0].mxu0
    %4042 = vdwg.mxu0
    %v4043 = vadd.f32 %v3405, %v3996
    %v4044 = vadd.f32 %v3407, %v3998
    %v4045 = vadd.f32 %v3446, %v4037
    %v4046 = vadd.f32 %v3448, %v4039
    %v4047 = vmul.f32 %v4043, 0.5
    %v4048 = vtanh.pop %v4047
    %v4049 = vadd.f32 %v4048, 1.0
    %v4050 = vmul.f32 %v4049, 0.5
    %v4051 = vmul.f32 %v4044, 0.5
    %v4052 = vtanh.pop %v4051
    %v4053 = vadd.f32 %v4052, 1.0
    %v4054 = vmul.f32 %v4053, 0.5
    %v4055 = vtanh.pop %v4045
    %v4056 = vmul.f32 %v4046, 0.5
    %v4057 = vtanh.pop %v4056
    %v4058 = vadd.f32 %v4057, 1.0
    %v4059 = vmul.f32 %v4058, 0.5
    %v4060 = vmul.f32 %v4054, %v3150
    %v4061 = vmul.f32 %v4050, %v4055
    %v4062 = vadd.f32 %v4060, %v4061
    %v4063 = vtanh.pop %v4062
    %v4064 = vmul.f32 %v4059, %v4063
    %s4065 = scalar_lea.vmem [#allocation3], 6
    %4066 = vst [vmem:[%s4065] sm:$0x3] %v4064
    %v4067 = vpack.c.bf16 %v4064, %v4064
    %v4068 = vld [vmem:[#allocation10] sm:$0xff]
    %v4069 = vld [vmem:[#allocation10 + $0x8] sm:$0xff]
    %v4070 = vld [vmem:[#allocation10 + $0x10] sm:$0xff]
    %v4071 = vld [vmem:[#allocation10 + $0x18] sm:$0xff]
    %v4072 = vld [vmem:[#allocation10 + $0x20] sm:$0xff]
    %v4073 = vld [vmem:[#allocation10 + $0x28] sm:$0xff]
    %v4074 = vld [vmem:[#allocation10 + $0x30] sm:$0xff]
    %v4075 = vld [vmem:[#allocation10 + $0x38] sm:$0xff]
    %v4076 = vld [vmem:[#allocation10 + $0x40] sm:$0xff]
    %v4077 = vld [vmem:[#allocation10 + $0x48] sm:$0xff]
    %v4078 = vld [vmem:[#allocation10 + $0x50] sm:$0xff]
    %v4079 = vld [vmem:[#allocation10 + $0x58] sm:$0xff]
    %v4080 = vld [vmem:[#allocation10 + $0x60] sm:$0xff]
    %v4081 = vld [vmem:[#allocation10 + $0x68] sm:$0xff]
    %v4082 = vld [vmem:[#allocation10 + $0x70] sm:$0xff]
    %v4083 = vld [vmem:[#allocation10 + $0x78] sm:$0xff]
    %v4084 = vld [vmem:[#allocation10 + $0x80] sm:$0xff]
    %v4085 = vld [vmem:[#allocation10 + $0x88] sm:$0xff]
    %v4086 = vld [vmem:[#allocation10 + $0x90] sm:$0xff]
    %v4087 = vld [vmem:[#allocation10 + $0x98] sm:$0xff]
    %v4088 = vld [vmem:[#allocation10 + $0xa0] sm:$0xff]
    %v4089 = vld [vmem:[#allocation10 + $0xa8] sm:$0xff]
    %v4090 = vld [vmem:[#allocation10 + $0xb0] sm:$0xff]
    %v4091 = vld [vmem:[#allocation10 + $0xb8] sm:$0xff]
    %v4092 = vld [vmem:[#allocation10 + $0xc0] sm:$0xff]
    %v4093 = vld [vmem:[#allocation10 + $0xc8] sm:$0xff]
    %v4094 = vld [vmem:[#allocation10 + $0xd0] sm:$0xff]
    %v4095 = vld [vmem:[#allocation10 + $0xd8] sm:$0xff]
    %v4096 = vld [vmem:[#allocation10 + $0xe0] sm:$0xff]
    %v4097 = vld [vmem:[#allocation10 + $0xe8] sm:$0xff]
    %v4098 = vld [vmem:[#allocation10 + $0xf0] sm:$0xff]
    %v4099 = vld [vmem:[#allocation10 + $0xf8] sm:$0xff]
    %v4100 = vld [vmem:[%s7] sm:$0xf]
    %v4102 = vlaneseq
    %v4103 = vshrl.u32 %v4102, 7
    %v4104 = vsub.s32 0, %v4103
    %v4105 = vrot.slane %v4100, %v4104
    %v4106 = vlaneseq
    %v4107 = vshrl.u32 %v4106, 7
    %v4108 = vsub.s32 1, %v4107
    %v4109 = vrot.slane %v4100, %v4108
    %v4110 = vlaneseq
    %v4111 = vshrl.u32 %v4110, 7
    %v4112 = vsub.s32 2, %v4111
    %v4113 = vrot.slane %v4100, %v4112
    %v4114 = vlaneseq
    %v4115 = vshrl.u32 %v4114, 7
    %v4116 = vsub.s32 3, %v4115
    %v4117 = vrot.slane %v4100, %v4116
    %v4154 = vunpack.c.l.b16 %v4068
    %v4155 = vunpack.c.h.b16 %v4068
    %v4156 = vunpack.c.l.b16 %v4069
    %v4157 = vunpack.c.h.b16 %v4069
    %v4158 = vunpack.c.l.b16 %v4070
    %v4159 = vunpack.c.h.b16 %v4070
    %v4160 = vunpack.c.l.b16 %v4071
    %v4161 = vunpack.c.h.b16 %v4071
    %v4162 = vunpack.c.l.b16 %v4072
    %v4163 = vunpack.c.h.b16 %v4072
    %v4164 = vunpack.c.l.b16 %v4073
    %v4165 = vunpack.c.h.b16 %v4073
    %v4166 = vunpack.c.l.b16 %v4074
    %v4167 = vunpack.c.h.b16 %v4074
    %v4168 = vunpack.c.l.b16 %v4075
    %v4169 = vunpack.c.h.b16 %v4075
    %v4170 = vunpack.c.l.b16 %v4076
    %v4171 = vunpack.c.h.b16 %v4076
    %v4172 = vunpack.c.l.b16 %v4077
    %v4173 = vunpack.c.h.b16 %v4077
    %v4174 = vunpack.c.l.b16 %v4078
    %v4175 = vunpack.c.h.b16 %v4078
    %v4176 = vunpack.c.l.b16 %v4079
    %v4177 = vunpack.c.h.b16 %v4079
    %v4178 = vunpack.c.l.b16 %v4080
    %v4179 = vunpack.c.h.b16 %v4080
    %v4180 = vunpack.c.l.b16 %v4081
    %v4181 = vunpack.c.h.b16 %v4081
    %v4182 = vunpack.c.l.b16 %v4082
    %v4183 = vunpack.c.h.b16 %v4082
    %v4184 = vunpack.c.l.b16 %v4083
    %v4185 = vunpack.c.h.b16 %v4083
    %v4186 = vunpack.c.l.b16 %v4084
    %v4187 = vunpack.c.h.b16 %v4084
    %v4188 = vunpack.c.l.b16 %v4085
    %v4189 = vunpack.c.h.b16 %v4085
    %v4190 = vunpack.c.l.b16 %v4086
    %v4191 = vunpack.c.h.b16 %v4086
    %v4192 = vunpack.c.l.b16 %v4087
    %v4193 = vunpack.c.h.b16 %v4087
    %v4194 = vunpack.c.l.b16 %v4088
    %v4195 = vunpack.c.h.b16 %v4088
    %v4196 = vunpack.c.l.b16 %v4089
    %v4197 = vunpack.c.h.b16 %v4089
    %v4198 = vunpack.c.l.b16 %v4090
    %v4199 = vunpack.c.h.b16 %v4090
    %v4200 = vunpack.c.l.b16 %v4091
    %v4201 = vunpack.c.h.b16 %v4091
    %v4202 = vunpack.c.l.b16 %v4092
    %v4203 = vunpack.c.h.b16 %v4092
    %v4204 = vunpack.c.l.b16 %v4093
    %v4205 = vunpack.c.h.b16 %v4093
    %v4206 = vunpack.c.l.b16 %v4094
    %v4207 = vunpack.c.h.b16 %v4094
    %v4208 = vunpack.c.l.b16 %v4095
    %v4209 = vunpack.c.h.b16 %v4095
    %v4210 = vunpack.c.l.b16 %v4096
    %v4211 = vunpack.c.h.b16 %v4096
    %v4212 = vunpack.c.l.b16 %v4097
    %v4213 = vunpack.c.h.b16 %v4097
    %v4214 = vunpack.c.l.b16 %v4098
    %v4215 = vunpack.c.h.b16 %v4098
    %v4216 = vunpack.c.l.b16 %v4099
    %v4217 = vunpack.c.h.b16 %v4099
    %v4218 = vpack.c.b16 %v4158, %v4154
    %v4219 = vpack.c.b16 %v4159, %v4155
    %v4220 = vpack.c.b16 %v4160, %v4156
    %v4221 = vpack.c.b16 %v4161, %v4157
    %v4222 = vpack.c.b16 %v4166, %v4162
    %v4223 = vpack.c.b16 %v4167, %v4163
    %v4224 = vpack.c.b16 %v4168, %v4164
    %v4225 = vpack.c.b16 %v4169, %v4165
    %v4226 = vpack.c.b16 %v4174, %v4170
    %v4227 = vpack.c.b16 %v4175, %v4171
    %v4228 = vpack.c.b16 %v4176, %v4172
    %v4229 = vpack.c.b16 %v4177, %v4173
    %v4230 = vpack.c.b16 %v4182, %v4178
    %v4231 = vpack.c.b16 %v4183, %v4179
    %v4232 = vpack.c.b16 %v4184, %v4180
    %v4233 = vpack.c.b16 %v4185, %v4181
    %v4234 = vpack.c.b16 %v4190, %v4186
    %v4235 = vpack.c.b16 %v4191, %v4187
    %v4236 = vpack.c.b16 %v4192, %v4188
    %v4237 = vpack.c.b16 %v4193, %v4189
    %v4238 = vpack.c.b16 %v4198, %v4194
    %v4239 = vpack.c.b16 %v4199, %v4195
    %v4240 = vpack.c.b16 %v4200, %v4196
    %v4241 = vpack.c.b16 %v4201, %v4197
    %v4242 = vpack.c.b16 %v4206, %v4202
    %v4243 = vpack.c.b16 %v4207, %v4203
    %v4244 = vpack.c.b16 %v4208, %v4204
    %v4245 = vpack.c.b16 %v4209, %v4205
    %v4246 = vpack.c.b16 %v4214, %v4210
    %v4247 = vpack.c.b16 %v4215, %v4211
    %v4248 = vpack.c.b16 %v4216, %v4212
    %v4249 = vpack.c.b16 %v4217, %v4213
    %4282 = vmatprep.subr.bf16.mxu0 %v4219
    %4283 = vmatpush1.bf16.msra.mxu0 %v4218
    %4284 = vmatprep.subr.bf16.mxu0 %v4223
    %4285 = vmatpush1.bf16.msra.mxu0 %v4222
    %4286 = vmatprep.subr.bf16.mxu0 %v4227
    %4287 = vmatpush1.bf16.msra.mxu0 %v4226
    %4288 = vmatprep.subr.bf16.mxu0 %v4231
    %4289 = vmatpush1.bf16.msra.mxu0 %v4230
    %4290 = vmatprep.subr.bf16.mxu0 %v4235
    %4291 = vmatpush1.bf16.msra.mxu0 %v4234
    %4292 = vmatprep.subr.bf16.mxu0 %v4239
    %4293 = vmatpush1.bf16.msra.mxu0 %v4238
    %4294 = vmatprep.subr.bf16.mxu0 %v4243
    %4295 = vmatpush1.bf16.msra.mxu0 %v4242
    %4296 = vmatprep.subr.bf16.mxu0 %v4247
    %4297 = vmatpush1.bf16.msra.mxu0 %v4246
    %4298 = vmatprep.subr.bf16.mxu0 0
    %4299 = vmatpush1.bf16.msra.mxu0 0
    %4300 = vmatprep.subr.bf16.mxu0 0
    %4301 = vmatpush1.bf16.msra.mxu0 0
    %4302 = vmatprep.subr.bf16.mxu0 0
    %4303 = vmatpush1.bf16.msra.mxu0 0
    %4304 = vmatprep.subr.bf16.mxu0 0
    %4305 = vmatpush1.bf16.msra.mxu0 0
    %4306 = vmatprep.subr.bf16.mxu0 0
    %4307 = vmatpush1.bf16.msra.mxu0 0
    %4308 = vmatprep.subr.bf16.mxu0 0
    %4309 = vmatpush1.bf16.msra.mxu0 0
    %4310 = vmatprep.subr.bf16.mxu0 0
    %4311 = vmatpush1.bf16.msra.mxu0 0
    %4312 = vmatprep.subr.bf16.mxu0 0
    %4313 = vmatpush1.bf16.msra.mxu0 0
    %4314 = vmatprep.mubr.bf16.mxu0 0
    %4315 = vmatmul.mubr.bf16.gmra.mrb[0].mxu0 %v4067
    %v4316 = vpop.f32.mrb[0].mxu0
    %v4317 = vadd.f32 %v4105, %v4316
    %v4318 = vpop.f32.mrb[0].mxu0
    %v4319 = vadd.f32 %v4109, %v4318
    %v4320 = vpop.f32.mrb[0].mxu0
    %v4321 = vpop.f32.mrb[0].mxu0
    %4322 = vdwg.mxu0
    %4323 = vmatprep.subr.bf16.mxu0 %v4221
    %4324 = vmatpush1.bf16.msra.mxu0 %v4220
    %4325 = vmatprep.subr.bf16.mxu0 %v4225
    %4326 = vmatpush1.bf16.msra.mxu0 %v4224
    %4327 = vmatprep.subr.bf16.mxu0 %v4229
    %4328 = vmatpush1.bf16.msra.mxu0 %v4228
    %4329 = vmatprep.subr.bf16.mxu0 %v4233
    %4330 = vmatpush1.bf16.msra.mxu0 %v4232
    %4331 = vmatprep.subr.bf16.mxu0 %v4237
    %4332 = vmatpush1.bf16.msra.mxu0 %v4236
    %4333 = vmatprep.subr.bf16.mxu0 %v4241
    %4334 = vmatpush1.bf16.msra.mxu0 %v4240
    %4335 = vmatprep.subr.bf16.mxu0 %v4245
    %4336 = vmatpush1.bf16.msra.mxu0 %v4244
    %4337 = vmatprep.subr.bf16.mxu0 %v4249
    %4338 = vmatpush1.bf16.msra.mxu0 %v4248
    %4339 = vmatprep.subr.bf16.mxu0 0
    %4340 = vmatpush1.bf16.msra.mxu0 0
    %4341 = vmatprep.subr.bf16.mxu0 0
    %4342 = vmatpush1.bf16.msra.mxu0 0
    %4343 = vmatprep.subr.bf16.mxu0 0
    %4344 = vmatpush1.bf16.msra.mxu0 0
    %4345 = vmatprep.subr.bf16.mxu0 0
    %4346 = vmatpush1.bf16.msra.mxu0 0
    %4347 = vmatprep.subr.bf16.mxu0 0
    %4348 = vmatpush1.bf16.msra.mxu0 0
    %4349 = vmatprep.subr.bf16.mxu0 0
    %4350 = vmatpush1.bf16.msra.mxu0 0
    %4351 = vmatprep.subr.bf16.mxu0 0
    %4352 = vmatpush1.bf16.msra.mxu0 0
    %4353 = vmatprep.subr.bf16.mxu0 0
    %4354 = vmatpush1.bf16.msra.mxu0 0
    %4355 = vmatprep.mubr.bf16.mxu0 0
    %4356 = vmatmul.mubr.bf16.gmra.mrb[0].mxu0 %v4067
    %v4357 = vpop.f32.mrb[0].mxu0
    %v4358 = vadd.f32 %v4113, %v4357
    %v4359 = vpop.f32.mrb[0].mxu0
    %v4360 = vadd.f32 %v4117, %v4359
    %v4361 = vpop.f32.mrb[0].mxu0
    %v4362 = vpop.f32.mrb[0].mxu0
    %4363 = vdwg.mxu0
    %v4364 = vld [vmem:[#allocation5] sm:$0xff]
    %v4365 = vld [vmem:[#allocation5 + $0x8] sm:$0xff]
    %v4366 = vld [vmem:[#allocation5 + $0x10] sm:$0xff]
    %v4367 = vld [vmem:[#allocation5 + $0x18] sm:$0xff]
    %v4368 = vld [vmem:[#allocation5 + $0x20] sm:$0xff]
    %v4369 = vld [vmem:[#allocation5 + $0x28] sm:$0xff]
    %v4370 = vld [vmem:[#allocation5 + $0x30] sm:$0xff]
    %v4371 = vld [vmem:[#allocation5 + $0x38] sm:$0xff]
    %v4372 = vld [vmem:[#allocation5 + $0x40] sm:$0xff]
    %v4373 = vld [vmem:[#allocation5 + $0x48] sm:$0xff]
    %v4374 = vld [vmem:[#allocation5 + $0x50] sm:$0xff]
    %v4375 = vld [vmem:[#allocation5 + $0x58] sm:$0xff]
    %v4376 = vld [vmem:[#allocation5 + $0x60] sm:$0xff]
    %v4377 = vld [vmem:[#allocation5 + $0x68] sm:$0xff]
    %v4378 = vld [vmem:[#allocation5 + $0x70] sm:$0xff]
    %v4379 = vld [vmem:[#allocation5 + $0x78] sm:$0xff]
    %v4380 = vld [vmem:[#allocation5 + $0x80] sm:$0xff]
    %v4381 = vld [vmem:[#allocation5 + $0x88] sm:$0xff]
    %v4382 = vld [vmem:[#allocation5 + $0x90] sm:$0xff]
    %v4383 = vld [vmem:[#allocation5 + $0x98] sm:$0xff]
    %v4384 = vld [vmem:[#allocation5 + $0xa0] sm:$0xff]
    %v4385 = vld [vmem:[#allocation5 + $0xa8] sm:$0xff]
    %v4386 = vld [vmem:[#allocation5 + $0xb0] sm:$0xff]
    %v4387 = vld [vmem:[#allocation5 + $0xb8] sm:$0xff]
    %v4388 = vld [vmem:[#allocation5 + $0xc0] sm:$0xff]
    %v4389 = vld [vmem:[#allocation5 + $0xc8] sm:$0xff]
    %v4390 = vld [vmem:[#allocation5 + $0xd0] sm:$0xff]
    %v4391 = vld [vmem:[#allocation5 + $0xd8] sm:$0xff]
    %v4392 = vld [vmem:[#allocation5 + $0xe0] sm:$0xff]
    %v4393 = vld [vmem:[#allocation5 + $0xe8] sm:$0xff]
    %v4394 = vld [vmem:[#allocation5 + $0xf0] sm:$0xff]
    %v4395 = vld [vmem:[#allocation5 + $0xf8] sm:$0xff]
    %s4396 = scalar_lea.vmem [#allocation2], 32
    %v4397 = vld [vmem:[%s4396] sm:$0xff]
    %v4430 = vunpack.c.l.b16 %v4364
    %v4431 = vunpack.c.h.b16 %v4364
    %v4432 = vunpack.c.l.b16 %v4365
    %v4433 = vunpack.c.h.b16 %v4365
    %v4434 = vunpack.c.l.b16 %v4366
    %v4435 = vunpack.c.h.b16 %v4366
    %v4436 = vunpack.c.l.b16 %v4367
    %v4437 = vunpack.c.h.b16 %v4367
    %v4438 = vunpack.c.l.b16 %v4368
    %v4439 = vunpack.c.h.b16 %v4368
    %v4440 = vunpack.c.l.b16 %v4369
    %v4441 = vunpack.c.h.b16 %v4369
    %v4442 = vunpack.c.l.b16 %v4370
    %v4443 = vunpack.c.h.b16 %v4370
    %v4444 = vunpack.c.l.b16 %v4371
    %v4445 = vunpack.c.h.b16 %v4371
    %v4446 = vunpack.c.l.b16 %v4372
    %v4447 = vunpack.c.h.b16 %v4372
    %v4448 = vunpack.c.l.b16 %v4373
    %v4449 = vunpack.c.h.b16 %v4373
    %v4450 = vunpack.c.l.b16 %v4374
    %v4451 = vunpack.c.h.b16 %v4374
    %v4452 = vunpack.c.l.b16 %v4375
    %v4453 = vunpack.c.h.b16 %v4375
    %v4454 = vunpack.c.l.b16 %v4376
    %v4455 = vunpack.c.h.b16 %v4376
    %v4456 = vunpack.c.l.b16 %v4377
    %v4457 = vunpack.c.h.b16 %v4377
    %v4458 = vunpack.c.l.b16 %v4378
    %v4459 = vunpack.c.h.b16 %v4378
    %v4460 = vunpack.c.l.b16 %v4379
    %v4461 = vunpack.c.h.b16 %v4379
    %v4462 = vunpack.c.l.b16 %v4380
    %v4463 = vunpack.c.h.b16 %v4380
    %v4464 = vunpack.c.l.b16 %v4381
    %v4465 = vunpack.c.h.b16 %v4381
    %v4466 = vunpack.c.l.b16 %v4382
    %v4467 = vunpack.c.h.b16 %v4382
    %v4468 = vunpack.c.l.b16 %v4383
    %v4469 = vunpack.c.h.b16 %v4383
    %v4470 = vunpack.c.l.b16 %v4384
    %v4471 = vunpack.c.h.b16 %v4384
    %v4472 = vunpack.c.l.b16 %v4385
    %v4473 = vunpack.c.h.b16 %v4385
    %v4474 = vunpack.c.l.b16 %v4386
    %v4475 = vunpack.c.h.b16 %v4386
    %v4476 = vunpack.c.l.b16 %v4387
    %v4477 = vunpack.c.h.b16 %v4387
    %v4478 = vunpack.c.l.b16 %v4388
    %v4479 = vunpack.c.h.b16 %v4388
    %v4480 = vunpack.c.l.b16 %v4389
    %v4481 = vunpack.c.h.b16 %v4389
    %v4482 = vunpack.c.l.b16 %v4390
    %v4483 = vunpack.c.h.b16 %v4390
    %v4484 = vunpack.c.l.b16 %v4391
    %v4485 = vunpack.c.h.b16 %v4391
    %v4486 = vunpack.c.l.b16 %v4392
    %v4487 = vunpack.c.h.b16 %v4392
    %v4488 = vunpack.c.l.b16 %v4393
    %v4489 = vunpack.c.h.b16 %v4393
    %v4490 = vunpack.c.l.b16 %v4394
    %v4491 = vunpack.c.h.b16 %v4394
    %v4492 = vunpack.c.l.b16 %v4395
    %v4493 = vunpack.c.h.b16 %v4395
    %v4494 = vpack.c.b16 %v4434, %v4430
    %v4495 = vpack.c.b16 %v4435, %v4431
    %v4496 = vpack.c.b16 %v4436, %v4432
    %v4497 = vpack.c.b16 %v4437, %v4433
    %v4498 = vpack.c.b16 %v4442, %v4438
    %v4499 = vpack.c.b16 %v4443, %v4439
    %v4500 = vpack.c.b16 %v4444, %v4440
    %v4501 = vpack.c.b16 %v4445, %v4441
    %v4502 = vpack.c.b16 %v4450, %v4446
    %v4503 = vpack.c.b16 %v4451, %v4447
    %v4504 = vpack.c.b16 %v4452, %v4448
    %v4505 = vpack.c.b16 %v4453, %v4449
    %v4506 = vpack.c.b16 %v4458, %v4454
    %v4507 = vpack.c.b16 %v4459, %v4455
    %v4508 = vpack.c.b16 %v4460, %v4456
    %v4509 = vpack.c.b16 %v4461, %v4457
    %v4510 = vpack.c.b16 %v4466, %v4462
    %v4511 = vpack.c.b16 %v4467, %v4463
    %v4512 = vpack.c.b16 %v4468, %v4464
    %v4513 = vpack.c.b16 %v4469, %v4465
    %v4514 = vpack.c.b16 %v4474, %v4470
    %v4515 = vpack.c.b16 %v4475, %v4471
    %v4516 = vpack.c.b16 %v4476, %v4472
    %v4517 = vpack.c.b16 %v4477, %v4473
    %v4518 = vpack.c.b16 %v4482, %v4478
    %v4519 = vpack.c.b16 %v4483, %v4479
    %v4520 = vpack.c.b16 %v4484, %v4480
    %v4521 = vpack.c.b16 %v4485, %v4481
    %v4522 = vpack.c.b16 %v4490, %v4486
    %v4523 = vpack.c.b16 %v4491, %v4487
    %v4524 = vpack.c.b16 %v4492, %v4488
    %v4525 = vpack.c.b16 %v4493, %v4489
    %v4559 = vcombine.high %v4397, %v4397
    %v4561 = vunpack.c.l.s4 1983009808
    %v4562 = vunpack.c.0.s8 %v4561
    %v4563 = vlaneseq
    %v4564 = vshrl.u32 %v4563, 7
    %v4565 = vsub.s32 %v4562, %v4564
    %v4566 = vrot.slane %v4397, %v4565
    %v4568 = vunpack.c.l.s4 1983009808
    %v4569 = vunpack.c.0.s8 %v4568
    %v4570 = vlaneseq
    %v4571 = vshrl.u32 %v4570, 7
    %v4572 = vsub.s32 %v4569, %v4571
    %v4573 = vrot.slane %v4559, %v4572
    %v4574 = vcombine.high %v4566, %v4566
    %v4575 = vcombine.high %v4573, %v4573
    %4580 = vmatprep.subr.bf16.mxu0 %v4495
    %4581 = vmatpush1.bf16.msra.mxu0 %v4494
    %4582 = vmatprep.subr.bf16.mxu0 %v4499
    %4583 = vmatpush1.bf16.msra.mxu0 %v4498
    %4584 = vmatprep.subr.bf16.mxu0 %v4503
    %4585 = vmatpush1.bf16.msra.mxu0 %v4502
    %4586 = vmatprep.subr.bf16.mxu0 %v4507
    %4587 = vmatpush1.bf16.msra.mxu0 %v4506
    %4588 = vmatprep.subr.bf16.mxu0 %v4511
    %4589 = vmatpush1.bf16.msra.mxu0 %v4510
    %4590 = vmatprep.subr.bf16.mxu0 %v4515
    %4591 = vmatpush1.bf16.msra.mxu0 %v4514
    %4592 = vmatprep.subr.bf16.mxu0 %v4519
    %4593 = vmatpush1.bf16.msra.mxu0 %v4518
    %4594 = vmatprep.subr.bf16.mxu0 %v4523
    %4595 = vmatpush1.bf16.msra.mxu0 %v4522
    %4596 = vmatprep.subr.bf16.mxu0 0
    %4597 = vmatpush1.bf16.msra.mxu0 0
    %4598 = vmatprep.subr.bf16.mxu0 0
    %4599 = vmatpush1.bf16.msra.mxu0 0
    %4600 = vmatprep.subr.bf16.mxu0 0
    %4601 = vmatpush1.bf16.msra.mxu0 0
    %4602 = vmatprep.subr.bf16.mxu0 0
    %4603 = vmatpush1.bf16.msra.mxu0 0
    %4604 = vmatprep.subr.bf16.mxu0 0
    %4605 = vmatpush1.bf16.msra.mxu0 0
    %4606 = vmatprep.subr.bf16.mxu0 0
    %4607 = vmatpush1.bf16.msra.mxu0 0
    %4608 = vmatprep.subr.bf16.mxu0 0
    %4609 = vmatpush1.bf16.msra.mxu0 0
    %4610 = vmatprep.subr.bf16.mxu0 0
    %4611 = vmatpush1.bf16.msra.mxu0 0
    %4612 = vmatprep.mubr.bf16.mxu0 0
    %4613 = vmatmul.mubr.bf16.gmra.mrb[0].mxu0 %v3768
    %v4614 = vpop.f32.mrb[0].mxu0
    %v4615 = vadd.f32 %v4566, %v4614
    %v4616 = vpop.f32.mrb[0].mxu0
    %v4617 = vadd.f32 %v4574, %v4616
    %v4618 = vpop.f32.mrb[0].mxu0
    %v4619 = vpop.f32.mrb[0].mxu0
    %4620 = vdwg.mxu0
    %4621 = vmatprep.subr.bf16.mxu0 %v4497
    %4622 = vmatpush1.bf16.msra.mxu0 %v4496
    %4623 = vmatprep.subr.bf16.mxu0 %v4501
    %4624 = vmatpush1.bf16.msra.mxu0 %v4500
    %4625 = vmatprep.subr.bf16.mxu0 %v4505
    %4626 = vmatpush1.bf16.msra.mxu0 %v4504
    %4627 = vmatprep.subr.bf16.mxu0 %v4509
    %4628 = vmatpush1.bf16.msra.mxu0 %v4508
    %4629 = vmatprep.subr.bf16.mxu0 %v4513
    %4630 = vmatpush1.bf16.msra.mxu0 %v4512
    %4631 = vmatprep.subr.bf16.mxu0 %v4517
    %4632 = vmatpush1.bf16.msra.mxu0 %v4516
    %4633 = vmatprep.subr.bf16.mxu0 %v4521
    %4634 = vmatpush1.bf16.msra.mxu0 %v4520
    %4635 = vmatprep.subr.bf16.mxu0 %v4525
    %4636 = vmatpush1.bf16.msra.mxu0 %v4524
    %4637 = vmatprep.subr.bf16.mxu0 0
    %4638 = vmatpush1.bf16.msra.mxu0 0
    %4639 = vmatprep.subr.bf16.mxu0 0
    %4640 = vmatpush1.bf16.msra.mxu0 0
    %4641 = vmatprep.subr.bf16.mxu0 0
    %4642 = vmatpush1.bf16.msra.mxu0 0
    %4643 = vmatprep.subr.bf16.mxu0 0
    %4644 = vmatpush1.bf16.msra.mxu0 0
    %4645 = vmatprep.subr.bf16.mxu0 0
    %4646 = vmatpush1.bf16.msra.mxu0 0
    %4647 = vmatprep.subr.bf16.mxu0 0
    %4648 = vmatpush1.bf16.msra.mxu0 0
    %4649 = vmatprep.subr.bf16.mxu0 0
    %4650 = vmatpush1.bf16.msra.mxu0 0
    %4651 = vmatprep.subr.bf16.mxu0 0
    %4652 = vmatpush1.bf16.msra.mxu0 0
    %4653 = vmatprep.mubr.bf16.mxu0 0
    %4654 = vmatmul.mubr.bf16.gmra.mrb[0].mxu0 %v3768
    %v4655 = vpop.f32.mrb[0].mxu0
    %v4656 = vadd.f32 %v4573, %v4655
    %v4657 = vpop.f32.mrb[0].mxu0
    %v4658 = vadd.f32 %v4575, %v4657
    %v4659 = vpop.f32.mrb[0].mxu0
    %v4660 = vpop.f32.mrb[0].mxu0
    %4661 = vdwg.mxu0
    %v4662 = vmul.f32 %v4615, 0.5
    %v4663 = vtanh.pop %v4662
    %v4664 = vadd.f32 %v4663, 1.0
    %v4665 = vmul.f32 %v4664, 0.5
    %v4666 = vmul.f32 %v4617, 0.5
    %v4667 = vtanh.pop %v4666
    %v4668 = vadd.f32 %v4667, 1.0
    %v4669 = vmul.f32 %v4668, 0.5
    %v4670 = vtanh.pop %v4656
    %v4671 = vmul.f32 %v4658, 0.5
    %v4672 = vtanh.pop %v4671
    %v4673 = vadd.f32 %v4672, 1.0
    %v4674 = vmul.f32 %v4673, 0.5
    %v4675 = vmul.f32 %v4669, %v3765
    %v4676 = vmul.f32 %v4665, %v4670
    %v4677 = vadd.f32 %v4675, %v4676
    %v4678 = vtanh.pop %v4677
    %v4679 = vmul.f32 %v4674, %v4678
    %v4680 = vpack.c.bf16 %v4679, %v4679
    %v4681 = vld [vmem:[#allocation8] sm:$0xff]
    %v4682 = vld [vmem:[#allocation8 + $0x8] sm:$0xff]
    %v4683 = vld [vmem:[#allocation8 + $0x10] sm:$0xff]
    %v4684 = vld [vmem:[#allocation8 + $0x18] sm:$0xff]
    %v4685 = vld [vmem:[#allocation8 + $0x20] sm:$0xff]
    %v4686 = vld [vmem:[#allocation8 + $0x28] sm:$0xff]
    %v4687 = vld [vmem:[#allocation8 + $0x30] sm:$0xff]
    %v4688 = vld [vmem:[#allocation8 + $0x38] sm:$0xff]
    %v4689 = vld [vmem:[#allocation8 + $0x40] sm:$0xff]
    %v4690 = vld [vmem:[#allocation8 + $0x48] sm:$0xff]
    %v4691 = vld [vmem:[#allocation8 + $0x50] sm:$0xff]
    %v4692 = vld [vmem:[#allocation8 + $0x58] sm:$0xff]
    %v4693 = vld [vmem:[#allocation8 + $0x60] sm:$0xff]
    %v4694 = vld [vmem:[#allocation8 + $0x68] sm:$0xff]
    %v4695 = vld [vmem:[#allocation8 + $0x70] sm:$0xff]
    %v4696 = vld [vmem:[#allocation8 + $0x78] sm:$0xff]
    %v4697 = vld [vmem:[#allocation8 + $0x80] sm:$0xff]
    %v4698 = vld [vmem:[#allocation8 + $0x88] sm:$0xff]
    %v4699 = vld [vmem:[#allocation8 + $0x90] sm:$0xff]
    %v4700 = vld [vmem:[#allocation8 + $0x98] sm:$0xff]
    %v4701 = vld [vmem:[#allocation8 + $0xa0] sm:$0xff]
    %v4702 = vld [vmem:[#allocation8 + $0xa8] sm:$0xff]
    %v4703 = vld [vmem:[#allocation8 + $0xb0] sm:$0xff]
    %v4704 = vld [vmem:[#allocation8 + $0xb8] sm:$0xff]
    %v4705 = vld [vmem:[#allocation8 + $0xc0] sm:$0xff]
    %v4706 = vld [vmem:[#allocation8 + $0xc8] sm:$0xff]
    %v4707 = vld [vmem:[#allocation8 + $0xd0] sm:$0xff]
    %v4708 = vld [vmem:[#allocation8 + $0xd8] sm:$0xff]
    %v4709 = vld [vmem:[#allocation8 + $0xe0] sm:$0xff]
    %v4710 = vld [vmem:[#allocation8 + $0xe8] sm:$0xff]
    %v4711 = vld [vmem:[#allocation8 + $0xf0] sm:$0xff]
    %v4712 = vld [vmem:[#allocation8 + $0xf8] sm:$0xff]
    %v4745 = vunpack.c.l.b16 %v4681
    %v4746 = vunpack.c.h.b16 %v4681
    %v4747 = vunpack.c.l.b16 %v4682
    %v4748 = vunpack.c.h.b16 %v4682
    %v4749 = vunpack.c.l.b16 %v4683
    %v4750 = vunpack.c.h.b16 %v4683
    %v4751 = vunpack.c.l.b16 %v4684
    %v4752 = vunpack.c.h.b16 %v4684
    %v4753 = vunpack.c.l.b16 %v4685
    %v4754 = vunpack.c.h.b16 %v4685
    %v4755 = vunpack.c.l.b16 %v4686
    %v4756 = vunpack.c.h.b16 %v4686
    %v4757 = vunpack.c.l.b16 %v4687
    %v4758 = vunpack.c.h.b16 %v4687
    %v4759 = vunpack.c.l.b16 %v4688
    %v4760 = vunpack.c.h.b16 %v4688
    %v4761 = vunpack.c.l.b16 %v4689
    %v4762 = vunpack.c.h.b16 %v4689
    %v4763 = vunpack.c.l.b16 %v4690
    %v4764 = vunpack.c.h.b16 %v4690
    %v4765 = vunpack.c.l.b16 %v4691
    %v4766 = vunpack.c.h.b16 %v4691
    %v4767 = vunpack.c.l.b16 %v4692
    %v4768 = vunpack.c.h.b16 %v4692
    %v4769 = vunpack.c.l.b16 %v4693
    %v4770 = vunpack.c.h.b16 %v4693
    %v4771 = vunpack.c.l.b16 %v4694
    %v4772 = vunpack.c.h.b16 %v4694
    %v4773 = vunpack.c.l.b16 %v4695
    %v4774 = vunpack.c.h.b16 %v4695
    %v4775 = vunpack.c.l.b16 %v4696
    %v4776 = vunpack.c.h.b16 %v4696
    %v4777 = vunpack.c.l.b16 %v4697
    %v4778 = vunpack.c.h.b16 %v4697
    %v4779 = vunpack.c.l.b16 %v4698
    %v4780 = vunpack.c.h.b16 %v4698
    %v4781 = vunpack.c.l.b16 %v4699
    %v4782 = vunpack.c.h.b16 %v4699
    %v4783 = vunpack.c.l.b16 %v4700
    %v4784 = vunpack.c.h.b16 %v4700
    %v4785 = vunpack.c.l.b16 %v4701
    %v4786 = vunpack.c.h.b16 %v4701
    %v4787 = vunpack.c.l.b16 %v4702
    %v4788 = vunpack.c.h.b16 %v4702
    %v4789 = vunpack.c.l.b16 %v4703
    %v4790 = vunpack.c.h.b16 %v4703
    %v4791 = vunpack.c.l.b16 %v4704
    %v4792 = vunpack.c.h.b16 %v4704
    %v4793 = vunpack.c.l.b16 %v4705
    %v4794 = vunpack.c.h.b16 %v4705
    %v4795 = vunpack.c.l.b16 %v4706
    %v4796 = vunpack.c.h.b16 %v4706
    %v4797 = vunpack.c.l.b16 %v4707
    %v4798 = vunpack.c.h.b16 %v4707
    %v4799 = vunpack.c.l.b16 %v4708
    %v4800 = vunpack.c.h.b16 %v4708
    %v4801 = vunpack.c.l.b16 %v4709
    %v4802 = vunpack.c.h.b16 %v4709
    %v4803 = vunpack.c.l.b16 %v4710
    %v4804 = vunpack.c.h.b16 %v4710
    %v4805 = vunpack.c.l.b16 %v4711
    %v4806 = vunpack.c.h.b16 %v4711
    %v4807 = vunpack.c.l.b16 %v4712
    %v4808 = vunpack.c.h.b16 %v4712
    %v4809 = vpack.c.b16 %v4749, %v4745
    %v4810 = vpack.c.b16 %v4750, %v4746
    %v4811 = vpack.c.b16 %v4751, %v4747
    %v4812 = vpack.c.b16 %v4752, %v4748
    %v4813 = vpack.c.b16 %v4757, %v4753
    %v4814 = vpack.c.b16 %v4758, %v4754
    %v4815 = vpack.c.b16 %v4759, %v4755
    %v4816 = vpack.c.b16 %v4760, %v4756
    %v4817 = vpack.c.b16 %v4765, %v4761
    %v4818 = vpack.c.b16 %v4766, %v4762
    %v4819 = vpack.c.b16 %v4767, %v4763
    %v4820 = vpack.c.b16 %v4768, %v4764
    %v4821 = vpack.c.b16 %v4773, %v4769
    %v4822 = vpack.c.b16 %v4774, %v4770
    %v4823 = vpack.c.b16 %v4775, %v4771
    %v4824 = vpack.c.b16 %v4776, %v4772
    %v4825 = vpack.c.b16 %v4781, %v4777
    %v4826 = vpack.c.b16 %v4782, %v4778
    %v4827 = vpack.c.b16 %v4783, %v4779
    %v4828 = vpack.c.b16 %v4784, %v4780
    %v4829 = vpack.c.b16 %v4789, %v4785
    %v4830 = vpack.c.b16 %v4790, %v4786
    %v4831 = vpack.c.b16 %v4791, %v4787
    %v4832 = vpack.c.b16 %v4792, %v4788
    %v4833 = vpack.c.b16 %v4797, %v4793
    %v4834 = vpack.c.b16 %v4798, %v4794
    %v4835 = vpack.c.b16 %v4799, %v4795
    %v4836 = vpack.c.b16 %v4800, %v4796
    %v4837 = vpack.c.b16 %v4805, %v4801
    %v4838 = vpack.c.b16 %v4806, %v4802
    %v4839 = vpack.c.b16 %v4807, %v4803
    %v4840 = vpack.c.b16 %v4808, %v4804
    %4873 = vmatprep.subr.bf16.mxu0 %v4810
    %4874 = vmatpush1.bf16.msra.mxu0 %v4809
    %4875 = vmatprep.subr.bf16.mxu0 %v4814
    %4876 = vmatpush1.bf16.msra.mxu0 %v4813
    %4877 = vmatprep.subr.bf16.mxu0 %v4818
    %4878 = vmatpush1.bf16.msra.mxu0 %v4817
    %4879 = vmatprep.subr.bf16.mxu0 %v4822
    %4880 = vmatpush1.bf16.msra.mxu0 %v4821
    %4881 = vmatprep.subr.bf16.mxu0 %v4826
    %4882 = vmatpush1.bf16.msra.mxu0 %v4825
    %4883 = vmatprep.subr.bf16.mxu0 %v4830
    %4884 = vmatpush1.bf16.msra.mxu0 %v4829
    %4885 = vmatprep.subr.bf16.mxu0 %v4834
    %4886 = vmatpush1.bf16.msra.mxu0 %v4833
    %4887 = vmatprep.subr.bf16.mxu0 %v4838
    %4888 = vmatpush1.bf16.msra.mxu0 %v4837
    %4889 = vmatprep.subr.bf16.mxu0 0
    %4890 = vmatpush1.bf16.msra.mxu0 0
    %4891 = vmatprep.subr.bf16.mxu0 0
    %4892 = vmatpush1.bf16.msra.mxu0 0
    %4893 = vmatprep.subr.bf16.mxu0 0
    %4894 = vmatpush1.bf16.msra.mxu0 0
    %4895 = vmatprep.subr.bf16.mxu0 0
    %4896 = vmatpush1.bf16.msra.mxu0 0
    %4897 = vmatprep.subr.bf16.mxu0 0
    %4898 = vmatpush1.bf16.msra.mxu0 0
    %4899 = vmatprep.subr.bf16.mxu0 0
    %4900 = vmatpush1.bf16.msra.mxu0 0
    %4901 = vmatprep.subr.bf16.mxu0 0
    %4902 = vmatpush1.bf16.msra.mxu0 0
    %4903 = vmatprep.subr.bf16.mxu0 0
    %4904 = vmatpush1.bf16.msra.mxu0 0
    %4905 = vmatprep.mubr.bf16.mxu0 0
    %4906 = vmatmul.mubr.bf16.gmra.mrb[0].mxu0 %v4680
    %v4907 = vpop.f32.mrb[0].mxu0
    %v4908 = vadd.f32 0.0, %v4907
    %v4909 = vpop.f32.mrb[0].mxu0
    %v4910 = vadd.f32 0.0, %v4909
    %v4911 = vpop.f32.mrb[0].mxu0
    %v4912 = vpop.f32.mrb[0].mxu0
    %4913 = vdwg.mxu0
    %4914 = vmatprep.subr.bf16.mxu0 %v4812
    %4915 = vmatpush1.bf16.msra.mxu0 %v4811
    %4916 = vmatprep.subr.bf16.mxu0 %v4816
    %4917 = vmatpush1.bf16.msra.mxu0 %v4815
    %4918 = vmatprep.subr.bf16.mxu0 %v4820
    %4919 = vmatpush1.bf16.msra.mxu0 %v4819
    %4920 = vmatprep.subr.bf16.mxu0 %v4824
    %4921 = vmatpush1.bf16.msra.mxu0 %v4823
    %4922 = vmatprep.subr.bf16.mxu0 %v4828
    %4923 = vmatpush1.bf16.msra.mxu0 %v4827
    %4924 = vmatprep.subr.bf16.mxu0 %v4832
    %4925 = vmatpush1.bf16.msra.mxu0 %v4831
    %4926 = vmatprep.subr.bf16.mxu0 %v4836
    %4927 = vmatpush1.bf16.msra.mxu0 %v4835
    %4928 = vmatprep.subr.bf16.mxu0 %v4840
    %4929 = vmatpush1.bf16.msra.mxu0 %v4839
    %4930 = vmatprep.subr.bf16.mxu0 0
    %4931 = vmatpush1.bf16.msra.mxu0 0
    %4932 = vmatprep.subr.bf16.mxu0 0
    %4933 = vmatpush1.bf16.msra.mxu0 0
    %4934 = vmatprep.subr.bf16.mxu0 0
    %4935 = vmatpush1.bf16.msra.mxu0 0
    %4936 = vmatprep.subr.bf16.mxu0 0
    %4937 = vmatpush1.bf16.msra.mxu0 0
    %4938 = vmatprep.subr.bf16.mxu0 0
    %4939 = vmatpush1.bf16.msra.mxu0 0
    %4940 = vmatprep.subr.bf16.mxu0 0
    %4941 = vmatpush1.bf16.msra.mxu0 0
    %4942 = vmatprep.subr.bf16.mxu0 0
    %4943 = vmatpush1.bf16.msra.mxu0 0
    %4944 = vmatprep.subr.bf16.mxu0 0
    %4945 = vmatpush1.bf16.msra.mxu0 0
    %4946 = vmatprep.mubr.bf16.mxu0 0
    %4947 = vmatmul.mubr.bf16.gmra.mrb[0].mxu0 %v4680
    %v4948 = vpop.f32.mrb[0].mxu0
    %v4949 = vadd.f32 0.0, %v4948
    %v4950 = vpop.f32.mrb[0].mxu0
    %v4951 = vadd.f32 0.0, %v4950
    %v4952 = vpop.f32.mrb[0].mxu0
    %v4953 = vpop.f32.mrb[0].mxu0
    %4954 = vdwg.mxu0
    %v4955 = vadd.f32 %v4317, %v4908
    %v4956 = vadd.f32 %v4319, %v4910
    %v4957 = vadd.f32 %v4358, %v4949
    %v4958 = vadd.f32 %v4360, %v4951
    %v4959 = vmul.f32 %v4955, 0.5
    %v4960 = vtanh.pop %v4959
    %v4961 = vadd.f32 %v4960, 1.0
    %v4962 = vmul.f32 %v4961, 0.5
    %v4963 = vmul.f32 %v4956, 0.5
    %v4964 = vtanh.pop %v4963
    %v4965 = vadd.f32 %v4964, 1.0
    %v4966 = vmul.f32 %v4965, 0.5
    %v4967 = vtanh.pop %v4957
    %v4968 = vmul.f32 %v4958, 0.5
    %v4969 = vtanh.pop %v4968
    %v4970 = vadd.f32 %v4969, 1.0
    %v4971 = vmul.f32 %v4970, 0.5
    %v4972 = vmul.f32 %v4966, %v4062
    %v4973 = vmul.f32 %v4962, %v4967
    %v4974 = vadd.f32 %v4972, %v4973
    %v4975 = vtanh.pop %v4974
    %v4976 = vmul.f32 %v4971, %v4975
    %s4977 = scalar_lea.vmem [#allocation3], 8
    %4978 = vst [vmem:[%s4977] sm:$0x3] %v4976
    %v4979 = vpack.c.bf16 %v4976, %v4976
    %v4980 = vld [vmem:[#allocation10] sm:$0xff]
    %v4981 = vld [vmem:[#allocation10 + $0x8] sm:$0xff]
    %v4982 = vld [vmem:[#allocation10 + $0x10] sm:$0xff]
    %v4983 = vld [vmem:[#allocation10 + $0x18] sm:$0xff]
    %v4984 = vld [vmem:[#allocation10 + $0x20] sm:$0xff]
    %v4985 = vld [vmem:[#allocation10 + $0x28] sm:$0xff]
    %v4986 = vld [vmem:[#allocation10 + $0x30] sm:$0xff]
    %v4987 = vld [vmem:[#allocation10 + $0x38] sm:$0xff]
    %v4988 = vld [vmem:[#allocation10 + $0x40] sm:$0xff]
    %v4989 = vld [vmem:[#allocation10 + $0x48] sm:$0xff]
    %v4990 = vld [vmem:[#allocation10 + $0x50] sm:$0xff]
    %v4991 = vld [vmem:[#allocation10 + $0x58] sm:$0xff]
    %v4992 = vld [vmem:[#allocation10 + $0x60] sm:$0xff]
    %v4993 = vld [vmem:[#allocation10 + $0x68] sm:$0xff]
    %v4994 = vld [vmem:[#allocation10 + $0x70] sm:$0xff]
    %v4995 = vld [vmem:[#allocation10 + $0x78] sm:$0xff]
    %v4996 = vld [vmem:[#allocation10 + $0x80] sm:$0xff]
    %v4997 = vld [vmem:[#allocation10 + $0x88] sm:$0xff]
    %v4998 = vld [vmem:[#allocation10 + $0x90] sm:$0xff]
    %v4999 = vld [vmem:[#allocation10 + $0x98] sm:$0xff]
    %v5000 = vld [vmem:[#allocation10 + $0xa0] sm:$0xff]
    %v5001 = vld [vmem:[#allocation10 + $0xa8] sm:$0xff]
    %v5002 = vld [vmem:[#allocation10 + $0xb0] sm:$0xff]
    %v5003 = vld [vmem:[#allocation10 + $0xb8] sm:$0xff]
    %v5004 = vld [vmem:[#allocation10 + $0xc0] sm:$0xff]
    %v5005 = vld [vmem:[#allocation10 + $0xc8] sm:$0xff]
    %v5006 = vld [vmem:[#allocation10 + $0xd0] sm:$0xff]
    %v5007 = vld [vmem:[#allocation10 + $0xd8] sm:$0xff]
    %v5008 = vld [vmem:[#allocation10 + $0xe0] sm:$0xff]
    %v5009 = vld [vmem:[#allocation10 + $0xe8] sm:$0xff]
    %v5010 = vld [vmem:[#allocation10 + $0xf0] sm:$0xff]
    %v5011 = vld [vmem:[#allocation10 + $0xf8] sm:$0xff]
    %v5012 = vld [vmem:[%s7] sm:$0xf]
    %v5014 = vlaneseq
    %v5015 = vshrl.u32 %v5014, 7
    %v5016 = vsub.s32 0, %v5015
    %v5017 = vrot.slane %v5012, %v5016
    %v5018 = vlaneseq
    %v5019 = vshrl.u32 %v5018, 7
    %v5020 = vsub.s32 1, %v5019
    %v5021 = vrot.slane %v5012, %v5020
    %v5022 = vlaneseq
    %v5023 = vshrl.u32 %v5022, 7
    %v5024 = vsub.s32 2, %v5023
    %v5025 = vrot.slane %v5012, %v5024
    %v5026 = vlaneseq
    %v5027 = vshrl.u32 %v5026, 7
    %v5028 = vsub.s32 3, %v5027
    %v5029 = vrot.slane %v5012, %v5028
    %v5066 = vunpack.c.l.b16 %v4980
    %v5067 = vunpack.c.h.b16 %v4980
    %v5068 = vunpack.c.l.b16 %v4981
    %v5069 = vunpack.c.h.b16 %v4981
    %v5070 = vunpack.c.l.b16 %v4982
    %v5071 = vunpack.c.h.b16 %v4982
    %v5072 = vunpack.c.l.b16 %v4983
    %v5073 = vunpack.c.h.b16 %v4983
    %v5074 = vunpack.c.l.b16 %v4984
    %v5075 = vunpack.c.h.b16 %v4984
    %v5076 = vunpack.c.l.b16 %v4985
    %v5077 = vunpack.c.h.b16 %v4985
    %v5078 = vunpack.c.l.b16 %v4986
    %v5079 = vunpack.c.h.b16 %v4986
    %v5080 = vunpack.c.l.b16 %v4987
    %v5081 = vunpack.c.h.b16 %v4987
    %v5082 = vunpack.c.l.b16 %v4988
    %v5083 = vunpack.c.h.b16 %v4988
    %v5084 = vunpack.c.l.b16 %v4989
    %v5085 = vunpack.c.h.b16 %v4989
    %v5086 = vunpack.c.l.b16 %v4990
    %v5087 = vunpack.c.h.b16 %v4990
    %v5088 = vunpack.c.l.b16 %v4991
    %v5089 = vunpack.c.h.b16 %v4991
    %v5090 = vunpack.c.l.b16 %v4992
    %v5091 = vunpack.c.h.b16 %v4992
    %v5092 = vunpack.c.l.b16 %v4993
    %v5093 = vunpack.c.h.b16 %v4993
    %v5094 = vunpack.c.l.b16 %v4994
    %v5095 = vunpack.c.h.b16 %v4994
    %v5096 = vunpack.c.l.b16 %v4995
    %v5097 = vunpack.c.h.b16 %v4995
    %v5098 = vunpack.c.l.b16 %v4996
    %v5099 = vunpack.c.h.b16 %v4996
    %v5100 = vunpack.c.l.b16 %v4997
    %v5101 = vunpack.c.h.b16 %v4997
    %v5102 = vunpack.c.l.b16 %v4998
    %v5103 = vunpack.c.h.b16 %v4998
    %v5104 = vunpack.c.l.b16 %v4999
    %v5105 = vunpack.c.h.b16 %v4999
    %v5106 = vunpack.c.l.b16 %v5000
    %v5107 = vunpack.c.h.b16 %v5000
    %v5108 = vunpack.c.l.b16 %v5001
    %v5109 = vunpack.c.h.b16 %v5001
    %v5110 = vunpack.c.l.b16 %v5002
    %v5111 = vunpack.c.h.b16 %v5002
    %v5112 = vunpack.c.l.b16 %v5003
    %v5113 = vunpack.c.h.b16 %v5003
    %v5114 = vunpack.c.l.b16 %v5004
    %v5115 = vunpack.c.h.b16 %v5004
    %v5116 = vunpack.c.l.b16 %v5005
    %v5117 = vunpack.c.h.b16 %v5005
    %v5118 = vunpack.c.l.b16 %v5006
    %v5119 = vunpack.c.h.b16 %v5006
    %v5120 = vunpack.c.l.b16 %v5007
    %v5121 = vunpack.c.h.b16 %v5007
    %v5122 = vunpack.c.l.b16 %v5008
    %v5123 = vunpack.c.h.b16 %v5008
    %v5124 = vunpack.c.l.b16 %v5009
    %v5125 = vunpack.c.h.b16 %v5009
    %v5126 = vunpack.c.l.b16 %v5010
    %v5127 = vunpack.c.h.b16 %v5010
    %v5128 = vunpack.c.l.b16 %v5011
    %v5129 = vunpack.c.h.b16 %v5011
    %v5130 = vpack.c.b16 %v5070, %v5066
    %v5131 = vpack.c.b16 %v5071, %v5067
    %v5132 = vpack.c.b16 %v5072, %v5068
    %v5133 = vpack.c.b16 %v5073, %v5069
    %v5134 = vpack.c.b16 %v5078, %v5074
    %v5135 = vpack.c.b16 %v5079, %v5075
    %v5136 = vpack.c.b16 %v5080, %v5076
    %v5137 = vpack.c.b16 %v5081, %v5077
    %v5138 = vpack.c.b16 %v5086, %v5082
    %v5139 = vpack.c.b16 %v5087, %v5083
    %v5140 = vpack.c.b16 %v5088, %v5084
    %v5141 = vpack.c.b16 %v5089, %v5085
    %v5142 = vpack.c.b16 %v5094, %v5090
    %v5143 = vpack.c.b16 %v5095, %v5091
    %v5144 = vpack.c.b16 %v5096, %v5092
    %v5145 = vpack.c.b16 %v5097, %v5093
    %v5146 = vpack.c.b16 %v5102, %v5098
    %v5147 = vpack.c.b16 %v5103, %v5099
    %v5148 = vpack.c.b16 %v5104, %v5100
    %v5149 = vpack.c.b16 %v5105, %v5101
    %v5150 = vpack.c.b16 %v5110, %v5106
    %v5151 = vpack.c.b16 %v5111, %v5107
    %v5152 = vpack.c.b16 %v5112, %v5108
    %v5153 = vpack.c.b16 %v5113, %v5109
    %v5154 = vpack.c.b16 %v5118, %v5114
    %v5155 = vpack.c.b16 %v5119, %v5115
    %v5156 = vpack.c.b16 %v5120, %v5116
    %v5157 = vpack.c.b16 %v5121, %v5117
    %v5158 = vpack.c.b16 %v5126, %v5122
    %v5159 = vpack.c.b16 %v5127, %v5123
    %v5160 = vpack.c.b16 %v5128, %v5124
    %v5161 = vpack.c.b16 %v5129, %v5125
    %5194 = vmatprep.subr.bf16.mxu0 %v5131
    %5195 = vmatpush1.bf16.msra.mxu0 %v5130
    %5196 = vmatprep.subr.bf16.mxu0 %v5135
    %5197 = vmatpush1.bf16.msra.mxu0 %v5134
    %5198 = vmatprep.subr.bf16.mxu0 %v5139
    %5199 = vmatpush1.bf16.msra.mxu0 %v5138
    %5200 = vmatprep.subr.bf16.mxu0 %v5143
    %5201 = vmatpush1.bf16.msra.mxu0 %v5142
    %5202 = vmatprep.subr.bf16.mxu0 %v5147
    %5203 = vmatpush1.bf16.msra.mxu0 %v5146
    %5204 = vmatprep.subr.bf16.mxu0 %v5151
    %5205 = vmatpush1.bf16.msra.mxu0 %v5150
    %5206 = vmatprep.subr.bf16.mxu0 %v5155
    %5207 = vmatpush1.bf16.msra.mxu0 %v5154
    %5208 = vmatprep.subr.bf16.mxu0 %v5159
    %5209 = vmatpush1.bf16.msra.mxu0 %v5158
    %5210 = vmatprep.subr.bf16.mxu0 0
    %5211 = vmatpush1.bf16.msra.mxu0 0
    %5212 = vmatprep.subr.bf16.mxu0 0
    %5213 = vmatpush1.bf16.msra.mxu0 0
    %5214 = vmatprep.subr.bf16.mxu0 0
    %5215 = vmatpush1.bf16.msra.mxu0 0
    %5216 = vmatprep.subr.bf16.mxu0 0
    %5217 = vmatpush1.bf16.msra.mxu0 0
    %5218 = vmatprep.subr.bf16.mxu0 0
    %5219 = vmatpush1.bf16.msra.mxu0 0
    %5220 = vmatprep.subr.bf16.mxu0 0
    %5221 = vmatpush1.bf16.msra.mxu0 0
    %5222 = vmatprep.subr.bf16.mxu0 0
    %5223 = vmatpush1.bf16.msra.mxu0 0
    %5224 = vmatprep.subr.bf16.mxu0 0
    %5225 = vmatpush1.bf16.msra.mxu0 0
    %5226 = vmatprep.mubr.bf16.mxu0 0
    %5227 = vmatmul.mubr.bf16.gmra.mrb[0].mxu0 %v4979
    %v5228 = vpop.f32.mrb[0].mxu0
    %v5229 = vadd.f32 %v5017, %v5228
    %v5230 = vpop.f32.mrb[0].mxu0
    %v5231 = vadd.f32 %v5021, %v5230
    %v5232 = vpop.f32.mrb[0].mxu0
    %v5233 = vpop.f32.mrb[0].mxu0
    %5234 = vdwg.mxu0
    %5235 = vmatprep.subr.bf16.mxu0 %v5133
    %5236 = vmatpush1.bf16.msra.mxu0 %v5132
    %5237 = vmatprep.subr.bf16.mxu0 %v5137
    %5238 = vmatpush1.bf16.msra.mxu0 %v5136
    %5239 = vmatprep.subr.bf16.mxu0 %v5141
    %5240 = vmatpush1.bf16.msra.mxu0 %v5140
    %5241 = vmatprep.subr.bf16.mxu0 %v5145
    %5242 = vmatpush1.bf16.msra.mxu0 %v5144
    %5243 = vmatprep.subr.bf16.mxu0 %v5149
    %5244 = vmatpush1.bf16.msra.mxu0 %v5148
    %5245 = vmatprep.subr.bf16.mxu0 %v5153
    %5246 = vmatpush1.bf16.msra.mxu0 %v5152
    %5247 = vmatprep.subr.bf16.mxu0 %v5157
    %5248 = vmatpush1.bf16.msra.mxu0 %v5156
    %5249 = vmatprep.subr.bf16.mxu0 %v5161
    %5250 = vmatpush1.bf16.msra.mxu0 %v5160
    %5251 = vmatprep.subr.bf16.mxu0 0
    %5252 = vmatpush1.bf16.msra.mxu0 0
    %5253 = vmatprep.subr.bf16.mxu0 0
    %5254 = vmatpush1.bf16.msra.mxu0 0
    %5255 = vmatprep.subr.bf16.mxu0 0
    %5256 = vmatpush1.bf16.msra.mxu0 0
    %5257 = vmatprep.subr.bf16.mxu0 0
    %5258 = vmatpush1.bf16.msra.mxu0 0
    %5259 = vmatprep.subr.bf16.mxu0 0
    %5260 = vmatpush1.bf16.msra.mxu0 0
    %5261 = vmatprep.subr.bf16.mxu0 0
    %5262 = vmatpush1.bf16.msra.mxu0 0
    %5263 = vmatprep.subr.bf16.mxu0 0
    %5264 = vmatpush1.bf16.msra.mxu0 0
    %5265 = vmatprep.subr.bf16.mxu0 0
    %5266 = vmatpush1.bf16.msra.mxu0 0
    %5267 = vmatprep.mubr.bf16.mxu0 0
    %5268 = vmatmul.mubr.bf16.gmra.mrb[0].mxu0 %v4979
    %v5269 = vpop.f32.mrb[0].mxu0
    %v5270 = vadd.f32 %v5025, %v5269
    %v5271 = vpop.f32.mrb[0].mxu0
    %v5272 = vadd.f32 %v5029, %v5271
    %v5273 = vpop.f32.mrb[0].mxu0
    %v5274 = vpop.f32.mrb[0].mxu0
    %5275 = vdwg.mxu0
    %v5276 = vld [vmem:[#allocation5] sm:$0xff]
    %v5277 = vld [vmem:[#allocation5 + $0x8] sm:$0xff]
    %v5278 = vld [vmem:[#allocation5 + $0x10] sm:$0xff]
    %v5279 = vld [vmem:[#allocation5 + $0x18] sm:$0xff]
    %v5280 = vld [vmem:[#allocation5 + $0x20] sm:$0xff]
    %v5281 = vld [vmem:[#allocation5 + $0x28] sm:$0xff]
    %v5282 = vld [vmem:[#allocation5 + $0x30] sm:$0xff]
    %v5283 = vld [vmem:[#allocation5 + $0x38] sm:$0xff]
    %v5284 = vld [vmem:[#allocation5 + $0x40] sm:$0xff]
    %v5285 = vld [vmem:[#allocation5 + $0x48] sm:$0xff]
    %v5286 = vld [vmem:[#allocation5 + $0x50] sm:$0xff]
    %v5287 = vld [vmem:[#allocation5 + $0x58] sm:$0xff]
    %v5288 = vld [vmem:[#allocation5 + $0x60] sm:$0xff]
    %v5289 = vld [vmem:[#allocation5 + $0x68] sm:$0xff]
    %v5290 = vld [vmem:[#allocation5 + $0x70] sm:$0xff]
    %v5291 = vld [vmem:[#allocation5 + $0x78] sm:$0xff]
    %v5292 = vld [vmem:[#allocation5 + $0x80] sm:$0xff]
    %v5293 = vld [vmem:[#allocation5 + $0x88] sm:$0xff]
    %v5294 = vld [vmem:[#allocation5 + $0x90] sm:$0xff]
    %v5295 = vld [vmem:[#allocation5 + $0x98] sm:$0xff]
    %v5296 = vld [vmem:[#allocation5 + $0xa0] sm:$0xff]
    %v5297 = vld [vmem:[#allocation5 + $0xa8] sm:$0xff]
    %v5298 = vld [vmem:[#allocation5 + $0xb0] sm:$0xff]
    %v5299 = vld [vmem:[#allocation5 + $0xb8] sm:$0xff]
    %v5300 = vld [vmem:[#allocation5 + $0xc0] sm:$0xff]
    %v5301 = vld [vmem:[#allocation5 + $0xc8] sm:$0xff]
    %v5302 = vld [vmem:[#allocation5 + $0xd0] sm:$0xff]
    %v5303 = vld [vmem:[#allocation5 + $0xd8] sm:$0xff]
    %v5304 = vld [vmem:[#allocation5 + $0xe0] sm:$0xff]
    %v5305 = vld [vmem:[#allocation5 + $0xe8] sm:$0xff]
    %v5306 = vld [vmem:[#allocation5 + $0xf0] sm:$0xff]
    %v5307 = vld [vmem:[#allocation5 + $0xf8] sm:$0xff]
    %s5308 = scalar_lea.vmem [#allocation2], 40
    %v5309 = vld [vmem:[%s5308] sm:$0xff]
    %v5342 = vunpack.c.l.b16 %v5276
    %v5343 = vunpack.c.h.b16 %v5276
    %v5344 = vunpack.c.l.b16 %v5277
    %v5345 = vunpack.c.h.b16 %v5277
    %v5346 = vunpack.c.l.b16 %v5278
    %v5347 = vunpack.c.h.b16 %v5278
    %v5348 = vunpack.c.l.b16 %v5279
    %v5349 = vunpack.c.h.b16 %v5279
    %v5350 = vunpack.c.l.b16 %v5280
    %v5351 = vunpack.c.h.b16 %v5280
    %v5352 = vunpack.c.l.b16 %v5281
    %v5353 = vunpack.c.h.b16 %v5281
    %v5354 = vunpack.c.l.b16 %v5282
    %v5355 = vunpack.c.h.b16 %v5282
    %v5356 = vunpack.c.l.b16 %v5283
    %v5357 = vunpack.c.h.b16 %v5283
    %v5358 = vunpack.c.l.b16 %v5284
    %v5359 = vunpack.c.h.b16 %v5284
    %v5360 = vunpack.c.l.b16 %v5285
    %v5361 = vunpack.c.h.b16 %v5285
    %v5362 = vunpack.c.l.b16 %v5286
    %v5363 = vunpack.c.h.b16 %v5286
    %v5364 = vunpack.c.l.b16 %v5287
    %v5365 = vunpack.c.h.b16 %v5287
    %v5366 = vunpack.c.l.b16 %v5288
    %v5367 = vunpack.c.h.b16 %v5288
    %v5368 = vunpack.c.l.b16 %v5289
    %v5369 = vunpack.c.h.b16 %v5289
    %v5370 = vunpack.c.l.b16 %v5290
    %v5371 = vunpack.c.h.b16 %v5290
    %v5372 = vunpack.c.l.b16 %v5291
    %v5373 = vunpack.c.h.b16 %v5291
    %v5374 = vunpack.c.l.b16 %v5292
    %v5375 = vunpack.c.h.b16 %v5292
    %v5376 = vunpack.c.l.b16 %v5293
    %v5377 = vunpack.c.h.b16 %v5293
    %v5378 = vunpack.c.l.b16 %v5294
    %v5379 = vunpack.c.h.b16 %v5294
    %v5380 = vunpack.c.l.b16 %v5295
    %v5381 = vunpack.c.h.b16 %v5295
    %v5382 = vunpack.c.l.b16 %v5296
    %v5383 = vunpack.c.h.b16 %v5296
    %v5384 = vunpack.c.l.b16 %v5297
    %v5385 = vunpack.c.h.b16 %v5297
    %v5386 = vunpack.c.l.b16 %v5298
    %v5387 = vunpack.c.h.b16 %v5298
    %v5388 = vunpack.c.l.b16 %v5299
    %v5389 = vunpack.c.h.b16 %v5299
    %v5390 = vunpack.c.l.b16 %v5300
    %v5391 = vunpack.c.h.b16 %v5300
    %v5392 = vunpack.c.l.b16 %v5301
    %v5393 = vunpack.c.h.b16 %v5301
    %v5394 = vunpack.c.l.b16 %v5302
    %v5395 = vunpack.c.h.b16 %v5302
    %v5396 = vunpack.c.l.b16 %v5303
    %v5397 = vunpack.c.h.b16 %v5303
    %v5398 = vunpack.c.l.b16 %v5304
    %v5399 = vunpack.c.h.b16 %v5304
    %v5400 = vunpack.c.l.b16 %v5305
    %v5401 = vunpack.c.h.b16 %v5305
    %v5402 = vunpack.c.l.b16 %v5306
    %v5403 = vunpack.c.h.b16 %v5306
    %v5404 = vunpack.c.l.b16 %v5307
    %v5405 = vunpack.c.h.b16 %v5307
    %v5406 = vpack.c.b16 %v5346, %v5342
    %v5407 = vpack.c.b16 %v5347, %v5343
    %v5408 = vpack.c.b16 %v5348, %v5344
    %v5409 = vpack.c.b16 %v5349, %v5345
    %v5410 = vpack.c.b16 %v5354, %v5350
    %v5411 = vpack.c.b16 %v5355, %v5351
    %v5412 = vpack.c.b16 %v5356, %v5352
    %v5413 = vpack.c.b16 %v5357, %v5353
    %v5414 = vpack.c.b16 %v5362, %v5358
    %v5415 = vpack.c.b16 %v5363, %v5359
    %v5416 = vpack.c.b16 %v5364, %v5360
    %v5417 = vpack.c.b16 %v5365, %v5361
    %v5418 = vpack.c.b16 %v5370, %v5366
    %v5419 = vpack.c.b16 %v5371, %v5367
    %v5420 = vpack.c.b16 %v5372, %v5368
    %v5421 = vpack.c.b16 %v5373, %v5369
    %v5422 = vpack.c.b16 %v5378, %v5374
    %v5423 = vpack.c.b16 %v5379, %v5375
    %v5424 = vpack.c.b16 %v5380, %v5376
    %v5425 = vpack.c.b16 %v5381, %v5377
    %v5426 = vpack.c.b16 %v5386, %v5382
    %v5427 = vpack.c.b16 %v5387, %v5383
    %v5428 = vpack.c.b16 %v5388, %v5384
    %v5429 = vpack.c.b16 %v5389, %v5385
    %v5430 = vpack.c.b16 %v5394, %v5390
    %v5431 = vpack.c.b16 %v5395, %v5391
    %v5432 = vpack.c.b16 %v5396, %v5392
    %v5433 = vpack.c.b16 %v5397, %v5393
    %v5434 = vpack.c.b16 %v5402, %v5398
    %v5435 = vpack.c.b16 %v5403, %v5399
    %v5436 = vpack.c.b16 %v5404, %v5400
    %v5437 = vpack.c.b16 %v5405, %v5401
    %v5471 = vcombine.high %v5309, %v5309
    %v5473 = vunpack.c.l.s4 1983009808
    %v5474 = vunpack.c.0.s8 %v5473
    %v5475 = vlaneseq
    %v5476 = vshrl.u32 %v5475, 7
    %v5477 = vsub.s32 %v5474, %v5476
    %v5478 = vrot.slane %v5309, %v5477
    %v5480 = vunpack.c.l.s4 1983009808
    %v5481 = vunpack.c.0.s8 %v5480
    %v5482 = vlaneseq
    %v5483 = vshrl.u32 %v5482, 7
    %v5484 = vsub.s32 %v5481, %v5483
    %v5485 = vrot.slane %v5471, %v5484
    %v5486 = vcombine.high %v5478, %v5478
    %v5487 = vcombine.high %v5485, %v5485
    %5492 = vmatprep.subr.bf16.mxu0 %v5407
    %5493 = vmatpush1.bf16.msra.mxu0 %v5406
    %5494 = vmatprep.subr.bf16.mxu0 %v5411
    %5495 = vmatpush1.bf16.msra.mxu0 %v5410
    %5496 = vmatprep.subr.bf16.mxu0 %v5415
    %5497 = vmatpush1.bf16.msra.mxu0 %v5414
    %5498 = vmatprep.subr.bf16.mxu0 %v5419
    %5499 = vmatpush1.bf16.msra.mxu0 %v5418
    %5500 = vmatprep.subr.bf16.mxu0 %v5423
    %5501 = vmatpush1.bf16.msra.mxu0 %v5422
    %5502 = vmatprep.subr.bf16.mxu0 %v5427
    %5503 = vmatpush1.bf16.msra.mxu0 %v5426
    %5504 = vmatprep.subr.bf16.mxu0 %v5431
    %5505 = vmatpush1.bf16.msra.mxu0 %v5430
    %5506 = vmatprep.subr.bf16.mxu0 %v5435
    %5507 = vmatpush1.bf16.msra.mxu0 %v5434
    %5508 = vmatprep.subr.bf16.mxu0 0
    %5509 = vmatpush1.bf16.msra.mxu0 0
    %5510 = vmatprep.subr.bf16.mxu0 0
    %5511 = vmatpush1.bf16.msra.mxu0 0
    %5512 = vmatprep.subr.bf16.mxu0 0
    %5513 = vmatpush1.bf16.msra.mxu0 0
    %5514 = vmatprep.subr.bf16.mxu0 0
    %5515 = vmatpush1.bf16.msra.mxu0 0
    %5516 = vmatprep.subr.bf16.mxu0 0
    %5517 = vmatpush1.bf16.msra.mxu0 0
    %5518 = vmatprep.subr.bf16.mxu0 0
    %5519 = vmatpush1.bf16.msra.mxu0 0
    %5520 = vmatprep.subr.bf16.mxu0 0
    %5521 = vmatpush1.bf16.msra.mxu0 0
    %5522 = vmatprep.subr.bf16.mxu0 0
    %5523 = vmatpush1.bf16.msra.mxu0 0
    %5524 = vmatprep.mubr.bf16.mxu0 0
    %5525 = vmatmul.mubr.bf16.gmra.mrb[0].mxu0 %v4680
    %v5526 = vpop.f32.mrb[0].mxu0
    %v5527 = vadd.f32 %v5478, %v5526
    %v5528 = vpop.f32.mrb[0].mxu0
    %v5529 = vadd.f32 %v5486, %v5528
    %v5530 = vpop.f32.mrb[0].mxu0
    %v5531 = vpop.f32.mrb[0].mxu0
    %5532 = vdwg.mxu0
    %5533 = vmatprep.subr.bf16.mxu0 %v5409
    %5534 = vmatpush1.bf16.msra.mxu0 %v5408
    %5535 = vmatprep.subr.bf16.mxu0 %v5413
    %5536 = vmatpush1.bf16.msra.mxu0 %v5412
    %5537 = vmatprep.subr.bf16.mxu0 %v5417
    %5538 = vmatpush1.bf16.msra.mxu0 %v5416
    %5539 = vmatprep.subr.bf16.mxu0 %v5421
    %5540 = vmatpush1.bf16.msra.mxu0 %v5420
    %5541 = vmatprep.subr.bf16.mxu0 %v5425
    %5542 = vmatpush1.bf16.msra.mxu0 %v5424
    %5543 = vmatprep.subr.bf16.mxu0 %v5429
    %5544 = vmatpush1.bf16.msra.mxu0 %v5428
    %5545 = vmatprep.subr.bf16.mxu0 %v5433
    %5546 = vmatpush1.bf16.msra.mxu0 %v5432
    %5547 = vmatprep.subr.bf16.mxu0 %v5437
    %5548 = vmatpush1.bf16.msra.mxu0 %v5436
    %5549 = vmatprep.subr.bf16.mxu0 0
    %5550 = vmatpush1.bf16.msra.mxu0 0
    %5551 = vmatprep.subr.bf16.mxu0 0
    %5552 = vmatpush1.bf16.msra.mxu0 0
    %5553 = vmatprep.subr.bf16.mxu0 0
    %5554 = vmatpush1.bf16.msra.mxu0 0
    %5555 = vmatprep.subr.bf16.mxu0 0
    %5556 = vmatpush1.bf16.msra.mxu0 0
    %5557 = vmatprep.subr.bf16.mxu0 0
    %5558 = vmatpush1.bf16.msra.mxu0 0
    %5559 = vmatprep.subr.bf16.mxu0 0
    %5560 = vmatpush1.bf16.msra.mxu0 0
    %5561 = vmatprep.subr.bf16.mxu0 0
    %5562 = vmatpush1.bf16.msra.mxu0 0
    %5563 = vmatprep.subr.bf16.mxu0 0
    %5564 = vmatpush1.bf16.msra.mxu0 0
    %5565 = vmatprep.mubr.bf16.mxu0 0
    %5566 = vmatmul.mubr.bf16.gmra.mrb[0].mxu0 %v4680
    %v5567 = vpop.f32.mrb[0].mxu0
    %v5568 = vadd.f32 %v5485, %v5567
    %v5569 = vpop.f32.mrb[0].mxu0
    %v5570 = vadd.f32 %v5487, %v5569
    %v5571 = vpop.f32.mrb[0].mxu0
    %v5572 = vpop.f32.mrb[0].mxu0
    %5573 = vdwg.mxu0
    %v5574 = vmul.f32 %v5527, 0.5
    %v5575 = vtanh.pop %v5574
    %v5576 = vadd.f32 %v5575, 1.0
    %v5577 = vmul.f32 %v5576, 0.5
    %v5578 = vmul.f32 %v5529, 0.5
    %v5579 = vtanh.pop %v5578
    %v5580 = vadd.f32 %v5579, 1.0
    %v5581 = vmul.f32 %v5580, 0.5
    %v5582 = vtanh.pop %v5568
    %v5583 = vmul.f32 %v5570, 0.5
    %v5584 = vtanh.pop %v5583
    %v5585 = vadd.f32 %v5584, 1.0
    %v5586 = vmul.f32 %v5585, 0.5
    %v5587 = vmul.f32 %v5581, %v4677
    %v5588 = vmul.f32 %v5577, %v5582
    %v5589 = vadd.f32 %v5587, %v5588
    %v5590 = vtanh.pop %v5589
    %v5591 = vmul.f32 %v5586, %v5590
    %v5592 = vpack.c.bf16 %v5591, %v5591
    %v5593 = vld [vmem:[#allocation8] sm:$0xff]
    %v5594 = vld [vmem:[#allocation8 + $0x8] sm:$0xff]
    %v5595 = vld [vmem:[#allocation8 + $0x10] sm:$0xff]
    %v5596 = vld [vmem:[#allocation8 + $0x18] sm:$0xff]
    %v5597 = vld [vmem:[#allocation8 + $0x20] sm:$0xff]
    %v5598 = vld [vmem:[#allocation8 + $0x28] sm:$0xff]
    %v5599 = vld [vmem:[#allocation8 + $0x30] sm:$0xff]
    %v5600 = vld [vmem:[#allocation8 + $0x38] sm:$0xff]
    %v5601 = vld [vmem:[#allocation8 + $0x40] sm:$0xff]
    %v5602 = vld [vmem:[#allocation8 + $0x48] sm:$0xff]
    %v5603 = vld [vmem:[#allocation8 + $0x50] sm:$0xff]
    %v5604 = vld [vmem:[#allocation8 + $0x58] sm:$0xff]
    %v5605 = vld [vmem:[#allocation8 + $0x60] sm:$0xff]
    %v5606 = vld [vmem:[#allocation8 + $0x68] sm:$0xff]
    %v5607 = vld [vmem:[#allocation8 + $0x70] sm:$0xff]
    %v5608 = vld [vmem:[#allocation8 + $0x78] sm:$0xff]
    %v5609 = vld [vmem:[#allocation8 + $0x80] sm:$0xff]
    %v5610 = vld [vmem:[#allocation8 + $0x88] sm:$0xff]
    %v5611 = vld [vmem:[#allocation8 + $0x90] sm:$0xff]
    %v5612 = vld [vmem:[#allocation8 + $0x98] sm:$0xff]
    %v5613 = vld [vmem:[#allocation8 + $0xa0] sm:$0xff]
    %v5614 = vld [vmem:[#allocation8 + $0xa8] sm:$0xff]
    %v5615 = vld [vmem:[#allocation8 + $0xb0] sm:$0xff]
    %v5616 = vld [vmem:[#allocation8 + $0xb8] sm:$0xff]
    %v5617 = vld [vmem:[#allocation8 + $0xc0] sm:$0xff]
    %v5618 = vld [vmem:[#allocation8 + $0xc8] sm:$0xff]
    %v5619 = vld [vmem:[#allocation8 + $0xd0] sm:$0xff]
    %v5620 = vld [vmem:[#allocation8 + $0xd8] sm:$0xff]
    %v5621 = vld [vmem:[#allocation8 + $0xe0] sm:$0xff]
    %v5622 = vld [vmem:[#allocation8 + $0xe8] sm:$0xff]
    %v5623 = vld [vmem:[#allocation8 + $0xf0] sm:$0xff]
    %v5624 = vld [vmem:[#allocation8 + $0xf8] sm:$0xff]
    %v5657 = vunpack.c.l.b16 %v5593
    %v5658 = vunpack.c.h.b16 %v5593
    %v5659 = vunpack.c.l.b16 %v5594
    %v5660 = vunpack.c.h.b16 %v5594
    %v5661 = vunpack.c.l.b16 %v5595
    %v5662 = vunpack.c.h.b16 %v5595
    %v5663 = vunpack.c.l.b16 %v5596
    %v5664 = vunpack.c.h.b16 %v5596
    %v5665 = vunpack.c.l.b16 %v5597
    %v5666 = vunpack.c.h.b16 %v5597
    %v5667 = vunpack.c.l.b16 %v5598
    %v5668 = vunpack.c.h.b16 %v5598
    %v5669 = vunpack.c.l.b16 %v5599
    %v5670 = vunpack.c.h.b16 %v5599
    %v5671 = vunpack.c.l.b16 %v5600
    %v5672 = vunpack.c.h.b16 %v5600
    %v5673 = vunpack.c.l.b16 %v5601
    %v5674 = vunpack.c.h.b16 %v5601
    %v5675 = vunpack.c.l.b16 %v5602
    %v5676 = vunpack.c.h.b16 %v5602
    %v5677 = vunpack.c.l.b16 %v5603
    %v5678 = vunpack.c.h.b16 %v5603
    %v5679 = vunpack.c.l.b16 %v5604
    %v5680 = vunpack.c.h.b16 %v5604
    %v5681 = vunpack.c.l.b16 %v5605
    %v5682 = vunpack.c.h.b16 %v5605
    %v5683 = vunpack.c.l.b16 %v5606
    %v5684 = vunpack.c.h.b16 %v5606
    %v5685 = vunpack.c.l.b16 %v5607
    %v5686 = vunpack.c.h.b16 %v5607
    %v5687 = vunpack.c.l.b16 %v5608
    %v5688 = vunpack.c.h.b16 %v5608
    %v5689 = vunpack.c.l.b16 %v5609
    %v5690 = vunpack.c.h.b16 %v5609
    %v5691 = vunpack.c.l.b16 %v5610
    %v5692 = vunpack.c.h.b16 %v5610
    %v5693 = vunpack.c.l.b16 %v5611
    %v5694 = vunpack.c.h.b16 %v5611
    %v5695 = vunpack.c.l.b16 %v5612
    %v5696 = vunpack.c.h.b16 %v5612
    %v5697 = vunpack.c.l.b16 %v5613
    %v5698 = vunpack.c.h.b16 %v5613
    %v5699 = vunpack.c.l.b16 %v5614
    %v5700 = vunpack.c.h.b16 %v5614
    %v5701 = vunpack.c.l.b16 %v5615
    %v5702 = vunpack.c.h.b16 %v5615
    %v5703 = vunpack.c.l.b16 %v5616
    %v5704 = vunpack.c.h.b16 %v5616
    %v5705 = vunpack.c.l.b16 %v5617
    %v5706 = vunpack.c.h.b16 %v5617
    %v5707 = vunpack.c.l.b16 %v5618
    %v5708 = vunpack.c.h.b16 %v5618
    %v5709 = vunpack.c.l.b16 %v5619
    %v5710 = vunpack.c.h.b16 %v5619
    %v5711 = vunpack.c.l.b16 %v5620
    %v5712 = vunpack.c.h.b16 %v5620
    %v5713 = vunpack.c.l.b16 %v5621
    %v5714 = vunpack.c.h.b16 %v5621
    %v5715 = vunpack.c.l.b16 %v5622
    %v5716 = vunpack.c.h.b16 %v5622
    %v5717 = vunpack.c.l.b16 %v5623
    %v5718 = vunpack.c.h.b16 %v5623
    %v5719 = vunpack.c.l.b16 %v5624
    %v5720 = vunpack.c.h.b16 %v5624
    %v5721 = vpack.c.b16 %v5661, %v5657
    %v5722 = vpack.c.b16 %v5662, %v5658
    %v5723 = vpack.c.b16 %v5663, %v5659
    %v5724 = vpack.c.b16 %v5664, %v5660
    %v5725 = vpack.c.b16 %v5669, %v5665
    %v5726 = vpack.c.b16 %v5670, %v5666
    %v5727 = vpack.c.b16 %v5671, %v5667
    %v5728 = vpack.c.b16 %v5672, %v5668
    %v5729 = vpack.c.b16 %v5677, %v5673
    %v5730 = vpack.c.b16 %v5678, %v5674
    %v5731 = vpack.c.b16 %v5679, %v5675
    %v5732 = vpack.c.b16 %v5680, %v5676
    %v5733 = vpack.c.b16 %v5685, %v5681
    %v5734 = vpack.c.b16 %v5686, %v5682
    %v5735 = vpack.c.b16 %v5687, %v5683
    %v5736 = vpack.c.b16 %v5688, %v5684
    %v5737 = vpack.c.b16 %v5693, %v5689
    %v5738 = vpack.c.b16 %v5694, %v5690
    %v5739 = vpack.c.b16 %v5695, %v5691
    %v5740 = vpack.c.b16 %v5696, %v5692
    %v5741 = vpack.c.b16 %v5701, %v5697
    %v5742 = vpack.c.b16 %v5702, %v5698
    %v5743 = vpack.c.b16 %v5703, %v5699
    %v5744 = vpack.c.b16 %v5704, %v5700
    %v5745 = vpack.c.b16 %v5709, %v5705
    %v5746 = vpack.c.b16 %v5710, %v5706
    %v5747 = vpack.c.b16 %v5711, %v5707
    %v5748 = vpack.c.b16 %v5712, %v5708
    %v5749 = vpack.c.b16 %v5717, %v5713
    %v5750 = vpack.c.b16 %v5718, %v5714
    %v5751 = vpack.c.b16 %v5719, %v5715
    %v5752 = vpack.c.b16 %v5720, %v5716
    %5785 = vmatprep.subr.bf16.mxu0 %v5722
    %5786 = vmatpush1.bf16.msra.mxu0 %v5721
    %5787 = vmatprep.subr.bf16.mxu0 %v5726
    %5788 = vmatpush1.bf16.msra.mxu0 %v5725
    %5789 = vmatprep.subr.bf16.mxu0 %v5730
    %5790 = vmatpush1.bf16.msra.mxu0 %v5729
    %5791 = vmatprep.subr.bf16.mxu0 %v5734
    %5792 = vmatpush1.bf16.msra.mxu0 %v5733
    %5793 = vmatprep.subr.bf16.mxu0 %v5738
    %5794 = vmatpush1.bf16.msra.mxu0 %v5737
    %5795 = vmatprep.subr.bf16.mxu0 %v5742
    %5796 = vmatpush1.bf16.msra.mxu0 %v5741
    %5797 = vmatprep.subr.bf16.mxu0 %v5746
    %5798 = vmatpush1.bf16.msra.mxu0 %v5745
    %5799 = vmatprep.subr.bf16.mxu0 %v5750
    %5800 = vmatpush1.bf16.msra.mxu0 %v5749
    %5801 = vmatprep.subr.bf16.mxu0 0
    %5802 = vmatpush1.bf16.msra.mxu0 0
    %5803 = vmatprep.subr.bf16.mxu0 0
    %5804 = vmatpush1.bf16.msra.mxu0 0
    %5805 = vmatprep.subr.bf16.mxu0 0
    %5806 = vmatpush1.bf16.msra.mxu0 0
    %5807 = vmatprep.subr.bf16.mxu0 0
    %5808 = vmatpush1.bf16.msra.mxu0 0
    %5809 = vmatprep.subr.bf16.mxu0 0
    %5810 = vmatpush1.bf16.msra.mxu0 0
    %5811 = vmatprep.subr.bf16.mxu0 0
    %5812 = vmatpush1.bf16.msra.mxu0 0
    %5813 = vmatprep.subr.bf16.mxu0 0
    %5814 = vmatpush1.bf16.msra.mxu0 0
    %5815 = vmatprep.subr.bf16.mxu0 0
    %5816 = vmatpush1.bf16.msra.mxu0 0
    %5817 = vmatprep.mubr.bf16.mxu0 0
    %5818 = vmatmul.mubr.bf16.gmra.mrb[0].mxu0 %v5592
    %v5819 = vpop.f32.mrb[0].mxu0
    %v5820 = vadd.f32 0.0, %v5819
    %v5821 = vpop.f32.mrb[0].mxu0
    %v5822 = vadd.f32 0.0, %v5821
    %v5823 = vpop.f32.mrb[0].mxu0
    %v5824 = vpop.f32.mrb[0].mxu0
    %5825 = vdwg.mxu0
    %5826 = vmatprep.subr.bf16.mxu0 %v5724
    %5827 = vmatpush1.bf16.msra.mxu0 %v5723
    %5828 = vmatprep.subr.bf16.mxu0 %v5728
    %5829 = vmatpush1.bf16.msra.mxu0 %v5727
    %5830 = vmatprep.subr.bf16.mxu0 %v5732
    %5831 = vmatpush1.bf16.msra.mxu0 %v5731
    %5832 = vmatprep.subr.bf16.mxu0 %v5736
    %5833 = vmatpush1.bf16.msra.mxu0 %v5735
    %5834 = vmatprep.subr.bf16.mxu0 %v5740
    %5835 = vmatpush1.bf16.msra.mxu0 %v5739
    %5836 = vmatprep.subr.bf16.mxu0 %v5744
    %5837 = vmatpush1.bf16.msra.mxu0 %v5743
    %5838 = vmatprep.subr.bf16.mxu0 %v5748
    %5839 = vmatpush1.bf16.msra.mxu0 %v5747
    %5840 = vmatprep.subr.bf16.mxu0 %v5752
    %5841 = vmatpush1.bf16.msra.mxu0 %v5751
    %5842 = vmatprep.subr.bf16.mxu0 0
    %5843 = vmatpush1.bf16.msra.mxu0 0
    %5844 = vmatprep.subr.bf16.mxu0 0
    %5845 = vmatpush1.bf16.msra.mxu0 0
    %5846 = vmatprep.subr.bf16.mxu0 0
    %5847 = vmatpush1.bf16.msra.mxu0 0
    %5848 = vmatprep.subr.bf16.mxu0 0
    %5849 = vmatpush1.bf16.msra.mxu0 0
    %5850 = vmatprep.subr.bf16.mxu0 0
    %5851 = vmatpush1.bf16.msra.mxu0 0
    %5852 = vmatprep.subr.bf16.mxu0 0
    %5853 = vmatpush1.bf16.msra.mxu0 0
    %5854 = vmatprep.subr.bf16.mxu0 0
    %5855 = vmatpush1.bf16.msra.mxu0 0
    %5856 = vmatprep.subr.bf16.mxu0 0
    %5857 = vmatpush1.bf16.msra.mxu0 0
    %5858 = vmatprep.mubr.bf16.mxu0 0
    %5859 = vmatmul.mubr.bf16.gmra.mrb[0].mxu0 %v5592
    %v5860 = vpop.f32.mrb[0].mxu0
    %v5861 = vadd.f32 0.0, %v5860
    %v5862 = vpop.f32.mrb[0].mxu0
    %v5863 = vadd.f32 0.0, %v5862
    %v5864 = vpop.f32.mrb[0].mxu0
    %v5865 = vpop.f32.mrb[0].mxu0
    %5866 = vdwg.mxu0
    %v5867 = vadd.f32 %v5229, %v5820
    %v5868 = vadd.f32 %v5231, %v5822
    %v5869 = vadd.f32 %v5270, %v5861
    %v5870 = vadd.f32 %v5272, %v5863
    %v5871 = vmul.f32 %v5867, 0.5
    %v5872 = vtanh.pop %v5871
    %v5873 = vadd.f32 %v5872, 1.0
    %v5874 = vmul.f32 %v5873, 0.5
    %v5875 = vmul.f32 %v5868, 0.5
    %v5876 = vtanh.pop %v5875
    %v5877 = vadd.f32 %v5876, 1.0
    %v5878 = vmul.f32 %v5877, 0.5
    %v5879 = vtanh.pop %v5869
    %v5880 = vmul.f32 %v5870, 0.5
    %v5881 = vtanh.pop %v5880
    %v5882 = vadd.f32 %v5881, 1.0
    %v5883 = vmul.f32 %v5882, 0.5
    %v5884 = vmul.f32 %v5878, %v4974
    %v5885 = vmul.f32 %v5874, %v5879
    %v5886 = vadd.f32 %v5884, %v5885
    %v5887 = vtanh.pop %v5886
    %v5888 = vmul.f32 %v5883, %v5887
    %s5889 = scalar_lea.vmem [#allocation3], 10
    %5890 = vst [vmem:[%s5889] sm:$0x3] %v5888
    %v5891 = vpack.c.bf16 %v5888, %v5888
    %v5892 = vld [vmem:[#allocation10] sm:$0xff]
    %v5893 = vld [vmem:[#allocation10 + $0x8] sm:$0xff]
    %v5894 = vld [vmem:[#allocation10 + $0x10] sm:$0xff]
    %v5895 = vld [vmem:[#allocation10 + $0x18] sm:$0xff]
    %v5896 = vld [vmem:[#allocation10 + $0x20] sm:$0xff]
    %v5897 = vld [vmem:[#allocation10 + $0x28] sm:$0xff]
    %v5898 = vld [vmem:[#allocation10 + $0x30] sm:$0xff]
    %v5899 = vld [vmem:[#allocation10 + $0x38] sm:$0xff]
    %v5900 = vld [vmem:[#allocation10 + $0x40] sm:$0xff]
    %v5901 = vld [vmem:[#allocation10 + $0x48] sm:$0xff]
    %v5902 = vld [vmem:[#allocation10 + $0x50] sm:$0xff]
    %v5903 = vld [vmem:[#allocation10 + $0x58] sm:$0xff]
    %v5904 = vld [vmem:[#allocation10 + $0x60] sm:$0xff]
    %v5905 = vld [vmem:[#allocation10 + $0x68] sm:$0xff]
    %v5906 = vld [vmem:[#allocation10 + $0x70] sm:$0xff]
    %v5907 = vld [vmem:[#allocation10 + $0x78] sm:$0xff]
    %v5908 = vld [vmem:[#allocation10 + $0x80] sm:$0xff]
    %v5909 = vld [vmem:[#allocation10 + $0x88] sm:$0xff]
    %v5910 = vld [vmem:[#allocation10 + $0x90] sm:$0xff]
    %v5911 = vld [vmem:[#allocation10 + $0x98] sm:$0xff]
    %v5912 = vld [vmem:[#allocation10 + $0xa0] sm:$0xff]
    %v5913 = vld [vmem:[#allocation10 + $0xa8] sm:$0xff]
    %v5914 = vld [vmem:[#allocation10 + $0xb0] sm:$0xff]
    %v5915 = vld [vmem:[#allocation10 + $0xb8] sm:$0xff]
    %v5916 = vld [vmem:[#allocation10 + $0xc0] sm:$0xff]
    %v5917 = vld [vmem:[#allocation10 + $0xc8] sm:$0xff]
    %v5918 = vld [vmem:[#allocation10 + $0xd0] sm:$0xff]
    %v5919 = vld [vmem:[#allocation10 + $0xd8] sm:$0xff]
    %v5920 = vld [vmem:[#allocation10 + $0xe0] sm:$0xff]
    %v5921 = vld [vmem:[#allocation10 + $0xe8] sm:$0xff]
    %v5922 = vld [vmem:[#allocation10 + $0xf0] sm:$0xff]
    %v5923 = vld [vmem:[#allocation10 + $0xf8] sm:$0xff]
    %v5924 = vld [vmem:[%s7] sm:$0xf]
    %v5926 = vlaneseq
    %v5927 = vshrl.u32 %v5926, 7
    %v5928 = vsub.s32 0, %v5927
    %v5929 = vrot.slane %v5924, %v5928
    %v5930 = vlaneseq
    %v5931 = vshrl.u32 %v5930, 7
    %v5932 = vsub.s32 1, %v5931
    %v5933 = vrot.slane %v5924, %v5932
    %v5934 = vlaneseq
    %v5935 = vshrl.u32 %v5934, 7
    %v5936 = vsub.s32 2, %v5935
    %v5937 = vrot.slane %v5924, %v5936
    %v5938 = vlaneseq
    %v5939 = vshrl.u32 %v5938, 7
    %v5940 = vsub.s32 3, %v5939
    %v5941 = vrot.slane %v5924, %v5940
    %v5978 = vunpack.c.l.b16 %v5892
    %v5979 = vunpack.c.h.b16 %v5892
    %v5980 = vunpack.c.l.b16 %v5893
    %v5981 = vunpack.c.h.b16 %v5893
    %v5982 = vunpack.c.l.b16 %v5894
    %v5983 = vunpack.c.h.b16 %v5894
    %v5984 = vunpack.c.l.b16 %v5895
    %v5985 = vunpack.c.h.b16 %v5895
    %v5986 = vunpack.c.l.b16 %v5896
    %v5987 = vunpack.c.h.b16 %v5896
    %v5988 = vunpack.c.l.b16 %v5897
    %v5989 = vunpack.c.h.b16 %v5897
    %v5990 = vunpack.c.l.b16 %v5898
    %v5991 = vunpack.c.h.b16 %v5898
    %v5992 = vunpack.c.l.b16 %v5899
    %v5993 = vunpack.c.h.b16 %v5899
    %v5994 = vunpack.c.l.b16 %v5900
    %v5995 = vunpack.c.h.b16 %v5900
    %v5996 = vunpack.c.l.b16 %v5901
    %v5997 = vunpack.c.h.b16 %v5901
    %v5998 = vunpack.c.l.b16 %v5902
    %v5999 = vunpack.c.h.b16 %v5902
    %v6000 = vunpack.c.l.b16 %v5903
    %v6001 = vunpack.c.h.b16 %v5903
    %v6002 = vunpack.c.l.b16 %v5904
    %v6003 = vunpack.c.h.b16 %v5904
    %v6004 = vunpack.c.l.b16 %v5905
    %v6005 = vunpack.c.h.b16 %v5905
    %v6006 = vunpack.c.l.b16 %v5906
    %v6007 = vunpack.c.h.b16 %v5906
    %v6008 = vunpack.c.l.b16 %v5907
    %v6009 = vunpack.c.h.b16 %v5907
    %v6010 = vunpack.c.l.b16 %v5908
    %v6011 = vunpack.c.h.b16 %v5908
    %v6012 = vunpack.c.l.b16 %v5909
    %v6013 = vunpack.c.h.b16 %v5909
    %v6014 = vunpack.c.l.b16 %v5910
    %v6015 = vunpack.c.h.b16 %v5910
    %v6016 = vunpack.c.l.b16 %v5911
    %v6017 = vunpack.c.h.b16 %v5911
    %v6018 = vunpack.c.l.b16 %v5912
    %v6019 = vunpack.c.h.b16 %v5912
    %v6020 = vunpack.c.l.b16 %v5913
    %v6021 = vunpack.c.h.b16 %v5913
    %v6022 = vunpack.c.l.b16 %v5914
    %v6023 = vunpack.c.h.b16 %v5914
    %v6024 = vunpack.c.l.b16 %v5915
    %v6025 = vunpack.c.h.b16 %v5915
    %v6026 = vunpack.c.l.b16 %v5916
    %v6027 = vunpack.c.h.b16 %v5916
    %v6028 = vunpack.c.l.b16 %v5917
    %v6029 = vunpack.c.h.b16 %v5917
    %v6030 = vunpack.c.l.b16 %v5918
    %v6031 = vunpack.c.h.b16 %v5918
    %v6032 = vunpack.c.l.b16 %v5919
    %v6033 = vunpack.c.h.b16 %v5919
    %v6034 = vunpack.c.l.b16 %v5920
    %v6035 = vunpack.c.h.b16 %v5920
    %v6036 = vunpack.c.l.b16 %v5921
    %v6037 = vunpack.c.h.b16 %v5921
    %v6038 = vunpack.c.l.b16 %v5922
    %v6039 = vunpack.c.h.b16 %v5922
    %v6040 = vunpack.c.l.b16 %v5923
    %v6041 = vunpack.c.h.b16 %v5923
    %v6042 = vpack.c.b16 %v5982, %v5978
    %v6043 = vpack.c.b16 %v5983, %v5979
    %v6044 = vpack.c.b16 %v5984, %v5980
    %v6045 = vpack.c.b16 %v5985, %v5981
    %v6046 = vpack.c.b16 %v5990, %v5986
    %v6047 = vpack.c.b16 %v5991, %v5987
    %v6048 = vpack.c.b16 %v5992, %v5988
    %v6049 = vpack.c.b16 %v5993, %v5989
    %v6050 = vpack.c.b16 %v5998, %v5994
    %v6051 = vpack.c.b16 %v5999, %v5995
    %v6052 = vpack.c.b16 %v6000, %v5996
    %v6053 = vpack.c.b16 %v6001, %v5997
    %v6054 = vpack.c.b16 %v6006, %v6002
    %v6055 = vpack.c.b16 %v6007, %v6003
    %v6056 = vpack.c.b16 %v6008, %v6004
    %v6057 = vpack.c.b16 %v6009, %v6005
    %v6058 = vpack.c.b16 %v6014, %v6010
    %v6059 = vpack.c.b16 %v6015, %v6011
    %v6060 = vpack.c.b16 %v6016, %v6012
    %v6061 = vpack.c.b16 %v6017, %v6013
    %v6062 = vpack.c.b16 %v6022, %v6018
    %v6063 = vpack.c.b16 %v6023, %v6019
    %v6064 = vpack.c.b16 %v6024, %v6020
    %v6065 = vpack.c.b16 %v6025, %v6021
    %v6066 = vpack.c.b16 %v6030, %v6026
    %v6067 = vpack.c.b16 %v6031, %v6027
    %v6068 = vpack.c.b16 %v6032, %v6028
    %v6069 = vpack.c.b16 %v6033, %v6029
    %v6070 = vpack.c.b16 %v6038, %v6034
    %v6071 = vpack.c.b16 %v6039, %v6035
    %v6072 = vpack.c.b16 %v6040, %v6036
    %v6073 = vpack.c.b16 %v6041, %v6037
    %6106 = vmatprep.subr.bf16.mxu0 %v6043
    %6107 = vmatpush1.bf16.msra.mxu0 %v6042
    %6108 = vmatprep.subr.bf16.mxu0 %v6047
    %6109 = vmatpush1.bf16.msra.mxu0 %v6046
    %6110 = vmatprep.subr.bf16.mxu0 %v6051
    %6111 = vmatpush1.bf16.msra.mxu0 %v6050
    %6112 = vmatprep.subr.bf16.mxu0 %v6055
    %6113 = vmatpush1.bf16.msra.mxu0 %v6054
    %6114 = vmatprep.subr.bf16.mxu0 %v6059
    %6115 = vmatpush1.bf16.msra.mxu0 %v6058
    %6116 = vmatprep.subr.bf16.mxu0 %v6063
    %6117 = vmatpush1.bf16.msra.mxu0 %v6062
    %6118 = vmatprep.subr.bf16.mxu0 %v6067
    %6119 = vmatpush1.bf16.msra.mxu0 %v6066
    %6120 = vmatprep.subr.bf16.mxu0 %v6071
    %6121 = vmatpush1.bf16.msra.mxu0 %v6070
    %6122 = vmatprep.subr.bf16.mxu0 0
    %6123 = vmatpush1.bf16.msra.mxu0 0
    %6124 = vmatprep.subr.bf16.mxu0 0
    %6125 = vmatpush1.bf16.msra.mxu0 0
    %6126 = vmatprep.subr.bf16.mxu0 0
    %6127 = vmatpush1.bf16.msra.mxu0 0
    %6128 = vmatprep.subr.bf16.mxu0 0
    %6129 = vmatpush1.bf16.msra.mxu0 0
    %6130 = vmatprep.subr.bf16.mxu0 0
    %6131 = vmatpush1.bf16.msra.mxu0 0
    %6132 = vmatprep.subr.bf16.mxu0 0
    %6133 = vmatpush1.bf16.msra.mxu0 0
    %6134 = vmatprep.subr.bf16.mxu0 0
    %6135 = vmatpush1.bf16.msra.mxu0 0
    %6136 = vmatprep.subr.bf16.mxu0 0
    %6137 = vmatpush1.bf16.msra.mxu0 0
    %6138 = vmatprep.mubr.bf16.mxu0 0
    %6139 = vmatmul.mubr.bf16.gmra.mrb[0].mxu0 %v5891
    %v6140 = vpop.f32.mrb[0].mxu0
    %v6141 = vadd.f32 %v5929, %v6140
    %v6142 = vpop.f32.mrb[0].mxu0
    %v6143 = vadd.f32 %v5933, %v6142
    %v6144 = vpop.f32.mrb[0].mxu0
    %v6145 = vpop.f32.mrb[0].mxu0
    %6146 = vdwg.mxu0
    %6147 = vmatprep.subr.bf16.mxu0 %v6045
    %6148 = vmatpush1.bf16.msra.mxu0 %v6044
    %6149 = vmatprep.subr.bf16.mxu0 %v6049
    %6150 = vmatpush1.bf16.msra.mxu0 %v6048
    %6151 = vmatprep.subr.bf16.mxu0 %v6053
    %6152 = vmatpush1.bf16.msra.mxu0 %v6052
    %6153 = vmatprep.subr.bf16.mxu0 %v6057
    %6154 = vmatpush1.bf16.msra.mxu0 %v6056
    %6155 = vmatprep.subr.bf16.mxu0 %v6061
    %6156 = vmatpush1.bf16.msra.mxu0 %v6060
    %6157 = vmatprep.subr.bf16.mxu0 %v6065
    %6158 = vmatpush1.bf16.msra.mxu0 %v6064
    %6159 = vmatprep.subr.bf16.mxu0 %v6069
    %6160 = vmatpush1.bf16.msra.mxu0 %v6068
    %6161 = vmatprep.subr.bf16.mxu0 %v6073
    %6162 = vmatpush1.bf16.msra.mxu0 %v6072
    %6163 = vmatprep.subr.bf16.mxu0 0
    %6164 = vmatpush1.bf16.msra.mxu0 0
    %6165 = vmatprep.subr.bf16.mxu0 0
    %6166 = vmatpush1.bf16.msra.mxu0 0
    %6167 = vmatprep.subr.bf16.mxu0 0
    %6168 = vmatpush1.bf16.msra.mxu0 0
    %6169 = vmatprep.subr.bf16.mxu0 0
    %6170 = vmatpush1.bf16.msra.mxu0 0
    %6171 = vmatprep.subr.bf16.mxu0 0
    %6172 = vmatpush1.bf16.msra.mxu0 0
    %6173 = vmatprep.subr.bf16.mxu0 0
    %6174 = vmatpush1.bf16.msra.mxu0 0
    %6175 = vmatprep.subr.bf16.mxu0 0
    %6176 = vmatpush1.bf16.msra.mxu0 0
    %6177 = vmatprep.subr.bf16.mxu0 0
    %6178 = vmatpush1.bf16.msra.mxu0 0
    %6179 = vmatprep.mubr.bf16.mxu0 0
    %6180 = vmatmul.mubr.bf16.gmra.mrb[0].mxu0 %v5891
    %v6181 = vpop.f32.mrb[0].mxu0
    %v6182 = vadd.f32 %v5937, %v6181
    %v6183 = vpop.f32.mrb[0].mxu0
    %v6184 = vadd.f32 %v5941, %v6183
    %v6185 = vpop.f32.mrb[0].mxu0
    %v6186 = vpop.f32.mrb[0].mxu0
    %6187 = vdwg.mxu0
    %v6188 = vld [vmem:[#allocation5] sm:$0xff]
    %v6189 = vld [vmem:[#allocation5 + $0x8] sm:$0xff]
    %v6190 = vld [vmem:[#allocation5 + $0x10] sm:$0xff]
    %v6191 = vld [vmem:[#allocation5 + $0x18] sm:$0xff]
    %v6192 = vld [vmem:[#allocation5 + $0x20] sm:$0xff]
    %v6193 = vld [vmem:[#allocation5 + $0x28] sm:$0xff]
    %v6194 = vld [vmem:[#allocation5 + $0x30] sm:$0xff]
    %v6195 = vld [vmem:[#allocation5 + $0x38] sm:$0xff]
    %v6196 = vld [vmem:[#allocation5 + $0x40] sm:$0xff]
    %v6197 = vld [vmem:[#allocation5 + $0x48] sm:$0xff]
    %v6198 = vld [vmem:[#allocation5 + $0x50] sm:$0xff]
    %v6199 = vld [vmem:[#allocation5 + $0x58] sm:$0xff]
    %v6200 = vld [vmem:[#allocation5 + $0x60] sm:$0xff]
    %v6201 = vld [vmem:[#allocation5 + $0x68] sm:$0xff]
    %v6202 = vld [vmem:[#allocation5 + $0x70] sm:$0xff]
    %v6203 = vld [vmem:[#allocation5 + $0x78] sm:$0xff]
    %v6204 = vld [vmem:[#allocation5 + $0x80] sm:$0xff]
    %v6205 = vld [vmem:[#allocation5 + $0x88] sm:$0xff]
    %v6206 = vld [vmem:[#allocation5 + $0x90] sm:$0xff]
    %v6207 = vld [vmem:[#allocation5 + $0x98] sm:$0xff]
    %v6208 = vld [vmem:[#allocation5 + $0xa0] sm:$0xff]
    %v6209 = vld [vmem:[#allocation5 + $0xa8] sm:$0xff]
    %v6210 = vld [vmem:[#allocation5 + $0xb0] sm:$0xff]
    %v6211 = vld [vmem:[#allocation5 + $0xb8] sm:$0xff]
    %v6212 = vld [vmem:[#allocation5 + $0xc0] sm:$0xff]
    %v6213 = vld [vmem:[#allocation5 + $0xc8] sm:$0xff]
    %v6214 = vld [vmem:[#allocation5 + $0xd0] sm:$0xff]
    %v6215 = vld [vmem:[#allocation5 + $0xd8] sm:$0xff]
    %v6216 = vld [vmem:[#allocation5 + $0xe0] sm:$0xff]
    %v6217 = vld [vmem:[#allocation5 + $0xe8] sm:$0xff]
    %v6218 = vld [vmem:[#allocation5 + $0xf0] sm:$0xff]
    %v6219 = vld [vmem:[#allocation5 + $0xf8] sm:$0xff]
    %s6220 = scalar_lea.vmem [#allocation2], 48
    %v6221 = vld [vmem:[%s6220] sm:$0xff]
    %v6254 = vunpack.c.l.b16 %v6188
    %v6255 = vunpack.c.h.b16 %v6188
    %v6256 = vunpack.c.l.b16 %v6189
    %v6257 = vunpack.c.h.b16 %v6189
    %v6258 = vunpack.c.l.b16 %v6190
    %v6259 = vunpack.c.h.b16 %v6190
    %v6260 = vunpack.c.l.b16 %v6191
    %v6261 = vunpack.c.h.b16 %v6191
    %v6262 = vunpack.c.l.b16 %v6192
    %v6263 = vunpack.c.h.b16 %v6192
    %v6264 = vunpack.c.l.b16 %v6193
    %v6265 = vunpack.c.h.b16 %v6193
    %v6266 = vunpack.c.l.b16 %v6194
    %v6267 = vunpack.c.h.b16 %v6194
    %v6268 = vunpack.c.l.b16 %v6195
    %v6269 = vunpack.c.h.b16 %v6195
    %v6270 = vunpack.c.l.b16 %v6196
    %v6271 = vunpack.c.h.b16 %v6196
    %v6272 = vunpack.c.l.b16 %v6197
    %v6273 = vunpack.c.h.b16 %v6197
    %v6274 = vunpack.c.l.b16 %v6198
    %v6275 = vunpack.c.h.b16 %v6198
    %v6276 = vunpack.c.l.b16 %v6199
    %v6277 = vunpack.c.h.b16 %v6199
    %v6278 = vunpack.c.l.b16 %v6200
    %v6279 = vunpack.c.h.b16 %v6200
    %v6280 = vunpack.c.l.b16 %v6201
    %v6281 = vunpack.c.h.b16 %v6201
    %v6282 = vunpack.c.l.b16 %v6202
    %v6283 = vunpack.c.h.b16 %v6202
    %v6284 = vunpack.c.l.b16 %v6203
    %v6285 = vunpack.c.h.b16 %v6203
    %v6286 = vunpack.c.l.b16 %v6204
    %v6287 = vunpack.c.h.b16 %v6204
    %v6288 = vunpack.c.l.b16 %v6205
    %v6289 = vunpack.c.h.b16 %v6205
    %v6290 = vunpack.c.l.b16 %v6206
    %v6291 = vunpack.c.h.b16 %v6206
    %v6292 = vunpack.c.l.b16 %v6207
    %v6293 = vunpack.c.h.b16 %v6207
    %v6294 = vunpack.c.l.b16 %v6208
    %v6295 = vunpack.c.h.b16 %v6208
    %v6296 = vunpack.c.l.b16 %v6209
    %v6297 = vunpack.c.h.b16 %v6209
    %v6298 = vunpack.c.l.b16 %v6210
    %v6299 = vunpack.c.h.b16 %v6210
    %v6300 = vunpack.c.l.b16 %v6211
    %v6301 = vunpack.c.h.b16 %v6211
    %v6302 = vunpack.c.l.b16 %v6212
    %v6303 = vunpack.c.h.b16 %v6212
    %v6304 = vunpack.c.l.b16 %v6213
    %v6305 = vunpack.c.h.b16 %v6213
    %v6306 = vunpack.c.l.b16 %v6214
    %v6307 = vunpack.c.h.b16 %v6214
    %v6308 = vunpack.c.l.b16 %v6215
    %v6309 = vunpack.c.h.b16 %v6215
    %v6310 = vunpack.c.l.b16 %v6216
    %v6311 = vunpack.c.h.b16 %v6216
    %v6312 = vunpack.c.l.b16 %v6217
    %v6313 = vunpack.c.h.b16 %v6217
    %v6314 = vunpack.c.l.b16 %v6218
    %v6315 = vunpack.c.h.b16 %v6218
    %v6316 = vunpack.c.l.b16 %v6219
    %v6317 = vunpack.c.h.b16 %v6219
    %v6318 = vpack.c.b16 %v6258, %v6254
    %v6319 = vpack.c.b16 %v6259, %v6255
    %v6320 = vpack.c.b16 %v6260, %v6256
    %v6321 = vpack.c.b16 %v6261, %v6257
    %v6322 = vpack.c.b16 %v6266, %v6262
    %v6323 = vpack.c.b16 %v6267, %v6263
    %v6324 = vpack.c.b16 %v6268, %v6264
    %v6325 = vpack.c.b16 %v6269, %v6265
    %v6326 = vpack.c.b16 %v6274, %v6270
    %v6327 = vpack.c.b16 %v6275, %v6271
    %v6328 = vpack.c.b16 %v6276, %v6272
    %v6329 = vpack.c.b16 %v6277, %v6273
    %v6330 = vpack.c.b16 %v6282, %v6278
    %v6331 = vpack.c.b16 %v6283, %v6279
    %v6332 = vpack.c.b16 %v6284, %v6280
    %v6333 = vpack.c.b16 %v6285, %v6281
    %v6334 = vpack.c.b16 %v6290, %v6286
    %v6335 = vpack.c.b16 %v6291, %v6287
    %v6336 = vpack.c.b16 %v6292, %v6288
    %v6337 = vpack.c.b16 %v6293, %v6289
    %v6338 = vpack.c.b16 %v6298, %v6294
    %v6339 = vpack.c.b16 %v6299, %v6295
    %v6340 = vpack.c.b16 %v6300, %v6296
    %v6341 = vpack.c.b16 %v6301, %v6297
    %v6342 = vpack.c.b16 %v6306, %v6302
    %v6343 = vpack.c.b16 %v6307, %v6303
    %v6344 = vpack.c.b16 %v6308, %v6304
    %v6345 = vpack.c.b16 %v6309, %v6305
    %v6346 = vpack.c.b16 %v6314, %v6310
    %v6347 = vpack.c.b16 %v6315, %v6311
    %v6348 = vpack.c.b16 %v6316, %v6312
    %v6349 = vpack.c.b16 %v6317, %v6313
    %v6383 = vcombine.high %v6221, %v6221
    %v6385 = vunpack.c.l.s4 1983009808
    %v6386 = vunpack.c.0.s8 %v6385
    %v6387 = vlaneseq
    %v6388 = vshrl.u32 %v6387, 7
    %v6389 = vsub.s32 %v6386, %v6388
    %v6390 = vrot.slane %v6221, %v6389
    %v6392 = vunpack.c.l.s4 1983009808
    %v6393 = vunpack.c.0.s8 %v6392
    %v6394 = vlaneseq
    %v6395 = vshrl.u32 %v6394, 7
    %v6396 = vsub.s32 %v6393, %v6395
    %v6397 = vrot.slane %v6383, %v6396
    %v6398 = vcombine.high %v6390, %v6390
    %v6399 = vcombine.high %v6397, %v6397
    %6404 = vmatprep.subr.bf16.mxu0 %v6319
    %6405 = vmatpush1.bf16.msra.mxu0 %v6318
    %6406 = vmatprep.subr.bf16.mxu0 %v6323
    %6407 = vmatpush1.bf16.msra.mxu0 %v6322
    %6408 = vmatprep.subr.bf16.mxu0 %v6327
    %6409 = vmatpush1.bf16.msra.mxu0 %v6326
    %6410 = vmatprep.subr.bf16.mxu0 %v6331
    %6411 = vmatpush1.bf16.msra.mxu0 %v6330
    %6412 = vmatprep.subr.bf16.mxu0 %v6335
    %6413 = vmatpush1.bf16.msra.mxu0 %v6334
    %6414 = vmatprep.subr.bf16.mxu0 %v6339
    %6415 = vmatpush1.bf16.msra.mxu0 %v6338
    %6416 = vmatprep.subr.bf16.mxu0 %v6343
    %6417 = vmatpush1.bf16.msra.mxu0 %v6342
    %6418 = vmatprep.subr.bf16.mxu0 %v6347
    %6419 = vmatpush1.bf16.msra.mxu0 %v6346
    %6420 = vmatprep.subr.bf16.mxu0 0
    %6421 = vmatpush1.bf16.msra.mxu0 0
    %6422 = vmatprep.subr.bf16.mxu0 0
    %6423 = vmatpush1.bf16.msra.mxu0 0
    %6424 = vmatprep.subr.bf16.mxu0 0
    %6425 = vmatpush1.bf16.msra.mxu0 0
    %6426 = vmatprep.subr.bf16.mxu0 0
    %6427 = vmatpush1.bf16.msra.mxu0 0
    %6428 = vmatprep.subr.bf16.mxu0 0
    %6429 = vmatpush1.bf16.msra.mxu0 0
    %6430 = vmatprep.subr.bf16.mxu0 0
    %6431 = vmatpush1.bf16.msra.mxu0 0
    %6432 = vmatprep.subr.bf16.mxu0 0
    %6433 = vmatpush1.bf16.msra.mxu0 0
    %6434 = vmatprep.subr.bf16.mxu0 0
    %6435 = vmatpush1.bf16.msra.mxu0 0
    %6436 = vmatprep.mubr.bf16.mxu0 0
    %6437 = vmatmul.mubr.bf16.gmra.mrb[0].mxu0 %v5592
    %v6438 = vpop.f32.mrb[0].mxu0
    %v6439 = vadd.f32 %v6390, %v6438
    %v6440 = vpop.f32.mrb[0].mxu0
    %v6441 = vadd.f32 %v6398, %v6440
    %v6442 = vpop.f32.mrb[0].mxu0
    %v6443 = vpop.f32.mrb[0].mxu0
    %6444 = vdwg.mxu0
    %6445 = vmatprep.subr.bf16.mxu0 %v6321
    %6446 = vmatpush1.bf16.msra.mxu0 %v6320
    %6447 = vmatprep.subr.bf16.mxu0 %v6325
    %6448 = vmatpush1.bf16.msra.mxu0 %v6324
    %6449 = vmatprep.subr.bf16.mxu0 %v6329
    %6450 = vmatpush1.bf16.msra.mxu0 %v6328
    %6451 = vmatprep.subr.bf16.mxu0 %v6333
    %6452 = vmatpush1.bf16.msra.mxu0 %v6332
    %6453 = vmatprep.subr.bf16.mxu0 %v6337
    %6454 = vmatpush1.bf16.msra.mxu0 %v6336
    %6455 = vmatprep.subr.bf16.mxu0 %v6341
    %6456 = vmatpush1.bf16.msra.mxu0 %v6340
    %6457 = vmatprep.subr.bf16.mxu0 %v6345
    %6458 = vmatpush1.bf16.msra.mxu0 %v6344
    %6459 = vmatprep.subr.bf16.mxu0 %v6349
    %6460 = vmatpush1.bf16.msra.mxu0 %v6348
    %6461 = vmatprep.subr.bf16.mxu0 0
    %6462 = vmatpush1.bf16.msra.mxu0 0
    %6463 = vmatprep.subr.bf16.mxu0 0
    %6464 = vmatpush1.bf16.msra.mxu0 0
    %6465 = vmatprep.subr.bf16.mxu0 0
    %6466 = vmatpush1.bf16.msra.mxu0 0
    %6467 = vmatprep.subr.bf16.mxu0 0
    %6468 = vmatpush1.bf16.msra.mxu0 0
    %6469 = vmatprep.subr.bf16.mxu0 0
    %6470 = vmatpush1.bf16.msra.mxu0 0
    %6471 = vmatprep.subr.bf16.mxu0 0
    %6472 = vmatpush1.bf16.msra.mxu0 0
    %6473 = vmatprep.subr.bf16.mxu0 0
    %6474 = vmatpush1.bf16.msra.mxu0 0
    %6475 = vmatprep.subr.bf16.mxu0 0
    %6476 = vmatpush1.bf16.msra.mxu0 0
    %6477 = vmatprep.mubr.bf16.mxu0 0
    %6478 = vmatmul.mubr.bf16.gmra.mrb[0].mxu0 %v5592
    %v6479 = vpop.f32.mrb[0].mxu0
    %v6480 = vadd.f32 %v6397, %v6479
    %v6481 = vpop.f32.mrb[0].mxu0
    %v6482 = vadd.f32 %v6399, %v6481
    %v6483 = vpop.f32.mrb[0].mxu0
    %v6484 = vpop.f32.mrb[0].mxu0
    %6485 = vdwg.mxu0
    %v6486 = vmul.f32 %v6439, 0.5
    %v6487 = vtanh.pop %v6486
    %v6488 = vadd.f32 %v6487, 1.0
    %v6489 = vmul.f32 %v6488, 0.5
    %v6490 = vmul.f32 %v6441, 0.5
    %v6491 = vtanh.pop %v6490
    %v6492 = vadd.f32 %v6491, 1.0
    %v6493 = vmul.f32 %v6492, 0.5
    %v6494 = vtanh.pop %v6480
    %v6495 = vmul.f32 %v6482, 0.5
    %v6496 = vtanh.pop %v6495
    %v6497 = vadd.f32 %v6496, 1.0
    %v6498 = vmul.f32 %v6497, 0.5
    %v6499 = vmul.f32 %v6493, %v5589
    %v6500 = vmul.f32 %v6489, %v6494
    %v6501 = vadd.f32 %v6499, %v6500
    %v6502 = vtanh.pop %v6501
    %v6503 = vmul.f32 %v6498, %v6502
    %v6504 = vpack.c.bf16 %v6503, %v6503
    %v6505 = vld [vmem:[#allocation8] sm:$0xff]
    %v6506 = vld [vmem:[#allocation8 + $0x8] sm:$0xff]
    %v6507 = vld [vmem:[#allocation8 + $0x10] sm:$0xff]
    %v6508 = vld [vmem:[#allocation8 + $0x18] sm:$0xff]
    %v6509 = vld [vmem:[#allocation8 + $0x20] sm:$0xff]
    %v6510 = vld [vmem:[#allocation8 + $0x28] sm:$0xff]
    %v6511 = vld [vmem:[#allocation8 + $0x30] sm:$0xff]
    %v6512 = vld [vmem:[#allocation8 + $0x38] sm:$0xff]
    %v6513 = vld [vmem:[#allocation8 + $0x40] sm:$0xff]
    %v6514 = vld [vmem:[#allocation8 + $0x48] sm:$0xff]
    %v6515 = vld [vmem:[#allocation8 + $0x50] sm:$0xff]
    %v6516 = vld [vmem:[#allocation8 + $0x58] sm:$0xff]
    %v6517 = vld [vmem:[#allocation8 + $0x60] sm:$0xff]
    %v6518 = vld [vmem:[#allocation8 + $0x68] sm:$0xff]
    %v6519 = vld [vmem:[#allocation8 + $0x70] sm:$0xff]
    %v6520 = vld [vmem:[#allocation8 + $0x78] sm:$0xff]
    %v6521 = vld [vmem:[#allocation8 + $0x80] sm:$0xff]
    %v6522 = vld [vmem:[#allocation8 + $0x88] sm:$0xff]
    %v6523 = vld [vmem:[#allocation8 + $0x90] sm:$0xff]
    %v6524 = vld [vmem:[#allocation8 + $0x98] sm:$0xff]
    %v6525 = vld [vmem:[#allocation8 + $0xa0] sm:$0xff]
    %v6526 = vld [vmem:[#allocation8 + $0xa8] sm:$0xff]
    %v6527 = vld [vmem:[#allocation8 + $0xb0] sm:$0xff]
    %v6528 = vld [vmem:[#allocation8 + $0xb8] sm:$0xff]
    %v6529 = vld [vmem:[#allocation8 + $0xc0] sm:$0xff]
    %v6530 = vld [vmem:[#allocation8 + $0xc8] sm:$0xff]
    %v6531 = vld [vmem:[#allocation8 + $0xd0] sm:$0xff]
    %v6532 = vld [vmem:[#allocation8 + $0xd8] sm:$0xff]
    %v6533 = vld [vmem:[#allocation8 + $0xe0] sm:$0xff]
    %v6534 = vld [vmem:[#allocation8 + $0xe8] sm:$0xff]
    %v6535 = vld [vmem:[#allocation8 + $0xf0] sm:$0xff]
    %v6536 = vld [vmem:[#allocation8 + $0xf8] sm:$0xff]
    %v6569 = vunpack.c.l.b16 %v6505
    %v6570 = vunpack.c.h.b16 %v6505
    %v6571 = vunpack.c.l.b16 %v6506
    %v6572 = vunpack.c.h.b16 %v6506
    %v6573 = vunpack.c.l.b16 %v6507
    %v6574 = vunpack.c.h.b16 %v6507
    %v6575 = vunpack.c.l.b16 %v6508
    %v6576 = vunpack.c.h.b16 %v6508
    %v6577 = vunpack.c.l.b16 %v6509
    %v6578 = vunpack.c.h.b16 %v6509
    %v6579 = vunpack.c.l.b16 %v6510
    %v6580 = vunpack.c.h.b16 %v6510
    %v6581 = vunpack.c.l.b16 %v6511
    %v6582 = vunpack.c.h.b16 %v6511
    %v6583 = vunpack.c.l.b16 %v6512
    %v6584 = vunpack.c.h.b16 %v6512
    %v6585 = vunpack.c.l.b16 %v6513
    %v6586 = vunpack.c.h.b16 %v6513
    %v6587 = vunpack.c.l.b16 %v6514
    %v6588 = vunpack.c.h.b16 %v6514
    %v6589 = vunpack.c.l.b16 %v6515
    %v6590 = vunpack.c.h.b16 %v6515
    %v6591 = vunpack.c.l.b16 %v6516
    %v6592 = vunpack.c.h.b16 %v6516
    %v6593 = vunpack.c.l.b16 %v6517
    %v6594 = vunpack.c.h.b16 %v6517
    %v6595 = vunpack.c.l.b16 %v6518
    %v6596 = vunpack.c.h.b16 %v6518
    %v6597 = vunpack.c.l.b16 %v6519
    %v6598 = vunpack.c.h.b16 %v6519
    %v6599 = vunpack.c.l.b16 %v6520
    %v6600 = vunpack.c.h.b16 %v6520
    %v6601 = vunpack.c.l.b16 %v6521
    %v6602 = vunpack.c.h.b16 %v6521
    %v6603 = vunpack.c.l.b16 %v6522
    %v6604 = vunpack.c.h.b16 %v6522
    %v6605 = vunpack.c.l.b16 %v6523
    %v6606 = vunpack.c.h.b16 %v6523
    %v6607 = vunpack.c.l.b16 %v6524
    %v6608 = vunpack.c.h.b16 %v6524
    %v6609 = vunpack.c.l.b16 %v6525
    %v6610 = vunpack.c.h.b16 %v6525
    %v6611 = vunpack.c.l.b16 %v6526
    %v6612 = vunpack.c.h.b16 %v6526
    %v6613 = vunpack.c.l.b16 %v6527
    %v6614 = vunpack.c.h.b16 %v6527
    %v6615 = vunpack.c.l.b16 %v6528
    %v6616 = vunpack.c.h.b16 %v6528
    %v6617 = vunpack.c.l.b16 %v6529
    %v6618 = vunpack.c.h.b16 %v6529
    %v6619 = vunpack.c.l.b16 %v6530
    %v6620 = vunpack.c.h.b16 %v6530
    %v6621 = vunpack.c.l.b16 %v6531
    %v6622 = vunpack.c.h.b16 %v6531
    %v6623 = vunpack.c.l.b16 %v6532
    %v6624 = vunpack.c.h.b16 %v6532
    %v6625 = vunpack.c.l.b16 %v6533
    %v6626 = vunpack.c.h.b16 %v6533
    %v6627 = vunpack.c.l.b16 %v6534
    %v6628 = vunpack.c.h.b16 %v6534
    %v6629 = vunpack.c.l.b16 %v6535
    %v6630 = vunpack.c.h.b16 %v6535
    %v6631 = vunpack.c.l.b16 %v6536
    %v6632 = vunpack.c.h.b16 %v6536
    %v6633 = vpack.c.b16 %v6573, %v6569
    %v6634 = vpack.c.b16 %v6574, %v6570
    %v6635 = vpack.c.b16 %v6575, %v6571
    %v6636 = vpack.c.b16 %v6576, %v6572
    %v6637 = vpack.c.b16 %v6581, %v6577
    %v6638 = vpack.c.b16 %v6582, %v6578
    %v6639 = vpack.c.b16 %v6583, %v6579
    %v6640 = vpack.c.b16 %v6584, %v6580
    %v6641 = vpack.c.b16 %v6589, %v6585
    %v6642 = vpack.c.b16 %v6590, %v6586
    %v6643 = vpack.c.b16 %v6591, %v6587
    %v6644 = vpack.c.b16 %v6592, %v6588
    %v6645 = vpack.c.b16 %v6597, %v6593
    %v6646 = vpack.c.b16 %v6598, %v6594
    %v6647 = vpack.c.b16 %v6599, %v6595
    %v6648 = vpack.c.b16 %v6600, %v6596
    %v6649 = vpack.c.b16 %v6605, %v6601
    %v6650 = vpack.c.b16 %v6606, %v6602
    %v6651 = vpack.c.b16 %v6607, %v6603
    %v6652 = vpack.c.b16 %v6608, %v6604
    %v6653 = vpack.c.b16 %v6613, %v6609
    %v6654 = vpack.c.b16 %v6614, %v6610
    %v6655 = vpack.c.b16 %v6615, %v6611
    %v6656 = vpack.c.b16 %v6616, %v6612
    %v6657 = vpack.c.b16 %v6621, %v6617
    %v6658 = vpack.c.b16 %v6622, %v6618
    %v6659 = vpack.c.b16 %v6623, %v6619
    %v6660 = vpack.c.b16 %v6624, %v6620
    %v6661 = vpack.c.b16 %v6629, %v6625
    %v6662 = vpack.c.b16 %v6630, %v6626
    %v6663 = vpack.c.b16 %v6631, %v6627
    %v6664 = vpack.c.b16 %v6632, %v6628
    %6697 = vmatprep.subr.bf16.mxu0 %v6634
    %6698 = vmatpush1.bf16.msra.mxu0 %v6633
    %6699 = vmatprep.subr.bf16.mxu0 %v6638
    %6700 = vmatpush1.bf16.msra.mxu0 %v6637
    %6701 = vmatprep.subr.bf16.mxu0 %v6642
    %6702 = vmatpush1.bf16.msra.mxu0 %v6641
    %6703 = vmatprep.subr.bf16.mxu0 %v6646
    %6704 = vmatpush1.bf16.msra.mxu0 %v6645
    %6705 = vmatprep.subr.bf16.mxu0 %v6650
    %6706 = vmatpush1.bf16.msra.mxu0 %v6649
    %6707 = vmatprep.subr.bf16.mxu0 %v6654
    %6708 = vmatpush1.bf16.msra.mxu0 %v6653
    %6709 = vmatprep.subr.bf16.mxu0 %v6658
    %6710 = vmatpush1.bf16.msra.mxu0 %v6657
    %6711 = vmatprep.subr.bf16.mxu0 %v6662
    %6712 = vmatpush1.bf16.msra.mxu0 %v6661
    %6713 = vmatprep.subr.bf16.mxu0 0
    %6714 = vmatpush1.bf16.msra.mxu0 0
    %6715 = vmatprep.subr.bf16.mxu0 0
    %6716 = vmatpush1.bf16.msra.mxu0 0
    %6717 = vmatprep.subr.bf16.mxu0 0
    %6718 = vmatpush1.bf16.msra.mxu0 0
    %6719 = vmatprep.subr.bf16.mxu0 0
    %6720 = vmatpush1.bf16.msra.mxu0 0
    %6721 = vmatprep.subr.bf16.mxu0 0
    %6722 = vmatpush1.bf16.msra.mxu0 0
    %6723 = vmatprep.subr.bf16.mxu0 0
    %6724 = vmatpush1.bf16.msra.mxu0 0
    %6725 = vmatprep.subr.bf16.mxu0 0
    %6726 = vmatpush1.bf16.msra.mxu0 0
    %6727 = vmatprep.subr.bf16.mxu0 0
    %6728 = vmatpush1.bf16.msra.mxu0 0
    %6729 = vmatprep.mubr.bf16.mxu0 0
    %6730 = vmatmul.mubr.bf16.gmra.mrb[0].mxu0 %v6504
    %v6731 = vpop.f32.mrb[0].mxu0
    %v6732 = vadd.f32 0.0, %v6731
    %v6733 = vpop.f32.mrb[0].mxu0
    %v6734 = vadd.f32 0.0, %v6733
    %v6735 = vpop.f32.mrb[0].mxu0
    %v6736 = vpop.f32.mrb[0].mxu0
    %6737 = vdwg.mxu0
    %6738 = vmatprep.subr.bf16.mxu0 %v6636
    %6739 = vmatpush1.bf16.msra.mxu0 %v6635
    %6740 = vmatprep.subr.bf16.mxu0 %v6640
    %6741 = vmatpush1.bf16.msra.mxu0 %v6639
    %6742 = vmatprep.subr.bf16.mxu0 %v6644
    %6743 = vmatpush1.bf16.msra.mxu0 %v6643
    %6744 = vmatprep.subr.bf16.mxu0 %v6648
    %6745 = vmatpush1.bf16.msra.mxu0 %v6647
    %6746 = vmatprep.subr.bf16.mxu0 %v6652
    %6747 = vmatpush1.bf16.msra.mxu0 %v6651
    %6748 = vmatprep.subr.bf16.mxu0 %v6656
    %6749 = vmatpush1.bf16.msra.mxu0 %v6655
    %6750 = vmatprep.subr.bf16.mxu0 %v6660
    %6751 = vmatpush1.bf16.msra.mxu0 %v6659
    %6752 = vmatprep.subr.bf16.mxu0 %v6664
    %6753 = vmatpush1.bf16.msra.mxu0 %v6663
    %6754 = vmatprep.subr.bf16.mxu0 0
    %6755 = vmatpush1.bf16.msra.mxu0 0
    %6756 = vmatprep.subr.bf16.mxu0 0
    %6757 = vmatpush1.bf16.msra.mxu0 0
    %6758 = vmatprep.subr.bf16.mxu0 0
    %6759 = vmatpush1.bf16.msra.mxu0 0
    %6760 = vmatprep.subr.bf16.mxu0 0
    %6761 = vmatpush1.bf16.msra.mxu0 0
    %6762 = vmatprep.subr.bf16.mxu0 0
    %6763 = vmatpush1.bf16.msra.mxu0 0
    %6764 = vmatprep.subr.bf16.mxu0 0
    %6765 = vmatpush1.bf16.msra.mxu0 0
    %6766 = vmatprep.subr.bf16.mxu0 0
    %6767 = vmatpush1.bf16.msra.mxu0 0
    %6768 = vmatprep.subr.bf16.mxu0 0
    %6769 = vmatpush1.bf16.msra.mxu0 0
    %6770 = vmatprep.mubr.bf16.mxu0 0
    %6771 = vmatmul.mubr.bf16.gmra.mrb[0].mxu0 %v6504
    %v6772 = vpop.f32.mrb[0].mxu0
    %v6773 = vadd.f32 0.0, %v6772
    %v6774 = vpop.f32.mrb[0].mxu0
    %v6775 = vadd.f32 0.0, %v6774
    %v6776 = vpop.f32.mrb[0].mxu0
    %v6777 = vpop.f32.mrb[0].mxu0
    %6778 = vdwg.mxu0
    %v6779 = vadd.f32 %v6141, %v6732
    %v6780 = vadd.f32 %v6143, %v6734
    %v6781 = vadd.f32 %v6182, %v6773
    %v6782 = vadd.f32 %v6184, %v6775
    %v6783 = vmul.f32 %v6779, 0.5
    %v6784 = vtanh.pop %v6783
    %v6785 = vadd.f32 %v6784, 1.0
    %v6786 = vmul.f32 %v6785, 0.5
    %v6787 = vmul.f32 %v6780, 0.5
    %v6788 = vtanh.pop %v6787
    %v6789 = vadd.f32 %v6788, 1.0
    %v6790 = vmul.f32 %v6789, 0.5
    %v6791 = vtanh.pop %v6781
    %v6792 = vmul.f32 %v6782, 0.5
    %v6793 = vtanh.pop %v6792
    %v6794 = vadd.f32 %v6793, 1.0
    %v6795 = vmul.f32 %v6794, 0.5
    %v6796 = vmul.f32 %v6790, %v5886
    %v6797 = vmul.f32 %v6786, %v6791
    %v6798 = vadd.f32 %v6796, %v6797
    %v6799 = vtanh.pop %v6798
    %v6800 = vmul.f32 %v6795, %v6799
    %s6801 = scalar_lea.vmem [#allocation3], 12
    %6802 = vst [vmem:[%s6801] sm:$0x3] %v6800
    %v6803 = vpack.c.bf16 %v6800, %v6800
    %v6804 = vld [vmem:[#allocation10] sm:$0xff]
    %v6805 = vld [vmem:[#allocation10 + $0x8] sm:$0xff]
    %v6806 = vld [vmem:[#allocation10 + $0x10] sm:$0xff]
    %v6807 = vld [vmem:[#allocation10 + $0x18] sm:$0xff]
    %v6808 = vld [vmem:[#allocation10 + $0x20] sm:$0xff]
    %v6809 = vld [vmem:[#allocation10 + $0x28] sm:$0xff]
    %v6810 = vld [vmem:[#allocation10 + $0x30] sm:$0xff]
    %v6811 = vld [vmem:[#allocation10 + $0x38] sm:$0xff]
    %v6812 = vld [vmem:[#allocation10 + $0x40] sm:$0xff]
    %v6813 = vld [vmem:[#allocation10 + $0x48] sm:$0xff]
    %v6814 = vld [vmem:[#allocation10 + $0x50] sm:$0xff]
    %v6815 = vld [vmem:[#allocation10 + $0x58] sm:$0xff]
    %v6816 = vld [vmem:[#allocation10 + $0x60] sm:$0xff]
    %v6817 = vld [vmem:[#allocation10 + $0x68] sm:$0xff]
    %v6818 = vld [vmem:[#allocation10 + $0x70] sm:$0xff]
    %v6819 = vld [vmem:[#allocation10 + $0x78] sm:$0xff]
    %v6820 = vld [vmem:[#allocation10 + $0x80] sm:$0xff]
    %v6821 = vld [vmem:[#allocation10 + $0x88] sm:$0xff]
    %v6822 = vld [vmem:[#allocation10 + $0x90] sm:$0xff]
    %v6823 = vld [vmem:[#allocation10 + $0x98] sm:$0xff]
    %v6824 = vld [vmem:[#allocation10 + $0xa0] sm:$0xff]
    %v6825 = vld [vmem:[#allocation10 + $0xa8] sm:$0xff]
    %v6826 = vld [vmem:[#allocation10 + $0xb0] sm:$0xff]
    %v6827 = vld [vmem:[#allocation10 + $0xb8] sm:$0xff]
    %v6828 = vld [vmem:[#allocation10 + $0xc0] sm:$0xff]
    %v6829 = vld [vmem:[#allocation10 + $0xc8] sm:$0xff]
    %v6830 = vld [vmem:[#allocation10 + $0xd0] sm:$0xff]
    %v6831 = vld [vmem:[#allocation10 + $0xd8] sm:$0xff]
    %v6832 = vld [vmem:[#allocation10 + $0xe0] sm:$0xff]
    %v6833 = vld [vmem:[#allocation10 + $0xe8] sm:$0xff]
    %v6834 = vld [vmem:[#allocation10 + $0xf0] sm:$0xff]
    %v6835 = vld [vmem:[#allocation10 + $0xf8] sm:$0xff]
    %v6836 = vld [vmem:[%s7] sm:$0xf]
    %v6838 = vlaneseq
    %v6839 = vshrl.u32 %v6838, 7
    %v6840 = vsub.s32 0, %v6839
    %v6841 = vrot.slane %v6836, %v6840
    %v6842 = vlaneseq
    %v6843 = vshrl.u32 %v6842, 7
    %v6844 = vsub.s32 1, %v6843
    %v6845 = vrot.slane %v6836, %v6844
    %v6846 = vlaneseq
    %v6847 = vshrl.u32 %v6846, 7
    %v6848 = vsub.s32 2, %v6847
    %v6849 = vrot.slane %v6836, %v6848
    %v6850 = vlaneseq
    %v6851 = vshrl.u32 %v6850, 7
    %v6852 = vsub.s32 3, %v6851
    %v6853 = vrot.slane %v6836, %v6852
    %v6890 = vunpack.c.l.b16 %v6804
    %v6891 = vunpack.c.h.b16 %v6804
    %v6892 = vunpack.c.l.b16 %v6805
    %v6893 = vunpack.c.h.b16 %v6805
    %v6894 = vunpack.c.l.b16 %v6806
    %v6895 = vunpack.c.h.b16 %v6806
    %v6896 = vunpack.c.l.b16 %v6807
    %v6897 = vunpack.c.h.b16 %v6807
    %v6898 = vunpack.c.l.b16 %v6808
    %v6899 = vunpack.c.h.b16 %v6808
    %v6900 = vunpack.c.l.b16 %v6809
    %v6901 = vunpack.c.h.b16 %v6809
    %v6902 = vunpack.c.l.b16 %v6810
    %v6903 = vunpack.c.h.b16 %v6810
    %v6904 = vunpack.c.l.b16 %v6811
    %v6905 = vunpack.c.h.b16 %v6811
    %v6906 = vunpack.c.l.b16 %v6812
    %v6907 = vunpack.c.h.b16 %v6812
    %v6908 = vunpack.c.l.b16 %v6813
    %v6909 = vunpack.c.h.b16 %v6813
    %v6910 = vunpack.c.l.b16 %v6814
    %v6911 = vunpack.c.h.b16 %v6814
    %v6912 = vunpack.c.l.b16 %v6815
    %v6913 = vunpack.c.h.b16 %v6815
    %v6914 = vunpack.c.l.b16 %v6816
    %v6915 = vunpack.c.h.b16 %v6816
    %v6916 = vunpack.c.l.b16 %v6817
    %v6917 = vunpack.c.h.b16 %v6817
    %v6918 = vunpack.c.l.b16 %v6818
    %v6919 = vunpack.c.h.b16 %v6818
    %v6920 = vunpack.c.l.b16 %v6819
    %v6921 = vunpack.c.h.b16 %v6819
    %v6922 = vunpack.c.l.b16 %v6820
    %v6923 = vunpack.c.h.b16 %v6820
    %v6924 = vunpack.c.l.b16 %v6821
    %v6925 = vunpack.c.h.b16 %v6821
    %v6926 = vunpack.c.l.b16 %v6822
    %v6927 = vunpack.c.h.b16 %v6822
    %v6928 = vunpack.c.l.b16 %v6823
    %v6929 = vunpack.c.h.b16 %v6823
    %v6930 = vunpack.c.l.b16 %v6824
    %v6931 = vunpack.c.h.b16 %v6824
    %v6932 = vunpack.c.l.b16 %v6825
    %v6933 = vunpack.c.h.b16 %v6825
    %v6934 = vunpack.c.l.b16 %v6826
    %v6935 = vunpack.c.h.b16 %v6826
    %v6936 = vunpack.c.l.b16 %v6827
    %v6937 = vunpack.c.h.b16 %v6827
    %v6938 = vunpack.c.l.b16 %v6828
    %v6939 = vunpack.c.h.b16 %v6828
    %v6940 = vunpack.c.l.b16 %v6829
    %v6941 = vunpack.c.h.b16 %v6829
    %v6942 = vunpack.c.l.b16 %v6830
    %v6943 = vunpack.c.h.b16 %v6830
    %v6944 = vunpack.c.l.b16 %v6831
    %v6945 = vunpack.c.h.b16 %v6831
    %v6946 = vunpack.c.l.b16 %v6832
    %v6947 = vunpack.c.h.b16 %v6832
    %v6948 = vunpack.c.l.b16 %v6833
    %v6949 = vunpack.c.h.b16 %v6833
    %v6950 = vunpack.c.l.b16 %v6834
    %v6951 = vunpack.c.h.b16 %v6834
    %v6952 = vunpack.c.l.b16 %v6835
    %v6953 = vunpack.c.h.b16 %v6835
    %v6954 = vpack.c.b16 %v6894, %v6890
    %v6955 = vpack.c.b16 %v6895, %v6891
    %v6956 = vpack.c.b16 %v6896, %v6892
    %v6957 = vpack.c.b16 %v6897, %v6893
    %v6958 = vpack.c.b16 %v6902, %v6898
    %v6959 = vpack.c.b16 %v6903, %v6899
    %v6960 = vpack.c.b16 %v6904, %v6900
    %v6961 = vpack.c.b16 %v6905, %v6901
    %v6962 = vpack.c.b16 %v6910, %v6906
    %v6963 = vpack.c.b16 %v6911, %v6907
    %v6964 = vpack.c.b16 %v6912, %v6908
    %v6965 = vpack.c.b16 %v6913, %v6909
    %v6966 = vpack.c.b16 %v6918, %v6914
    %v6967 = vpack.c.b16 %v6919, %v6915
    %v6968 = vpack.c.b16 %v6920, %v6916
    %v6969 = vpack.c.b16 %v6921, %v6917
    %v6970 = vpack.c.b16 %v6926, %v6922
    %v6971 = vpack.c.b16 %v6927, %v6923
    %v6972 = vpack.c.b16 %v6928, %v6924
    %v6973 = vpack.c.b16 %v6929, %v6925
    %v6974 = vpack.c.b16 %v6934, %v6930
    %v6975 = vpack.c.b16 %v6935, %v6931
    %v6976 = vpack.c.b16 %v6936, %v6932
    %v6977 = vpack.c.b16 %v6937, %v6933
    %v6978 = vpack.c.b16 %v6942, %v6938
    %v6979 = vpack.c.b16 %v6943, %v6939
    %v6980 = vpack.c.b16 %v6944, %v6940
    %v6981 = vpack.c.b16 %v6945, %v6941
    %v6982 = vpack.c.b16 %v6950, %v6946
    %v6983 = vpack.c.b16 %v6951, %v6947
    %v6984 = vpack.c.b16 %v6952, %v6948
    %v6985 = vpack.c.b16 %v6953, %v6949
    %7018 = vmatprep.subr.bf16.mxu0 %v6955
    %7019 = vmatpush1.bf16.msra.mxu0 %v6954
    %7020 = vmatprep.subr.bf16.mxu0 %v6959
    %7021 = vmatpush1.bf16.msra.mxu0 %v6958
    %7022 = vmatprep.subr.bf16.mxu0 %v6963
    %7023 = vmatpush1.bf16.msra.mxu0 %v6962
    %7024 = vmatprep.subr.bf16.mxu0 %v6967
    %7025 = vmatpush1.bf16.msra.mxu0 %v6966
    %7026 = vmatprep.subr.bf16.mxu0 %v6971
    %7027 = vmatpush1.bf16.msra.mxu0 %v6970
    %7028 = vmatprep.subr.bf16.mxu0 %v6975
    %7029 = vmatpush1.bf16.msra.mxu0 %v6974
    %7030 = vmatprep.subr.bf16.mxu0 %v6979
    %7031 = vmatpush1.bf16.msra.mxu0 %v6978
    %7032 = vmatprep.subr.bf16.mxu0 %v6983
    %7033 = vmatpush1.bf16.msra.mxu0 %v6982
    %7034 = vmatprep.subr.bf16.mxu0 0
    %7035 = vmatpush1.bf16.msra.mxu0 0
    %7036 = vmatprep.subr.bf16.mxu0 0
    %7037 = vmatpush1.bf16.msra.mxu0 0
    %7038 = vmatprep.subr.bf16.mxu0 0
    %7039 = vmatpush1.bf16.msra.mxu0 0
    %7040 = vmatprep.subr.bf16.mxu0 0
    %7041 = vmatpush1.bf16.msra.mxu0 0
    %7042 = vmatprep.subr.bf16.mxu0 0
    %7043 = vmatpush1.bf16.msra.mxu0 0
    %7044 = vmatprep.subr.bf16.mxu0 0
    %7045 = vmatpush1.bf16.msra.mxu0 0
    %7046 = vmatprep.subr.bf16.mxu0 0
    %7047 = vmatpush1.bf16.msra.mxu0 0
    %7048 = vmatprep.subr.bf16.mxu0 0
    %7049 = vmatpush1.bf16.msra.mxu0 0
    %7050 = vmatprep.mubr.bf16.mxu0 0
    %7051 = vmatmul.mubr.bf16.gmra.mrb[0].mxu0 %v6803
    %v7052 = vpop.f32.mrb[0].mxu0
    %v7053 = vadd.f32 %v6841, %v7052
    %v7054 = vpop.f32.mrb[0].mxu0
    %v7055 = vadd.f32 %v6845, %v7054
    %v7056 = vpop.f32.mrb[0].mxu0
    %v7057 = vpop.f32.mrb[0].mxu0
    %7058 = vdwg.mxu0
    %7059 = vmatprep.subr.bf16.mxu0 %v6957
    %7060 = vmatpush1.bf16.msra.mxu0 %v6956
    %7061 = vmatprep.subr.bf16.mxu0 %v6961
    %7062 = vmatpush1.bf16.msra.mxu0 %v6960
    %7063 = vmatprep.subr.bf16.mxu0 %v6965
    %7064 = vmatpush1.bf16.msra.mxu0 %v6964
    %7065 = vmatprep.subr.bf16.mxu0 %v6969
    %7066 = vmatpush1.bf16.msra.mxu0 %v6968
    %7067 = vmatprep.subr.bf16.mxu0 %v6973
    %7068 = vmatpush1.bf16.msra.mxu0 %v6972
    %7069 = vmatprep.subr.bf16.mxu0 %v6977
    %7070 = vmatpush1.bf16.msra.mxu0 %v6976
    %7071 = vmatprep.subr.bf16.mxu0 %v6981
    %7072 = vmatpush1.bf16.msra.mxu0 %v6980
    %7073 = vmatprep.subr.bf16.mxu0 %v6985
    %7074 = vmatpush1.bf16.msra.mxu0 %v6984
    %7075 = vmatprep.subr.bf16.mxu0 0
    %7076 = vmatpush1.bf16.msra.mxu0 0
    %7077 = vmatprep.subr.bf16.mxu0 0
    %7078 = vmatpush1.bf16.msra.mxu0 0
    %7079 = vmatprep.subr.bf16.mxu0 0
    %7080 = vmatpush1.bf16.msra.mxu0 0
    %7081 = vmatprep.subr.bf16.mxu0 0
    %7082 = vmatpush1.bf16.msra.mxu0 0
    %7083 = vmatprep.subr.bf16.mxu0 0
    %7084 = vmatpush1.bf16.msra.mxu0 0
    %7085 = vmatprep.subr.bf16.mxu0 0
    %7086 = vmatpush1.bf16.msra.mxu0 0
    %7087 = vmatprep.subr.bf16.mxu0 0
    %7088 = vmatpush1.bf16.msra.mxu0 0
    %7089 = vmatprep.subr.bf16.mxu0 0
    %7090 = vmatpush1.bf16.msra.mxu0 0
    %7091 = vmatprep.mubr.bf16.mxu0 0
    %7092 = vmatmul.mubr.bf16.gmra.mrb[0].mxu0 %v6803
    %v7093 = vpop.f32.mrb[0].mxu0
    %v7094 = vadd.f32 %v6849, %v7093
    %v7095 = vpop.f32.mrb[0].mxu0
    %v7096 = vadd.f32 %v6853, %v7095
    %v7097 = vpop.f32.mrb[0].mxu0
    %v7098 = vpop.f32.mrb[0].mxu0
    %7099 = vdwg.mxu0
    %v7100 = vld [vmem:[#allocation5] sm:$0xff]
    %v7101 = vld [vmem:[#allocation5 + $0x8] sm:$0xff]
    %v7102 = vld [vmem:[#allocation5 + $0x10] sm:$0xff]
    %v7103 = vld [vmem:[#allocation5 + $0x18] sm:$0xff]
    %v7104 = vld [vmem:[#allocation5 + $0x20] sm:$0xff]
    %v7105 = vld [vmem:[#allocation5 + $0x28] sm:$0xff]
    %v7106 = vld [vmem:[#allocation5 + $0x30] sm:$0xff]
    %v7107 = vld [vmem:[#allocation5 + $0x38] sm:$0xff]
    %v7108 = vld [vmem:[#allocation5 + $0x40] sm:$0xff]
    %v7109 = vld [vmem:[#allocation5 + $0x48] sm:$0xff]
    %v7110 = vld [vmem:[#allocation5 + $0x50] sm:$0xff]
    %v7111 = vld [vmem:[#allocation5 + $0x58] sm:$0xff]
    %v7112 = vld [vmem:[#allocation5 + $0x60] sm:$0xff]
    %v7113 = vld [vmem:[#allocation5 + $0x68] sm:$0xff]
    %v7114 = vld [vmem:[#allocation5 + $0x70] sm:$0xff]
    %v7115 = vld [vmem:[#allocation5 + $0x78] sm:$0xff]
    %v7116 = vld [vmem:[#allocation5 + $0x80] sm:$0xff]
    %v7117 = vld [vmem:[#allocation5 + $0x88] sm:$0xff]
    %v7118 = vld [vmem:[#allocation5 + $0x90] sm:$0xff]
    %v7119 = vld [vmem:[#allocation5 + $0x98] sm:$0xff]
    %v7120 = vld [vmem:[#allocation5 + $0xa0] sm:$0xff]
    %v7121 = vld [vmem:[#allocation5 + $0xa8] sm:$0xff]
    %v7122 = vld [vmem:[#allocation5 + $0xb0] sm:$0xff]
    %v7123 = vld [vmem:[#allocation5 + $0xb8] sm:$0xff]
    %v7124 = vld [vmem:[#allocation5 + $0xc0] sm:$0xff]
    %v7125 = vld [vmem:[#allocation5 + $0xc8] sm:$0xff]
    %v7126 = vld [vmem:[#allocation5 + $0xd0] sm:$0xff]
    %v7127 = vld [vmem:[#allocation5 + $0xd8] sm:$0xff]
    %v7128 = vld [vmem:[#allocation5 + $0xe0] sm:$0xff]
    %v7129 = vld [vmem:[#allocation5 + $0xe8] sm:$0xff]
    %v7130 = vld [vmem:[#allocation5 + $0xf0] sm:$0xff]
    %v7131 = vld [vmem:[#allocation5 + $0xf8] sm:$0xff]
    %s7132 = scalar_lea.vmem [#allocation2], 56
    %v7133 = vld [vmem:[%s7132] sm:$0xff]
    %v7166 = vunpack.c.l.b16 %v7100
    %v7167 = vunpack.c.h.b16 %v7100
    %v7168 = vunpack.c.l.b16 %v7101
    %v7169 = vunpack.c.h.b16 %v7101
    %v7170 = vunpack.c.l.b16 %v7102
    %v7171 = vunpack.c.h.b16 %v7102
    %v7172 = vunpack.c.l.b16 %v7103
    %v7173 = vunpack.c.h.b16 %v7103
    %v7174 = vunpack.c.l.b16 %v7104
    %v7175 = vunpack.c.h.b16 %v7104
    %v7176 = vunpack.c.l.b16 %v7105
    %v7177 = vunpack.c.h.b16 %v7105
    %v7178 = vunpack.c.l.b16 %v7106
    %v7179 = vunpack.c.h.b16 %v7106
    %v7180 = vunpack.c.l.b16 %v7107
    %v7181 = vunpack.c.h.b16 %v7107
    %v7182 = vunpack.c.l.b16 %v7108
    %v7183 = vunpack.c.h.b16 %v7108
    %v7184 = vunpack.c.l.b16 %v7109
    %v7185 = vunpack.c.h.b16 %v7109
    %v7186 = vunpack.c.l.b16 %v7110
    %v7187 = vunpack.c.h.b16 %v7110
    %v7188 = vunpack.c.l.b16 %v7111
    %v7189 = vunpack.c.h.b16 %v7111
    %v7190 = vunpack.c.l.b16 %v7112
    %v7191 = vunpack.c.h.b16 %v7112
    %v7192 = vunpack.c.l.b16 %v7113
    %v7193 = vunpack.c.h.b16 %v7113
    %v7194 = vunpack.c.l.b16 %v7114
    %v7195 = vunpack.c.h.b16 %v7114
    %v7196 = vunpack.c.l.b16 %v7115
    %v7197 = vunpack.c.h.b16 %v7115
    %v7198 = vunpack.c.l.b16 %v7116
    %v7199 = vunpack.c.h.b16 %v7116
    %v7200 = vunpack.c.l.b16 %v7117
    %v7201 = vunpack.c.h.b16 %v7117
    %v7202 = vunpack.c.l.b16 %v7118
    %v7203 = vunpack.c.h.b16 %v7118
    %v7204 = vunpack.c.l.b16 %v7119
    %v7205 = vunpack.c.h.b16 %v7119
    %v7206 = vunpack.c.l.b16 %v7120
    %v7207 = vunpack.c.h.b16 %v7120
    %v7208 = vunpack.c.l.b16 %v7121
    %v7209 = vunpack.c.h.b16 %v7121
    %v7210 = vunpack.c.l.b16 %v7122
    %v7211 = vunpack.c.h.b16 %v7122
    %v7212 = vunpack.c.l.b16 %v7123
    %v7213 = vunpack.c.h.b16 %v7123
    %v7214 = vunpack.c.l.b16 %v7124
    %v7215 = vunpack.c.h.b16 %v7124
    %v7216 = vunpack.c.l.b16 %v7125
    %v7217 = vunpack.c.h.b16 %v7125
    %v7218 = vunpack.c.l.b16 %v7126
    %v7219 = vunpack.c.h.b16 %v7126
    %v7220 = vunpack.c.l.b16 %v7127
    %v7221 = vunpack.c.h.b16 %v7127
    %v7222 = vunpack.c.l.b16 %v7128
    %v7223 = vunpack.c.h.b16 %v7128
    %v7224 = vunpack.c.l.b16 %v7129
    %v7225 = vunpack.c.h.b16 %v7129
    %v7226 = vunpack.c.l.b16 %v7130
    %v7227 = vunpack.c.h.b16 %v7130
    %v7228 = vunpack.c.l.b16 %v7131
    %v7229 = vunpack.c.h.b16 %v7131
    %v7230 = vpack.c.b16 %v7170, %v7166
    %v7231 = vpack.c.b16 %v7171, %v7167
    %v7232 = vpack.c.b16 %v7172, %v7168
    %v7233 = vpack.c.b16 %v7173, %v7169
    %v7234 = vpack.c.b16 %v7178, %v7174
    %v7235 = vpack.c.b16 %v7179, %v7175
    %v7236 = vpack.c.b16 %v7180, %v7176
    %v7237 = vpack.c.b16 %v7181, %v7177
    %v7238 = vpack.c.b16 %v7186, %v7182
    %v7239 = vpack.c.b16 %v7187, %v7183
    %v7240 = vpack.c.b16 %v7188, %v7184
    %v7241 = vpack.c.b16 %v7189, %v7185
    %v7242 = vpack.c.b16 %v7194, %v7190
    %v7243 = vpack.c.b16 %v7195, %v7191
    %v7244 = vpack.c.b16 %v7196, %v7192
    %v7245 = vpack.c.b16 %v7197, %v7193
    %v7246 = vpack.c.b16 %v7202, %v7198
    %v7247 = vpack.c.b16 %v7203, %v7199
    %v7248 = vpack.c.b16 %v7204, %v7200
    %v7249 = vpack.c.b16 %v7205, %v7201
    %v7250 = vpack.c.b16 %v7210, %v7206
    %v7251 = vpack.c.b16 %v7211, %v7207
    %v7252 = vpack.c.b16 %v7212, %v7208
    %v7253 = vpack.c.b16 %v7213, %v7209
    %v7254 = vpack.c.b16 %v7218, %v7214
    %v7255 = vpack.c.b16 %v7219, %v7215
    %v7256 = vpack.c.b16 %v7220, %v7216
    %v7257 = vpack.c.b16 %v7221, %v7217
    %v7258 = vpack.c.b16 %v7226, %v7222
    %v7259 = vpack.c.b16 %v7227, %v7223
    %v7260 = vpack.c.b16 %v7228, %v7224
    %v7261 = vpack.c.b16 %v7229, %v7225
    %v7295 = vcombine.high %v7133, %v7133
    %v7297 = vunpack.c.l.s4 1983009808
    %v7298 = vunpack.c.0.s8 %v7297
    %v7299 = vlaneseq
    %v7300 = vshrl.u32 %v7299, 7
    %v7301 = vsub.s32 %v7298, %v7300
    %v7302 = vrot.slane %v7133, %v7301
    %v7304 = vunpack.c.l.s4 1983009808
    %v7305 = vunpack.c.0.s8 %v7304
    %v7306 = vlaneseq
    %v7307 = vshrl.u32 %v7306, 7
    %v7308 = vsub.s32 %v7305, %v7307
    %v7309 = vrot.slane %v7295, %v7308
    %v7310 = vcombine.high %v7302, %v7302
    %v7311 = vcombine.high %v7309, %v7309
    %7316 = vmatprep.subr.bf16.mxu0 %v7231
    %7317 = vmatpush1.bf16.msra.mxu0 %v7230
    %7318 = vmatprep.subr.bf16.mxu0 %v7235
    %7319 = vmatpush1.bf16.msra.mxu0 %v7234
    %7320 = vmatprep.subr.bf16.mxu0 %v7239
    %7321 = vmatpush1.bf16.msra.mxu0 %v7238
    %7322 = vmatprep.subr.bf16.mxu0 %v7243
    %7323 = vmatpush1.bf16.msra.mxu0 %v7242
    %7324 = vmatprep.subr.bf16.mxu0 %v7247
    %7325 = vmatpush1.bf16.msra.mxu0 %v7246
    %7326 = vmatprep.subr.bf16.mxu0 %v7251
    %7327 = vmatpush1.bf16.msra.mxu0 %v7250
    %7328 = vmatprep.subr.bf16.mxu0 %v7255
    %7329 = vmatpush1.bf16.msra.mxu0 %v7254
    %7330 = vmatprep.subr.bf16.mxu0 %v7259
    %7331 = vmatpush1.bf16.msra.mxu0 %v7258
    %7332 = vmatprep.subr.bf16.mxu0 0
    %7333 = vmatpush1.bf16.msra.mxu0 0
    %7334 = vmatprep.subr.bf16.mxu0 0
    %7335 = vmatpush1.bf16.msra.mxu0 0
    %7336 = vmatprep.subr.bf16.mxu0 0
    %7337 = vmatpush1.bf16.msra.mxu0 0
    %7338 = vmatprep.subr.bf16.mxu0 0
    %7339 = vmatpush1.bf16.msra.mxu0 0
    %7340 = vmatprep.subr.bf16.mxu0 0
    %7341 = vmatpush1.bf16.msra.mxu0 0
    %7342 = vmatprep.subr.bf16.mxu0 0
    %7343 = vmatpush1.bf16.msra.mxu0 0
    %7344 = vmatprep.subr.bf16.mxu0 0
    %7345 = vmatpush1.bf16.msra.mxu0 0
    %7346 = vmatprep.subr.bf16.mxu0 0
    %7347 = vmatpush1.bf16.msra.mxu0 0
    %7348 = vmatprep.mubr.bf16.mxu0 0
    %7349 = vmatmul.mubr.bf16.gmra.mrb[0].mxu0 %v6504
    %v7350 = vpop.f32.mrb[0].mxu0
    %v7351 = vadd.f32 %v7302, %v7350
    %v7352 = vpop.f32.mrb[0].mxu0
    %v7353 = vadd.f32 %v7310, %v7352
    %v7354 = vpop.f32.mrb[0].mxu0
    %v7355 = vpop.f32.mrb[0].mxu0
    %7356 = vdwg.mxu0
    %7357 = vmatprep.subr.bf16.mxu0 %v7233
    %7358 = vmatpush1.bf16.msra.mxu0 %v7232
    %7359 = vmatprep.subr.bf16.mxu0 %v7237
    %7360 = vmatpush1.bf16.msra.mxu0 %v7236
    %7361 = vmatprep.subr.bf16.mxu0 %v7241
    %7362 = vmatpush1.bf16.msra.mxu0 %v7240
    %7363 = vmatprep.subr.bf16.mxu0 %v7245
    %7364 = vmatpush1.bf16.msra.mxu0 %v7244
    %7365 = vmatprep.subr.bf16.mxu0 %v7249
    %7366 = vmatpush1.bf16.msra.mxu0 %v7248
    %7367 = vmatprep.subr.bf16.mxu0 %v7253
    %7368 = vmatpush1.bf16.msra.mxu0 %v7252
    %7369 = vmatprep.subr.bf16.mxu0 %v7257
    %7370 = vmatpush1.bf16.msra.mxu0 %v7256
    %7371 = vmatprep.subr.bf16.mxu0 %v7261
    %7372 = vmatpush1.bf16.msra.mxu0 %v7260
    %7373 = vmatprep.subr.bf16.mxu0 0
    %7374 = vmatpush1.bf16.msra.mxu0 0
    %7375 = vmatprep.subr.bf16.mxu0 0
    %7376 = vmatpush1.bf16.msra.mxu0 0
    %7377 = vmatprep.subr.bf16.mxu0 0
    %7378 = vmatpush1.bf16.msra.mxu0 0
    %7379 = vmatprep.subr.bf16.mxu0 0
    %7380 = vmatpush1.bf16.msra.mxu0 0
    %7381 = vmatprep.subr.bf16.mxu0 0
    %7382 = vmatpush1.bf16.msra.mxu0 0
    %7383 = vmatprep.subr.bf16.mxu0 0
    %7384 = vmatpush1.bf16.msra.mxu0 0
    %7385 = vmatprep.subr.bf16.mxu0 0
    %7386 = vmatpush1.bf16.msra.mxu0 0
    %7387 = vmatprep.subr.bf16.mxu0 0
    %7388 = vmatpush1.bf16.msra.mxu0 0
    %7389 = vmatprep.mubr.bf16.mxu0 0
    %7390 = vmatmul.mubr.bf16.gmra.mrb[0].mxu0 %v6504
    %v7391 = vpop.f32.mrb[0].mxu0
    %v7392 = vadd.f32 %v7309, %v7391
    %v7393 = vpop.f32.mrb[0].mxu0
    %v7394 = vadd.f32 %v7311, %v7393
    %v7395 = vpop.f32.mrb[0].mxu0
    %v7396 = vpop.f32.mrb[0].mxu0
    %7397 = vdwg.mxu0
    %v7398 = vmul.f32 %v7351, 0.5
    %v7399 = vtanh.pop %v7398
    %v7400 = vadd.f32 %v7399, 1.0
    %v7401 = vmul.f32 %v7400, 0.5
    %v7402 = vmul.f32 %v7353, 0.5
    %v7403 = vtanh.pop %v7402
    %v7404 = vadd.f32 %v7403, 1.0
    %v7405 = vmul.f32 %v7404, 0.5
    %v7406 = vtanh.pop %v7392
    %v7407 = vmul.f32 %v7394, 0.5
    %v7408 = vtanh.pop %v7407
    %v7409 = vadd.f32 %v7408, 1.0
    %v7410 = vmul.f32 %v7409, 0.5
    %v7411 = vmul.f32 %v7405, %v6501
    %v7412 = vmul.f32 %v7401, %v7406
    %v7413 = vadd.f32 %v7411, %v7412
    %v7414 = vtanh.pop %v7413
    %v7415 = vmul.f32 %v7410, %v7414
    %v7416 = vpack.c.bf16 %v7415, %v7415
    %v7417 = vld [vmem:[#allocation8] sm:$0xff]
    %v7418 = vld [vmem:[#allocation8 + $0x8] sm:$0xff]
    %v7419 = vld [vmem:[#allocation8 + $0x10] sm:$0xff]
    %v7420 = vld [vmem:[#allocation8 + $0x18] sm:$0xff]
    %v7421 = vld [vmem:[#allocation8 + $0x20] sm:$0xff]
    %v7422 = vld [vmem:[#allocation8 + $0x28] sm:$0xff]
    %v7423 = vld [vmem:[#allocation8 + $0x30] sm:$0xff]
    %v7424 = vld [vmem:[#allocation8 + $0x38] sm:$0xff]
    %v7425 = vld [vmem:[#allocation8 + $0x40] sm:$0xff]
    %v7426 = vld [vmem:[#allocation8 + $0x48] sm:$0xff]
    %v7427 = vld [vmem:[#allocation8 + $0x50] sm:$0xff]
    %v7428 = vld [vmem:[#allocation8 + $0x58] sm:$0xff]
    %v7429 = vld [vmem:[#allocation8 + $0x60] sm:$0xff]
    %v7430 = vld [vmem:[#allocation8 + $0x68] sm:$0xff]
    %v7431 = vld [vmem:[#allocation8 + $0x70] sm:$0xff]
    %v7432 = vld [vmem:[#allocation8 + $0x78] sm:$0xff]
    %v7433 = vld [vmem:[#allocation8 + $0x80] sm:$0xff]
    %v7434 = vld [vmem:[#allocation8 + $0x88] sm:$0xff]
    %v7435 = vld [vmem:[#allocation8 + $0x90] sm:$0xff]
    %v7436 = vld [vmem:[#allocation8 + $0x98] sm:$0xff]
    %v7437 = vld [vmem:[#allocation8 + $0xa0] sm:$0xff]
    %v7438 = vld [vmem:[#allocation8 + $0xa8] sm:$0xff]
    %v7439 = vld [vmem:[#allocation8 + $0xb0] sm:$0xff]
    %v7440 = vld [vmem:[#allocation8 + $0xb8] sm:$0xff]
    %v7441 = vld [vmem:[#allocation8 + $0xc0] sm:$0xff]
    %v7442 = vld [vmem:[#allocation8 + $0xc8] sm:$0xff]
    %v7443 = vld [vmem:[#allocation8 + $0xd0] sm:$0xff]
    %v7444 = vld [vmem:[#allocation8 + $0xd8] sm:$0xff]
    %v7445 = vld [vmem:[#allocation8 + $0xe0] sm:$0xff]
    %v7446 = vld [vmem:[#allocation8 + $0xe8] sm:$0xff]
    %v7447 = vld [vmem:[#allocation8 + $0xf0] sm:$0xff]
    %v7448 = vld [vmem:[#allocation8 + $0xf8] sm:$0xff]
    %v7481 = vunpack.c.l.b16 %v7417
    %v7482 = vunpack.c.h.b16 %v7417
    %v7483 = vunpack.c.l.b16 %v7418
    %v7484 = vunpack.c.h.b16 %v7418
    %v7485 = vunpack.c.l.b16 %v7419
    %v7486 = vunpack.c.h.b16 %v7419
    %v7487 = vunpack.c.l.b16 %v7420
    %v7488 = vunpack.c.h.b16 %v7420
    %v7489 = vunpack.c.l.b16 %v7421
    %v7490 = vunpack.c.h.b16 %v7421
    %v7491 = vunpack.c.l.b16 %v7422
    %v7492 = vunpack.c.h.b16 %v7422
    %v7493 = vunpack.c.l.b16 %v7423
    %v7494 = vunpack.c.h.b16 %v7423
    %v7495 = vunpack.c.l.b16 %v7424
    %v7496 = vunpack.c.h.b16 %v7424
    %v7497 = vunpack.c.l.b16 %v7425
    %v7498 = vunpack.c.h.b16 %v7425
    %v7499 = vunpack.c.l.b16 %v7426
    %v7500 = vunpack.c.h.b16 %v7426
    %v7501 = vunpack.c.l.b16 %v7427
    %v7502 = vunpack.c.h.b16 %v7427
    %v7503 = vunpack.c.l.b16 %v7428
    %v7504 = vunpack.c.h.b16 %v7428
    %v7505 = vunpack.c.l.b16 %v7429
    %v7506 = vunpack.c.h.b16 %v7429
    %v7507 = vunpack.c.l.b16 %v7430
    %v7508 = vunpack.c.h.b16 %v7430
    %v7509 = vunpack.c.l.b16 %v7431
    %v7510 = vunpack.c.h.b16 %v7431
    %v7511 = vunpack.c.l.b16 %v7432
    %v7512 = vunpack.c.h.b16 %v7432
    %v7513 = vunpack.c.l.b16 %v7433
    %v7514 = vunpack.c.h.b16 %v7433
    %v7515 = vunpack.c.l.b16 %v7434
    %v7516 = vunpack.c.h.b16 %v7434
    %v7517 = vunpack.c.l.b16 %v7435
    %v7518 = vunpack.c.h.b16 %v7435
    %v7519 = vunpack.c.l.b16 %v7436
    %v7520 = vunpack.c.h.b16 %v7436
    %v7521 = vunpack.c.l.b16 %v7437
    %v7522 = vunpack.c.h.b16 %v7437
    %v7523 = vunpack.c.l.b16 %v7438
    %v7524 = vunpack.c.h.b16 %v7438
    %v7525 = vunpack.c.l.b16 %v7439
    %v7526 = vunpack.c.h.b16 %v7439
    %v7527 = vunpack.c.l.b16 %v7440
    %v7528 = vunpack.c.h.b16 %v7440
    %v7529 = vunpack.c.l.b16 %v7441
    %v7530 = vunpack.c.h.b16 %v7441
    %v7531 = vunpack.c.l.b16 %v7442
    %v7532 = vunpack.c.h.b16 %v7442
    %v7533 = vunpack.c.l.b16 %v7443
    %v7534 = vunpack.c.h.b16 %v7443
    %v7535 = vunpack.c.l.b16 %v7444
    %v7536 = vunpack.c.h.b16 %v7444
    %v7537 = vunpack.c.l.b16 %v7445
    %v7538 = vunpack.c.h.b16 %v7445
    %v7539 = vunpack.c.l.b16 %v7446
    %v7540 = vunpack.c.h.b16 %v7446
    %v7541 = vunpack.c.l.b16 %v7447
    %v7542 = vunpack.c.h.b16 %v7447
    %v7543 = vunpack.c.l.b16 %v7448
    %v7544 = vunpack.c.h.b16 %v7448
    %v7545 = vpack.c.b16 %v7485, %v7481
    %v7546 = vpack.c.b16 %v7486, %v7482
    %v7547 = vpack.c.b16 %v7487, %v7483
    %v7548 = vpack.c.b16 %v7488, %v7484
    %v7549 = vpack.c.b16 %v7493, %v7489
    %v7550 = vpack.c.b16 %v7494, %v7490
    %v7551 = vpack.c.b16 %v7495, %v7491
    %v7552 = vpack.c.b16 %v7496, %v7492
    %v7553 = vpack.c.b16 %v7501, %v7497
    %v7554 = vpack.c.b16 %v7502, %v7498
    %v7555 = vpack.c.b16 %v7503, %v7499
    %v7556 = vpack.c.b16 %v7504, %v7500
    %v7557 = vpack.c.b16 %v7509, %v7505
    %v7558 = vpack.c.b16 %v7510, %v7506
    %v7559 = vpack.c.b16 %v7511, %v7507
    %v7560 = vpack.c.b16 %v7512, %v7508
    %v7561 = vpack.c.b16 %v7517, %v7513
    %v7562 = vpack.c.b16 %v7518, %v7514
    %v7563 = vpack.c.b16 %v7519, %v7515
    %v7564 = vpack.c.b16 %v7520, %v7516
    %v7565 = vpack.c.b16 %v7525, %v7521
    %v7566 = vpack.c.b16 %v7526, %v7522
    %v7567 = vpack.c.b16 %v7527, %v7523
    %v7568 = vpack.c.b16 %v7528, %v7524
    %v7569 = vpack.c.b16 %v7533, %v7529
    %v7570 = vpack.c.b16 %v7534, %v7530
    %v7571 = vpack.c.b16 %v7535, %v7531
    %v7572 = vpack.c.b16 %v7536, %v7532
    %v7573 = vpack.c.b16 %v7541, %v7537
    %v7574 = vpack.c.b16 %v7542, %v7538
    %v7575 = vpack.c.b16 %v7543, %v7539
    %v7576 = vpack.c.b16 %v7544, %v7540
    %7609 = vmatprep.subr.bf16.mxu0 %v7546
    %7610 = vmatpush1.bf16.msra.mxu0 %v7545
    %7611 = vmatprep.subr.bf16.mxu0 %v7550
    %7612 = vmatpush1.bf16.msra.mxu0 %v7549
    %7613 = vmatprep.subr.bf16.mxu0 %v7554
    %7614 = vmatpush1.bf16.msra.mxu0 %v7553
    %7615 = vmatprep.subr.bf16.mxu0 %v7558
    %7616 = vmatpush1.bf16.msra.mxu0 %v7557
    %7617 = vmatprep.subr.bf16.mxu0 %v7562
    %7618 = vmatpush1.bf16.msra.mxu0 %v7561
    %7619 = vmatprep.subr.bf16.mxu0 %v7566
    %7620 = vmatpush1.bf16.msra.mxu0 %v7565
    %7621 = vmatprep.subr.bf16.mxu0 %v7570
    %7622 = vmatpush1.bf16.msra.mxu0 %v7569
    %7623 = vmatprep.subr.bf16.mxu0 %v7574
    %7624 = vmatpush1.bf16.msra.mxu0 %v7573
    %7625 = vmatprep.subr.bf16.mxu0 0
    %7626 = vmatpush1.bf16.msra.mxu0 0
    %7627 = vmatprep.subr.bf16.mxu0 0
    %7628 = vmatpush1.bf16.msra.mxu0 0
    %7629 = vmatprep.subr.bf16.mxu0 0
    %7630 = vmatpush1.bf16.msra.mxu0 0
    %7631 = vmatprep.subr.bf16.mxu0 0
    %7632 = vmatpush1.bf16.msra.mxu0 0
    %7633 = vmatprep.subr.bf16.mxu0 0
    %7634 = vmatpush1.bf16.msra.mxu0 0
    %7635 = vmatprep.subr.bf16.mxu0 0
    %7636 = vmatpush1.bf16.msra.mxu0 0
    %7637 = vmatprep.subr.bf16.mxu0 0
    %7638 = vmatpush1.bf16.msra.mxu0 0
    %7639 = vmatprep.subr.bf16.mxu0 0
    %7640 = vmatpush1.bf16.msra.mxu0 0
    %7641 = vmatprep.mubr.bf16.mxu0 0
    %7642 = vmatmul.mubr.bf16.gmra.mrb[0].mxu0 %v7416
    %v7643 = vpop.f32.mrb[0].mxu0
    %v7644 = vadd.f32 0.0, %v7643
    %v7645 = vpop.f32.mrb[0].mxu0
    %v7646 = vadd.f32 0.0, %v7645
    %v7647 = vpop.f32.mrb[0].mxu0
    %v7648 = vpop.f32.mrb[0].mxu0
    %7649 = vdwg.mxu0
    %7650 = vmatprep.subr.bf16.mxu0 %v7548
    %7651 = vmatpush1.bf16.msra.mxu0 %v7547
    %7652 = vmatprep.subr.bf16.mxu0 %v7552
    %7653 = vmatpush1.bf16.msra.mxu0 %v7551
    %7654 = vmatprep.subr.bf16.mxu0 %v7556
    %7655 = vmatpush1.bf16.msra.mxu0 %v7555
    %7656 = vmatprep.subr.bf16.mxu0 %v7560
    %7657 = vmatpush1.bf16.msra.mxu0 %v7559
    %7658 = vmatprep.subr.bf16.mxu0 %v7564
    %7659 = vmatpush1.bf16.msra.mxu0 %v7563
    %7660 = vmatprep.subr.bf16.mxu0 %v7568
    %7661 = vmatpush1.bf16.msra.mxu0 %v7567
    %7662 = vmatprep.subr.bf16.mxu0 %v7572
    %7663 = vmatpush1.bf16.msra.mxu0 %v7571
    %7664 = vmatprep.subr.bf16.mxu0 %v7576
    %7665 = vmatpush1.bf16.msra.mxu0 %v7575
    %7666 = vmatprep.subr.bf16.mxu0 0
    %7667 = vmatpush1.bf16.msra.mxu0 0
    %7668 = vmatprep.subr.bf16.mxu0 0
    %7669 = vmatpush1.bf16.msra.mxu0 0
    %7670 = vmatprep.subr.bf16.mxu0 0
    %7671 = vmatpush1.bf16.msra.mxu0 0
    %7672 = vmatprep.subr.bf16.mxu0 0
    %7673 = vmatpush1.bf16.msra.mxu0 0
    %7674 = vmatprep.subr.bf16.mxu0 0
    %7675 = vmatpush1.bf16.msra.mxu0 0
    %7676 = vmatprep.subr.bf16.mxu0 0
    %7677 = vmatpush1.bf16.msra.mxu0 0
    %7678 = vmatprep.subr.bf16.mxu0 0
    %7679 = vmatpush1.bf16.msra.mxu0 0
    %7680 = vmatprep.subr.bf16.mxu0 0
    %7681 = vmatpush1.bf16.msra.mxu0 0
    %7682 = vmatprep.mubr.bf16.mxu0 0
    %7683 = vmatmul.mubr.bf16.gmra.mrb[0].mxu0 %v7416
    %v7684 = vpop.f32.mrb[0].mxu0
    %v7685 = vadd.f32 0.0, %v7684
    %v7686 = vpop.f32.mrb[0].mxu0
    %v7687 = vadd.f32 0.0, %v7686
    %v7688 = vpop.f32.mrb[0].mxu0
    %v7689 = vpop.f32.mrb[0].mxu0
    %7690 = vdwg.mxu0
    %v7691 = vadd.f32 %v7053, %v7644
    %v7692 = vadd.f32 %v7055, %v7646
    %v7693 = vadd.f32 %v7094, %v7685
    %v7694 = vadd.f32 %v7096, %v7687
    %v7695 = vmul.f32 %v7691, 0.5
    %v7696 = vtanh.pop %v7695
    %v7697 = vadd.f32 %v7696, 1.0
    %v7698 = vmul.f32 %v7697, 0.5
    %v7699 = vmul.f32 %v7692, 0.5
    %v7700 = vtanh.pop %v7699
    %v7701 = vadd.f32 %v7700, 1.0
    %v7702 = vmul.f32 %v7701, 0.5
    %v7703 = vtanh.pop %v7693
    %v7704 = vmul.f32 %v7694, 0.5
    %v7705 = vtanh.pop %v7704
    %v7706 = vadd.f32 %v7705, 1.0
    %v7707 = vmul.f32 %v7706, 0.5
    %v7708 = vmul.f32 %v7702, %v6798
    %v7709 = vmul.f32 %v7698, %v7703
    %v7710 = vadd.f32 %v7708, %v7709
    %v7711 = vtanh.pop %v7710
    %v7712 = vmul.f32 %v7707, %v7711
    %s7713 = scalar_lea.vmem [#allocation3], 14
    %7714 = vst [vmem:[%s7713] sm:$0x3] %v7712
    %v7715 = vld [vmem:[#allocation3] sm:$0x3]
    %v7716 = vld [vmem:[#allocation3 + $0x2] sm:$0x3]
    %v7717 = vld [vmem:[#allocation3 + $0x4] sm:$0x3]
    %v7718 = vld [vmem:[#allocation3 + $0x6] sm:$0x3]
    %v7719 = vld [vmem:[#allocation3 + $0x8] sm:$0x3]
    %v7720 = vld [vmem:[#allocation3 + $0xa] sm:$0x3]
    %v7721 = vld [vmem:[#allocation3 + $0xc] sm:$0x3]
    %v7722 = vld [vmem:[#allocation3 + $0xe] sm:$0x3]
    %v7723 = vld [vmem:[%s8] sm:$0x1]
    %v7725 = vlaneseq
    %v7726 = vshrl.u32 %v7725, 7
    %v7727 = vsub.s32 0, %v7726
    %v7728 = vrot.slane %v7723, %v7727
    %v7730 = vmul.f32 %v7715, %v7728
    %v7731 = vmul.f32 %v7716, %v7728
    %v7732 = vmul.f32 %v7717, %v7728
    %v7733 = vmul.f32 %v7718, %v7728
    %v7734 = vmul.f32 %v7719, %v7728
    %v7735 = vmul.f32 %v7720, %v7728
    %v7736 = vmul.f32 %v7721, %v7728
    %v7737 = vmul.f32 %v7722, %v7728
    %vm7738 = vcmask 1041408
    %v7739 = vsel %vm7738, %v7730, 0.0
    %7740 = vadd.xlane.f32.xlu0 %v7739
    %v7741 = vpop.xlane.xlu0 %7740
    %v7742 = vsel %vm7738, %v7731, 0.0
    %7743 = vadd.xlane.f32.xlu0 %v7742
    %v7744 = vpop.xlane.xlu0 %7743
    %v7745 = vsel %vm7738, %v7732, 0.0
    %7746 = vadd.xlane.f32.xlu0 %v7745
    %v7747 = vpop.xlane.xlu0 %7746
    %v7748 = vsel %vm7738, %v7733, 0.0
    %7749 = vadd.xlane.f32.xlu0 %v7748
    %v7750 = vpop.xlane.xlu0 %7749
    %v7751 = vsel %vm7738, %v7734, 0.0
    %7752 = vadd.xlane.f32.xlu0 %v7751
    %v7753 = vpop.xlane.xlu0 %7752
    %v7754 = vsel %vm7738, %v7735, 0.0
    %7755 = vadd.xlane.f32.xlu0 %v7754
    %v7756 = vpop.xlane.xlu0 %7755
    %v7757 = vsel %vm7738, %v7736, 0.0
    %7758 = vadd.xlane.f32.xlu0 %v7757
    %v7759 = vpop.xlane.xlu0 %7758
    %v7760 = vsel %vm7738, %v7737, 0.0
    %7761 = vadd.xlane.f32.xlu0 %v7760
    %v7762 = vpop.xlane.xlu0 %7761
    %v7763 = vld [vmem:[#allocation4] sm:$0x1]
    %v7765 = vlaneseq
    %v7766 = vshrl.u32 %v7765, 7
    %v7767 = vsub.s32 0, %v7766
    %v7768 = vrot.slane %v7763, %v7767
    %7769 = vset.pattern.permute.xlu0 0
    %7770 = vperm.xlu0 %7769, %v7768
    %v7771 = vpop.permute.xlu0 %7770
    %v7773 = vadd.f32 %v7741, %v7771
    %v7774 = vadd.f32 %v7744, %v7771
    %v7775 = vadd.f32 %v7747, %v7771
    %v7776 = vadd.f32 %v7750, %v7771
    %v7777 = vadd.f32 %v7753, %v7771
    %v7778 = vadd.f32 %v7756, %v7771
    %v7779 = vadd.f32 %v7759, %v7771
    %v7780 = vadd.f32 %v7762, %v7771
    %v7789 = vlaneseq
    %v7790 = vand.u32 %v7789, 127
    %v7791 = vlaneseq
    %v7792 = vshrl.u32 %v7791, 7
    %v7793 = vsub.s32 %v7790, %v7792
    %v7794 = vrot.slane %v7773, %v7793
    %v7795 = vlaneseq
    %v7796 = vshrl.u32 %v7795, 7
    %v7797 = vsub.s32 %v7790, %v7796
    %v7798 = vrot.slane %v7774, %v7797
    %v7799 = vlaneseq
    %v7800 = vshrl.u32 %v7799, 7
    %v7801 = vsub.s32 %v7790, %v7800
    %v7802 = vrot.slane %v7775, %v7801
    %v7803 = vlaneseq
    %v7804 = vshrl.u32 %v7803, 7
    %v7805 = vsub.s32 %v7790, %v7804
    %v7806 = vrot.slane %v7776, %v7805
    %v7807 = vlaneseq
    %v7808 = vshrl.u32 %v7807, 7
    %v7809 = vsub.s32 %v7790, %v7808
    %v7810 = vrot.slane %v7777, %v7809
    %v7811 = vlaneseq
    %v7812 = vshrl.u32 %v7811, 7
    %v7813 = vsub.s32 %v7790, %v7812
    %v7814 = vrot.slane %v7778, %v7813
    %v7815 = vlaneseq
    %v7816 = vshrl.u32 %v7815, 7
    %v7817 = vsub.s32 %v7790, %v7816
    %v7818 = vrot.slane %v7779, %v7817
    %v7819 = vlaneseq
    %v7820 = vshrl.u32 %v7819, 7
    %v7821 = vsub.s32 %v7790, %v7820
    %v7822 = vrot.slane %v7780, %v7821
    %vm7823 = vcmask 1041409
    %v7824 = vsel %vm7823, %v7798, %v7794
    %vm7825 = vcmask 1042434
    %v7826 = vsel %vm7825, %v7802, %v7824
    %vm7827 = vcmask 1043459
    %v7828 = vsel %vm7827, %v7806, %v7826
    %vm7829 = vcmask 1044484
    %v7830 = vsel %vm7829, %v7810, %v7828
    %vm7831 = vcmask 1045509
    %v7832 = vsel %vm7831, %v7814, %v7830
    %vm7833 = vcmask 1046534
    %v7834 = vsel %vm7833, %v7818, %v7832
    %vm7835 = vcmask 1047559
    %v7836 = vsel %vm7835, %v7822, %v7834
    %vm7838 = vcmask 15360
    %7839 = vst.msk [vmem:[%s10] sm:$0xff] %vm7838, %v7836
    %v7840 = vld [vmem:[%s1] sm:$0xff]
    %v7841 = vsub.f32 %v7840, %v7836
    %v7842 = vmul.f32 %v7841, %v7841
    %v7843 = vsel %vm7838, %v7842, 0.0
    %7844 = vadd.xlane.f32.xlu0 %v7843
    %v7845 = vpop.xlane.xlu0 %7844
    %v7846 = vrot.slane %v7845, 4
    %v7847 = vadd.f32 %v7845, %v7846
    %v7848 = vrot.slane %v7847, 2
    %v7849 = vadd.f32 %v7847, %v7848
    %v7850 = vrot.slane %v7849, 1
    %v7851 = vadd.f32 %v7849, %v7850
    %s7852 = vtos %v7851
    %s7853 = smul.f32 %s7852, 0.0625
    %v7854 = vstv %s7853
    %vm7855 = vcmask 0
    %7856 = vst.msk [vmem:[#allocation11] sm:$0x1] %vm7855, %v7854
    // Predicated region
    $region54: #{network_forward.1} parent=1 // pred_check
      _
    $region55: #{network_forward.1} parent=1 // pred_check_branch
      %7858 = sbr.rel (0) target = $region57
    $region56: #{network_forward.1} parent=1 // pred_region
      _
    $region57: #{network_forward.1} parent=1 // pred_fallthru
      _
    // Predicated region
    $region58: #{network_forward.1} parent=1 // pred_check
      _
    $region59: #{network_forward.1} parent=1 // pred_check_branch
      %7860 = sbr.rel (0) target = $region61
    $region60: #{network_forward.1} parent=1 // pred_region
      %s7862 = ssub.s32 16, 16
      %7863 = vsyncadd [#allocation7], %s7862
      %s7865 = sshll.u32 [#allocation11], 4
      %s7866 = int_to_ptr.vmem [resolvable:$true] %s7865
      %7868 = dma.vmem_to_hbm [thread:$0]  %s7866, 16, %s11, [#allocation7]
    $region61: #{network_forward.1} parent=1 // pred_fallthru
      _
    // Predicated region
    $region62: #{network_forward.1} parent=1 // pred_check
      _
    $region63: #{network_forward.1} parent=1 // pred_check_branch
      %7870 = sbr.rel (0) target = $region65
    $region64: #{network_forward.1} parent=1 // pred_region
      _
    $region65: #{network_forward.1} parent=1 // pred_fallthru
      _
    // Predicated region
    $region66: #{network_forward.1} parent=1 // pred_check
      _
    $region67: #{network_forward.1} parent=1 // pred_check_branch
      %7872 = sbr.rel (0) target = $region69
    $region68: #{network_forward.1} parent=1 // pred_region
      %7873 = dma.done [#allocation7], 16
    $region69: #{network_forward.1} parent=1 // pred_fallthru
      _
    %7874 = vsyncpa [#allocation6], 1
    %7875 = vsyncpa [#allocation9], 1
    %7876 = vsyncpa [#allocation7], 1

</llo_original>
